<compile_context>
chip_gen: v5e
topology: v5e:2x2
jax: 0.10.0
libtpu: 0.0.40
codegen_flags: <defaults>
</compile_context>

<pallas_src>
import math

import numpy as np
import jax
import jax.numpy as jnp
from jax.experimental import pallas as pl
from jax.experimental.pallas import tpu as pltpu

BN_EPS = 1e-5


# ----------------------------- fused kernel ----------------------------------

def make_fused_kernel(B, L):
    L1, L2, L3, L4 = L, L // 2, L // 4, L // 8

    def bn_relu(h):
        # Train-mode BatchNorm1d (weight=1, bias=0) + ReLU on a (N, C) slab;
        # per-channel stats over all N = B*Lcur rows; var clamped at 0.
        n = h.shape[0]
        s1 = jnp.sum(h, axis=0, keepdims=True)
        s2 = jnp.sum(h * h, axis=0, keepdims=True)
        mean = s1 * (1.0 / n)
        var = jnp.maximum(s2 * (1.0 / n) - mean * mean, 0.0)
        inv = jax.lax.rsqrt(var + BN_EPS)
        return jnp.maximum((h - mean) * inv, 0.0)

    def edge_masks(n_rows, l_cur):
        # (N,1) bool masks for the first / last row of every batch segment,
        # via one modulo compare (no B-unrolled logical_ors).
        row = jax.lax.broadcasted_iota(jnp.int32, (n_rows, 1), 0)
        r = row % l_cur
        return r == 0, r == (l_cur - 1)

    def conv_k3(h, wcat_ref, is_first, is_last):
        # conv1d(k=3, padding=1, no bias) on a (N, Cin) slab.
        # wcat_ref = [W0 | W1 | W2] : (Cin, 3*Cout) bf16 (built in the wrapper).
        # out[l] = x[l-1]@W0 + x[l]@W1 + x[l+1]@W2 ; shifting the per-tap
        # products is equivalent to shifting the inputs (matmul is row-wise),
        # so no (N, 3*Cin) im2col slab is ever materialized.
        y = jnp.dot(h.astype(jnp.bfloat16), wcat_ref[...],
                    preferred_element_type=jnp.float32)          # (N, 3*Cout)
        cout = y.shape[1] // 3
        y0 = y[:, :cout]
        y1 = y[:, cout:2 * cout]
        y2 = y[:, 2 * cout:]
        zero = jnp.zeros((1, cout), jnp.float32)
        prev = jnp.where(is_first, 0.0,
                         jnp.concatenate([zero, y0[:-1, :]], axis=0))  # y0[l-1]
        nxt = jnp.where(is_last, 0.0,
                        jnp.concatenate([y2[1:, :], zero], axis=0))    # y2[l+1]
        return prev + y1 + nxt

    def maxpool2(h, sel_ref):
        # max_pool1d(k=2, s=2): sel_ref is the (N, N) bf16 0/1 de-interleave
        # permutation (even source rows first, then odd).  0/1 selection of
        # bf16 values with f32 accumulation is exact; pairs never cross a
        # batch boundary since every Lcur is even.
        y = jnp.dot(sel_ref[...], h.astype(jnp.bfloat16),
                    preferred_element_type=jnp.float32)          # (N, C)
        m = y.shape[0] // 2
        return jnp.maximum(y[:m, :], y[m:, :])                   # (N//2, C)

    def kernel(x_ref, sel1_ref, sel2_ref, sel3_ref,
               w1a_ref, w1b_ref, w2a_ref, w2b_ref, w3a_ref, w3b_ref,
               wt_ref, bt_ref, wf_top_ref, wf_bot_ref, bf_ref,
               pred_ref, inter_ref, trans_ref):
        f32 = jnp.float32

        # ------------------------------ block 1 ------------------------------
        # conv1 has Cin=1: three VPU broadcast-FMAs on the merged (N,3) taps.
        t = x_ref[...]                                           # (B*L, 3) f32
        w1a = w1a_ref[...]                                       # (3, 64)  f32
        h = (t[:, 0:1] * w1a[0:1, :]
             + t[:, 1:2] * w1a[1:2, :]
             + t[:, 2:3] * w1a[2:3, :])                          # (B*L, 64)
        h = bn_relu(h)
        first1, last1 = edge_masks(B * L1, L1)
        h = bn_relu(conv_k3(h, w1b_ref, first1, last1))
        h = maxpool2(h, sel1_ref)                                # (B*L/2, 64)

        # ------------------------------ block 2 ------------------------------
        first2, last2 = edge_masks(B * L2, L2)
        h = bn_relu(conv_k3(h, w2a_ref, first2, last2))
        h = bn_relu(conv_k3(h, w2b_ref, first2, last2))
        h = maxpool2(h, sel2_ref)                                # (B*L/4, 128)

        # ------------------------------ block 3 ------------------------------
        first3, last3 = edge_masks(B * L3, L3)
        h = bn_relu(conv_k3(h, w3a_ref, first3, last3))
        h = bn_relu(conv_k3(h, w3b_ref, first3, last3))
        h = maxpool2(h, sel3_ref)                                # (B*L/8, 256)

        # -------------------------------- head --------------------------------
        c3 = h.shape[1]
        # global max over the remaining length: tile-aligned split (L4 is a
        # multiple of 8) + one reduction (no per-batch unrolled slices).
        inter = jnp.max(h.reshape(B, L4, c3), axis=1)            # (B, 256)
        inter16 = inter.astype(jnp.bfloat16)
        trans = jnp.maximum(
            jnp.dot(inter16, wt_ref[...], preferred_element_type=f32)
            + bt_ref[...], 0.0)                                  # (B, 256)
        # concat([inter, trans]) @ Wf == inter @ Wf[:256] + trans @ Wf[256:]
        logit = (jnp.dot(inter16, wf_top_ref[...], preferred_element_type=f32)
                 + jnp.dot(trans.astype(jnp.bfloat16), wf_bot_ref[...],
                           preferred_element_type=f32)
                 + bf_ref[...])                                  # (B, classes)
        # numerically stable sigmoid
        e = jnp.exp(-jnp.abs(logit))
        pred_ref[...] = jnp.where(logit >= 0.0, 1.0 / (1.0 + e), e / (1.0 + e))
        inter_ref[...] = inter
        trans_ref[...] = trans

    return kernel


# ------------------------------- wrapper --------------------------------------

def _deinterleave(n):
    # (n, n) 0/1 permutation: rows 0..n/2-1 pick even source rows, the rest odd.
    m = np.zeros((n, n), np.float32)
    j = np.arange(n // 2)
    m[j, 2 * j] = 1.0
    m[n // 2 + j, 2 * j + 1] = 1.0
    return jnp.asarray(m, dtype=jnp.bfloat16)


def bytecode_net_forward(input_bytecode, params):
    """input_bytecode: (dims, seq_len). Returns (pred, inter, trans)."""
    x = input_bytecode.astype(jnp.float32)
    B, L = x.shape
    assert L % 8 == 0, "seq_len must be divisible by 8 (three 2x poolings)"

    # Three shifted taps of the single-channel input merged into ONE (B*L, 3)
    # input (one DMA): column k holds x_pad[:, k:k+L].
    xp = jnp.pad(x, ((0, 0), (1, 1)))
    taps = jnp.stack([xp[:, k:k + L].reshape(B * L) for k in range(3)], axis=1)

    def wcat(w):        # (3, Cin, Cout) -> (Cin, 3*Cout) bf16 = [W0 | W1 | W2]
        return jnp.concatenate([w[0], w[1], w[2]], axis=1).astype(jnp.bfloat16)

    w1a = params["w1a"][:, 0, :]                       # (3, 64) f32 (VPU path)
    w1b = wcat(params["w1b"])
    w2a, w2b = wcat(params["w2a"]), wcat(params["w2b"])
    w3a, w3b = wcat(params["w3a"]), wcat(params["w3b"])
    wt = params["wt"].astype(jnp.bfloat16)

    c1, c2 = params["w1b"].shape[-1], params["w2b"].shape[-1]    # 64, 128
    c3 = params["w3b"].shape[-1]                                 # 256
    hid = params["wt"].shape[-1]                                 # 256
    num_classes = params["wf"].shape[-1]

    wf_top = params["wf"][:c3, :].astype(jnp.bfloat16)
    wf_bot = params["wf"][c3:, :].astype(jnp.bfloat16)
    bt, bf = params["bt"], params["bf"]

    # Wrapper-built bf16 0/1 pooling constants (one per pool size): removes the
    # in-kernel int32 iota masks and the f32 MXU-decomposition penalty.
    sel1 = _deinterleave(B * L)
    sel2 = _deinterleave(B * L // 2)
    sel3 = _deinterleave(B * L // 4)

    out_shapes = (jax.ShapeDtypeStruct((B, num_classes), jnp.float32),
                  jax.ShapeDtypeStruct((B, c3), jnp.float32),
                  jax.ShapeDtypeStruct((B, hid), jnp.float32))

    # Advisory cost estimate for the XLA scheduler.
    n1, n2, n3 = B * L, B * L // 2, B * L // 4
    macs = (n1 * 3 * c1 + n1 * (3 * c1) * c1 + n1 * n1 * c1
            + n2 * (3 * c1) * c2 + n2 * (3 * c2) * c2 + n2 * n2 * c2
            + n3 * (3 * c2) * c3 + n3 * (3 * c3) * c3 + n3 * n3 * c3
            + B * c3 * hid + B * (c3 + hid) * num_classes)
    args = (taps, sel1, sel2, sel3, w1a, w1b, w2a, w2b, w3a, w3b,
            wt, bt, wf_top, wf_bot, bf)
    bytes_accessed = int(sum(int(np.prod(a.shape)) * a.dtype.itemsize
                             for a in args)
                         + 4 * B * (num_classes + c3 + hid))
    cost = pl.CostEstimate(flops=int(2 * macs),
                           transcendentals=int(6 * c3 + B * num_classes),
                           bytes_accessed=bytes_accessed)

    # Single fused kernel, no grid: all weights + activations (<2 MiB) fit in
    # VMEM, so whole-array blocks and one invocation are best at this size.
    # If B or L scales, add a 'parallel' grid axis (v7x has 2 TensorCores and
    # only 64 MiB VMEM) instead of growing this single invocation.
    return pl.pallas_call(
        make_fused_kernel(B, L),
        out_shape=out_shapes,
        cost_estimate=cost,
        compiler_params=pltpu.CompilerParams(
            vmem_limit_bytes=32 * 1024 * 1024),
    )(*args)


# ---------------------- parameter init (deterministic) ------------------------

def init_conv_w(key, cin, cout):
    # init_layer for Conv1d: n = n_in * kernel_width; uniform(-sqrt(6/n), sqrt(6/n))
    n = cin * 3
    scale = math.sqrt(2.0 / n) * math.sqrt(3.0)
    return jax.random.uniform(key, (3, cin, cout), jnp.float32, -scale, scale)


def init_linear(key, n_in, n_out):
    scale = math.sqrt(2.0 / n_in) * math.sqrt(3.0)
    w = jax.random.uniform(key, (n_in, n_out), jnp.float32, -scale, scale)
    b = jnp.zeros((1, n_out), jnp.float32)
    return w, b


# ----------------------- pure-JAX f32 reference (check) -----------------------

def reference_forward(x, p):
    hi = jax.lax.Precision.HIGHEST

    def conv(h, w):                       # h: (B, L, Cin), w: (3, Cin, Cout)
        L = h.shape[1]
        hp = jnp.pad(h, ((0, 0), (1, 1), (0, 0)))
        return sum(jnp.einsum("blc,cd->bld", hp[:, k:k + L], w[k], precision=hi)
                   for k in range(3))

    def bn_relu(h):                       # train-mode BN, gamma=1, beta=0
        m = jnp.mean(h, axis=(0, 1), keepdims=True)
        v = jnp.mean(jnp.square(h - m), axis=(0, 1), keepdims=True)
        return jnp.maximum((h - m) * jax.lax.rsqrt(v + BN_EPS), 0.0)

    def block(h, wa, wb):
        h = bn_relu(conv(h, wa))
        h = bn_relu(conv(h, wb))
        B, L, C = h.shape
        return jnp.max(h.reshape(B, L // 2, 2, C), axis=2)

    h = x.astype(jnp.float32)[:, :, None]
    h = block(h, p["w1a"], p["w1b"])
    h = block(h, p["w2a"], p["w2b"])
    h = block(h, p["w3a"], p["w3b"])
    inter = jnp.max(h, axis=1)
    trans = jnp.maximum(jnp.dot(inter, p["wt"], precision=hi) + p["bt"], 0.0)
    logit = (jnp.dot(jnp.concatenate([inter, trans], axis=1), p["wf"],
                     precision=hi) + p["bf"])
    return jax.nn.sigmoid(logit), inter, trans


# ----------------------------------- main --------------------------------------

if __name__ == "__main__":
    key = jax.random.PRNGKey(0)
    ks = jax.random.split(key, 9)
    classes_num = 16
    dims, seq_len = 2, 128            # small shapes consistent with the module

    params = dict(
        w1a=init_conv_w(ks[0], 1, 64),
        w1b=init_conv_w(ks[1], 64, 64),
        w2a=init_conv_w(ks[2], 64, 128),
        w2b=init_conv_w(ks[3], 128, 128),
        w3a=init_conv_w(ks[4], 128, 256),
        w3b=init_conv_w(ks[5], 256, 256),
    )
    params["wt"], params["bt"] = init_linear(ks[6], 256, 256)                 # transform_fc
    params["wf"], params["bf"] = init_linear(ks[7], 256 + 256, classes_num)   # final_fc
    # bytecode_fc, byetecode_bn and s_gtl/s_mll/s_bbl/s_bsl exist in __init__
    # but are unused by forward(), so they are not materialized.

    input_bytecode = jax.random.uniform(ks[8], (dims, seq_len), jnp.float32)

    fwd = jax.jit(bytecode_net_forward)
    pred, inter, trans = fwd(input_bytecode, params)
    jax.block_until_ready((pred, inter, trans))

    assert pred.shape == (dims, classes_num)
    assert inter.shape == (dims, 256)
    assert trans.shape == (dims, 256)

    # Sanity check vs a pure-JAX f32 reference.  Loose tolerances: the kernel
    # uses bf16 MXU operands while the reference runs f32 at HIGHEST precision.
    pred_r, inter_r, trans_r = reference_forward(input_bytecode, params)
    np.testing.assert_allclose(np.asarray(pred), np.asarray(pred_r),
                               rtol=1e-1, atol=5e-2)
    np.testing.assert_allclose(np.asarray(inter), np.asarray(inter_r),
                               rtol=1e-1, atol=1e-1)
    np.testing.assert_allclose(np.asarray(trans), np.asarray(trans_r),
                               rtol=1e-1, atol=1e-1)

    print("KERNEL_OK")
</pallas_src>

<mosaic_0001>
module attributes {stable_mosaic.version = 11 : i64} {
  func.func @kernel(%arg0: memref<256x3xf32, #tpu.memory_space<vmem>>, %arg1: memref<256x256xbf16, #tpu.memory_space<vmem>>, %arg2: memref<128x128xbf16, #tpu.memory_space<vmem>>, %arg3: memref<64x64xbf16, #tpu.memory_space<vmem>>, %arg4: memref<3x64xf32, #tpu.memory_space<vmem>>, %arg5: memref<64x192xbf16, #tpu.memory_space<vmem>>, %arg6: memref<64x384xbf16, #tpu.memory_space<vmem>>, %arg7: memref<128x384xbf16, #tpu.memory_space<vmem>>, %arg8: memref<128x768xbf16, #tpu.memory_space<vmem>>, %arg9: memref<256x768xbf16, #tpu.memory_space<vmem>>, %arg10: memref<256x256xbf16, #tpu.memory_space<vmem>>, %arg11: memref<1x256xf32, #tpu.memory_space<vmem>>, %arg12: memref<256x16xbf16, #tpu.memory_space<vmem>>, %arg13: memref<256x16xbf16, #tpu.memory_space<vmem>>, %arg14: memref<1x16xf32, #tpu.memory_space<vmem>>, %arg15: memref<2x16xf32, #tpu.memory_space<vmem>>, %arg16: memref<2x256xf32, #tpu.memory_space<vmem>>, %arg17: memref<2x256xf32, #tpu.memory_space<vmem>>) attributes {dimension_semantics = [], scalar_prefetch = 0 : i64, scratch_operands = 0 : i64, tpu.core_type = #tpu.core_type<tc>} {
    %c0 = arith.constant 0 : index
    %c0_0 = arith.constant 0 : index
    %0 = vector.load %arg0[%c0, %c0_0] : memref<256x3xf32, #tpu.memory_space<vmem>>, vector<256x3xf32>
    %c0_1 = arith.constant 0 : index
    %c0_2 = arith.constant 0 : index
    %1 = vector.load %arg4[%c0_1, %c0_2] : memref<3x64xf32, #tpu.memory_space<vmem>>, vector<3x64xf32>
    %2 = vector.extract_strided_slice %0 {offsets = [0, 0], sizes = [256, 1], strides = [1, 1]} : vector<256x3xf32> to vector<256x1xf32>
    %3 = vector.extract_strided_slice %1 {offsets = [0, 0], sizes = [1, 64], strides = [1, 1]} : vector<3x64xf32> to vector<1x64xf32>
    %4 = vector.broadcast %2 : vector<256x1xf32> to vector<256x64xf32>
    %5 = vector.broadcast %3 : vector<1x64xf32> to vector<256x64xf32>
    %6 = arith.mulf %4, %5 : vector<256x64xf32>
    %7 = vector.extract_strided_slice %0 {offsets = [0, 1], sizes = [256, 1], strides = [1, 1]} : vector<256x3xf32> to vector<256x1xf32>
    %8 = vector.extract_strided_slice %1 {offsets = [1, 0], sizes = [1, 64], strides = [1, 1]} : vector<3x64xf32> to vector<1x64xf32>
    %9 = vector.broadcast %7 : vector<256x1xf32> to vector<256x64xf32>
    %10 = vector.broadcast %8 : vector<1x64xf32> to vector<256x64xf32>
    %11 = arith.mulf %9, %10 : vector<256x64xf32>
    %12 = arith.addf %6, %11 : vector<256x64xf32>
    %13 = vector.extract_strided_slice %0 {offsets = [0, 2], sizes = [256, 1], strides = [1, 1]} : vector<256x3xf32> to vector<256x1xf32>
    %14 = vector.extract_strided_slice %1 {offsets = [2, 0], sizes = [1, 64], strides = [1, 1]} : vector<3x64xf32> to vector<1x64xf32>
    %15 = vector.broadcast %13 : vector<256x1xf32> to vector<256x64xf32>
    %16 = vector.broadcast %14 : vector<1x64xf32> to vector<256x64xf32>
    %17 = arith.mulf %15, %16 : vector<256x64xf32>
    %18 = arith.addf %12, %17 : vector<256x64xf32>
    %cst = arith.constant dense<0.000000e+00> : vector<64xf32>
    %19 = vector.multi_reduction <add>, %18, %cst [0] : vector<256x64xf32> to vector<64xf32>
    %20 = vector.shape_cast %19 : vector<64xf32> to vector<1x64xf32>
    %21 = arith.mulf %18, %18 : vector<256x64xf32>
    %cst_3 = arith.constant dense<0.000000e+00> : vector<64xf32>
    %22 = vector.multi_reduction <add>, %21, %cst_3 [0] : vector<256x64xf32> to vector<64xf32>
    %23 = vector.shape_cast %22 : vector<64xf32> to vector<1x64xf32>
    %cst_4 = arith.constant 3.906250e-03 : f32
    %24 = vector.broadcast %cst_4 : f32 to vector<1x64xf32>
    %25 = arith.mulf %20, %24 : vector<1x64xf32>
    %cst_5 = arith.constant 3.906250e-03 : f32
    %26 = vector.broadcast %cst_5 : f32 to vector<1x64xf32>
    %27 = arith.mulf %23, %26 : vector<1x64xf32>
    %28 = arith.mulf %25, %25 : vector<1x64xf32>
    %29 = arith.subf %27, %28 : vector<1x64xf32>
    %cst_6 = arith.constant 0.000000e+00 : f32
    %30 = vector.broadcast %cst_6 : f32 to vector<1x64xf32>
    %31 = arith.maximumf %29, %30 : vector<1x64xf32>
    %cst_7 = arith.constant 9.99999974E-6 : f32
    %32 = vector.broadcast %cst_7 : f32 to vector<1x64xf32>
    %33 = arith.addf %31, %32 : vector<1x64xf32>
    %34 = math.rsqrt %33 : vector<1x64xf32>
    %35 = vector.broadcast %25 : vector<1x64xf32> to vector<256x64xf32>
    %36 = arith.subf %18, %35 : vector<256x64xf32>
    %37 = vector.broadcast %34 : vector<1x64xf32> to vector<256x64xf32>
    %38 = arith.mulf %36, %37 : vector<256x64xf32>
    %cst_8 = arith.constant 0.000000e+00 : f32
    %39 = vector.broadcast %cst_8 : f32 to vector<256x64xf32>
    %40 = arith.maximumf %38, %39 : vector<256x64xf32>
    %41 = tpu.iota {dimensions = array<i32: 0>} : vector<256x1xi32>
    %c128_i32 = arith.constant 128 : i32
    %c0_i32 = arith.constant 0 : i32
    %42 = arith.cmpi eq, %c128_i32, %c0_i32 : i32
    %c1_i32 = arith.constant 1 : i32
    %43 = arith.select %42, %c1_i32, %c128_i32 : i32
    %44 = vector.broadcast %43 : i32 to vector<256x1xi32>
    %45 = arith.remsi %41, %44 : vector<256x1xi32>
    %c0_i32_9 = arith.constant 0 : i32
    %46 = vector.broadcast %c0_i32_9 : i32 to vector<256x1xi32>
    %47 = arith.cmpi ne, %45, %46 : vector<256x1xi32>
    %c0_i32_10 = arith.constant 0 : i32
    %48 = vector.broadcast %c0_i32_10 : i32 to vector<256x1xi32>
    %49 = arith.cmpi slt, %45, %48 : vector<256x1xi32>
    %c0_i32_11 = arith.constant 0 : i32
    %50 = arith.cmpi slt, %43, %c0_i32_11 : i32
    %51 = vector.broadcast %50 : i1 to vector<256x1xi1>
    %52 = vector.broadcast %51 : vector<256x1xi1> to vector<256x1xi1>
    %53 = arith.xori %49, %52 : vector<256x1xi1>
    %54 = arith.andi %53, %47 : vector<256x1xi1>
    %55 = vector.broadcast %43 : i32 to vector<256x1xi32>
    %56 = arith.addi %45, %55 : vector<256x1xi32>
    %57 = arith.select %54, %56, %45 : vector<256x1xi1>, vector<256x1xi32>
    %c0_i32_12 = arith.constant 0 : i32
    %58 = vector.broadcast %c0_i32_12 : i32 to vector<256x1xi32>
    %59 = arith.cmpi eq, %57, %58 : vector<256x1xi32>
    %c127_i32 = arith.constant 127 : i32
    %60 = vector.broadcast %c127_i32 : i32 to vector<256x1xi32>
    %61 = arith.cmpi eq, %57, %60 : vector<256x1xi32>
    %62 = arith.truncf %40 : vector<256x64xf32> to vector<256x64xbf16>
    %c0_13 = arith.constant 0 : index
    %c0_14 = arith.constant 0 : index
    %63 = vector.load %arg5[%c0_13, %c0_14] : memref<64x192xbf16, #tpu.memory_space<vmem>>, vector<64x192xbf16>
    %cst_15 = arith.constant dense<0.000000e+00> : vector<256x192xf32>
    %64 = tpu.matmul %62, %63, %cst_15 {dimension_numbers = #tpu.dot_dimension_numbers<[1], [0], [0], [1], [0, 0, 1, 1], [], []>} : vector<256x64xbf16>, vector<64x192xbf16>, vector<256x192xf32> -> vector<256x192xf32>
    %65 = vector.extract_strided_slice %64 {offsets = [0, 0], sizes = [256, 64], strides = [1, 1]} : vector<256x192xf32> to vector<256x64xf32>
    %66 = vector.extract_strided_slice %64 {offsets = [0, 64], sizes = [256, 64], strides = [1, 1]} : vector<256x192xf32> to vector<256x64xf32>
    %67 = vector.extract_strided_slice %64 {offsets = [0, 128], sizes = [256, 64], strides = [1, 1]} : vector<256x192xf32> to vector<256x64xf32>
    %cst_16 = arith.constant 0.000000e+00 : f32
    %68 = vector.broadcast %cst_16 : f32 to vector<1x64xf32>
    %69 = vector.extract_strided_slice %65 {offsets = [0, 0], sizes = [255, 64], strides = [1, 1]} : vector<256x64xf32> to vector<255x64xf32>
    %70 = tpu.concatenate %68, %69 in 0 : vector<1x64xf32>, vector<255x64xf32> -> vector<256x64xf32>
    %cst_17 = arith.constant 0.000000e+00 : f32
    %71 = vector.shape_cast %59 : vector<256x1xi1> to vector<256x1xi1>
    %72 = vector.broadcast %71 : vector<256x1xi1> to vector<256x64xi1>
    %73 = vector.broadcast %cst_17 : f32 to vector<256x64xf32>
    %74 = arith.select %72, %73, %70 : vector<256x64xi1>, vector<256x64xf32>
    %75 = vector.extract_strided_slice %67 {offsets = [1, 0], sizes = [255, 64], strides = [1, 1]} : vector<256x64xf32> to vector<255x64xf32>
    %76 = tpu.concatenate %75, %68 in 0 : vector<255x64xf32>, vector<1x64xf32> -> vector<256x64xf32>
    %cst_18 = arith.constant 0.000000e+00 : f32
    %77 = vector.shape_cast %61 : vector<256x1xi1> to vector<256x1xi1>
    %78 = vector.broadcast %77 : vector<256x1xi1> to vector<256x64xi1>
    %79 = vector.broadcast %cst_18 : f32 to vector<256x64xf32>
    %80 = arith.select %78, %79, %76 : vector<256x64xi1>, vector<256x64xf32>
    %81 = arith.addf %74, %66 : vector<256x64xf32>
    %82 = arith.addf %81, %80 : vector<256x64xf32>
    %cst_19 = arith.constant dense<0.000000e+00> : vector<64xf32>
    %83 = vector.multi_reduction <add>, %82, %cst_19 [0] : vector<256x64xf32> to vector<64xf32>
    %84 = vector.shape_cast %83 : vector<64xf32> to vector<1x64xf32>
    %85 = arith.mulf %82, %82 : vector<256x64xf32>
    %cst_20 = arith.constant dense<0.000000e+00> : vector<64xf32>
    %86 = vector.multi_reduction <add>, %85, %cst_20 [0] : vector<256x64xf32> to vector<64xf32>
    %87 = vector.shape_cast %86 : vector<64xf32> to vector<1x64xf32>
    %cst_21 = arith.constant 3.906250e-03 : f32
    %88 = vector.broadcast %cst_21 : f32 to vector<1x64xf32>
    %89 = arith.mulf %84, %88 : vector<1x64xf32>
    %cst_22 = arith.constant 3.906250e-03 : f32
    %90 = vector.broadcast %cst_22 : f32 to vector<1x64xf32>
    %91 = arith.mulf %87, %90 : vector<1x64xf32>
    %92 = arith.mulf %89, %89 : vector<1x64xf32>
    %93 = arith.subf %91, %92 : vector<1x64xf32>
    %cst_23 = arith.constant 0.000000e+00 : f32
    %94 = vector.broadcast %cst_23 : f32 to vector<1x64xf32>
    %95 = arith.maximumf %93, %94 : vector<1x64xf32>
    %cst_24 = arith.constant 9.99999974E-6 : f32
    %96 = vector.broadcast %cst_24 : f32 to vector<1x64xf32>
    %97 = arith.addf %95, %96 : vector<1x64xf32>
    %98 = math.rsqrt %97 : vector<1x64xf32>
    %99 = vector.broadcast %89 : vector<1x64xf32> to vector<256x64xf32>
    %100 = arith.subf %82, %99 : vector<256x64xf32>
    %101 = vector.broadcast %98 : vector<1x64xf32> to vector<256x64xf32>
    %102 = arith.mulf %100, %101 : vector<256x64xf32>
    %cst_25 = arith.constant 0.000000e+00 : f32
    %103 = vector.broadcast %cst_25 : f32 to vector<256x64xf32>
    %104 = arith.maximumf %102, %103 : vector<256x64xf32>
    %c0_26 = arith.constant 0 : index
    %c0_27 = arith.constant 0 : index
    %105 = vector.load %arg1[%c0_26, %c0_27] : memref<256x256xbf16, #tpu.memory_space<vmem>>, vector<256x256xbf16>
    %106 = arith.truncf %104 : vector<256x64xf32> to vector<256x64xbf16>
    %cst_28 = arith.constant dense<0.000000e+00> : vector<256x64xf32>
    %107 = tpu.matmul %105, %106, %cst_28 {dimension_numbers = #tpu.dot_dimension_numbers<[1], [0], [0], [1], [0, 0, 1, 1], [], []>} : vector<256x256xbf16>, vector<256x64xbf16>, vector<256x64xf32> -> vector<256x64xf32>
    %108 = vector.extract_strided_slice %107 {offsets = [0, 0], sizes = [128, 64], strides = [1, 1]} : vector<256x64xf32> to vector<128x64xf32>
    %109 = vector.extract_strided_slice %107 {offsets = [128, 0], sizes = [128, 64], strides = [1, 1]} : vector<256x64xf32> to vector<128x64xf32>
    %110 = arith.maximumf %108, %109 : vector<128x64xf32>
    %111 = tpu.iota {dimensions = array<i32: 0>} : vector<128x1xi32>
    %c64_i32 = arith.constant 64 : i32
    %c0_i32_29 = arith.constant 0 : i32
    %112 = arith.cmpi eq, %c64_i32, %c0_i32_29 : i32
    %c1_i32_30 = arith.constant 1 : i32
    %113 = arith.select %112, %c1_i32_30, %c64_i32 : i32
    %114 = vector.broadcast %113 : i32 to vector<128x1xi32>
    %115 = arith.remsi %111, %114 : vector<128x1xi32>
    %c0_i32_31 = arith.constant 0 : i32
    %116 = vector.broadcast %c0_i32_31 : i32 to vector<128x1xi32>
    %117 = arith.cmpi ne, %115, %116 : vector<128x1xi32>
    %c0_i32_32 = arith.constant 0 : i32
    %118 = vector.broadcast %c0_i32_32 : i32 to vector<128x1xi32>
    %119 = arith.cmpi slt, %115, %118 : vector<128x1xi32>
    %c0_i32_33 = arith.constant 0 : i32
    %120 = arith.cmpi slt, %113, %c0_i32_33 : i32
    %121 = vector.broadcast %120 : i1 to vector<128x1xi1>
    %122 = vector.broadcast %121 : vector<128x1xi1> to vector<128x1xi1>
    %123 = arith.xori %119, %122 : vector<128x1xi1>
    %124 = arith.andi %123, %117 : vector<128x1xi1>
    %125 = vector.broadcast %113 : i32 to vector<128x1xi32>
    %126 = arith.addi %115, %125 : vector<128x1xi32>
    %127 = arith.select %124, %126, %115 : vector<128x1xi1>, vector<128x1xi32>
    %c0_i32_34 = arith.constant 0 : i32
    %128 = vector.broadcast %c0_i32_34 : i32 to vector<128x1xi32>
    %129 = arith.cmpi eq, %127, %128 : vector<128x1xi32>
    %c63_i32 = arith.constant 63 : i32
    %130 = vector.broadcast %c63_i32 : i32 to vector<128x1xi32>
    %131 = arith.cmpi eq, %127, %130 : vector<128x1xi32>
    %132 = arith.truncf %110 : vector<128x64xf32> to vector<128x64xbf16>
    %c0_35 = arith.constant 0 : index
    %c0_36 = arith.constant 0 : index
    %133 = vector.load %arg6[%c0_35, %c0_36] : memref<64x384xbf16, #tpu.memory_space<vmem>>, vector<64x384xbf16>
    %cst_37 = arith.constant dense<0.000000e+00> : vector<128x384xf32>
    %134 = tpu.matmul %132, %133, %cst_37 {dimension_numbers = #tpu.dot_dimension_numbers<[1], [0], [0], [1], [0, 0, 1, 1], [], []>} : vector<128x64xbf16>, vector<64x384xbf16>, vector<128x384xf32> -> vector<128x384xf32>
    %135 = vector.extract_strided_slice %134 {offsets = [0, 0], sizes = [128, 128], strides = [1, 1]} : vector<128x384xf32> to vector<128x128xf32>
    %136 = vector.extract_strided_slice %134 {offsets = [0, 128], sizes = [128, 128], strides = [1, 1]} : vector<128x384xf32> to vector<128x128xf32>
    %137 = vector.extract_strided_slice %134 {offsets = [0, 256], sizes = [128, 128], strides = [1, 1]} : vector<128x384xf32> to vector<128x128xf32>
    %cst_38 = arith.constant 0.000000e+00 : f32
    %138 = vector.broadcast %cst_38 : f32 to vector<1x128xf32>
    %139 = vector.extract_strided_slice %135 {offsets = [0, 0], sizes = [127, 128], strides = [1, 1]} : vector<128x128xf32> to vector<127x128xf32>
    %140 = tpu.concatenate %138, %139 in 0 : vector<1x128xf32>, vector<127x128xf32> -> vector<128x128xf32>
    %cst_39 = arith.constant 0.000000e+00 : f32
    %141 = vector.shape_cast %129 : vector<128x1xi1> to vector<128x1xi1>
    %142 = vector.broadcast %141 : vector<128x1xi1> to vector<128x128xi1>
    %143 = vector.broadcast %cst_39 : f32 to vector<128x128xf32>
    %144 = arith.select %142, %143, %140 : vector<128x128xi1>, vector<128x128xf32>
    %145 = vector.extract_strided_slice %137 {offsets = [1, 0], sizes = [127, 128], strides = [1, 1]} : vector<128x128xf32> to vector<127x128xf32>
    %146 = tpu.concatenate %145, %138 in 0 : vector<127x128xf32>, vector<1x128xf32> -> vector<128x128xf32>
    %cst_40 = arith.constant 0.000000e+00 : f32
    %147 = vector.shape_cast %131 : vector<128x1xi1> to vector<128x1xi1>
    %148 = vector.broadcast %147 : vector<128x1xi1> to vector<128x128xi1>
    %149 = vector.broadcast %cst_40 : f32 to vector<128x128xf32>
    %150 = arith.select %148, %149, %146 : vector<128x128xi1>, vector<128x128xf32>
    %151 = arith.addf %144, %136 : vector<128x128xf32>
    %152 = arith.addf %151, %150 : vector<128x128xf32>
    %cst_41 = arith.constant dense<0.000000e+00> : vector<128xf32>
    %153 = vector.multi_reduction <add>, %152, %cst_41 [0] : vector<128x128xf32> to vector<128xf32>
    %154 = vector.shape_cast %153 : vector<128xf32> to vector<1x128xf32>
    %155 = arith.mulf %152, %152 : vector<128x128xf32>
    %cst_42 = arith.constant dense<0.000000e+00> : vector<128xf32>
    %156 = vector.multi_reduction <add>, %155, %cst_42 [0] : vector<128x128xf32> to vector<128xf32>
    %157 = vector.shape_cast %156 : vector<128xf32> to vector<1x128xf32>
    %cst_43 = arith.constant 7.812500e-03 : f32
    %158 = vector.broadcast %cst_43 : f32 to vector<1x128xf32>
    %159 = arith.mulf %154, %158 : vector<1x128xf32>
    %cst_44 = arith.constant 7.812500e-03 : f32
    %160 = vector.broadcast %cst_44 : f32 to vector<1x128xf32>
    %161 = arith.mulf %157, %160 : vector<1x128xf32>
    %162 = arith.mulf %159, %159 : vector<1x128xf32>
    %163 = arith.subf %161, %162 : vector<1x128xf32>
    %cst_45 = arith.constant 0.000000e+00 : f32
    %164 = vector.broadcast %cst_45 : f32 to vector<1x128xf32>
    %165 = arith.maximumf %163, %164 : vector<1x128xf32>
    %cst_46 = arith.constant 9.99999974E-6 : f32
    %166 = vector.broadcast %cst_46 : f32 to vector<1x128xf32>
    %167 = arith.addf %165, %166 : vector<1x128xf32>
    %168 = math.rsqrt %167 : vector<1x128xf32>
    %169 = vector.broadcast %159 : vector<1x128xf32> to vector<128x128xf32>
    %170 = arith.subf %152, %169 : vector<128x128xf32>
    %171 = vector.broadcast %168 : vector<1x128xf32> to vector<128x128xf32>
    %172 = arith.mulf %170, %171 : vector<128x128xf32>
    %cst_47 = arith.constant 0.000000e+00 : f32
    %173 = vector.broadcast %cst_47 : f32 to vector<128x128xf32>
    %174 = arith.maximumf %172, %173 : vector<128x128xf32>
    %175 = arith.truncf %174 : vector<128x128xf32> to vector<128x128xbf16>
    %c0_48 = arith.constant 0 : index
    %c0_49 = arith.constant 0 : index
    %176 = vector.load %arg7[%c0_48, %c0_49] : memref<128x384xbf16, #tpu.memory_space<vmem>>, vector<128x384xbf16>
    %cst_50 = arith.constant dense<0.000000e+00> : vector<128x384xf32>
    %177 = tpu.matmul %175, %176, %cst_50 {dimension_numbers = #tpu.dot_dimension_numbers<[1], [0], [0], [1], [0, 0, 1, 1], [], []>} : vector<128x128xbf16>, vector<128x384xbf16>, vector<128x384xf32> -> vector<128x384xf32>
    %178 = vector.extract_strided_slice %177 {offsets = [0, 0], sizes = [128, 128], strides = [1, 1]} : vector<128x384xf32> to vector<128x128xf32>
    %179 = vector.extract_strided_slice %177 {offsets = [0, 128], sizes = [128, 128], strides = [1, 1]} : vector<128x384xf32> to vector<128x128xf32>
    %180 = vector.extract_strided_slice %177 {offsets = [0, 256], sizes = [128, 128], strides = [1, 1]} : vector<128x384xf32> to vector<128x128xf32>
    %cst_51 = arith.constant 0.000000e+00 : f32
    %181 = vector.broadcast %cst_51 : f32 to vector<1x128xf32>
    %182 = vector.extract_strided_slice %178 {offsets = [0, 0], sizes = [127, 128], strides = [1, 1]} : vector<128x128xf32> to vector<127x128xf32>
    %183 = tpu.concatenate %181, %182 in 0 : vector<1x128xf32>, vector<127x128xf32> -> vector<128x128xf32>
    %cst_52 = arith.constant 0.000000e+00 : f32
    %184 = vector.shape_cast %129 : vector<128x1xi1> to vector<128x1xi1>
    %185 = vector.broadcast %184 : vector<128x1xi1> to vector<128x128xi1>
    %186 = vector.broadcast %cst_52 : f32 to vector<128x128xf32>
    %187 = arith.select %185, %186, %183 : vector<128x128xi1>, vector<128x128xf32>
    %188 = vector.extract_strided_slice %180 {offsets = [1, 0], sizes = [127, 128], strides = [1, 1]} : vector<128x128xf32> to vector<127x128xf32>
    %189 = tpu.concatenate %188, %181 in 0 : vector<127x128xf32>, vector<1x128xf32> -> vector<128x128xf32>
    %cst_53 = arith.constant 0.000000e+00 : f32
    %190 = vector.shape_cast %131 : vector<128x1xi1> to vector<128x1xi1>
    %191 = vector.broadcast %190 : vector<128x1xi1> to vector<128x128xi1>
    %192 = vector.broadcast %cst_53 : f32 to vector<128x128xf32>
    %193 = arith.select %191, %192, %189 : vector<128x128xi1>, vector<128x128xf32>
    %194 = arith.addf %187, %179 : vector<128x128xf32>
    %195 = arith.addf %194, %193 : vector<128x128xf32>
    %cst_54 = arith.constant dense<0.000000e+00> : vector<128xf32>
    %196 = vector.multi_reduction <add>, %195, %cst_54 [0] : vector<128x128xf32> to vector<128xf32>
    %197 = vector.shape_cast %196 : vector<128xf32> to vector<1x128xf32>
    %198 = arith.mulf %195, %195 : vector<128x128xf32>
    %cst_55 = arith.constant dense<0.000000e+00> : vector<128xf32>
    %199 = vector.multi_reduction <add>, %198, %cst_55 [0] : vector<128x128xf32> to vector<128xf32>
    %200 = vector.shape_cast %199 : vector<128xf32> to vector<1x128xf32>
    %cst_56 = arith.constant 7.812500e-03 : f32
    %201 = vector.broadcast %cst_56 : f32 to vector<1x128xf32>
    %202 = arith.mulf %197, %201 : vector<1x128xf32>
    %cst_57 = arith.constant 7.812500e-03 : f32
    %203 = vector.broadcast %cst_57 : f32 to vector<1x128xf32>
    %204 = arith.mulf %200, %203 : vector<1x128xf32>
    %205 = arith.mulf %202, %202 : vector<1x128xf32>
    %206 = arith.subf %204, %205 : vector<1x128xf32>
    %cst_58 = arith.constant 0.000000e+00 : f32
    %207 = vector.broadcast %cst_58 : f32 to vector<1x128xf32>
    %208 = arith.maximumf %206, %207 : vector<1x128xf32>
    %cst_59 = arith.constant 9.99999974E-6 : f32
    %209 = vector.broadcast %cst_59 : f32 to vector<1x128xf32>
    %210 = arith.addf %208, %209 : vector<1x128xf32>
    %211 = math.rsqrt %210 : vector<1x128xf32>
    %212 = vector.broadcast %202 : vector<1x128xf32> to vector<128x128xf32>
    %213 = arith.subf %195, %212 : vector<128x128xf32>
    %214 = vector.broadcast %211 : vector<1x128xf32> to vector<128x128xf32>
    %215 = arith.mulf %213, %214 : vector<128x128xf32>
    %cst_60 = arith.constant 0.000000e+00 : f32
    %216 = vector.broadcast %cst_60 : f32 to vector<128x128xf32>
    %217 = arith.maximumf %215, %216 : vector<128x128xf32>
    %c0_61 = arith.constant 0 : index
    %c0_62 = arith.constant 0 : index
    %218 = vector.load %arg2[%c0_61, %c0_62] : memref<128x128xbf16, #tpu.memory_space<vmem>>, vector<128x128xbf16>
    %219 = arith.truncf %217 : vector<128x128xf32> to vector<128x128xbf16>
    %cst_63 = arith.constant dense<0.000000e+00> : vector<128x128xf32>
    %220 = tpu.matmul %218, %219, %cst_63 {dimension_numbers = #tpu.dot_dimension_numbers<[1], [0], [0], [1], [0, 0, 1, 1], [], []>} : vector<128x128xbf16>, vector<128x128xbf16>, vector<128x128xf32> -> vector<128x128xf32>
    %221 = vector.extract_strided_slice %220 {offsets = [0, 0], sizes = [64, 128], strides = [1, 1]} : vector<128x128xf32> to vector<64x128xf32>
    %222 = vector.extract_strided_slice %220 {offsets = [64, 0], sizes = [64, 128], strides = [1, 1]} : vector<128x128xf32> to vector<64x128xf32>
    %223 = arith.maximumf %221, %222 : vector<64x128xf32>
    %224 = tpu.iota {dimensions = array<i32: 0>} : vector<64x1xi32>
    %c32_i32 = arith.constant 32 : i32
    %c0_i32_64 = arith.constant 0 : i32
    %225 = arith.cmpi eq, %c32_i32, %c0_i32_64 : i32
    %c1_i32_65 = arith.constant 1 : i32
    %226 = arith.select %225, %c1_i32_65, %c32_i32 : i32
    %227 = vector.broadcast %226 : i32 to vector<64x1xi32>
    %228 = arith.remsi %224, %227 : vector<64x1xi32>
    %c0_i32_66 = arith.constant 0 : i32
    %229 = vector.broadcast %c0_i32_66 : i32 to vector<64x1xi32>
    %230 = arith.cmpi ne, %228, %229 : vector<64x1xi32>
    %c0_i32_67 = arith.constant 0 : i32
    %231 = vector.broadcast %c0_i32_67 : i32 to vector<64x1xi32>
    %232 = arith.cmpi slt, %228, %231 : vector<64x1xi32>
    %c0_i32_68 = arith.constant 0 : i32
    %233 = arith.cmpi slt, %226, %c0_i32_68 : i32
    %234 = vector.broadcast %233 : i1 to vector<64x1xi1>
    %235 = vector.broadcast %234 : vector<64x1xi1> to vector<64x1xi1>
    %236 = arith.xori %232, %235 : vector<64x1xi1>
    %237 = arith.andi %236, %230 : vector<64x1xi1>
    %238 = vector.broadcast %226 : i32 to vector<64x1xi32>
    %239 = arith.addi %228, %238 : vector<64x1xi32>
    %240 = arith.select %237, %239, %228 : vector<64x1xi1>, vector<64x1xi32>
    %c0_i32_69 = arith.constant 0 : i32
    %241 = vector.broadcast %c0_i32_69 : i32 to vector<64x1xi32>
    %242 = arith.cmpi eq, %240, %241 : vector<64x1xi32>
    %c31_i32 = arith.constant 31 : i32
    %243 = vector.broadcast %c31_i32 : i32 to vector<64x1xi32>
    %244 = arith.cmpi eq, %240, %243 : vector<64x1xi32>
    %245 = arith.truncf %223 : vector<64x128xf32> to vector<64x128xbf16>
    %c0_70 = arith.constant 0 : index
    %c0_71 = arith.constant 0 : index
    %246 = vector.load %arg8[%c0_70, %c0_71] : memref<128x768xbf16, #tpu.memory_space<vmem>>, vector<128x768xbf16>
    %cst_72 = arith.constant dense<0.000000e+00> : vector<64x768xf32>
    %247 = tpu.matmul %245, %246, %cst_72 {dimension_numbers = #tpu.dot_dimension_numbers<[1], [0], [0], [1], [0, 0, 1, 1], [], []>} : vector<64x128xbf16>, vector<128x768xbf16>, vector<64x768xf32> -> vector<64x768xf32>
    %248 = vector.extract_strided_slice %247 {offsets = [0, 0], sizes = [64, 256], strides = [1, 1]} : vector<64x768xf32> to vector<64x256xf32>
    %249 = vector.extract_strided_slice %247 {offsets = [0, 256], sizes = [64, 256], strides = [1, 1]} : vector<64x768xf32> to vector<64x256xf32>
    %250 = vector.extract_strided_slice %247 {offsets = [0, 512], sizes = [64, 256], strides = [1, 1]} : vector<64x768xf32> to vector<64x256xf32>
    %cst_73 = arith.constant 0.000000e+00 : f32
    %251 = vector.broadcast %cst_73 : f32 to vector<1x256xf32>
    %252 = vector.extract_strided_slice %248 {offsets = [0, 0], sizes = [63, 256], strides = [1, 1]} : vector<64x256xf32> to vector<63x256xf32>
    %253 = tpu.concatenate %251, %252 in 0 : vector<1x256xf32>, vector<63x256xf32> -> vector<64x256xf32>
    %cst_74 = arith.constant 0.000000e+00 : f32
    %254 = vector.shape_cast %242 : vector<64x1xi1> to vector<64x1xi1>
    %255 = vector.broadcast %254 : vector<64x1xi1> to vector<64x256xi1>
    %256 = vector.broadcast %cst_74 : f32 to vector<64x256xf32>
    %257 = arith.select %255, %256, %253 : vector<64x256xi1>, vector<64x256xf32>
    %258 = vector.extract_strided_slice %250 {offsets = [1, 0], sizes = [63, 256], strides = [1, 1]} : vector<64x256xf32> to vector<63x256xf32>
    %259 = tpu.concatenate %258, %251 in 0 : vector<63x256xf32>, vector<1x256xf32> -> vector<64x256xf32>
    %cst_75 = arith.constant 0.000000e+00 : f32
    %260 = vector.shape_cast %244 : vector<64x1xi1> to vector<64x1xi1>
    %261 = vector.broadcast %260 : vector<64x1xi1> to vector<64x256xi1>
    %262 = vector.broadcast %cst_75 : f32 to vector<64x256xf32>
    %263 = arith.select %261, %262, %259 : vector<64x256xi1>, vector<64x256xf32>
    %264 = arith.addf %257, %249 : vector<64x256xf32>
    %265 = arith.addf %264, %263 : vector<64x256xf32>
    %cst_76 = arith.constant dense<0.000000e+00> : vector<256xf32>
    %266 = vector.multi_reduction <add>, %265, %cst_76 [0] : vector<64x256xf32> to vector<256xf32>
    %267 = vector.shape_cast %266 : vector<256xf32> to vector<1x256xf32>
    %268 = arith.mulf %265, %265 : vector<64x256xf32>
    %cst_77 = arith.constant dense<0.000000e+00> : vector<256xf32>
    %269 = vector.multi_reduction <add>, %268, %cst_77 [0] : vector<64x256xf32> to vector<256xf32>
    %270 = vector.shape_cast %269 : vector<256xf32> to vector<1x256xf32>
    %cst_78 = arith.constant 1.562500e-02 : f32
    %271 = vector.broadcast %cst_78 : f32 to vector<1x256xf32>
    %272 = arith.mulf %267, %271 : vector<1x256xf32>
    %cst_79 = arith.constant 1.562500e-02 : f32
    %273 = vector.broadcast %cst_79 : f32 to vector<1x256xf32>
    %274 = arith.mulf %270, %273 : vector<1x256xf32>
    %275 = arith.mulf %272, %272 : vector<1x256xf32>
    %276 = arith.subf %274, %275 : vector<1x256xf32>
    %cst_80 = arith.constant 0.000000e+00 : f32
    %277 = vector.broadcast %cst_80 : f32 to vector<1x256xf32>
    %278 = arith.maximumf %276, %277 : vector<1x256xf32>
    %cst_81 = arith.constant 9.99999974E-6 : f32
    %279 = vector.broadcast %cst_81 : f32 to vector<1x256xf32>
    %280 = arith.addf %278, %279 : vector<1x256xf32>
    %281 = math.rsqrt %280 : vector<1x256xf32>
    %282 = vector.broadcast %272 : vector<1x256xf32> to vector<64x256xf32>
    %283 = arith.subf %265, %282 : vector<64x256xf32>
    %284 = vector.broadcast %281 : vector<1x256xf32> to vector<64x256xf32>
    %285 = arith.mulf %283, %284 : vector<64x256xf32>
    %cst_82 = arith.constant 0.000000e+00 : f32
    %286 = vector.broadcast %cst_82 : f32 to vector<64x256xf32>
    %287 = arith.maximumf %285, %286 : vector<64x256xf32>
    %288 = arith.truncf %287 : vector<64x256xf32> to vector<64x256xbf16>
    %c0_83 = arith.constant 0 : index
    %c0_84 = arith.constant 0 : index
    %289 = vector.load %arg9[%c0_83, %c0_84] : memref<256x768xbf16, #tpu.memory_space<vmem>>, vector<256x768xbf16>
    %cst_85 = arith.constant dense<0.000000e+00> : vector<64x768xf32>
    %290 = tpu.matmul %288, %289, %cst_85 {dimension_numbers = #tpu.dot_dimension_numbers<[1], [0], [0], [1], [0, 0, 1, 1], [], []>} : vector<64x256xbf16>, vector<256x768xbf16>, vector<64x768xf32> -> vector<64x768xf32>
    %291 = vector.extract_strided_slice %290 {offsets = [0, 0], sizes = [64, 256], strides = [1, 1]} : vector<64x768xf32> to vector<64x256xf32>
    %292 = vector.extract_strided_slice %290 {offsets = [0, 256], sizes = [64, 256], strides = [1, 1]} : vector<64x768xf32> to vector<64x256xf32>
    %293 = vector.extract_strided_slice %290 {offsets = [0, 512], sizes = [64, 256], strides = [1, 1]} : vector<64x768xf32> to vector<64x256xf32>
    %cst_86 = arith.constant 0.000000e+00 : f32
    %294 = vector.broadcast %cst_86 : f32 to vector<1x256xf32>
    %295 = vector.extract_strided_slice %291 {offsets = [0, 0], sizes = [63, 256], strides = [1, 1]} : vector<64x256xf32> to vector<63x256xf32>
    %296 = tpu.concatenate %294, %295 in 0 : vector<1x256xf32>, vector<63x256xf32> -> vector<64x256xf32>
    %cst_87 = arith.constant 0.000000e+00 : f32
    %297 = vector.shape_cast %242 : vector<64x1xi1> to vector<64x1xi1>
    %298 = vector.broadcast %297 : vector<64x1xi1> to vector<64x256xi1>
    %299 = vector.broadcast %cst_87 : f32 to vector<64x256xf32>
    %300 = arith.select %298, %299, %296 : vector<64x256xi1>, vector<64x256xf32>
    %301 = vector.extract_strided_slice %293 {offsets = [1, 0], sizes = [63, 256], strides = [1, 1]} : vector<64x256xf32> to vector<63x256xf32>
    %302 = tpu.concatenate %301, %294 in 0 : vector<63x256xf32>, vector<1x256xf32> -> vector<64x256xf32>
    %cst_88 = arith.constant 0.000000e+00 : f32
    %303 = vector.shape_cast %244 : vector<64x1xi1> to vector<64x1xi1>
    %304 = vector.broadcast %303 : vector<64x1xi1> to vector<64x256xi1>
    %305 = vector.broadcast %cst_88 : f32 to vector<64x256xf32>
    %306 = arith.select %304, %305, %302 : vector<64x256xi1>, vector<64x256xf32>
    %307 = arith.addf %300, %292 : vector<64x256xf32>
    %308 = arith.addf %307, %306 : vector<64x256xf32>
    %cst_89 = arith.constant dense<0.000000e+00> : vector<256xf32>
    %309 = vector.multi_reduction <add>, %308, %cst_89 [0] : vector<64x256xf32> to vector<256xf32>
    %310 = vector.shape_cast %309 : vector<256xf32> to vector<1x256xf32>
    %311 = arith.mulf %308, %308 : vector<64x256xf32>
    %cst_90 = arith.constant dense<0.000000e+00> : vector<256xf32>
    %312 = vector.multi_reduction <add>, %311, %cst_90 [0] : vector<64x256xf32> to vector<256xf32>
    %313 = vector.shape_cast %312 : vector<256xf32> to vector<1x256xf32>
    %cst_91 = arith.constant 1.562500e-02 : f32
    %314 = vector.broadcast %cst_91 : f32 to vector<1x256xf32>
    %315 = arith.mulf %310, %314 : vector<1x256xf32>
    %cst_92 = arith.constant 1.562500e-02 : f32
    %316 = vector.broadcast %cst_92 : f32 to vector<1x256xf32>
    %317 = arith.mulf %313, %316 : vector<1x256xf32>
    %318 = arith.mulf %315, %315 : vector<1x256xf32>
    %319 = arith.subf %317, %318 : vector<1x256xf32>
    %cst_93 = arith.constant 0.000000e+00 : f32
    %320 = vector.broadcast %cst_93 : f32 to vector<1x256xf32>
    %321 = arith.maximumf %319, %320 : vector<1x256xf32>
    %cst_94 = arith.constant 9.99999974E-6 : f32
    %322 = vector.broadcast %cst_94 : f32 to vector<1x256xf32>
    %323 = arith.addf %321, %322 : vector<1x256xf32>
    %324 = math.rsqrt %323 : vector<1x256xf32>
    %325 = vector.broadcast %315 : vector<1x256xf32> to vector<64x256xf32>
    %326 = arith.subf %308, %325 : vector<64x256xf32>
    %327 = vector.broadcast %324 : vector<1x256xf32> to vector<64x256xf32>
    %328 = arith.mulf %326, %327 : vector<64x256xf32>
    %cst_95 = arith.constant 0.000000e+00 : f32
    %329 = vector.broadcast %cst_95 : f32 to vector<64x256xf32>
    %330 = arith.maximumf %328, %329 : vector<64x256xf32>
    %c0_96 = arith.constant 0 : index
    %c0_97 = arith.constant 0 : index
    %331 = vector.load %arg3[%c0_96, %c0_97] : memref<64x64xbf16, #tpu.memory_space<vmem>>, vector<64x64xbf16>
    %332 = arith.truncf %330 : vector<64x256xf32> to vector<64x256xbf16>
    %cst_98 = arith.constant dense<0.000000e+00> : vector<64x256xf32>
    %333 = tpu.matmul %331, %332, %cst_98 {dimension_numbers = #tpu.dot_dimension_numbers<[1], [0], [0], [1], [0, 0, 1, 1], [], []>} : vector<64x64xbf16>, vector<64x256xbf16>, vector<64x256xf32> -> vector<64x256xf32>
    %334 = vector.extract_strided_slice %333 {offsets = [0, 0], sizes = [32, 256], strides = [1, 1]} : vector<64x256xf32> to vector<32x256xf32>
    %335 = vector.extract_strided_slice %333 {offsets = [32, 0], sizes = [32, 256], strides = [1, 1]} : vector<64x256xf32> to vector<32x256xf32>
    %336 = arith.maximumf %334, %335 : vector<32x256xf32>
    %337 = vector.shape_cast %336 : vector<32x256xf32> to vector<2x16x256xf32>
    %cst_99 = arith.constant dense<0xFF800000> : vector<2x256xf32>
    %338 = vector.multi_reduction <maximumf>, %337, %cst_99 [1] : vector<2x16x256xf32> to vector<2x256xf32>
    %339 = arith.truncf %338 : vector<2x256xf32> to vector<2x256xbf16>
    %c0_100 = arith.constant 0 : index
    %c0_101 = arith.constant 0 : index
    %340 = vector.load %arg10[%c0_100, %c0_101] : memref<256x256xbf16, #tpu.memory_space<vmem>>, vector<256x256xbf16>
    %cst_102 = arith.constant dense<0.000000e+00> : vector<2x256xf32>
    %341 = tpu.matmul %339, %340, %cst_102 {dimension_numbers = #tpu.dot_dimension_numbers<[1], [0], [0], [1], [0, 0, 1, 1], [], []>} : vector<2x256xbf16>, vector<256x256xbf16>, vector<2x256xf32> -> vector<2x256xf32>
    %c0_103 = arith.constant 0 : index
    %c0_104 = arith.constant 0 : index
    %342 = vector.load %arg11[%c0_103, %c0_104] : memref<1x256xf32, #tpu.memory_space<vmem>>, vector<1x256xf32>
    %343 = vector.broadcast %342 : vector<1x256xf32> to vector<2x256xf32>
    %344 = arith.addf %341, %343 : vector<2x256xf32>
    %cst_105 = arith.constant 0.000000e+00 : f32
    %345 = vector.broadcast %cst_105 : f32 to vector<2x256xf32>
    %346 = arith.maximumf %344, %345 : vector<2x256xf32>
    %c0_106 = arith.constant 0 : index
    %c0_107 = arith.constant 0 : index
    %347 = vector.load %arg12[%c0_106, %c0_107] : memref<256x16xbf16, #tpu.memory_space<vmem>>, vector<256x16xbf16>
    %cst_108 = arith.constant dense<0.000000e+00> : vector<2x16xf32>
    %348 = tpu.matmul %339, %347, %cst_108 {dimension_numbers = #tpu.dot_dimension_numbers<[1], [0], [0], [1], [0, 0, 1, 1], [], []>} : vector<2x256xbf16>, vector<256x16xbf16>, vector<2x16xf32> -> vector<2x16xf32>
    %349 = arith.truncf %346 : vector<2x256xf32> to vector<2x256xbf16>
    %c0_109 = arith.constant 0 : index
    %c0_110 = arith.constant 0 : index
    %350 = vector.load %arg13[%c0_109, %c0_110] : memref<256x16xbf16, #tpu.memory_space<vmem>>, vector<256x16xbf16>
    %cst_111 = arith.constant dense<0.000000e+00> : vector<2x16xf32>
    %351 = tpu.matmul %349, %350, %cst_111 {dimension_numbers = #tpu.dot_dimension_numbers<[1], [0], [0], [1], [0, 0, 1, 1], [], []>} : vector<2x256xbf16>, vector<256x16xbf16>, vector<2x16xf32> -> vector<2x16xf32>
    %352 = arith.addf %348, %351 : vector<2x16xf32>
    %c0_112 = arith.constant 0 : index
    %c0_113 = arith.constant 0 : index
    %353 = vector.load %arg14[%c0_112, %c0_113] : memref<1x16xf32, #tpu.memory_space<vmem>>, vector<1x16xf32>
    %354 = vector.broadcast %353 : vector<1x16xf32> to vector<2x16xf32>
    %355 = arith.addf %352, %354 : vector<2x16xf32>
    %356 = math.absf %355 : vector<2x16xf32>
    %cst_114 = arith.constant 0.000000e+00 : f32
    %357 = vector.broadcast %cst_114 : f32 to vector<2x16xf32>
    %358 = arith.subf %357, %356 : vector<2x16xf32>
    %359 = math.exp %358 : vector<2x16xf32>
    %cst_115 = arith.constant 0.000000e+00 : f32
    %360 = vector.broadcast %cst_115 : f32 to vector<2x16xf32>
    %361 = arith.cmpf oge, %355, %360 : vector<2x16xf32>
    %cst_116 = arith.constant 1.000000e+00 : f32
    %362 = vector.broadcast %cst_116 : f32 to vector<2x16xf32>
    %363 = arith.addf %362, %359 : vector<2x16xf32>
    %cst_117 = arith.constant 1.000000e+00 : f32
    %364 = vector.broadcast %cst_117 : f32 to vector<2x16xf32>
    %365 = arith.divf %364, %363 : vector<2x16xf32>
    %cst_118 = arith.constant 1.000000e+00 : f32
    %366 = vector.broadcast %cst_118 : f32 to vector<2x16xf32>
    %367 = arith.addf %366, %359 : vector<2x16xf32>
    %368 = arith.divf %359, %367 : vector<2x16xf32>
    %369 = arith.select %361, %365, %368 : vector<2x16xi1>, vector<2x16xf32>
    %c0_119 = arith.constant 0 : index
    %c0_120 = arith.constant 0 : index
    %370 = vector.load %arg15[%c0_119, %c0_120] : memref<2x16xf32, #tpu.memory_space<vmem>>, vector<2x16xf32>
    tpu.vector_store %arg15[%c0_119, %c0_120], %369 {strides = array<i32>} : memref<2x16xf32, #tpu.memory_space<vmem>>, vector<2x16xf32>,
    %c0_121 = arith.constant 0 : index
    %c0_122 = arith.constant 0 : index
    %371 = vector.load %arg16[%c0_121, %c0_122] : memref<2x256xf32, #tpu.memory_space<vmem>>, vector<2x256xf32>
    tpu.vector_store %arg16[%c0_121, %c0_122], %338 {strides = array<i32>} : memref<2x256xf32, #tpu.memory_space<vmem>>, vector<2x256xf32>,
    %c0_123 = arith.constant 0 : index
    %c0_124 = arith.constant 0 : index
    %372 = vector.load %arg17[%c0_123, %c0_124] : memref<2x256xf32, #tpu.memory_space<vmem>>, vector<2x256xf32>
    tpu.vector_store %arg17[%c0_123, %c0_124], %346 {strides = array<i32>} : memref<2x256xf32, #tpu.memory_space<vmem>>, vector<2x256xf32>,
    return
  }
}

</mosaic_0001>

<llo_original>
// kernel: bytecode_net_forward.1
$region0: #{bytecode_net_forward.1}
  #allocation0 [shape = 'u32[]', space=smem, size = 0x4, offset = 0x4, fixed_abs, tag = 'smem constant byte address 0x4 - core index']
  #allocation1 [shape = 'u32[72,128]{1,0:T(1,128)}', space=vmem, size = 0x9000, scoped, tag = 'internal scratch']
  %s0 = inlined_call_operand.vmem [shape: f32[256,3], index: 0, kind: input, shape index: {}]
  %s1 = inlined_call_operand.vmem [shape: bf16[256,256], index: 1, kind: input, shape index: {}]
  %s2 = inlined_call_operand.vmem [shape: bf16[128,128], index: 2, kind: input, shape index: {}]
  %s3 = inlined_call_operand.vmem [shape: bf16[64,64], index: 3, kind: input, shape index: {}]
  %s4 = inlined_call_operand.vmem [shape: f32[3,64], index: 4, kind: input, shape index: {}]
  %s5 = inlined_call_operand.vmem [shape: bf16[64,192], index: 5, kind: input, shape index: {}]
  %s6 = inlined_call_operand.vmem [shape: bf16[64,384], index: 6, kind: input, shape index: {}]
  %s7 = inlined_call_operand.vmem [shape: bf16[128,384], index: 7, kind: input, shape index: {}]
  %s8 = inlined_call_operand.vmem [shape: bf16[128,768], index: 8, kind: input, shape index: {}]
  %s9 = inlined_call_operand.vmem [shape: bf16[256,768], index: 9, kind: input, shape index: {}]
  %s10 = inlined_call_operand.vmem [shape: bf16[256,256], index: 10, kind: input, shape index: {}]
  %s11 = inlined_call_operand.vmem [shape: f32[1,256], index: 11, kind: input, shape index: {}]
  %s12 = inlined_call_operand.vmem [shape: bf16[256,16], index: 12, kind: input, shape index: {}]
  %s13 = inlined_call_operand.vmem [shape: bf16[256,16], index: 13, kind: input, shape index: {}]
  %s14 = inlined_call_operand.vmem [shape: f32[1,16], index: 14, kind: input, shape index: {}]
  %s15 = inlined_call_operand.hbm [shape: f32[2,16], index: 15, kind: output, shape index: {0}]
  %s16 = inlined_call_operand.hbm [shape: f32[2,256], index: 16, kind: output, shape index: {1}]
  %s17 = inlined_call_operand.hbm [shape: f32[2,256], index: 17, kind: output, shape index: {2}]
  %18 = xla_tuple %s15, %s16, %s17
  %s19 = sld [smem:[#allocation0]]
  $region86: #{bytecode_net_forward.1} parent=0
    _
  %s21 = ssub.s32 1, %s19
  %s22 = scalar_select 0, %s21, %s19
  $region1: #{bytecode_net_forward.1} parent=0
    #allocation2 [shape = 'u8[1024]{0}', space=vmem, size = 0x400, scoped, tag = 'output window, operand 0, single buffered']
    #allocation3 [shape = 's32[1]{0}', space=sflag, size = 0x4, scoped, tag = 'scoped memory for bytecode_net_forward.1']
    #allocation4 [shape = 'u8[2048]{0}', space=vmem, size = 0x800, scoped, tag = 'output window, operand 1, single buffered']
    #allocation5 [shape = 's32[1]{0}', space=sflag, size = 0x4, scoped, tag = 'scoped memory for bytecode_net_forward.1']
    #allocation6 [shape = 'u8[2048]{0}', space=vmem, size = 0x800, scoped, tag = 'output window, operand 2, single buffered']
    %23 = vsyncpa [#allocation3], 0
    %24 = vsyncpa [#allocation5], 0
    // Predicated region
    $region2: #{bytecode_net_forward.1} parent=1 // pred_check
      _
    $region3: #{bytecode_net_forward.1} parent=1 // pred_check_branch
      %26 = sbr.rel (0) target = $region5
    $region4: #{bytecode_net_forward.1} parent=1 // pred_region
      _
    $region5: #{bytecode_net_forward.1} parent=1 // pred_fallthru
      _
    // Predicated region
    $region6: #{bytecode_net_forward.1} parent=1 // pred_check
      _
    $region7: #{bytecode_net_forward.1} parent=1 // pred_check_branch
      %28 = sbr.rel (0) target = $region9
    $region8: #{bytecode_net_forward.1} parent=1 // pred_region
      _
    $region9: #{bytecode_net_forward.1} parent=1 // pred_fallthru
      _
    // Predicated region
    $region10: #{bytecode_net_forward.1} parent=1 // pred_check
      _
    $region11: #{bytecode_net_forward.1} parent=1 // pred_check_branch
      %30 = sbr.rel (0) target = $region13
    $region12: #{bytecode_net_forward.1} parent=1 // pred_region
      _
    $region13: #{bytecode_net_forward.1} parent=1 // pred_fallthru
      _
    // Predicated region
    $region14: #{bytecode_net_forward.1} parent=1 // pred_check
      _
    $region15: #{bytecode_net_forward.1} parent=1 // pred_check_branch
      %32 = sbr.rel (0) target = $region17
    $region16: #{bytecode_net_forward.1} parent=1 // pred_region
      _
    $region17: #{bytecode_net_forward.1} parent=1 // pred_fallthru
      _
    // Predicated region
    $region18: #{bytecode_net_forward.1} parent=1 // pred_check
      _
    $region19: #{bytecode_net_forward.1} parent=1 // pred_check_branch
      %34 = sbr.rel (0) target = $region21
    $region20: #{bytecode_net_forward.1} parent=1 // pred_region
      _
    $region21: #{bytecode_net_forward.1} parent=1 // pred_fallthru
      _
    // Predicated region
    $region22: #{bytecode_net_forward.1} parent=1 // pred_check
      _
    $region23: #{bytecode_net_forward.1} parent=1 // pred_check_branch
      %36 = sbr.rel (0) target = $region25
    $region24: #{bytecode_net_forward.1} parent=1 // pred_region
      _
    $region25: #{bytecode_net_forward.1} parent=1 // pred_fallthru
      _
    // Predicated region
    $region26: #{bytecode_net_forward.1} parent=1 // pred_check
      _
    $region27: #{bytecode_net_forward.1} parent=1 // pred_check_branch
      %38 = sbr.rel (0) target = $region29
    $region28: #{bytecode_net_forward.1} parent=1 // pred_region
      _
    $region29: #{bytecode_net_forward.1} parent=1 // pred_fallthru
      _
    // Predicated region
    $region30: #{bytecode_net_forward.1} parent=1 // pred_check
      _
    $region31: #{bytecode_net_forward.1} parent=1 // pred_check_branch
      %40 = sbr.rel (0) target = $region33
    $region32: #{bytecode_net_forward.1} parent=1 // pred_region
      _
    $region33: #{bytecode_net_forward.1} parent=1 // pred_fallthru
      _
    // Predicated region
    $region34: #{bytecode_net_forward.1} parent=1 // pred_check
      _
    $region35: #{bytecode_net_forward.1} parent=1 // pred_check_branch
      %42 = sbr.rel (0) target = $region37
    $region36: #{bytecode_net_forward.1} parent=1 // pred_region
      _
    $region37: #{bytecode_net_forward.1} parent=1 // pred_fallthru
      _
    // Predicated region
    $region38: #{bytecode_net_forward.1} parent=1 // pred_check
      _
    $region39: #{bytecode_net_forward.1} parent=1 // pred_check_branch
      %44 = sbr.rel (0) target = $region41
    $region40: #{bytecode_net_forward.1} parent=1 // pred_region
      _
    $region41: #{bytecode_net_forward.1} parent=1 // pred_fallthru
      _
    // Predicated region
    $region42: #{bytecode_net_forward.1} parent=1 // pred_check
      _
    $region43: #{bytecode_net_forward.1} parent=1 // pred_check_branch
      %46 = sbr.rel (0) target = $region45
    $region44: #{bytecode_net_forward.1} parent=1 // pred_region
      _
    $region45: #{bytecode_net_forward.1} parent=1 // pred_fallthru
      _
    // Predicated region
    $region46: #{bytecode_net_forward.1} parent=1 // pred_check
      _
    $region47: #{bytecode_net_forward.1} parent=1 // pred_check_branch
      %48 = sbr.rel (0) target = $region49
    $region48: #{bytecode_net_forward.1} parent=1 // pred_region
      _
    $region49: #{bytecode_net_forward.1} parent=1 // pred_fallthru
      _
    // Predicated region
    $region50: #{bytecode_net_forward.1} parent=1 // pred_check
      _
    $region51: #{bytecode_net_forward.1} parent=1 // pred_check_branch
      %50 = sbr.rel (0) target = $region53
    $region52: #{bytecode_net_forward.1} parent=1 // pred_region
      _
    $region53: #{bytecode_net_forward.1} parent=1 // pred_fallthru
      _
    // Predicated region
    $region54: #{bytecode_net_forward.1} parent=1 // pred_check
      _
    $region55: #{bytecode_net_forward.1} parent=1 // pred_check_branch
      %52 = sbr.rel (0) target = $region57
    $region56: #{bytecode_net_forward.1} parent=1 // pred_region
      _
    $region57: #{bytecode_net_forward.1} parent=1 // pred_fallthru
      _
    // Predicated region
    $region58: #{bytecode_net_forward.1} parent=1 // pred_check
      _
    $region59: #{bytecode_net_forward.1} parent=1 // pred_check_branch
      %54 = sbr.rel (0) target = $region61
    $region60: #{bytecode_net_forward.1} parent=1 // pred_region
      _
    $region61: #{bytecode_net_forward.1} parent=1 // pred_fallthru
      _
    %v56 = vld [vmem:[%s0] sm:$0xff]
    %v57 = vld [vmem:[%s0 + $0x8] sm:$0xff]
    %v58 = vld [vmem:[%s0 + $0x10] sm:$0xff]
    %v59 = vld [vmem:[%s0 + $0x18] sm:$0xff]
    %v60 = vld [vmem:[%s0 + $0x20] sm:$0xff]
    %v61 = vld [vmem:[%s0 + $0x28] sm:$0xff]
    %v62 = vld [vmem:[%s0 + $0x30] sm:$0xff]
    %v63 = vld [vmem:[%s0 + $0x38] sm:$0xff]
    %v64 = vld [vmem:[%s0 + $0x40] sm:$0xff]
    %v65 = vld [vmem:[%s0 + $0x48] sm:$0xff]
    %v66 = vld [vmem:[%s0 + $0x50] sm:$0xff]
    %v67 = vld [vmem:[%s0 + $0x58] sm:$0xff]
    %v68 = vld [vmem:[%s0 + $0x60] sm:$0xff]
    %v69 = vld [vmem:[%s0 + $0x68] sm:$0xff]
    %v70 = vld [vmem:[%s0 + $0x70] sm:$0xff]
    %v71 = vld [vmem:[%s0 + $0x78] sm:$0xff]
    %v72 = vld [vmem:[%s0 + $0x80] sm:$0xff]
    %v73 = vld [vmem:[%s0 + $0x88] sm:$0xff]
    %v74 = vld [vmem:[%s0 + $0x90] sm:$0xff]
    %v75 = vld [vmem:[%s0 + $0x98] sm:$0xff]
    %v76 = vld [vmem:[%s0 + $0xa0] sm:$0xff]
    %v77 = vld [vmem:[%s0 + $0xa8] sm:$0xff]
    %v78 = vld [vmem:[%s0 + $0xb0] sm:$0xff]
    %v79 = vld [vmem:[%s0 + $0xb8] sm:$0xff]
    %v80 = vld [vmem:[%s0 + $0xc0] sm:$0xff]
    %v81 = vld [vmem:[%s0 + $0xc8] sm:$0xff]
    %v82 = vld [vmem:[%s0 + $0xd0] sm:$0xff]
    %v83 = vld [vmem:[%s0 + $0xd8] sm:$0xff]
    %v84 = vld [vmem:[%s0 + $0xe0] sm:$0xff]
    %v85 = vld [vmem:[%s0 + $0xe8] sm:$0xff]
    %v86 = vld [vmem:[%s0 + $0xf0] sm:$0xff]
    %v87 = vld [vmem:[%s0 + $0xf8] sm:$0xff]
    %v88 = vld [vmem:[%s4] sm:$0x7]
    %90 = vset.pattern.permute.xlu0 0
    %91 = vperm.xlu0 %90, %v56
    %v92 = vpop.permute.xlu0 %91
    %95 = vset.pattern.permute.xlu0 0
    %96 = vperm.xlu0 %95, %v57
    %v97 = vpop.permute.xlu0 %96
    %100 = vset.pattern.permute.xlu0 0
    %101 = vperm.xlu0 %100, %v58
    %v102 = vpop.permute.xlu0 %101
    %105 = vset.pattern.permute.xlu0 0
    %106 = vperm.xlu0 %105, %v59
    %v107 = vpop.permute.xlu0 %106
    %110 = vset.pattern.permute.xlu0 0
    %111 = vperm.xlu0 %110, %v60
    %v112 = vpop.permute.xlu0 %111
    %115 = vset.pattern.permute.xlu0 0
    %116 = vperm.xlu0 %115, %v61
    %v117 = vpop.permute.xlu0 %116
    %120 = vset.pattern.permute.xlu0 0
    %121 = vperm.xlu0 %120, %v62
    %v122 = vpop.permute.xlu0 %121
    %125 = vset.pattern.permute.xlu0 0
    %126 = vperm.xlu0 %125, %v63
    %v127 = vpop.permute.xlu0 %126
    %130 = vset.pattern.permute.xlu0 0
    %131 = vperm.xlu0 %130, %v64
    %v132 = vpop.permute.xlu0 %131
    %135 = vset.pattern.permute.xlu0 0
    %136 = vperm.xlu0 %135, %v65
    %v137 = vpop.permute.xlu0 %136
    %140 = vset.pattern.permute.xlu0 0
    %141 = vperm.xlu0 %140, %v66
    %v142 = vpop.permute.xlu0 %141
    %145 = vset.pattern.permute.xlu0 0
    %146 = vperm.xlu0 %145, %v67
    %v147 = vpop.permute.xlu0 %146
    %150 = vset.pattern.permute.xlu0 0
    %151 = vperm.xlu0 %150, %v68
    %v152 = vpop.permute.xlu0 %151
    %155 = vset.pattern.permute.xlu0 0
    %156 = vperm.xlu0 %155, %v69
    %v157 = vpop.permute.xlu0 %156
    %160 = vset.pattern.permute.xlu0 0
    %161 = vperm.xlu0 %160, %v70
    %v162 = vpop.permute.xlu0 %161
    %165 = vset.pattern.permute.xlu0 0
    %166 = vperm.xlu0 %165, %v71
    %v167 = vpop.permute.xlu0 %166
    %170 = vset.pattern.permute.xlu0 0
    %171 = vperm.xlu0 %170, %v72
    %v172 = vpop.permute.xlu0 %171
    %175 = vset.pattern.permute.xlu0 0
    %176 = vperm.xlu0 %175, %v73
    %v177 = vpop.permute.xlu0 %176
    %180 = vset.pattern.permute.xlu0 0
    %181 = vperm.xlu0 %180, %v74
    %v182 = vpop.permute.xlu0 %181
    %185 = vset.pattern.permute.xlu0 0
    %186 = vperm.xlu0 %185, %v75
    %v187 = vpop.permute.xlu0 %186
    %190 = vset.pattern.permute.xlu0 0
    %191 = vperm.xlu0 %190, %v76
    %v192 = vpop.permute.xlu0 %191
    %195 = vset.pattern.permute.xlu0 0
    %196 = vperm.xlu0 %195, %v77
    %v197 = vpop.permute.xlu0 %196
    %200 = vset.pattern.permute.xlu0 0
    %201 = vperm.xlu0 %200, %v78
    %v202 = vpop.permute.xlu0 %201
    %205 = vset.pattern.permute.xlu0 0
    %206 = vperm.xlu0 %205, %v79
    %v207 = vpop.permute.xlu0 %206
    %210 = vset.pattern.permute.xlu0 0
    %211 = vperm.xlu0 %210, %v80
    %v212 = vpop.permute.xlu0 %211
    %215 = vset.pattern.permute.xlu0 0
    %216 = vperm.xlu0 %215, %v81
    %v217 = vpop.permute.xlu0 %216
    %220 = vset.pattern.permute.xlu0 0
    %221 = vperm.xlu0 %220, %v82
    %v222 = vpop.permute.xlu0 %221
    %225 = vset.pattern.permute.xlu0 0
    %226 = vperm.xlu0 %225, %v83
    %v227 = vpop.permute.xlu0 %226
    %230 = vset.pattern.permute.xlu0 0
    %231 = vperm.xlu0 %230, %v84
    %v232 = vpop.permute.xlu0 %231
    %235 = vset.pattern.permute.xlu0 0
    %236 = vperm.xlu0 %235, %v85
    %v237 = vpop.permute.xlu0 %236
    %240 = vset.pattern.permute.xlu0 0
    %241 = vperm.xlu0 %240, %v86
    %v242 = vpop.permute.xlu0 %241
    %245 = vset.pattern.permute.xlu0 0
    %246 = vperm.xlu0 %245, %v87
    %v247 = vpop.permute.xlu0 %246
    %v249 = vperm.slane %v88, 0
    %v250 = vmul.f32 %v92, %v249
    %v251 = vmul.f32 %v97, %v249
    %v252 = vmul.f32 %v102, %v249
    %v253 = vmul.f32 %v107, %v249
    %v254 = vmul.f32 %v112, %v249
    %v255 = vmul.f32 %v117, %v249
    %v256 = vmul.f32 %v122, %v249
    %v257 = vmul.f32 %v127, %v249
    %v258 = vmul.f32 %v132, %v249
    %v259 = vmul.f32 %v137, %v249
    %v260 = vmul.f32 %v142, %v249
    %v261 = vmul.f32 %v147, %v249
    %v262 = vmul.f32 %v152, %v249
    %v263 = vmul.f32 %v157, %v249
    %v264 = vmul.f32 %v162, %v249
    %v265 = vmul.f32 %v167, %v249
    %v266 = vmul.f32 %v172, %v249
    %v267 = vmul.f32 %v177, %v249
    %v268 = vmul.f32 %v182, %v249
    %v269 = vmul.f32 %v187, %v249
    %v270 = vmul.f32 %v192, %v249
    %v271 = vmul.f32 %v197, %v249
    %v272 = vmul.f32 %v202, %v249
    %v273 = vmul.f32 %v207, %v249
    %v274 = vmul.f32 %v212, %v249
    %v275 = vmul.f32 %v217, %v249
    %v276 = vmul.f32 %v222, %v249
    %v277 = vmul.f32 %v227, %v249
    %v278 = vmul.f32 %v232, %v249
    %v279 = vmul.f32 %v237, %v249
    %v280 = vmul.f32 %v242, %v249
    %v281 = vmul.f32 %v247, %v249
    %282 = vset.pattern.permute.xlu0 1
    %283 = vperm.xlu0 %282, %v56
    %v284 = vpop.permute.xlu0 %283
    %286 = vset.pattern.permute.xlu0 1
    %287 = vperm.xlu0 %286, %v57
    %v288 = vpop.permute.xlu0 %287
    %290 = vset.pattern.permute.xlu0 1
    %291 = vperm.xlu0 %290, %v58
    %v292 = vpop.permute.xlu0 %291
    %294 = vset.pattern.permute.xlu0 1
    %295 = vperm.xlu0 %294, %v59
    %v296 = vpop.permute.xlu0 %295
    %298 = vset.pattern.permute.xlu0 1
    %299 = vperm.xlu0 %298, %v60
    %v300 = vpop.permute.xlu0 %299
    %302 = vset.pattern.permute.xlu0 1
    %303 = vperm.xlu0 %302, %v61
    %v304 = vpop.permute.xlu0 %303
    %306 = vset.pattern.permute.xlu0 1
    %307 = vperm.xlu0 %306, %v62
    %v308 = vpop.permute.xlu0 %307
    %310 = vset.pattern.permute.xlu0 1
    %311 = vperm.xlu0 %310, %v63
    %v312 = vpop.permute.xlu0 %311
    %314 = vset.pattern.permute.xlu0 1
    %315 = vperm.xlu0 %314, %v64
    %v316 = vpop.permute.xlu0 %315
    %318 = vset.pattern.permute.xlu0 1
    %319 = vperm.xlu0 %318, %v65
    %v320 = vpop.permute.xlu0 %319
    %322 = vset.pattern.permute.xlu0 1
    %323 = vperm.xlu0 %322, %v66
    %v324 = vpop.permute.xlu0 %323
    %326 = vset.pattern.permute.xlu0 1
    %327 = vperm.xlu0 %326, %v67
    %v328 = vpop.permute.xlu0 %327
    %330 = vset.pattern.permute.xlu0 1
    %331 = vperm.xlu0 %330, %v68
    %v332 = vpop.permute.xlu0 %331
    %334 = vset.pattern.permute.xlu0 1
    %335 = vperm.xlu0 %334, %v69
    %v336 = vpop.permute.xlu0 %335
    %338 = vset.pattern.permute.xlu0 1
    %339 = vperm.xlu0 %338, %v70
    %v340 = vpop.permute.xlu0 %339
    %342 = vset.pattern.permute.xlu0 1
    %343 = vperm.xlu0 %342, %v71
    %v344 = vpop.permute.xlu0 %343
    %346 = vset.pattern.permute.xlu0 1
    %347 = vperm.xlu0 %346, %v72
    %v348 = vpop.permute.xlu0 %347
    %350 = vset.pattern.permute.xlu0 1
    %351 = vperm.xlu0 %350, %v73
    %v352 = vpop.permute.xlu0 %351
    %354 = vset.pattern.permute.xlu0 1
    %355 = vperm.xlu0 %354, %v74
    %v356 = vpop.permute.xlu0 %355
    %358 = vset.pattern.permute.xlu0 1
    %359 = vperm.xlu0 %358, %v75
    %v360 = vpop.permute.xlu0 %359
    %362 = vset.pattern.permute.xlu0 1
    %363 = vperm.xlu0 %362, %v76
    %v364 = vpop.permute.xlu0 %363
    %366 = vset.pattern.permute.xlu0 1
    %367 = vperm.xlu0 %366, %v77
    %v368 = vpop.permute.xlu0 %367
    %370 = vset.pattern.permute.xlu0 1
    %371 = vperm.xlu0 %370, %v78
    %v372 = vpop.permute.xlu0 %371
    %374 = vset.pattern.permute.xlu0 1
    %375 = vperm.xlu0 %374, %v79
    %v376 = vpop.permute.xlu0 %375
    %378 = vset.pattern.permute.xlu0 1
    %379 = vperm.xlu0 %378, %v80
    %v380 = vpop.permute.xlu0 %379
    %382 = vset.pattern.permute.xlu0 1
    %383 = vperm.xlu0 %382, %v81
    %v384 = vpop.permute.xlu0 %383
    %386 = vset.pattern.permute.xlu0 1
    %387 = vperm.xlu0 %386, %v82
    %v388 = vpop.permute.xlu0 %387
    %390 = vset.pattern.permute.xlu0 1
    %391 = vperm.xlu0 %390, %v83
    %v392 = vpop.permute.xlu0 %391
    %394 = vset.pattern.permute.xlu0 1
    %395 = vperm.xlu0 %394, %v84
    %v396 = vpop.permute.xlu0 %395
    %398 = vset.pattern.permute.xlu0 1
    %399 = vperm.xlu0 %398, %v85
    %v400 = vpop.permute.xlu0 %399
    %402 = vset.pattern.permute.xlu0 1
    %403 = vperm.xlu0 %402, %v86
    %v404 = vpop.permute.xlu0 %403
    %406 = vset.pattern.permute.xlu0 1
    %407 = vperm.xlu0 %406, %v87
    %v408 = vpop.permute.xlu0 %407
    %v410 = vperm.slane %v88, 1
    %v411 = vmul.f32 %v284, %v410
    %v412 = vmul.f32 %v288, %v410
    %v413 = vmul.f32 %v292, %v410
    %v414 = vmul.f32 %v296, %v410
    %v415 = vmul.f32 %v300, %v410
    %v416 = vmul.f32 %v304, %v410
    %v417 = vmul.f32 %v308, %v410
    %v418 = vmul.f32 %v312, %v410
    %v419 = vmul.f32 %v316, %v410
    %v420 = vmul.f32 %v320, %v410
    %v421 = vmul.f32 %v324, %v410
    %v422 = vmul.f32 %v328, %v410
    %v423 = vmul.f32 %v332, %v410
    %v424 = vmul.f32 %v336, %v410
    %v425 = vmul.f32 %v340, %v410
    %v426 = vmul.f32 %v344, %v410
    %v427 = vmul.f32 %v348, %v410
    %v428 = vmul.f32 %v352, %v410
    %v429 = vmul.f32 %v356, %v410
    %v430 = vmul.f32 %v360, %v410
    %v431 = vmul.f32 %v364, %v410
    %v432 = vmul.f32 %v368, %v410
    %v433 = vmul.f32 %v372, %v410
    %v434 = vmul.f32 %v376, %v410
    %v435 = vmul.f32 %v380, %v410
    %v436 = vmul.f32 %v384, %v410
    %v437 = vmul.f32 %v388, %v410
    %v438 = vmul.f32 %v392, %v410
    %v439 = vmul.f32 %v396, %v410
    %v440 = vmul.f32 %v400, %v410
    %v441 = vmul.f32 %v404, %v410
    %v442 = vmul.f32 %v408, %v410
    %v443 = vadd.f32 %v250, %v411
    %v444 = vadd.f32 %v251, %v412
    %v445 = vadd.f32 %v252, %v413
    %v446 = vadd.f32 %v253, %v414
    %v447 = vadd.f32 %v254, %v415
    %v448 = vadd.f32 %v255, %v416
    %v449 = vadd.f32 %v256, %v417
    %v450 = vadd.f32 %v257, %v418
    %v451 = vadd.f32 %v258, %v419
    %v452 = vadd.f32 %v259, %v420
    %v453 = vadd.f32 %v260, %v421
    %v454 = vadd.f32 %v261, %v422
    %v455 = vadd.f32 %v262, %v423
    %v456 = vadd.f32 %v263, %v424
    %v457 = vadd.f32 %v264, %v425
    %v458 = vadd.f32 %v265, %v426
    %v459 = vadd.f32 %v266, %v427
    %v460 = vadd.f32 %v267, %v428
    %v461 = vadd.f32 %v268, %v429
    %v462 = vadd.f32 %v269, %v430
    %v463 = vadd.f32 %v270, %v431
    %v464 = vadd.f32 %v271, %v432
    %v465 = vadd.f32 %v272, %v433
    %v466 = vadd.f32 %v273, %v434
    %v467 = vadd.f32 %v274, %v435
    %v468 = vadd.f32 %v275, %v436
    %v469 = vadd.f32 %v276, %v437
    %v470 = vadd.f32 %v277, %v438
    %v471 = vadd.f32 %v278, %v439
    %v472 = vadd.f32 %v279, %v440
    %v473 = vadd.f32 %v280, %v441
    %v474 = vadd.f32 %v281, %v442
    %475 = vset.pattern.permute.xlu0 2
    %476 = vperm.xlu0 %475, %v56
    %v477 = vpop.permute.xlu0 %476
    %479 = vset.pattern.permute.xlu0 2
    %480 = vperm.xlu0 %479, %v57
    %v481 = vpop.permute.xlu0 %480
    %483 = vset.pattern.permute.xlu0 2
    %484 = vperm.xlu0 %483, %v58
    %v485 = vpop.permute.xlu0 %484
    %487 = vset.pattern.permute.xlu0 2
    %488 = vperm.xlu0 %487, %v59
    %v489 = vpop.permute.xlu0 %488
    %491 = vset.pattern.permute.xlu0 2
    %492 = vperm.xlu0 %491, %v60
    %v493 = vpop.permute.xlu0 %492
    %495 = vset.pattern.permute.xlu0 2
    %496 = vperm.xlu0 %495, %v61
    %v497 = vpop.permute.xlu0 %496
    %499 = vset.pattern.permute.xlu0 2
    %500 = vperm.xlu0 %499, %v62
    %v501 = vpop.permute.xlu0 %500
    %503 = vset.pattern.permute.xlu0 2
    %504 = vperm.xlu0 %503, %v63
    %v505 = vpop.permute.xlu0 %504
    %507 = vset.pattern.permute.xlu0 2
    %508 = vperm.xlu0 %507, %v64
    %v509 = vpop.permute.xlu0 %508
    %511 = vset.pattern.permute.xlu0 2
    %512 = vperm.xlu0 %511, %v65
    %v513 = vpop.permute.xlu0 %512
    %515 = vset.pattern.permute.xlu0 2
    %516 = vperm.xlu0 %515, %v66
    %v517 = vpop.permute.xlu0 %516
    %519 = vset.pattern.permute.xlu0 2
    %520 = vperm.xlu0 %519, %v67
    %v521 = vpop.permute.xlu0 %520
    %523 = vset.pattern.permute.xlu0 2
    %524 = vperm.xlu0 %523, %v68
    %v525 = vpop.permute.xlu0 %524
    %527 = vset.pattern.permute.xlu0 2
    %528 = vperm.xlu0 %527, %v69
    %v529 = vpop.permute.xlu0 %528
    %531 = vset.pattern.permute.xlu0 2
    %532 = vperm.xlu0 %531, %v70
    %v533 = vpop.permute.xlu0 %532
    %535 = vset.pattern.permute.xlu0 2
    %536 = vperm.xlu0 %535, %v71
    %v537 = vpop.permute.xlu0 %536
    %539 = vset.pattern.permute.xlu0 2
    %540 = vperm.xlu0 %539, %v72
    %v541 = vpop.permute.xlu0 %540
    %543 = vset.pattern.permute.xlu0 2
    %544 = vperm.xlu0 %543, %v73
    %v545 = vpop.permute.xlu0 %544
    %547 = vset.pattern.permute.xlu0 2
    %548 = vperm.xlu0 %547, %v74
    %v549 = vpop.permute.xlu0 %548
    %551 = vset.pattern.permute.xlu0 2
    %552 = vperm.xlu0 %551, %v75
    %v553 = vpop.permute.xlu0 %552
    %555 = vset.pattern.permute.xlu0 2
    %556 = vperm.xlu0 %555, %v76
    %v557 = vpop.permute.xlu0 %556
    %559 = vset.pattern.permute.xlu0 2
    %560 = vperm.xlu0 %559, %v77
    %v561 = vpop.permute.xlu0 %560
    %563 = vset.pattern.permute.xlu0 2
    %564 = vperm.xlu0 %563, %v78
    %v565 = vpop.permute.xlu0 %564
    %567 = vset.pattern.permute.xlu0 2
    %568 = vperm.xlu0 %567, %v79
    %v569 = vpop.permute.xlu0 %568
    %571 = vset.pattern.permute.xlu0 2
    %572 = vperm.xlu0 %571, %v80
    %v573 = vpop.permute.xlu0 %572
    %575 = vset.pattern.permute.xlu0 2
    %576 = vperm.xlu0 %575, %v81
    %v577 = vpop.permute.xlu0 %576
    %579 = vset.pattern.permute.xlu0 2
    %580 = vperm.xlu0 %579, %v82
    %v581 = vpop.permute.xlu0 %580
    %583 = vset.pattern.permute.xlu0 2
    %584 = vperm.xlu0 %583, %v83
    %v585 = vpop.permute.xlu0 %584
    %587 = vset.pattern.permute.xlu0 2
    %588 = vperm.xlu0 %587, %v84
    %v589 = vpop.permute.xlu0 %588
    %591 = vset.pattern.permute.xlu0 2
    %592 = vperm.xlu0 %591, %v85
    %v593 = vpop.permute.xlu0 %592
    %595 = vset.pattern.permute.xlu0 2
    %596 = vperm.xlu0 %595, %v86
    %v597 = vpop.permute.xlu0 %596
    %599 = vset.pattern.permute.xlu0 2
    %600 = vperm.xlu0 %599, %v87
    %v601 = vpop.permute.xlu0 %600
    %v603 = vperm.slane %v88, 2
    %v604 = vmul.f32 %v477, %v603
    %v605 = vmul.f32 %v481, %v603
    %v606 = vmul.f32 %v485, %v603
    %v607 = vmul.f32 %v489, %v603
    %v608 = vmul.f32 %v493, %v603
    %v609 = vmul.f32 %v497, %v603
    %v610 = vmul.f32 %v501, %v603
    %v611 = vmul.f32 %v505, %v603
    %v612 = vmul.f32 %v509, %v603
    %v613 = vmul.f32 %v513, %v603
    %v614 = vmul.f32 %v517, %v603
    %v615 = vmul.f32 %v521, %v603
    %v616 = vmul.f32 %v525, %v603
    %v617 = vmul.f32 %v529, %v603
    %v618 = vmul.f32 %v533, %v603
    %v619 = vmul.f32 %v537, %v603
    %v620 = vmul.f32 %v541, %v603
    %v621 = vmul.f32 %v545, %v603
    %v622 = vmul.f32 %v549, %v603
    %v623 = vmul.f32 %v553, %v603
    %v624 = vmul.f32 %v557, %v603
    %v625 = vmul.f32 %v561, %v603
    %v626 = vmul.f32 %v565, %v603
    %v627 = vmul.f32 %v569, %v603
    %v628 = vmul.f32 %v573, %v603
    %v629 = vmul.f32 %v577, %v603
    %v630 = vmul.f32 %v581, %v603
    %v631 = vmul.f32 %v585, %v603
    %v632 = vmul.f32 %v589, %v603
    %v633 = vmul.f32 %v593, %v603
    %v634 = vmul.f32 %v597, %v603
    %v635 = vmul.f32 %v601, %v603
    %v636 = vadd.f32 %v443, %v604
    %v637 = vadd.f32 %v444, %v605
    %v638 = vadd.f32 %v445, %v606
    %v639 = vadd.f32 %v446, %v607
    %v640 = vadd.f32 %v447, %v608
    %v641 = vadd.f32 %v448, %v609
    %v642 = vadd.f32 %v449, %v610
    %v643 = vadd.f32 %v450, %v611
    %v644 = vadd.f32 %v451, %v612
    %v645 = vadd.f32 %v452, %v613
    %v646 = vadd.f32 %v453, %v614
    %v647 = vadd.f32 %v454, %v615
    %v648 = vadd.f32 %v455, %v616
    %v649 = vadd.f32 %v456, %v617
    %v650 = vadd.f32 %v457, %v618
    %v651 = vadd.f32 %v458, %v619
    %v652 = vadd.f32 %v459, %v620
    %v653 = vadd.f32 %v460, %v621
    %v654 = vadd.f32 %v461, %v622
    %v655 = vadd.f32 %v462, %v623
    %v656 = vadd.f32 %v463, %v624
    %v657 = vadd.f32 %v464, %v625
    %v658 = vadd.f32 %v465, %v626
    %v659 = vadd.f32 %v466, %v627
    %v660 = vadd.f32 %v467, %v628
    %v661 = vadd.f32 %v468, %v629
    %v662 = vadd.f32 %v469, %v630
    %v663 = vadd.f32 %v470, %v631
    %v664 = vadd.f32 %v471, %v632
    %v665 = vadd.f32 %v472, %v633
    %v666 = vadd.f32 %v473, %v634
    %v667 = vadd.f32 %v474, %v635
    %vm668 = vcmask 523264
    %v669 = vsel %vm668, %v636, 0.0
    %v670 = vsel %vm668, %v637, 0.0
    %v671 = vadd.f32 %v669, %v670
    %v672 = vsel %vm668, %v638, 0.0
    %v673 = vadd.f32 %v671, %v672
    %v674 = vsel %vm668, %v639, 0.0
    %v675 = vadd.f32 %v673, %v674
    %v676 = vsel %vm668, %v640, 0.0
    %v677 = vadd.f32 %v675, %v676
    %v678 = vsel %vm668, %v641, 0.0
    %v679 = vadd.f32 %v677, %v678
    %v680 = vsel %vm668, %v642, 0.0
    %v681 = vadd.f32 %v679, %v680
    %v682 = vsel %vm668, %v643, 0.0
    %v683 = vadd.f32 %v681, %v682
    %v684 = vsel %vm668, %v644, 0.0
    %v685 = vadd.f32 %v683, %v684
    %v686 = vsel %vm668, %v645, 0.0
    %v687 = vadd.f32 %v685, %v686
    %v688 = vsel %vm668, %v646, 0.0
    %v689 = vadd.f32 %v687, %v688
    %v690 = vsel %vm668, %v647, 0.0
    %v691 = vadd.f32 %v689, %v690
    %v692 = vsel %vm668, %v648, 0.0
    %v693 = vadd.f32 %v691, %v692
    %v694 = vsel %vm668, %v649, 0.0
    %v695 = vadd.f32 %v693, %v694
    %v696 = vsel %vm668, %v650, 0.0
    %v697 = vadd.f32 %v695, %v696
    %v698 = vsel %vm668, %v651, 0.0
    %v699 = vadd.f32 %v697, %v698
    %v700 = vsel %vm668, %v652, 0.0
    %v701 = vadd.f32 %v699, %v700
    %v702 = vsel %vm668, %v653, 0.0
    %v703 = vadd.f32 %v701, %v702
    %v704 = vsel %vm668, %v654, 0.0
    %v705 = vadd.f32 %v703, %v704
    %v706 = vsel %vm668, %v655, 0.0
    %v707 = vadd.f32 %v705, %v706
    %v708 = vsel %vm668, %v656, 0.0
    %v709 = vadd.f32 %v707, %v708
    %v710 = vsel %vm668, %v657, 0.0
    %v711 = vadd.f32 %v709, %v710
    %v712 = vsel %vm668, %v658, 0.0
    %v713 = vadd.f32 %v711, %v712
    %v714 = vsel %vm668, %v659, 0.0
    %v715 = vadd.f32 %v713, %v714
    %v716 = vsel %vm668, %v660, 0.0
    %v717 = vadd.f32 %v715, %v716
    %v718 = vsel %vm668, %v661, 0.0
    %v719 = vadd.f32 %v717, %v718
    %v720 = vsel %vm668, %v662, 0.0
    %v721 = vadd.f32 %v719, %v720
    %v722 = vsel %vm668, %v663, 0.0
    %v723 = vadd.f32 %v721, %v722
    %v724 = vsel %vm668, %v664, 0.0
    %v725 = vadd.f32 %v723, %v724
    %v726 = vsel %vm668, %v665, 0.0
    %v727 = vadd.f32 %v725, %v726
    %v728 = vsel %vm668, %v666, 0.0
    %v729 = vadd.f32 %v727, %v728
    %v730 = vsel %vm668, %v667, 0.0
    %v731 = vadd.f32 %v729, %v730
    %v732 = vrot.slane %v731, 4
    %v733 = vadd.f32 %v731, %v732
    %v734 = vrot.slane %v733, 2
    %v735 = vadd.f32 %v733, %v734
    %v736 = vrot.slane %v735, 1
    %v737 = vadd.f32 %v735, %v736
    %v738 = vmul.f32 %v636, %v636
    %v739 = vmul.f32 %v637, %v637
    %v740 = vmul.f32 %v638, %v638
    %v741 = vmul.f32 %v639, %v639
    %v742 = vmul.f32 %v640, %v640
    %v743 = vmul.f32 %v641, %v641
    %v744 = vmul.f32 %v642, %v642
    %v745 = vmul.f32 %v643, %v643
    %v746 = vmul.f32 %v644, %v644
    %v747 = vmul.f32 %v645, %v645
    %v748 = vmul.f32 %v646, %v646
    %v749 = vmul.f32 %v647, %v647
    %v750 = vmul.f32 %v648, %v648
    %v751 = vmul.f32 %v649, %v649
    %v752 = vmul.f32 %v650, %v650
    %v753 = vmul.f32 %v651, %v651
    %v754 = vmul.f32 %v652, %v652
    %v755 = vmul.f32 %v653, %v653
    %v756 = vmul.f32 %v654, %v654
    %v757 = vmul.f32 %v655, %v655
    %v758 = vmul.f32 %v656, %v656
    %v759 = vmul.f32 %v657, %v657
    %v760 = vmul.f32 %v658, %v658
    %v761 = vmul.f32 %v659, %v659
    %v762 = vmul.f32 %v660, %v660
    %v763 = vmul.f32 %v661, %v661
    %v764 = vmul.f32 %v662, %v662
    %v765 = vmul.f32 %v663, %v663
    %v766 = vmul.f32 %v664, %v664
    %v767 = vmul.f32 %v665, %v665
    %v768 = vmul.f32 %v666, %v666
    %v769 = vmul.f32 %v667, %v667
    %v770 = vsel %vm668, %v738, 0.0
    %v771 = vsel %vm668, %v739, 0.0
    %v772 = vadd.f32 %v770, %v771
    %v773 = vsel %vm668, %v740, 0.0
    %v774 = vadd.f32 %v772, %v773
    %v775 = vsel %vm668, %v741, 0.0
    %v776 = vadd.f32 %v774, %v775
    %v777 = vsel %vm668, %v742, 0.0
    %v778 = vadd.f32 %v776, %v777
    %v779 = vsel %vm668, %v743, 0.0
    %v780 = vadd.f32 %v778, %v779
    %v781 = vsel %vm668, %v744, 0.0
    %v782 = vadd.f32 %v780, %v781
    %v783 = vsel %vm668, %v745, 0.0
    %v784 = vadd.f32 %v782, %v783
    %v785 = vsel %vm668, %v746, 0.0
    %v786 = vadd.f32 %v784, %v785
    %v787 = vsel %vm668, %v747, 0.0
    %v788 = vadd.f32 %v786, %v787
    %v789 = vsel %vm668, %v748, 0.0
    %v790 = vadd.f32 %v788, %v789
    %v791 = vsel %vm668, %v749, 0.0
    %v792 = vadd.f32 %v790, %v791
    %v793 = vsel %vm668, %v750, 0.0
    %v794 = vadd.f32 %v792, %v793
    %v795 = vsel %vm668, %v751, 0.0
    %v796 = vadd.f32 %v794, %v795
    %v797 = vsel %vm668, %v752, 0.0
    %v798 = vadd.f32 %v796, %v797
    %v799 = vsel %vm668, %v753, 0.0
    %v800 = vadd.f32 %v798, %v799
    %v801 = vsel %vm668, %v754, 0.0
    %v802 = vadd.f32 %v800, %v801
    %v803 = vsel %vm668, %v755, 0.0
    %v804 = vadd.f32 %v802, %v803
    %v805 = vsel %vm668, %v756, 0.0
    %v806 = vadd.f32 %v804, %v805
    %v807 = vsel %vm668, %v757, 0.0
    %v808 = vadd.f32 %v806, %v807
    %v809 = vsel %vm668, %v758, 0.0
    %v810 = vadd.f32 %v808, %v809
    %v811 = vsel %vm668, %v759, 0.0
    %v812 = vadd.f32 %v810, %v811
    %v813 = vsel %vm668, %v760, 0.0
    %v814 = vadd.f32 %v812, %v813
    %v815 = vsel %vm668, %v761, 0.0
    %v816 = vadd.f32 %v814, %v815
    %v817 = vsel %vm668, %v762, 0.0
    %v818 = vadd.f32 %v816, %v817
    %v819 = vsel %vm668, %v763, 0.0
    %v820 = vadd.f32 %v818, %v819
    %v821 = vsel %vm668, %v764, 0.0
    %v822 = vadd.f32 %v820, %v821
    %v823 = vsel %vm668, %v765, 0.0
    %v824 = vadd.f32 %v822, %v823
    %v825 = vsel %vm668, %v766, 0.0
    %v826 = vadd.f32 %v824, %v825
    %v827 = vsel %vm668, %v767, 0.0
    %v828 = vadd.f32 %v826, %v827
    %v829 = vsel %vm668, %v768, 0.0
    %v830 = vadd.f32 %v828, %v829
    %v831 = vsel %vm668, %v769, 0.0
    %v832 = vadd.f32 %v830, %v831
    %v833 = vrot.slane %v832, 4
    %v834 = vadd.f32 %v832, %v833
    %v835 = vrot.slane %v834, 2
    %v836 = vadd.f32 %v834, %v835
    %v837 = vrot.slane %v836, 1
    %v838 = vadd.f32 %v836, %v837
    %v839 = vmul.f32 %v737, 0.00390625
    %v840 = vmul.f32 %v838, 0.00390625
    %v841 = vmul.f32 %v839, %v839
    %v842 = vsub.f32 %v840, %v841
    %v843 = vmax.f32 %v842, 0.0
    %v844 = vadd.f32 %v843, 1e-05
    %v845 = vrsqrt.pop %v844
    %v846 = vmul.f32 %v845, %v844
    %v847 = vmul.f32 %v846, %v845
    %v848 = vmul.f32 0.5, %v847
    %v849 = vsub.f32 1.5, %v848
    %v850 = vmul.f32 %v845, %v849
    %vm851 = vweird.f32 %v844
    %vm852 = vweird.f32 %v845
    %vm853 = vmor %vm851, %vm852
    %v854 = vsel %vm853, %v845, %v850
    %v855 = vsub.f32 %v636, %v839
    %v856 = vsub.f32 %v637, %v839
    %v857 = vsub.f32 %v638, %v839
    %v858 = vsub.f32 %v639, %v839
    %v859 = vsub.f32 %v640, %v839
    %v860 = vsub.f32 %v641, %v839
    %v861 = vsub.f32 %v642, %v839
    %v862 = vsub.f32 %v643, %v839
    %v863 = vsub.f32 %v644, %v839
    %v864 = vsub.f32 %v645, %v839
    %v865 = vsub.f32 %v646, %v839
    %v866 = vsub.f32 %v647, %v839
    %v867 = vsub.f32 %v648, %v839
    %v868 = vsub.f32 %v649, %v839
    %v869 = vsub.f32 %v650, %v839
    %v870 = vsub.f32 %v651, %v839
    %v871 = vsub.f32 %v652, %v839
    %v872 = vsub.f32 %v653, %v839
    %v873 = vsub.f32 %v654, %v839
    %v874 = vsub.f32 %v655, %v839
    %v875 = vsub.f32 %v656, %v839
    %v876 = vsub.f32 %v657, %v839
    %v877 = vsub.f32 %v658, %v839
    %v878 = vsub.f32 %v659, %v839
    %v879 = vsub.f32 %v660, %v839
    %v880 = vsub.f32 %v661, %v839
    %v881 = vsub.f32 %v662, %v839
    %v882 = vsub.f32 %v663, %v839
    %v883 = vsub.f32 %v664, %v839
    %v884 = vsub.f32 %v665, %v839
    %v885 = vsub.f32 %v666, %v839
    %v886 = vsub.f32 %v667, %v839
    %v887 = vmul.f32 %v855, %v854
    %v888 = vmul.f32 %v856, %v854
    %v889 = vmul.f32 %v857, %v854
    %v890 = vmul.f32 %v858, %v854
    %v891 = vmul.f32 %v859, %v854
    %v892 = vmul.f32 %v860, %v854
    %v893 = vmul.f32 %v861, %v854
    %v894 = vmul.f32 %v862, %v854
    %v895 = vmul.f32 %v863, %v854
    %v896 = vmul.f32 %v864, %v854
    %v897 = vmul.f32 %v865, %v854
    %v898 = vmul.f32 %v866, %v854
    %v899 = vmul.f32 %v867, %v854
    %v900 = vmul.f32 %v868, %v854
    %v901 = vmul.f32 %v869, %v854
    %v902 = vmul.f32 %v870, %v854
    %v903 = vmul.f32 %v871, %v854
    %v904 = vmul.f32 %v872, %v854
    %v905 = vmul.f32 %v873, %v854
    %v906 = vmul.f32 %v874, %v854
    %v907 = vmul.f32 %v875, %v854
    %v908 = vmul.f32 %v876, %v854
    %v909 = vmul.f32 %v877, %v854
    %v910 = vmul.f32 %v878, %v854
    %v911 = vmul.f32 %v879, %v854
    %v912 = vmul.f32 %v880, %v854
    %v913 = vmul.f32 %v881, %v854
    %v914 = vmul.f32 %v882, %v854
    %v915 = vmul.f32 %v883, %v854
    %v916 = vmul.f32 %v884, %v854
    %v917 = vmul.f32 %v885, %v854
    %v918 = vmul.f32 %v886, %v854
    %v919 = vmax.f32 %v887, 0.0
    %v920 = vmax.f32 %v888, 0.0
    %v921 = vmax.f32 %v889, 0.0
    %v922 = vmax.f32 %v890, 0.0
    %v923 = vmax.f32 %v891, 0.0
    %v924 = vmax.f32 %v892, 0.0
    %v925 = vmax.f32 %v893, 0.0
    %v926 = vmax.f32 %v894, 0.0
    %v927 = vmax.f32 %v895, 0.0
    %v928 = vmax.f32 %v896, 0.0
    %v929 = vmax.f32 %v897, 0.0
    %v930 = vmax.f32 %v898, 0.0
    %v931 = vmax.f32 %v899, 0.0
    %v932 = vmax.f32 %v900, 0.0
    %v933 = vmax.f32 %v901, 0.0
    %v934 = vmax.f32 %v902, 0.0
    %v935 = vmax.f32 %v903, 0.0
    %v936 = vmax.f32 %v904, 0.0
    %v937 = vmax.f32 %v905, 0.0
    %v938 = vmax.f32 %v906, 0.0
    %v939 = vmax.f32 %v907, 0.0
    %v940 = vmax.f32 %v908, 0.0
    %v941 = vmax.f32 %v909, 0.0
    %v942 = vmax.f32 %v910, 0.0
    %v943 = vmax.f32 %v911, 0.0
    %v944 = vmax.f32 %v912, 0.0
    %v945 = vmax.f32 %v913, 0.0
    %v946 = vmax.f32 %v914, 0.0
    %v947 = vmax.f32 %v915, 0.0
    %v948 = vmax.f32 %v916, 0.0
    %v949 = vmax.f32 %v917, 0.0
    %v950 = vmax.f32 %v918, 0.0
    %v951 = vlaneseq
    %v952 = vshrl.u32 %v951, 7
    %v953 = vadd.s32 %v952, 8
    %v954 = vadd.s32 %v952, 16
    %v955 = vadd.s32 %v952, 24
    %v956 = vadd.s32 %v952, 32
    %v957 = vadd.s32 %v952, 40
    %v958 = vadd.s32 %v952, 48
    %v959 = vadd.s32 %v952, 56
    %v960 = vadd.s32 %v952, 64
    %v961 = vadd.s32 %v952, 72
    %v962 = vadd.s32 %v952, 80
    %v963 = vadd.s32 %v952, 88
    %v964 = vadd.s32 %v952, 96
    %v965 = vadd.s32 %v952, 104
    %v966 = vadd.s32 %v952, 112
    %v967 = vadd.s32 %v952, 120
    %v968 = vadd.s32 %v952, 128
    %v969 = vadd.s32 %v952, 136
    %v970 = vadd.s32 %v952, 144
    %v971 = vadd.s32 %v952, 152
    %v972 = vadd.s32 %v952, 160
    %v973 = vadd.s32 %v952, 168
    %v974 = vadd.s32 %v952, 176
    %v975 = vadd.s32 %v952, 184
    %v976 = vadd.s32 %v952, 192
    %v977 = vadd.s32 %v952, 200
    %v978 = vadd.s32 %v952, 208
    %v979 = vadd.s32 %v952, 216
    %v980 = vadd.s32 %v952, 224
    %v981 = vadd.s32 %v952, 232
    %v982 = vadd.s32 %v952, 240
    %v983 = vadd.s32 %v952, 248
    %vm984 = vcmp.lt.s32.totalorder %v952, 0
    %v985 = vsub.s32 0, %v952
    %v986 = vsel %vm984, %v985, %v952
    %v987 = vshrl.u32 %v986, 7
    %v988 = vand.u32 %v986, 127
    %v989 = vsub.s32 0, %v988
    %v990 = vsel %vm984, %v989, %v988
    %vm991 = vcmp.lt.s32.totalorder %v953, 0
    %v992 = vsub.s32 0, %v953
    %v993 = vsel %vm991, %v992, %v953
    %v994 = vshrl.u32 %v993, 7
    %v995 = vand.u32 %v993, 127
    %v996 = vsub.s32 0, %v995
    %v997 = vsel %vm991, %v996, %v995
    %vm998 = vcmp.lt.s32.totalorder %v954, 0
    %v999 = vsub.s32 0, %v954
    %v1000 = vsel %vm998, %v999, %v954
    %v1001 = vshrl.u32 %v1000, 7
    %v1002 = vand.u32 %v1000, 127
    %v1003 = vsub.s32 0, %v1002
    %v1004 = vsel %vm998, %v1003, %v1002
    %vm1005 = vcmp.lt.s32.totalorder %v955, 0
    %v1006 = vsub.s32 0, %v955
    %v1007 = vsel %vm1005, %v1006, %v955
    %v1008 = vshrl.u32 %v1007, 7
    %v1009 = vand.u32 %v1007, 127
    %v1010 = vsub.s32 0, %v1009
    %v1011 = vsel %vm1005, %v1010, %v1009
    %vm1012 = vcmp.lt.s32.totalorder %v956, 0
    %v1013 = vsub.s32 0, %v956
    %v1014 = vsel %vm1012, %v1013, %v956
    %v1015 = vshrl.u32 %v1014, 7
    %v1016 = vand.u32 %v1014, 127
    %v1017 = vsub.s32 0, %v1016
    %v1018 = vsel %vm1012, %v1017, %v1016
    %vm1019 = vcmp.lt.s32.totalorder %v957, 0
    %v1020 = vsub.s32 0, %v957
    %v1021 = vsel %vm1019, %v1020, %v957
    %v1022 = vshrl.u32 %v1021, 7
    %v1023 = vand.u32 %v1021, 127
    %v1024 = vsub.s32 0, %v1023
    %v1025 = vsel %vm1019, %v1024, %v1023
    %vm1026 = vcmp.lt.s32.totalorder %v958, 0
    %v1027 = vsub.s32 0, %v958
    %v1028 = vsel %vm1026, %v1027, %v958
    %v1029 = vshrl.u32 %v1028, 7
    %v1030 = vand.u32 %v1028, 127
    %v1031 = vsub.s32 0, %v1030
    %v1032 = vsel %vm1026, %v1031, %v1030
    %vm1033 = vcmp.lt.s32.totalorder %v959, 0
    %v1034 = vsub.s32 0, %v959
    %v1035 = vsel %vm1033, %v1034, %v959
    %v1036 = vshrl.u32 %v1035, 7
    %v1037 = vand.u32 %v1035, 127
    %v1038 = vsub.s32 0, %v1037
    %v1039 = vsel %vm1033, %v1038, %v1037
    %vm1040 = vcmp.lt.s32.totalorder %v960, 0
    %v1041 = vsub.s32 0, %v960
    %v1042 = vsel %vm1040, %v1041, %v960
    %v1043 = vshrl.u32 %v1042, 7
    %v1044 = vand.u32 %v1042, 127
    %v1045 = vsub.s32 0, %v1044
    %v1046 = vsel %vm1040, %v1045, %v1044
    %vm1047 = vcmp.lt.s32.totalorder %v961, 0
    %v1048 = vsub.s32 0, %v961
    %v1049 = vsel %vm1047, %v1048, %v961
    %v1050 = vshrl.u32 %v1049, 7
    %v1051 = vand.u32 %v1049, 127
    %v1052 = vsub.s32 0, %v1051
    %v1053 = vsel %vm1047, %v1052, %v1051
    %vm1054 = vcmp.lt.s32.totalorder %v962, 0
    %v1055 = vsub.s32 0, %v962
    %v1056 = vsel %vm1054, %v1055, %v962
    %v1057 = vshrl.u32 %v1056, 7
    %v1058 = vand.u32 %v1056, 127
    %v1059 = vsub.s32 0, %v1058
    %v1060 = vsel %vm1054, %v1059, %v1058
    %vm1061 = vcmp.lt.s32.totalorder %v963, 0
    %v1062 = vsub.s32 0, %v963
    %v1063 = vsel %vm1061, %v1062, %v963
    %v1064 = vshrl.u32 %v1063, 7
    %v1065 = vand.u32 %v1063, 127
    %v1066 = vsub.s32 0, %v1065
    %v1067 = vsel %vm1061, %v1066, %v1065
    %vm1068 = vcmp.lt.s32.totalorder %v964, 0
    %v1069 = vsub.s32 0, %v964
    %v1070 = vsel %vm1068, %v1069, %v964
    %v1071 = vshrl.u32 %v1070, 7
    %v1072 = vand.u32 %v1070, 127
    %v1073 = vsub.s32 0, %v1072
    %v1074 = vsel %vm1068, %v1073, %v1072
    %vm1075 = vcmp.lt.s32.totalorder %v965, 0
    %v1076 = vsub.s32 0, %v965
    %v1077 = vsel %vm1075, %v1076, %v965
    %v1078 = vshrl.u32 %v1077, 7
    %v1079 = vand.u32 %v1077, 127
    %v1080 = vsub.s32 0, %v1079
    %v1081 = vsel %vm1075, %v1080, %v1079
    %vm1082 = vcmp.lt.s32.totalorder %v966, 0
    %v1083 = vsub.s32 0, %v966
    %v1084 = vsel %vm1082, %v1083, %v966
    %v1085 = vshrl.u32 %v1084, 7
    %v1086 = vand.u32 %v1084, 127
    %v1087 = vsub.s32 0, %v1086
    %v1088 = vsel %vm1082, %v1087, %v1086
    %vm1089 = vcmp.lt.s32.totalorder %v967, 0
    %v1090 = vsub.s32 0, %v967
    %v1091 = vsel %vm1089, %v1090, %v967
    %v1092 = vshrl.u32 %v1091, 7
    %v1093 = vand.u32 %v1091, 127
    %v1094 = vsub.s32 0, %v1093
    %v1095 = vsel %vm1089, %v1094, %v1093
    %vm1096 = vcmp.lt.s32.totalorder %v968, 0
    %v1097 = vsub.s32 0, %v968
    %v1098 = vsel %vm1096, %v1097, %v968
    %v1099 = vshrl.u32 %v1098, 7
    %v1100 = vand.u32 %v1098, 127
    %v1101 = vsub.s32 0, %v1100
    %v1102 = vsel %vm1096, %v1101, %v1100
    %vm1103 = vcmp.lt.s32.totalorder %v969, 0
    %v1104 = vsub.s32 0, %v969
    %v1105 = vsel %vm1103, %v1104, %v969
    %v1106 = vshrl.u32 %v1105, 7
    %v1107 = vand.u32 %v1105, 127
    %v1108 = vsub.s32 0, %v1107
    %v1109 = vsel %vm1103, %v1108, %v1107
    %vm1110 = vcmp.lt.s32.totalorder %v970, 0
    %v1111 = vsub.s32 0, %v970
    %v1112 = vsel %vm1110, %v1111, %v970
    %v1113 = vshrl.u32 %v1112, 7
    %v1114 = vand.u32 %v1112, 127
    %v1115 = vsub.s32 0, %v1114
    %v1116 = vsel %vm1110, %v1115, %v1114
    %vm1117 = vcmp.lt.s32.totalorder %v971, 0
    %v1118 = vsub.s32 0, %v971
    %v1119 = vsel %vm1117, %v1118, %v971
    %v1120 = vshrl.u32 %v1119, 7
    %v1121 = vand.u32 %v1119, 127
    %v1122 = vsub.s32 0, %v1121
    %v1123 = vsel %vm1117, %v1122, %v1121
    %vm1124 = vcmp.lt.s32.totalorder %v972, 0
    %v1125 = vsub.s32 0, %v972
    %v1126 = vsel %vm1124, %v1125, %v972
    %v1127 = vshrl.u32 %v1126, 7
    %v1128 = vand.u32 %v1126, 127
    %v1129 = vsub.s32 0, %v1128
    %v1130 = vsel %vm1124, %v1129, %v1128
    %vm1131 = vcmp.lt.s32.totalorder %v973, 0
    %v1132 = vsub.s32 0, %v973
    %v1133 = vsel %vm1131, %v1132, %v973
    %v1134 = vshrl.u32 %v1133, 7
    %v1135 = vand.u32 %v1133, 127
    %v1136 = vsub.s32 0, %v1135
    %v1137 = vsel %vm1131, %v1136, %v1135
    %vm1138 = vcmp.lt.s32.totalorder %v974, 0
    %v1139 = vsub.s32 0, %v974
    %v1140 = vsel %vm1138, %v1139, %v974
    %v1141 = vshrl.u32 %v1140, 7
    %v1142 = vand.u32 %v1140, 127
    %v1143 = vsub.s32 0, %v1142
    %v1144 = vsel %vm1138, %v1143, %v1142
    %vm1145 = vcmp.lt.s32.totalorder %v975, 0
    %v1146 = vsub.s32 0, %v975
    %v1147 = vsel %vm1145, %v1146, %v975
    %v1148 = vshrl.u32 %v1147, 7
    %v1149 = vand.u32 %v1147, 127
    %v1150 = vsub.s32 0, %v1149
    %v1151 = vsel %vm1145, %v1150, %v1149
    %vm1152 = vcmp.lt.s32.totalorder %v976, 0
    %v1153 = vsub.s32 0, %v976
    %v1154 = vsel %vm1152, %v1153, %v976
    %v1155 = vshrl.u32 %v1154, 7
    %v1156 = vand.u32 %v1154, 127
    %v1157 = vsub.s32 0, %v1156
    %v1158 = vsel %vm1152, %v1157, %v1156
    %vm1159 = vcmp.lt.s32.totalorder %v977, 0
    %v1160 = vsub.s32 0, %v977
    %v1161 = vsel %vm1159, %v1160, %v977
    %v1162 = vshrl.u32 %v1161, 7
    %v1163 = vand.u32 %v1161, 127
    %v1164 = vsub.s32 0, %v1163
    %v1165 = vsel %vm1159, %v1164, %v1163
    %vm1166 = vcmp.lt.s32.totalorder %v978, 0
    %v1167 = vsub.s32 0, %v978
    %v1168 = vsel %vm1166, %v1167, %v978
    %v1169 = vshrl.u32 %v1168, 7
    %v1170 = vand.u32 %v1168, 127
    %v1171 = vsub.s32 0, %v1170
    %v1172 = vsel %vm1166, %v1171, %v1170
    %vm1173 = vcmp.lt.s32.totalorder %v979, 0
    %v1174 = vsub.s32 0, %v979
    %v1175 = vsel %vm1173, %v1174, %v979
    %v1176 = vshrl.u32 %v1175, 7
    %v1177 = vand.u32 %v1175, 127
    %v1178 = vsub.s32 0, %v1177
    %v1179 = vsel %vm1173, %v1178, %v1177
    %vm1180 = vcmp.lt.s32.totalorder %v980, 0
    %v1181 = vsub.s32 0, %v980
    %v1182 = vsel %vm1180, %v1181, %v980
    %v1183 = vshrl.u32 %v1182, 7
    %v1184 = vand.u32 %v1182, 127
    %v1185 = vsub.s32 0, %v1184
    %v1186 = vsel %vm1180, %v1185, %v1184
    %vm1187 = vcmp.lt.s32.totalorder %v981, 0
    %v1188 = vsub.s32 0, %v981
    %v1189 = vsel %vm1187, %v1188, %v981
    %v1190 = vshrl.u32 %v1189, 7
    %v1191 = vand.u32 %v1189, 127
    %v1192 = vsub.s32 0, %v1191
    %v1193 = vsel %vm1187, %v1192, %v1191
    %vm1194 = vcmp.lt.s32.totalorder %v982, 0
    %v1195 = vsub.s32 0, %v982
    %v1196 = vsel %vm1194, %v1195, %v982
    %v1197 = vshrl.u32 %v1196, 7
    %v1198 = vand.u32 %v1196, 127
    %v1199 = vsub.s32 0, %v1198
    %v1200 = vsel %vm1194, %v1199, %v1198
    %vm1201 = vcmp.lt.s32.totalorder %v983, 0
    %v1202 = vsub.s32 0, %v983
    %v1203 = vsel %vm1201, %v1202, %v983
    %v1204 = vshrl.u32 %v1203, 7
    %v1205 = vand.u32 %v1203, 127
    %v1206 = vsub.s32 0, %v1205
    %v1207 = vsel %vm1201, %v1206, %v1205
    %vm1208 = vcmp.ne.s32.totalorder %v990, 0
    %vm1209 = vcmp.ne.s32.totalorder %v997, 0
    %vm1210 = vcmp.ne.s32.totalorder %v1004, 0
    %vm1211 = vcmp.ne.s32.totalorder %v1011, 0
    %vm1212 = vcmp.ne.s32.totalorder %v1018, 0
    %vm1213 = vcmp.ne.s32.totalorder %v1025, 0
    %vm1214 = vcmp.ne.s32.totalorder %v1032, 0
    %vm1215 = vcmp.ne.s32.totalorder %v1039, 0
    %vm1216 = vcmp.ne.s32.totalorder %v1046, 0
    %vm1217 = vcmp.ne.s32.totalorder %v1053, 0
    %vm1218 = vcmp.ne.s32.totalorder %v1060, 0
    %vm1219 = vcmp.ne.s32.totalorder %v1067, 0
    %vm1220 = vcmp.ne.s32.totalorder %v1074, 0
    %vm1221 = vcmp.ne.s32.totalorder %v1081, 0
    %vm1222 = vcmp.ne.s32.totalorder %v1088, 0
    %vm1223 = vcmp.ne.s32.totalorder %v1095, 0
    %vm1224 = vcmp.ne.s32.totalorder %v1102, 0
    %vm1225 = vcmp.ne.s32.totalorder %v1109, 0
    %vm1226 = vcmp.ne.s32.totalorder %v1116, 0
    %vm1227 = vcmp.ne.s32.totalorder %v1123, 0
    %vm1228 = vcmp.ne.s32.totalorder %v1130, 0
    %vm1229 = vcmp.ne.s32.totalorder %v1137, 0
    %vm1230 = vcmp.ne.s32.totalorder %v1144, 0
    %vm1231 = vcmp.ne.s32.totalorder %v1151, 0
    %vm1232 = vcmp.ne.s32.totalorder %v1158, 0
    %vm1233 = vcmp.ne.s32.totalorder %v1165, 0
    %vm1234 = vcmp.ne.s32.totalorder %v1172, 0
    %vm1235 = vcmp.ne.s32.totalorder %v1179, 0
    %vm1236 = vcmp.ne.s32.totalorder %v1186, 0
    %vm1237 = vcmp.ne.s32.totalorder %v1193, 0
    %vm1238 = vcmp.ne.s32.totalorder %v1200, 0
    %vm1239 = vcmp.ne.s32.totalorder %v1207, 0
    %vm1240 = vcmp.lt.s32.totalorder %v990, 0
    %vm1241 = vcmp.lt.s32.totalorder %v997, 0
    %vm1242 = vcmp.lt.s32.totalorder %v1004, 0
    %vm1243 = vcmp.lt.s32.totalorder %v1011, 0
    %vm1244 = vcmp.lt.s32.totalorder %v1018, 0
    %vm1245 = vcmp.lt.s32.totalorder %v1025, 0
    %vm1246 = vcmp.lt.s32.totalorder %v1032, 0
    %vm1247 = vcmp.lt.s32.totalorder %v1039, 0
    %vm1248 = vcmp.lt.s32.totalorder %v1046, 0
    %vm1249 = vcmp.lt.s32.totalorder %v1053, 0
    %vm1250 = vcmp.lt.s32.totalorder %v1060, 0
    %vm1251 = vcmp.lt.s32.totalorder %v1067, 0
    %vm1252 = vcmp.lt.s32.totalorder %v1074, 0
    %vm1253 = vcmp.lt.s32.totalorder %v1081, 0
    %vm1254 = vcmp.lt.s32.totalorder %v1088, 0
    %vm1255 = vcmp.lt.s32.totalorder %v1095, 0
    %vm1256 = vcmp.lt.s32.totalorder %v1102, 0
    %vm1257 = vcmp.lt.s32.totalorder %v1109, 0
    %vm1258 = vcmp.lt.s32.totalorder %v1116, 0
    %vm1259 = vcmp.lt.s32.totalorder %v1123, 0
    %vm1260 = vcmp.lt.s32.totalorder %v1130, 0
    %vm1261 = vcmp.lt.s32.totalorder %v1137, 0
    %vm1262 = vcmp.lt.s32.totalorder %v1144, 0
    %vm1263 = vcmp.lt.s32.totalorder %v1151, 0
    %vm1264 = vcmp.lt.s32.totalorder %v1158, 0
    %vm1265 = vcmp.lt.s32.totalorder %v1165, 0
    %vm1266 = vcmp.lt.s32.totalorder %v1172, 0
    %vm1267 = vcmp.lt.s32.totalorder %v1179, 0
    %vm1268 = vcmp.lt.s32.totalorder %v1186, 0
    %vm1269 = vcmp.lt.s32.totalorder %v1193, 0
    %vm1270 = vcmp.lt.s32.totalorder %v1200, 0
    %vm1271 = vcmp.lt.s32.totalorder %v1207, 0
    %vm1272 = vmand %vm1240, %vm1208
    %vm1273 = vmand %vm1241, %vm1209
    %vm1274 = vmand %vm1242, %vm1210
    %vm1275 = vmand %vm1243, %vm1211
    %vm1276 = vmand %vm1244, %vm1212
    %vm1277 = vmand %vm1245, %vm1213
    %vm1278 = vmand %vm1246, %vm1214
    %vm1279 = vmand %vm1247, %vm1215
    %vm1280 = vmand %vm1248, %vm1216
    %vm1281 = vmand %vm1249, %vm1217
    %vm1282 = vmand %vm1250, %vm1218
    %vm1283 = vmand %vm1251, %vm1219
    %vm1284 = vmand %vm1252, %vm1220
    %vm1285 = vmand %vm1253, %vm1221
    %vm1286 = vmand %vm1254, %vm1222
    %vm1287 = vmand %vm1255, %vm1223
    %vm1288 = vmand %vm1256, %vm1224
    %vm1289 = vmand %vm1257, %vm1225
    %vm1290 = vmand %vm1258, %vm1226
    %vm1291 = vmand %vm1259, %vm1227
    %vm1292 = vmand %vm1260, %vm1228
    %vm1293 = vmand %vm1261, %vm1229
    %vm1294 = vmand %vm1262, %vm1230
    %vm1295 = vmand %vm1263, %vm1231
    %vm1296 = vmand %vm1264, %vm1232
    %vm1297 = vmand %vm1265, %vm1233
    %vm1298 = vmand %vm1266, %vm1234
    %vm1299 = vmand %vm1267, %vm1235
    %vm1300 = vmand %vm1268, %vm1236
    %vm1301 = vmand %vm1269, %vm1237
    %vm1302 = vmand %vm1270, %vm1238
    %vm1303 = vmand %vm1271, %vm1239
    %v1304 = vadd.s32 %v990, 128
    %v1305 = vadd.s32 %v997, 128
    %v1306 = vadd.s32 %v1004, 128
    %v1307 = vadd.s32 %v1011, 128
    %v1308 = vadd.s32 %v1018, 128
    %v1309 = vadd.s32 %v1025, 128
    %v1310 = vadd.s32 %v1032, 128
    %v1311 = vadd.s32 %v1039, 128
    %v1312 = vadd.s32 %v1046, 128
    %v1313 = vadd.s32 %v1053, 128
    %v1314 = vadd.s32 %v1060, 128
    %v1315 = vadd.s32 %v1067, 128
    %v1316 = vadd.s32 %v1074, 128
    %v1317 = vadd.s32 %v1081, 128
    %v1318 = vadd.s32 %v1088, 128
    %v1319 = vadd.s32 %v1095, 128
    %v1320 = vadd.s32 %v1102, 128
    %v1321 = vadd.s32 %v1109, 128
    %v1322 = vadd.s32 %v1116, 128
    %v1323 = vadd.s32 %v1123, 128
    %v1324 = vadd.s32 %v1130, 128
    %v1325 = vadd.s32 %v1137, 128
    %v1326 = vadd.s32 %v1144, 128
    %v1327 = vadd.s32 %v1151, 128
    %v1328 = vadd.s32 %v1158, 128
    %v1329 = vadd.s32 %v1165, 128
    %v1330 = vadd.s32 %v1172, 128
    %v1331 = vadd.s32 %v1179, 128
    %v1332 = vadd.s32 %v1186, 128
    %v1333 = vadd.s32 %v1193, 128
    %v1334 = vadd.s32 %v1200, 128
    %v1335 = vadd.s32 %v1207, 128
    %v1336 = vsel %vm1272, %v1304, %v990
    %v1337 = vsel %vm1273, %v1305, %v997
    %v1338 = vsel %vm1274, %v1306, %v1004
    %v1339 = vsel %vm1275, %v1307, %v1011
    %v1340 = vsel %vm1276, %v1308, %v1018
    %v1341 = vsel %vm1277, %v1309, %v1025
    %v1342 = vsel %vm1278, %v1310, %v1032
    %v1343 = vsel %vm1279, %v1311, %v1039
    %v1344 = vsel %vm1280, %v1312, %v1046
    %v1345 = vsel %vm1281, %v1313, %v1053
    %v1346 = vsel %vm1282, %v1314, %v1060
    %v1347 = vsel %vm1283, %v1315, %v1067
    %v1348 = vsel %vm1284, %v1316, %v1074
    %v1349 = vsel %vm1285, %v1317, %v1081
    %v1350 = vsel %vm1286, %v1318, %v1088
    %v1351 = vsel %vm1287, %v1319, %v1095
    %v1352 = vsel %vm1288, %v1320, %v1102
    %v1353 = vsel %vm1289, %v1321, %v1109
    %v1354 = vsel %vm1290, %v1322, %v1116
    %v1355 = vsel %vm1291, %v1323, %v1123
    %v1356 = vsel %vm1292, %v1324, %v1130
    %v1357 = vsel %vm1293, %v1325, %v1137
    %v1358 = vsel %vm1294, %v1326, %v1144
    %v1359 = vsel %vm1295, %v1327, %v1151
    %v1360 = vsel %vm1296, %v1328, %v1158
    %v1361 = vsel %vm1297, %v1329, %v1165
    %v1362 = vsel %vm1298, %v1330, %v1172
    %v1363 = vsel %vm1299, %v1331, %v1179
    %v1364 = vsel %vm1300, %v1332, %v1186
    %v1365 = vsel %vm1301, %v1333, %v1193
    %v1366 = vsel %vm1302, %v1334, %v1200
    %v1367 = vsel %vm1303, %v1335, %v1207
    %vm1368 = vcmp.eq.s32.totalorder %v1336, 0
    %vm1369 = vcmp.eq.s32.totalorder %v1337, 0
    %vm1370 = vcmp.eq.s32.totalorder %v1338, 0
    %vm1371 = vcmp.eq.s32.totalorder %v1339, 0
    %vm1372 = vcmp.eq.s32.totalorder %v1340, 0
    %vm1373 = vcmp.eq.s32.totalorder %v1341, 0
    %vm1374 = vcmp.eq.s32.totalorder %v1342, 0
    %vm1375 = vcmp.eq.s32.totalorder %v1343, 0
    %vm1376 = vcmp.eq.s32.totalorder %v1344, 0
    %vm1377 = vcmp.eq.s32.totalorder %v1345, 0
    %vm1378 = vcmp.eq.s32.totalorder %v1346, 0
    %vm1379 = vcmp.eq.s32.totalorder %v1347, 0
    %vm1380 = vcmp.eq.s32.totalorder %v1348, 0
    %vm1381 = vcmp.eq.s32.totalorder %v1349, 0
    %vm1382 = vcmp.eq.s32.totalorder %v1350, 0
    %vm1383 = vcmp.eq.s32.totalorder %v1351, 0
    %vm1384 = vcmp.eq.s32.totalorder %v1352, 0
    %vm1385 = vcmp.eq.s32.totalorder %v1353, 0
    %vm1386 = vcmp.eq.s32.totalorder %v1354, 0
    %vm1387 = vcmp.eq.s32.totalorder %v1355, 0
    %vm1388 = vcmp.eq.s32.totalorder %v1356, 0
    %vm1389 = vcmp.eq.s32.totalorder %v1357, 0
    %vm1390 = vcmp.eq.s32.totalorder %v1358, 0
    %vm1391 = vcmp.eq.s32.totalorder %v1359, 0
    %vm1392 = vcmp.eq.s32.totalorder %v1360, 0
    %vm1393 = vcmp.eq.s32.totalorder %v1361, 0
    %vm1394 = vcmp.eq.s32.totalorder %v1362, 0
    %vm1395 = vcmp.eq.s32.totalorder %v1363, 0
    %vm1396 = vcmp.eq.s32.totalorder %v1364, 0
    %vm1397 = vcmp.eq.s32.totalorder %v1365, 0
    %vm1398 = vcmp.eq.s32.totalorder %v1366, 0
    %vm1399 = vcmp.eq.s32.totalorder %v1367, 0
    %vm1400 = vcmp.eq.s32.totalorder %v1336, 127
    %vm1401 = vcmp.eq.s32.totalorder %v1337, 127
    %vm1402 = vcmp.eq.s32.totalorder %v1338, 127
    %vm1403 = vcmp.eq.s32.totalorder %v1339, 127
    %vm1404 = vcmp.eq.s32.totalorder %v1340, 127
    %vm1405 = vcmp.eq.s32.totalorder %v1341, 127
    %vm1406 = vcmp.eq.s32.totalorder %v1342, 127
    %vm1407 = vcmp.eq.s32.totalorder %v1343, 127
    %vm1408 = vcmp.eq.s32.totalorder %v1344, 127
    %vm1409 = vcmp.eq.s32.totalorder %v1345, 127
    %vm1410 = vcmp.eq.s32.totalorder %v1346, 127
    %vm1411 = vcmp.eq.s32.totalorder %v1347, 127
    %vm1412 = vcmp.eq.s32.totalorder %v1348, 127
    %vm1413 = vcmp.eq.s32.totalorder %v1349, 127
    %vm1414 = vcmp.eq.s32.totalorder %v1350, 127
    %vm1415 = vcmp.eq.s32.totalorder %v1351, 127
    %vm1416 = vcmp.eq.s32.totalorder %v1352, 127
    %vm1417 = vcmp.eq.s32.totalorder %v1353, 127
    %vm1418 = vcmp.eq.s32.totalorder %v1354, 127
    %vm1419 = vcmp.eq.s32.totalorder %v1355, 127
    %vm1420 = vcmp.eq.s32.totalorder %v1356, 127
    %vm1421 = vcmp.eq.s32.totalorder %v1357, 127
    %vm1422 = vcmp.eq.s32.totalorder %v1358, 127
    %vm1423 = vcmp.eq.s32.totalorder %v1359, 127
    %vm1424 = vcmp.eq.s32.totalorder %v1360, 127
    %vm1425 = vcmp.eq.s32.totalorder %v1361, 127
    %vm1426 = vcmp.eq.s32.totalorder %v1362, 127
    %vm1427 = vcmp.eq.s32.totalorder %v1363, 127
    %vm1428 = vcmp.eq.s32.totalorder %v1364, 127
    %vm1429 = vcmp.eq.s32.totalorder %v1365, 127
    %vm1430 = vcmp.eq.s32.totalorder %v1366, 127
    %vm1431 = vcmp.eq.s32.totalorder %v1367, 127
    %v1432 = vpack.c.bf16 %v920, %v919
    %v1433 = vpack.c.bf16 %v922, %v921
    %v1434 = vpack.c.bf16 %v924, %v923
    %v1435 = vpack.c.bf16 %v926, %v925
    %v1436 = vpack.c.bf16 %v928, %v927
    %v1437 = vpack.c.bf16 %v930, %v929
    %v1438 = vpack.c.bf16 %v932, %v931
    %v1439 = vpack.c.bf16 %v934, %v933
    %v1440 = vpack.c.bf16 %v936, %v935
    %v1441 = vpack.c.bf16 %v938, %v937
    %v1442 = vpack.c.bf16 %v940, %v939
    %v1443 = vpack.c.bf16 %v942, %v941
    %v1444 = vpack.c.bf16 %v944, %v943
    %v1445 = vpack.c.bf16 %v946, %v945
    %v1446 = vpack.c.bf16 %v948, %v947
    %v1447 = vpack.c.bf16 %v950, %v949
    %v1448 = vld [vmem:[%s5] sm:$0xff]
    %v1449 = vld [vmem:[%s5 + $0x8] sm:$0xff]
    %v1450 = vld [vmem:[%s5 + $0x10] sm:$0xff]
    %v1451 = vld [vmem:[%s5 + $0x18] sm:$0xff]
    %v1452 = vld [vmem:[%s5 + $0x20] sm:$0xff]
    %v1453 = vld [vmem:[%s5 + $0x28] sm:$0xff]
    %v1454 = vld [vmem:[%s5 + $0x30] sm:$0xff]
    %v1455 = vld [vmem:[%s5 + $0x38] sm:$0xff]
    %v1464 = vunpack.c.l.b16 %v1448
    %v1465 = vunpack.c.h.b16 %v1448
    %v1466 = vunpack.c.l.b16 %v1449
    %v1467 = vunpack.c.h.b16 %v1449
    %v1468 = vunpack.c.l.b16 %v1450
    %v1469 = vunpack.c.h.b16 %v1450
    %v1470 = vunpack.c.l.b16 %v1451
    %v1471 = vunpack.c.h.b16 %v1451
    %v1472 = vunpack.c.l.b16 %v1452
    %v1473 = vunpack.c.h.b16 %v1452
    %v1474 = vunpack.c.l.b16 %v1453
    %v1475 = vunpack.c.h.b16 %v1453
    %v1476 = vunpack.c.l.b16 %v1454
    %v1477 = vunpack.c.h.b16 %v1454
    %v1478 = vunpack.c.l.b16 %v1455
    %v1479 = vunpack.c.h.b16 %v1455
    %v1480 = vpack.c.b16 %v1466, %v1464
    %v1481 = vpack.c.b16 %v1467, %v1465
    %v1482 = vpack.c.b16 %v1470, %v1468
    %v1483 = vpack.c.b16 %v1471, %v1469
    %v1484 = vpack.c.b16 %v1474, %v1472
    %v1485 = vpack.c.b16 %v1475, %v1473
    %v1486 = vpack.c.b16 %v1478, %v1476
    %v1487 = vpack.c.b16 %v1479, %v1477
    %v1497 = vsel %vm668, %v1432, 0
    %v1500 = vsel %vm668, %v1433, 0
    %v1503 = vsel %vm668, %v1434, 0
    %v1506 = vsel %vm668, %v1435, 0
    %v1509 = vsel %vm668, %v1436, 0
    %v1512 = vsel %vm668, %v1437, 0
    %v1515 = vsel %vm668, %v1438, 0
    %v1518 = vsel %vm668, %v1439, 0
    %v1521 = vsel %vm668, %v1440, 0
    %v1524 = vsel %vm668, %v1441, 0
    %v1527 = vsel %vm668, %v1442, 0
    %v1530 = vsel %vm668, %v1443, 0
    %v1533 = vsel %vm668, %v1444, 0
    %v1536 = vsel %vm668, %v1445, 0
    %v1539 = vsel %vm668, %v1446, 0
    %v1542 = vsel %vm668, %v1447, 0
    %1544 = vmatpush.bf16.msra.mxu0 0
    %1545 = vmatpush.bf16.msra.mxu0 0
    %1546 = vmatpush.bf16.msra.mxu0 0
    %1547 = vmatpush.bf16.msra.mxu0 0
    %1548 = vmatpush.bf16.msra.mxu0 %v1486
    %1549 = vmatpush.bf16.msra.mxu0 %v1484
    %1550 = vmatpush.bf16.msra.mxu0 %v1482
    %1551 = vmatpush.bf16.msra.mxu0 %v1480
    %1552 = vmatmul.bf16.gmra.mxu0 %v1497
    %v1553 = vpop.f32.mrf.mxu0
    %v1554 = vadd.f32 0.0, %v1553
    %v1555 = vpop.f32.mrf.mxu0
    %v1556 = vadd.f32 0.0, %v1555
    %1557 = vmatmul.bf16.gmra.mxu0 %v1500
    %v1558 = vpop.f32.mrf.mxu0
    %v1559 = vadd.f32 0.0, %v1558
    %v1560 = vpop.f32.mrf.mxu0
    %v1561 = vadd.f32 0.0, %v1560
    %1562 = vmatmul.bf16.gmra.mxu0 %v1503
    %v1563 = vpop.f32.mrf.mxu0
    %v1564 = vadd.f32 0.0, %v1563
    %v1565 = vpop.f32.mrf.mxu0
    %v1566 = vadd.f32 0.0, %v1565
    %1567 = vmatmul.bf16.gmra.mxu0 %v1506
    %v1568 = vpop.f32.mrf.mxu0
    %v1569 = vadd.f32 0.0, %v1568
    %v1570 = vpop.f32.mrf.mxu0
    %v1571 = vadd.f32 0.0, %v1570
    %1572 = vmatmul.bf16.gmra.mxu0 %v1509
    %v1573 = vpop.f32.mrf.mxu0
    %v1574 = vadd.f32 0.0, %v1573
    %v1575 = vpop.f32.mrf.mxu0
    %v1576 = vadd.f32 0.0, %v1575
    %1577 = vmatmul.bf16.gmra.mxu0 %v1512
    %v1578 = vpop.f32.mrf.mxu0
    %v1579 = vadd.f32 0.0, %v1578
    %v1580 = vpop.f32.mrf.mxu0
    %v1581 = vadd.f32 0.0, %v1580
    %1582 = vmatmul.bf16.gmra.mxu0 %v1515
    %v1583 = vpop.f32.mrf.mxu0
    %v1584 = vadd.f32 0.0, %v1583
    %v1585 = vpop.f32.mrf.mxu0
    %v1586 = vadd.f32 0.0, %v1585
    %1587 = vmatmul.bf16.gmra.mxu0 %v1518
    %v1588 = vpop.f32.mrf.mxu0
    %v1589 = vadd.f32 0.0, %v1588
    %v1590 = vpop.f32.mrf.mxu0
    %v1591 = vadd.f32 0.0, %v1590
    %1592 = vmatmul.bf16.gmra.mxu0 %v1521
    %v1593 = vpop.f32.mrf.mxu0
    %v1594 = vadd.f32 0.0, %v1593
    %v1595 = vpop.f32.mrf.mxu0
    %v1596 = vadd.f32 0.0, %v1595
    %1597 = vmatmul.bf16.gmra.mxu0 %v1524
    %v1598 = vpop.f32.mrf.mxu0
    %v1599 = vadd.f32 0.0, %v1598
    %v1600 = vpop.f32.mrf.mxu0
    %v1601 = vadd.f32 0.0, %v1600
    %1602 = vmatmul.bf16.gmra.mxu0 %v1527
    %v1603 = vpop.f32.mrf.mxu0
    %v1604 = vadd.f32 0.0, %v1603
    %v1605 = vpop.f32.mrf.mxu0
    %v1606 = vadd.f32 0.0, %v1605
    %1607 = vmatmul.bf16.gmra.mxu0 %v1530
    %v1608 = vpop.f32.mrf.mxu0
    %v1609 = vadd.f32 0.0, %v1608
    %v1610 = vpop.f32.mrf.mxu0
    %v1611 = vadd.f32 0.0, %v1610
    %1612 = vmatmul.bf16.gmra.mxu0 %v1533
    %v1613 = vpop.f32.mrf.mxu0
    %v1614 = vadd.f32 0.0, %v1613
    %v1615 = vpop.f32.mrf.mxu0
    %v1616 = vadd.f32 0.0, %v1615
    %1617 = vmatmul.bf16.gmra.mxu0 %v1536
    %v1618 = vpop.f32.mrf.mxu0
    %v1619 = vadd.f32 0.0, %v1618
    %v1620 = vpop.f32.mrf.mxu0
    %v1621 = vadd.f32 0.0, %v1620
    %1622 = vmatmul.bf16.gmra.mxu0 %v1539
    %v1623 = vpop.f32.mrf.mxu0
    %v1624 = vadd.f32 0.0, %v1623
    %v1625 = vpop.f32.mrf.mxu0
    %v1626 = vadd.f32 0.0, %v1625
    %1627 = vmatmul.bf16.gmra.mxu0 %v1542
    %v1628 = vpop.f32.mrf.mxu0
    %v1629 = vadd.f32 0.0, %v1628
    %v1630 = vpop.f32.mrf.mxu0
    %v1631 = vadd.f32 0.0, %v1630
    %1632 = vdwg.mxu0
    %1633 = vmatpush.bf16.msra.mxu0 0
    %1634 = vmatpush.bf16.msra.mxu0 0
    %1635 = vmatpush.bf16.msra.mxu0 0
    %1636 = vmatpush.bf16.msra.mxu0 0
    %1637 = vmatpush.bf16.msra.mxu0 %v1487
    %1638 = vmatpush.bf16.msra.mxu0 %v1485
    %1639 = vmatpush.bf16.msra.mxu0 %v1483
    %1640 = vmatpush.bf16.msra.mxu0 %v1481
    %1641 = vmatmul.bf16.gmra.mxu0 %v1497
    %v1642 = vpop.f32.mrf.mxu0
    %v1643 = vadd.f32 0.0, %v1642
    %v1644 = vpop.f32.mrf.mxu0
    %v1645 = vadd.f32 0.0, %v1644
    %1646 = vmatmul.bf16.gmra.mxu0 %v1500
    %v1647 = vpop.f32.mrf.mxu0
    %v1648 = vadd.f32 0.0, %v1647
    %v1649 = vpop.f32.mrf.mxu0
    %v1650 = vadd.f32 0.0, %v1649
    %1651 = vmatmul.bf16.gmra.mxu0 %v1503
    %v1652 = vpop.f32.mrf.mxu0
    %v1653 = vadd.f32 0.0, %v1652
    %v1654 = vpop.f32.mrf.mxu0
    %v1655 = vadd.f32 0.0, %v1654
    %1656 = vmatmul.bf16.gmra.mxu0 %v1506
    %v1657 = vpop.f32.mrf.mxu0
    %v1658 = vadd.f32 0.0, %v1657
    %v1659 = vpop.f32.mrf.mxu0
    %v1660 = vadd.f32 0.0, %v1659
    %1661 = vmatmul.bf16.gmra.mxu0 %v1509
    %v1662 = vpop.f32.mrf.mxu0
    %v1663 = vadd.f32 0.0, %v1662
    %v1664 = vpop.f32.mrf.mxu0
    %v1665 = vadd.f32 0.0, %v1664
    %1666 = vmatmul.bf16.gmra.mxu0 %v1512
    %v1667 = vpop.f32.mrf.mxu0
    %v1668 = vadd.f32 0.0, %v1667
    %v1669 = vpop.f32.mrf.mxu0
    %v1670 = vadd.f32 0.0, %v1669
    %1671 = vmatmul.bf16.gmra.mxu0 %v1515
    %v1672 = vpop.f32.mrf.mxu0
    %v1673 = vadd.f32 0.0, %v1672
    %v1674 = vpop.f32.mrf.mxu0
    %v1675 = vadd.f32 0.0, %v1674
    %1676 = vmatmul.bf16.gmra.mxu0 %v1518
    %v1677 = vpop.f32.mrf.mxu0
    %v1678 = vadd.f32 0.0, %v1677
    %v1679 = vpop.f32.mrf.mxu0
    %v1680 = vadd.f32 0.0, %v1679
    %1681 = vmatmul.bf16.gmra.mxu0 %v1521
    %v1682 = vpop.f32.mrf.mxu0
    %v1683 = vadd.f32 0.0, %v1682
    %v1684 = vpop.f32.mrf.mxu0
    %v1685 = vadd.f32 0.0, %v1684
    %1686 = vmatmul.bf16.gmra.mxu0 %v1524
    %v1687 = vpop.f32.mrf.mxu0
    %v1688 = vadd.f32 0.0, %v1687
    %v1689 = vpop.f32.mrf.mxu0
    %v1690 = vadd.f32 0.0, %v1689
    %1691 = vmatmul.bf16.gmra.mxu0 %v1527
    %v1692 = vpop.f32.mrf.mxu0
    %v1693 = vadd.f32 0.0, %v1692
    %v1694 = vpop.f32.mrf.mxu0
    %v1695 = vadd.f32 0.0, %v1694
    %1696 = vmatmul.bf16.gmra.mxu0 %v1530
    %v1697 = vpop.f32.mrf.mxu0
    %v1698 = vadd.f32 0.0, %v1697
    %v1699 = vpop.f32.mrf.mxu0
    %v1700 = vadd.f32 0.0, %v1699
    %1701 = vmatmul.bf16.gmra.mxu0 %v1533
    %v1702 = vpop.f32.mrf.mxu0
    %v1703 = vadd.f32 0.0, %v1702
    %v1704 = vpop.f32.mrf.mxu0
    %v1705 = vadd.f32 0.0, %v1704
    %1706 = vmatmul.bf16.gmra.mxu0 %v1536
    %v1707 = vpop.f32.mrf.mxu0
    %v1708 = vadd.f32 0.0, %v1707
    %v1709 = vpop.f32.mrf.mxu0
    %v1710 = vadd.f32 0.0, %v1709
    %1711 = vmatmul.bf16.gmra.mxu0 %v1539
    %v1712 = vpop.f32.mrf.mxu0
    %v1713 = vadd.f32 0.0, %v1712
    %v1714 = vpop.f32.mrf.mxu0
    %v1715 = vadd.f32 0.0, %v1714
    %1716 = vmatmul.bf16.gmra.mxu0 %v1542
    %v1717 = vpop.f32.mrf.mxu0
    %v1718 = vadd.f32 0.0, %v1717
    %v1719 = vpop.f32.mrf.mxu0
    %v1720 = vadd.f32 0.0, %v1719
    %1721 = vdwg.mxu0
    %vm1754 = vcmask 1040384
    %v1755 = vrot.slane %v1554, 7
    %v1756 = vrot.slane %v1556, 7
    %v1757 = vsel %vm1754, %v1755, %v1756
    %v1758 = vrot.slane %v1559, 7
    %v1759 = vsel %vm1754, %v1756, %v1758
    %v1760 = vrot.slane %v1561, 7
    %v1761 = vsel %vm1754, %v1758, %v1760
    %v1762 = vrot.slane %v1564, 7
    %v1763 = vsel %vm1754, %v1760, %v1762
    %v1764 = vrot.slane %v1566, 7
    %v1765 = vsel %vm1754, %v1762, %v1764
    %v1766 = vrot.slane %v1569, 7
    %v1767 = vsel %vm1754, %v1764, %v1766
    %v1768 = vrot.slane %v1571, 7
    %v1769 = vsel %vm1754, %v1766, %v1768
    %v1770 = vrot.slane %v1574, 7
    %v1771 = vsel %vm1754, %v1768, %v1770
    %v1772 = vrot.slane %v1576, 7
    %v1773 = vsel %vm1754, %v1770, %v1772
    %v1774 = vrot.slane %v1579, 7
    %v1775 = vsel %vm1754, %v1772, %v1774
    %v1776 = vrot.slane %v1581, 7
    %v1777 = vsel %vm1754, %v1774, %v1776
    %v1778 = vrot.slane %v1584, 7
    %v1779 = vsel %vm1754, %v1776, %v1778
    %v1780 = vrot.slane %v1586, 7
    %v1781 = vsel %vm1754, %v1778, %v1780
    %v1782 = vrot.slane %v1589, 7
    %v1783 = vsel %vm1754, %v1780, %v1782
    %v1784 = vrot.slane %v1591, 7
    %v1785 = vsel %vm1754, %v1782, %v1784
    %v1786 = vrot.slane %v1594, 7
    %v1787 = vsel %vm1754, %v1784, %v1786
    %v1788 = vrot.slane %v1596, 7
    %v1789 = vsel %vm1754, %v1786, %v1788
    %v1790 = vrot.slane %v1599, 7
    %v1791 = vsel %vm1754, %v1788, %v1790
    %v1792 = vrot.slane %v1601, 7
    %v1793 = vsel %vm1754, %v1790, %v1792
    %v1794 = vrot.slane %v1604, 7
    %v1795 = vsel %vm1754, %v1792, %v1794
    %v1796 = vrot.slane %v1606, 7
    %v1797 = vsel %vm1754, %v1794, %v1796
    %v1798 = vrot.slane %v1609, 7
    %v1799 = vsel %vm1754, %v1796, %v1798
    %v1800 = vrot.slane %v1611, 7
    %v1801 = vsel %vm1754, %v1798, %v1800
    %v1802 = vrot.slane %v1614, 7
    %v1803 = vsel %vm1754, %v1800, %v1802
    %v1804 = vrot.slane %v1616, 7
    %v1805 = vsel %vm1754, %v1802, %v1804
    %v1806 = vrot.slane %v1619, 7
    %v1807 = vsel %vm1754, %v1804, %v1806
    %v1808 = vrot.slane %v1621, 7
    %v1809 = vsel %vm1754, %v1806, %v1808
    %v1810 = vrot.slane %v1624, 7
    %v1811 = vsel %vm1754, %v1808, %v1810
    %v1812 = vrot.slane %v1626, 7
    %v1813 = vsel %vm1754, %v1810, %v1812
    %v1814 = vrot.slane %v1629, 7
    %v1815 = vsel %vm1754, %v1812, %v1814
    %v1816 = vrot.slane %v1631, 7
    %v1817 = vsel %vm1754, %v1814, %v1816
    %v1850 = vsel %vm1754, 0.0, %v1755
    %v1851 = vsel %vm1368, 1, 0
    %v1852 = vsel %vm1369, 1, 0
    %v1853 = vsel %vm1370, 1, 0
    %v1854 = vsel %vm1371, 1, 0
    %v1855 = vsel %vm1372, 1, 0
    %v1856 = vsel %vm1373, 1, 0
    %v1857 = vsel %vm1374, 1, 0
    %v1858 = vsel %vm1375, 1, 0
    %v1859 = vsel %vm1376, 1, 0
    %v1860 = vsel %vm1377, 1, 0
    %v1861 = vsel %vm1378, 1, 0
    %v1862 = vsel %vm1379, 1, 0
    %v1863 = vsel %vm1380, 1, 0
    %v1864 = vsel %vm1381, 1, 0
    %v1865 = vsel %vm1382, 1, 0
    %v1866 = vsel %vm1383, 1, 0
    %v1867 = vsel %vm1384, 1, 0
    %v1868 = vsel %vm1385, 1, 0
    %v1869 = vsel %vm1386, 1, 0
    %v1870 = vsel %vm1387, 1, 0
    %v1871 = vsel %vm1388, 1, 0
    %v1872 = vsel %vm1389, 1, 0
    %v1873 = vsel %vm1390, 1, 0
    %v1874 = vsel %vm1391, 1, 0
    %v1875 = vsel %vm1392, 1, 0
    %v1876 = vsel %vm1393, 1, 0
    %v1877 = vsel %vm1394, 1, 0
    %v1878 = vsel %vm1395, 1, 0
    %v1879 = vsel %vm1396, 1, 0
    %v1880 = vsel %vm1397, 1, 0
    %v1881 = vsel %vm1398, 1, 0
    %v1882 = vsel %vm1399, 1, 0
    %vm1883 = vcmp.eq.s32.totalorder %v1851, 1
    %vm1884 = vcmp.eq.s32.totalorder %v1852, 1
    %vm1885 = vcmp.eq.s32.totalorder %v1853, 1
    %vm1886 = vcmp.eq.s32.totalorder %v1854, 1
    %vm1887 = vcmp.eq.s32.totalorder %v1855, 1
    %vm1888 = vcmp.eq.s32.totalorder %v1856, 1
    %vm1889 = vcmp.eq.s32.totalorder %v1857, 1
    %vm1890 = vcmp.eq.s32.totalorder %v1858, 1
    %vm1891 = vcmp.eq.s32.totalorder %v1859, 1
    %vm1892 = vcmp.eq.s32.totalorder %v1860, 1
    %vm1893 = vcmp.eq.s32.totalorder %v1861, 1
    %vm1894 = vcmp.eq.s32.totalorder %v1862, 1
    %vm1895 = vcmp.eq.s32.totalorder %v1863, 1
    %vm1896 = vcmp.eq.s32.totalorder %v1864, 1
    %vm1897 = vcmp.eq.s32.totalorder %v1865, 1
    %vm1898 = vcmp.eq.s32.totalorder %v1866, 1
    %vm1899 = vcmp.eq.s32.totalorder %v1867, 1
    %vm1900 = vcmp.eq.s32.totalorder %v1868, 1
    %vm1901 = vcmp.eq.s32.totalorder %v1869, 1
    %vm1902 = vcmp.eq.s32.totalorder %v1870, 1
    %vm1903 = vcmp.eq.s32.totalorder %v1871, 1
    %vm1904 = vcmp.eq.s32.totalorder %v1872, 1
    %vm1905 = vcmp.eq.s32.totalorder %v1873, 1
    %vm1906 = vcmp.eq.s32.totalorder %v1874, 1
    %vm1907 = vcmp.eq.s32.totalorder %v1875, 1
    %vm1908 = vcmp.eq.s32.totalorder %v1876, 1
    %vm1909 = vcmp.eq.s32.totalorder %v1877, 1
    %vm1910 = vcmp.eq.s32.totalorder %v1878, 1
    %vm1911 = vcmp.eq.s32.totalorder %v1879, 1
    %vm1912 = vcmp.eq.s32.totalorder %v1880, 1
    %vm1913 = vcmp.eq.s32.totalorder %v1881, 1
    %vm1914 = vcmp.eq.s32.totalorder %v1882, 1
    %v1915 = vsel %vm1883, 0.0, %v1850
    %v1916 = vsel %vm1884, 0.0, %v1757
    %v1917 = vsel %vm1885, 0.0, %v1759
    %v1918 = vsel %vm1886, 0.0, %v1761
    %v1919 = vsel %vm1887, 0.0, %v1763
    %v1920 = vsel %vm1888, 0.0, %v1765
    %v1921 = vsel %vm1889, 0.0, %v1767
    %v1922 = vsel %vm1890, 0.0, %v1769
    %v1923 = vsel %vm1891, 0.0, %v1771
    %v1924 = vsel %vm1892, 0.0, %v1773
    %v1925 = vsel %vm1893, 0.0, %v1775
    %v1926 = vsel %vm1894, 0.0, %v1777
    %v1927 = vsel %vm1895, 0.0, %v1779
    %v1928 = vsel %vm1896, 0.0, %v1781
    %v1929 = vsel %vm1897, 0.0, %v1783
    %v1930 = vsel %vm1898, 0.0, %v1785
    %v1931 = vsel %vm1899, 0.0, %v1787
    %v1932 = vsel %vm1900, 0.0, %v1789
    %v1933 = vsel %vm1901, 0.0, %v1791
    %v1934 = vsel %vm1902, 0.0, %v1793
    %v1935 = vsel %vm1903, 0.0, %v1795
    %v1936 = vsel %vm1904, 0.0, %v1797
    %v1937 = vsel %vm1905, 0.0, %v1799
    %v1938 = vsel %vm1906, 0.0, %v1801
    %v1939 = vsel %vm1907, 0.0, %v1803
    %v1940 = vsel %vm1908, 0.0, %v1805
    %v1941 = vsel %vm1909, 0.0, %v1807
    %v1942 = vsel %vm1910, 0.0, %v1809
    %v1943 = vsel %vm1911, 0.0, %v1811
    %v1944 = vsel %vm1912, 0.0, %v1813
    %v1945 = vsel %vm1913, 0.0, %v1815
    %v1946 = vsel %vm1914, 0.0, %v1817
    %vm1979 = vcmask 1046528
    %v1980 = vrot.slane %v1643, 1
    %v1981 = vrot.slane %v1645, 1
    %v1982 = vsel %vm1979, %v1980, %v1981
    %v1983 = vrot.slane %v1648, 1
    %v1984 = vsel %vm1979, %v1981, %v1983
    %v1985 = vrot.slane %v1650, 1
    %v1986 = vsel %vm1979, %v1983, %v1985
    %v1987 = vrot.slane %v1653, 1
    %v1988 = vsel %vm1979, %v1985, %v1987
    %v1989 = vrot.slane %v1655, 1
    %v1990 = vsel %vm1979, %v1987, %v1989
    %v1991 = vrot.slane %v1658, 1
    %v1992 = vsel %vm1979, %v1989, %v1991
    %v1993 = vrot.slane %v1660, 1
    %v1994 = vsel %vm1979, %v1991, %v1993
    %v1995 = vrot.slane %v1663, 1
    %v1996 = vsel %vm1979, %v1993, %v1995
    %v1997 = vrot.slane %v1665, 1
    %v1998 = vsel %vm1979, %v1995, %v1997
    %v1999 = vrot.slane %v1668, 1
    %v2000 = vsel %vm1979, %v1997, %v1999
    %v2001 = vrot.slane %v1670, 1
    %v2002 = vsel %vm1979, %v1999, %v2001
    %v2003 = vrot.slane %v1673, 1
    %v2004 = vsel %vm1979, %v2001, %v2003
    %v2005 = vrot.slane %v1675, 1
    %v2006 = vsel %vm1979, %v2003, %v2005
    %v2007 = vrot.slane %v1678, 1
    %v2008 = vsel %vm1979, %v2005, %v2007
    %v2009 = vrot.slane %v1680, 1
    %v2010 = vsel %vm1979, %v2007, %v2009
    %v2011 = vrot.slane %v1683, 1
    %v2012 = vsel %vm1979, %v2009, %v2011
    %v2013 = vrot.slane %v1685, 1
    %v2014 = vsel %vm1979, %v2011, %v2013
    %v2015 = vrot.slane %v1688, 1
    %v2016 = vsel %vm1979, %v2013, %v2015
    %v2017 = vrot.slane %v1690, 1
    %v2018 = vsel %vm1979, %v2015, %v2017
    %v2019 = vrot.slane %v1693, 1
    %v2020 = vsel %vm1979, %v2017, %v2019
    %v2021 = vrot.slane %v1695, 1
    %v2022 = vsel %vm1979, %v2019, %v2021
    %v2023 = vrot.slane %v1698, 1
    %v2024 = vsel %vm1979, %v2021, %v2023
    %v2025 = vrot.slane %v1700, 1
    %v2026 = vsel %vm1979, %v2023, %v2025
    %v2027 = vrot.slane %v1703, 1
    %v2028 = vsel %vm1979, %v2025, %v2027
    %v2029 = vrot.slane %v1705, 1
    %v2030 = vsel %vm1979, %v2027, %v2029
    %v2031 = vrot.slane %v1708, 1
    %v2032 = vsel %vm1979, %v2029, %v2031
    %v2033 = vrot.slane %v1710, 1
    %v2034 = vsel %vm1979, %v2031, %v2033
    %v2035 = vrot.slane %v1713, 1
    %v2036 = vsel %vm1979, %v2033, %v2035
    %v2037 = vrot.slane %v1715, 1
    %v2038 = vsel %vm1979, %v2035, %v2037
    %v2039 = vrot.slane %v1718, 1
    %v2040 = vsel %vm1979, %v2037, %v2039
    %v2041 = vrot.slane %v1720, 1
    %v2042 = vsel %vm1979, %v2039, %v2041
    %v2075 = vsel %vm1979, %v2041, 0.0
    %v2076 = vsel %vm1400, 1, 0
    %v2077 = vsel %vm1401, 1, 0
    %v2078 = vsel %vm1402, 1, 0
    %v2079 = vsel %vm1403, 1, 0
    %v2080 = vsel %vm1404, 1, 0
    %v2081 = vsel %vm1405, 1, 0
    %v2082 = vsel %vm1406, 1, 0
    %v2083 = vsel %vm1407, 1, 0
    %v2084 = vsel %vm1408, 1, 0
    %v2085 = vsel %vm1409, 1, 0
    %v2086 = vsel %vm1410, 1, 0
    %v2087 = vsel %vm1411, 1, 0
    %v2088 = vsel %vm1412, 1, 0
    %v2089 = vsel %vm1413, 1, 0
    %v2090 = vsel %vm1414, 1, 0
    %v2091 = vsel %vm1415, 1, 0
    %v2092 = vsel %vm1416, 1, 0
    %v2093 = vsel %vm1417, 1, 0
    %v2094 = vsel %vm1418, 1, 0
    %v2095 = vsel %vm1419, 1, 0
    %v2096 = vsel %vm1420, 1, 0
    %v2097 = vsel %vm1421, 1, 0
    %v2098 = vsel %vm1422, 1, 0
    %v2099 = vsel %vm1423, 1, 0
    %v2100 = vsel %vm1424, 1, 0
    %v2101 = vsel %vm1425, 1, 0
    %v2102 = vsel %vm1426, 1, 0
    %v2103 = vsel %vm1427, 1, 0
    %v2104 = vsel %vm1428, 1, 0
    %v2105 = vsel %vm1429, 1, 0
    %v2106 = vsel %vm1430, 1, 0
    %v2107 = vsel %vm1431, 1, 0
    %vm2108 = vcmp.eq.s32.totalorder %v2076, 1
    %vm2109 = vcmp.eq.s32.totalorder %v2077, 1
    %vm2110 = vcmp.eq.s32.totalorder %v2078, 1
    %vm2111 = vcmp.eq.s32.totalorder %v2079, 1
    %vm2112 = vcmp.eq.s32.totalorder %v2080, 1
    %vm2113 = vcmp.eq.s32.totalorder %v2081, 1
    %vm2114 = vcmp.eq.s32.totalorder %v2082, 1
    %vm2115 = vcmp.eq.s32.totalorder %v2083, 1
    %vm2116 = vcmp.eq.s32.totalorder %v2084, 1
    %vm2117 = vcmp.eq.s32.totalorder %v2085, 1
    %vm2118 = vcmp.eq.s32.totalorder %v2086, 1
    %vm2119 = vcmp.eq.s32.totalorder %v2087, 1
    %vm2120 = vcmp.eq.s32.totalorder %v2088, 1
    %vm2121 = vcmp.eq.s32.totalorder %v2089, 1
    %vm2122 = vcmp.eq.s32.totalorder %v2090, 1
    %vm2123 = vcmp.eq.s32.totalorder %v2091, 1
    %vm2124 = vcmp.eq.s32.totalorder %v2092, 1
    %vm2125 = vcmp.eq.s32.totalorder %v2093, 1
    %vm2126 = vcmp.eq.s32.totalorder %v2094, 1
    %vm2127 = vcmp.eq.s32.totalorder %v2095, 1
    %vm2128 = vcmp.eq.s32.totalorder %v2096, 1
    %vm2129 = vcmp.eq.s32.totalorder %v2097, 1
    %vm2130 = vcmp.eq.s32.totalorder %v2098, 1
    %vm2131 = vcmp.eq.s32.totalorder %v2099, 1
    %vm2132 = vcmp.eq.s32.totalorder %v2100, 1
    %vm2133 = vcmp.eq.s32.totalorder %v2101, 1
    %vm2134 = vcmp.eq.s32.totalorder %v2102, 1
    %vm2135 = vcmp.eq.s32.totalorder %v2103, 1
    %vm2136 = vcmp.eq.s32.totalorder %v2104, 1
    %vm2137 = vcmp.eq.s32.totalorder %v2105, 1
    %vm2138 = vcmp.eq.s32.totalorder %v2106, 1
    %vm2139 = vcmp.eq.s32.totalorder %v2107, 1
    %v2140 = vsel %vm2108, 0.0, %v1982
    %v2141 = vsel %vm2109, 0.0, %v1984
    %v2142 = vsel %vm2110, 0.0, %v1986
    %v2143 = vsel %vm2111, 0.0, %v1988
    %v2144 = vsel %vm2112, 0.0, %v1990
    %v2145 = vsel %vm2113, 0.0, %v1992
    %v2146 = vsel %vm2114, 0.0, %v1994
    %v2147 = vsel %vm2115, 0.0, %v1996
    %v2148 = vsel %vm2116, 0.0, %v1998
    %v2149 = vsel %vm2117, 0.0, %v2000
    %v2150 = vsel %vm2118, 0.0, %v2002
    %v2151 = vsel %vm2119, 0.0, %v2004
    %v2152 = vsel %vm2120, 0.0, %v2006
    %v2153 = vsel %vm2121, 0.0, %v2008
    %v2154 = vsel %vm2122, 0.0, %v2010
    %v2155 = vsel %vm2123, 0.0, %v2012
    %v2156 = vsel %vm2124, 0.0, %v2014
    %v2157 = vsel %vm2125, 0.0, %v2016
    %v2158 = vsel %vm2126, 0.0, %v2018
    %v2159 = vsel %vm2127, 0.0, %v2020
    %v2160 = vsel %vm2128, 0.0, %v2022
    %v2161 = vsel %vm2129, 0.0, %v2024
    %v2162 = vsel %vm2130, 0.0, %v2026
    %v2163 = vsel %vm2131, 0.0, %v2028
    %v2164 = vsel %vm2132, 0.0, %v2030
    %v2165 = vsel %vm2133, 0.0, %v2032
    %v2166 = vsel %vm2134, 0.0, %v2034
    %v2167 = vsel %vm2135, 0.0, %v2036
    %v2168 = vsel %vm2136, 0.0, %v2038
    %v2169 = vsel %vm2137, 0.0, %v2040
    %v2170 = vsel %vm2138, 0.0, %v2042
    %v2171 = vsel %vm2139, 0.0, %v2075
    %2172 = vrot.lane.b32.xlu0 %v1554, 64
    %v2173 = vpop.permute.xlu0 %2172
    %2174 = vrot.lane.b32.xlu0 %v1556, 64
    %v2175 = vpop.permute.xlu0 %2174
    %2176 = vrot.lane.b32.xlu0 %v1559, 64
    %v2177 = vpop.permute.xlu0 %2176
    %2178 = vrot.lane.b32.xlu0 %v1561, 64
    %v2179 = vpop.permute.xlu0 %2178
    %2180 = vrot.lane.b32.xlu0 %v1564, 64
    %v2181 = vpop.permute.xlu0 %2180
    %2182 = vrot.lane.b32.xlu0 %v1566, 64
    %v2183 = vpop.permute.xlu0 %2182
    %2184 = vrot.lane.b32.xlu0 %v1569, 64
    %v2185 = vpop.permute.xlu0 %2184
    %2186 = vrot.lane.b32.xlu0 %v1571, 64
    %v2187 = vpop.permute.xlu0 %2186
    %2188 = vrot.lane.b32.xlu0 %v1574, 64
    %v2189 = vpop.permute.xlu0 %2188
    %2190 = vrot.lane.b32.xlu0 %v1576, 64
    %v2191 = vpop.permute.xlu0 %2190
    %2192 = vrot.lane.b32.xlu0 %v1579, 64
    %v2193 = vpop.permute.xlu0 %2192
    %2194 = vrot.lane.b32.xlu0 %v1581, 64
    %v2195 = vpop.permute.xlu0 %2194
    %2196 = vrot.lane.b32.xlu0 %v1584, 64
    %v2197 = vpop.permute.xlu0 %2196
    %2198 = vrot.lane.b32.xlu0 %v1586, 64
    %v2199 = vpop.permute.xlu0 %2198
    %2200 = vrot.lane.b32.xlu0 %v1589, 64
    %v2201 = vpop.permute.xlu0 %2200
    %2202 = vrot.lane.b32.xlu0 %v1591, 64
    %v2203 = vpop.permute.xlu0 %2202
    %2204 = vrot.lane.b32.xlu0 %v1594, 64
    %v2205 = vpop.permute.xlu0 %2204
    %2206 = vrot.lane.b32.xlu0 %v1596, 64
    %v2207 = vpop.permute.xlu0 %2206
    %2208 = vrot.lane.b32.xlu0 %v1599, 64
    %v2209 = vpop.permute.xlu0 %2208
    %2210 = vrot.lane.b32.xlu0 %v1601, 64
    %v2211 = vpop.permute.xlu0 %2210
    %2212 = vrot.lane.b32.xlu0 %v1604, 64
    %v2213 = vpop.permute.xlu0 %2212
    %2214 = vrot.lane.b32.xlu0 %v1606, 64
    %v2215 = vpop.permute.xlu0 %2214
    %2216 = vrot.lane.b32.xlu0 %v1609, 64
    %v2217 = vpop.permute.xlu0 %2216
    %2218 = vrot.lane.b32.xlu0 %v1611, 64
    %v2219 = vpop.permute.xlu0 %2218
    %2220 = vrot.lane.b32.xlu0 %v1614, 64
    %v2221 = vpop.permute.xlu0 %2220
    %2222 = vrot.lane.b32.xlu0 %v1616, 64
    %v2223 = vpop.permute.xlu0 %2222
    %2224 = vrot.lane.b32.xlu0 %v1619, 64
    %v2225 = vpop.permute.xlu0 %2224
    %2226 = vrot.lane.b32.xlu0 %v1621, 64
    %v2227 = vpop.permute.xlu0 %2226
    %2228 = vrot.lane.b32.xlu0 %v1624, 64
    %v2229 = vpop.permute.xlu0 %2228
    %2230 = vrot.lane.b32.xlu0 %v1626, 64
    %v2231 = vpop.permute.xlu0 %2230
    %2232 = vrot.lane.b32.xlu0 %v1629, 64
    %v2233 = vpop.permute.xlu0 %2232
    %2234 = vrot.lane.b32.xlu0 %v1631, 64
    %v2235 = vpop.permute.xlu0 %2234
    %v2268 = vadd.f32 %v1915, %v2173
    %v2269 = vadd.f32 %v1916, %v2175
    %v2270 = vadd.f32 %v1917, %v2177
    %v2271 = vadd.f32 %v1918, %v2179
    %v2272 = vadd.f32 %v1919, %v2181
    %v2273 = vadd.f32 %v1920, %v2183
    %v2274 = vadd.f32 %v1921, %v2185
    %v2275 = vadd.f32 %v1922, %v2187
    %v2276 = vadd.f32 %v1923, %v2189
    %v2277 = vadd.f32 %v1924, %v2191
    %v2278 = vadd.f32 %v1925, %v2193
    %v2279 = vadd.f32 %v1926, %v2195
    %v2280 = vadd.f32 %v1927, %v2197
    %v2281 = vadd.f32 %v1928, %v2199
    %v2282 = vadd.f32 %v1929, %v2201
    %v2283 = vadd.f32 %v1930, %v2203
    %v2284 = vadd.f32 %v1931, %v2205
    %v2285 = vadd.f32 %v1932, %v2207
    %v2286 = vadd.f32 %v1933, %v2209
    %v2287 = vadd.f32 %v1934, %v2211
    %v2288 = vadd.f32 %v1935, %v2213
    %v2289 = vadd.f32 %v1936, %v2215
    %v2290 = vadd.f32 %v1937, %v2217
    %v2291 = vadd.f32 %v1938, %v2219
    %v2292 = vadd.f32 %v1939, %v2221
    %v2293 = vadd.f32 %v1940, %v2223
    %v2294 = vadd.f32 %v1941, %v2225
    %v2295 = vadd.f32 %v1942, %v2227
    %v2296 = vadd.f32 %v1943, %v2229
    %v2297 = vadd.f32 %v1944, %v2231
    %v2298 = vadd.f32 %v1945, %v2233
    %v2299 = vadd.f32 %v1946, %v2235
    %v2300 = vadd.f32 %v2268, %v2140
    %v2301 = vadd.f32 %v2269, %v2141
    %v2302 = vadd.f32 %v2270, %v2142
    %v2303 = vadd.f32 %v2271, %v2143
    %v2304 = vadd.f32 %v2272, %v2144
    %v2305 = vadd.f32 %v2273, %v2145
    %v2306 = vadd.f32 %v2274, %v2146
    %v2307 = vadd.f32 %v2275, %v2147
    %v2308 = vadd.f32 %v2276, %v2148
    %v2309 = vadd.f32 %v2277, %v2149
    %v2310 = vadd.f32 %v2278, %v2150
    %v2311 = vadd.f32 %v2279, %v2151
    %v2312 = vadd.f32 %v2280, %v2152
    %v2313 = vadd.f32 %v2281, %v2153
    %v2314 = vadd.f32 %v2282, %v2154
    %v2315 = vadd.f32 %v2283, %v2155
    %v2316 = vadd.f32 %v2284, %v2156
    %v2317 = vadd.f32 %v2285, %v2157
    %v2318 = vadd.f32 %v2286, %v2158
    %v2319 = vadd.f32 %v2287, %v2159
    %v2320 = vadd.f32 %v2288, %v2160
    %v2321 = vadd.f32 %v2289, %v2161
    %v2322 = vadd.f32 %v2290, %v2162
    %v2323 = vadd.f32 %v2291, %v2163
    %v2324 = vadd.f32 %v2292, %v2164
    %v2325 = vadd.f32 %v2293, %v2165
    %v2326 = vadd.f32 %v2294, %v2166
    %v2327 = vadd.f32 %v2295, %v2167
    %v2328 = vadd.f32 %v2296, %v2168
    %v2329 = vadd.f32 %v2297, %v2169
    %v2330 = vadd.f32 %v2298, %v2170
    %v2331 = vadd.f32 %v2299, %v2171
    %v2332 = vsel %vm668, %v2300, 0.0
    %v2333 = vsel %vm668, %v2301, 0.0
    %v2334 = vadd.f32 %v2332, %v2333
    %v2335 = vsel %vm668, %v2302, 0.0
    %v2336 = vadd.f32 %v2334, %v2335
    %v2337 = vsel %vm668, %v2303, 0.0
    %v2338 = vadd.f32 %v2336, %v2337
    %v2339 = vsel %vm668, %v2304, 0.0
    %v2340 = vadd.f32 %v2338, %v2339
    %v2341 = vsel %vm668, %v2305, 0.0
    %v2342 = vadd.f32 %v2340, %v2341
    %v2343 = vsel %vm668, %v2306, 0.0
    %v2344 = vadd.f32 %v2342, %v2343
    %v2345 = vsel %vm668, %v2307, 0.0
    %v2346 = vadd.f32 %v2344, %v2345
    %v2347 = vsel %vm668, %v2308, 0.0
    %v2348 = vadd.f32 %v2346, %v2347
    %v2349 = vsel %vm668, %v2309, 0.0
    %v2350 = vadd.f32 %v2348, %v2349
    %v2351 = vsel %vm668, %v2310, 0.0
    %v2352 = vadd.f32 %v2350, %v2351
    %v2353 = vsel %vm668, %v2311, 0.0
    %v2354 = vadd.f32 %v2352, %v2353
    %v2355 = vsel %vm668, %v2312, 0.0
    %v2356 = vadd.f32 %v2354, %v2355
    %v2357 = vsel %vm668, %v2313, 0.0
    %v2358 = vadd.f32 %v2356, %v2357
    %v2359 = vsel %vm668, %v2314, 0.0
    %v2360 = vadd.f32 %v2358, %v2359
    %v2361 = vsel %vm668, %v2315, 0.0
    %v2362 = vadd.f32 %v2360, %v2361
    %v2363 = vsel %vm668, %v2316, 0.0
    %v2364 = vadd.f32 %v2362, %v2363
    %v2365 = vsel %vm668, %v2317, 0.0
    %v2366 = vadd.f32 %v2364, %v2365
    %v2367 = vsel %vm668, %v2318, 0.0
    %v2368 = vadd.f32 %v2366, %v2367
    %v2369 = vsel %vm668, %v2319, 0.0
    %v2370 = vadd.f32 %v2368, %v2369
    %v2371 = vsel %vm668, %v2320, 0.0
    %v2372 = vadd.f32 %v2370, %v2371
    %v2373 = vsel %vm668, %v2321, 0.0
    %v2374 = vadd.f32 %v2372, %v2373
    %v2375 = vsel %vm668, %v2322, 0.0
    %v2376 = vadd.f32 %v2374, %v2375
    %v2377 = vsel %vm668, %v2323, 0.0
    %v2378 = vadd.f32 %v2376, %v2377
    %v2379 = vsel %vm668, %v2324, 0.0
    %v2380 = vadd.f32 %v2378, %v2379
    %v2381 = vsel %vm668, %v2325, 0.0
    %v2382 = vadd.f32 %v2380, %v2381
    %v2383 = vsel %vm668, %v2326, 0.0
    %v2384 = vadd.f32 %v2382, %v2383
    %v2385 = vsel %vm668, %v2327, 0.0
    %v2386 = vadd.f32 %v2384, %v2385
    %v2387 = vsel %vm668, %v2328, 0.0
    %v2388 = vadd.f32 %v2386, %v2387
    %v2389 = vsel %vm668, %v2329, 0.0
    %v2390 = vadd.f32 %v2388, %v2389
    %v2391 = vsel %vm668, %v2330, 0.0
    %v2392 = vadd.f32 %v2390, %v2391
    %v2393 = vsel %vm668, %v2331, 0.0
    %v2394 = vadd.f32 %v2392, %v2393
    %v2395 = vrot.slane %v2394, 4
    %v2396 = vadd.f32 %v2394, %v2395
    %v2397 = vrot.slane %v2396, 2
    %v2398 = vadd.f32 %v2396, %v2397
    %v2399 = vrot.slane %v2398, 1
    %v2400 = vadd.f32 %v2398, %v2399
    %v2401 = vmul.f32 %v2300, %v2300
    %v2402 = vmul.f32 %v2301, %v2301
    %v2403 = vmul.f32 %v2302, %v2302
    %v2404 = vmul.f32 %v2303, %v2303
    %v2405 = vmul.f32 %v2304, %v2304
    %v2406 = vmul.f32 %v2305, %v2305
    %v2407 = vmul.f32 %v2306, %v2306
    %v2408 = vmul.f32 %v2307, %v2307
    %v2409 = vmul.f32 %v2308, %v2308
    %v2410 = vmul.f32 %v2309, %v2309
    %v2411 = vmul.f32 %v2310, %v2310
    %v2412 = vmul.f32 %v2311, %v2311
    %v2413 = vmul.f32 %v2312, %v2312
    %v2414 = vmul.f32 %v2313, %v2313
    %v2415 = vmul.f32 %v2314, %v2314
    %v2416 = vmul.f32 %v2315, %v2315
    %v2417 = vmul.f32 %v2316, %v2316
    %v2418 = vmul.f32 %v2317, %v2317
    %v2419 = vmul.f32 %v2318, %v2318
    %v2420 = vmul.f32 %v2319, %v2319
    %v2421 = vmul.f32 %v2320, %v2320
    %v2422 = vmul.f32 %v2321, %v2321
    %v2423 = vmul.f32 %v2322, %v2322
    %v2424 = vmul.f32 %v2323, %v2323
    %v2425 = vmul.f32 %v2324, %v2324
    %v2426 = vmul.f32 %v2325, %v2325
    %v2427 = vmul.f32 %v2326, %v2326
    %v2428 = vmul.f32 %v2327, %v2327
    %v2429 = vmul.f32 %v2328, %v2328
    %v2430 = vmul.f32 %v2329, %v2329
    %v2431 = vmul.f32 %v2330, %v2330
    %v2432 = vmul.f32 %v2331, %v2331
    %v2433 = vsel %vm668, %v2401, 0.0
    %v2434 = vsel %vm668, %v2402, 0.0
    %v2435 = vadd.f32 %v2433, %v2434
    %v2436 = vsel %vm668, %v2403, 0.0
    %v2437 = vadd.f32 %v2435, %v2436
    %v2438 = vsel %vm668, %v2404, 0.0
    %v2439 = vadd.f32 %v2437, %v2438
    %v2440 = vsel %vm668, %v2405, 0.0
    %v2441 = vadd.f32 %v2439, %v2440
    %v2442 = vsel %vm668, %v2406, 0.0
    %v2443 = vadd.f32 %v2441, %v2442
    %v2444 = vsel %vm668, %v2407, 0.0
    %v2445 = vadd.f32 %v2443, %v2444
    %v2446 = vsel %vm668, %v2408, 0.0
    %v2447 = vadd.f32 %v2445, %v2446
    %v2448 = vsel %vm668, %v2409, 0.0
    %v2449 = vadd.f32 %v2447, %v2448
    %v2450 = vsel %vm668, %v2410, 0.0
    %v2451 = vadd.f32 %v2449, %v2450
    %v2452 = vsel %vm668, %v2411, 0.0
    %v2453 = vadd.f32 %v2451, %v2452
    %v2454 = vsel %vm668, %v2412, 0.0
    %v2455 = vadd.f32 %v2453, %v2454
    %v2456 = vsel %vm668, %v2413, 0.0
    %v2457 = vadd.f32 %v2455, %v2456
    %v2458 = vsel %vm668, %v2414, 0.0
    %v2459 = vadd.f32 %v2457, %v2458
    %v2460 = vsel %vm668, %v2415, 0.0
    %v2461 = vadd.f32 %v2459, %v2460
    %v2462 = vsel %vm668, %v2416, 0.0
    %v2463 = vadd.f32 %v2461, %v2462
    %v2464 = vsel %vm668, %v2417, 0.0
    %v2465 = vadd.f32 %v2463, %v2464
    %v2466 = vsel %vm668, %v2418, 0.0
    %v2467 = vadd.f32 %v2465, %v2466
    %v2468 = vsel %vm668, %v2419, 0.0
    %v2469 = vadd.f32 %v2467, %v2468
    %v2470 = vsel %vm668, %v2420, 0.0
    %v2471 = vadd.f32 %v2469, %v2470
    %v2472 = vsel %vm668, %v2421, 0.0
    %v2473 = vadd.f32 %v2471, %v2472
    %v2474 = vsel %vm668, %v2422, 0.0
    %v2475 = vadd.f32 %v2473, %v2474
    %v2476 = vsel %vm668, %v2423, 0.0
    %v2477 = vadd.f32 %v2475, %v2476
    %v2478 = vsel %vm668, %v2424, 0.0
    %v2479 = vadd.f32 %v2477, %v2478
    %v2480 = vsel %vm668, %v2425, 0.0
    %v2481 = vadd.f32 %v2479, %v2480
    %v2482 = vsel %vm668, %v2426, 0.0
    %v2483 = vadd.f32 %v2481, %v2482
    %v2484 = vsel %vm668, %v2427, 0.0
    %v2485 = vadd.f32 %v2483, %v2484
    %v2486 = vsel %vm668, %v2428, 0.0
    %v2487 = vadd.f32 %v2485, %v2486
    %v2488 = vsel %vm668, %v2429, 0.0
    %v2489 = vadd.f32 %v2487, %v2488
    %v2490 = vsel %vm668, %v2430, 0.0
    %v2491 = vadd.f32 %v2489, %v2490
    %v2492 = vsel %vm668, %v2431, 0.0
    %v2493 = vadd.f32 %v2491, %v2492
    %v2494 = vsel %vm668, %v2432, 0.0
    %v2495 = vadd.f32 %v2493, %v2494
    %v2496 = vrot.slane %v2495, 4
    %v2497 = vadd.f32 %v2495, %v2496
    %v2498 = vrot.slane %v2497, 2
    %v2499 = vadd.f32 %v2497, %v2498
    %v2500 = vrot.slane %v2499, 1
    %v2501 = vadd.f32 %v2499, %v2500
    %v2502 = vmul.f32 %v2400, 0.00390625
    %v2503 = vmul.f32 %v2501, 0.00390625
    %v2504 = vmul.f32 %v2502, %v2502
    %v2505 = vsub.f32 %v2503, %v2504
    %v2506 = vmax.f32 %v2505, 0.0
    %v2507 = vadd.f32 %v2506, 1e-05
    %v2508 = vrsqrt.pop %v2507
    %v2509 = vmul.f32 %v2508, %v2507
    %v2510 = vmul.f32 %v2509, %v2508
    %v2511 = vmul.f32 0.5, %v2510
    %v2512 = vsub.f32 1.5, %v2511
    %v2513 = vmul.f32 %v2508, %v2512
    %vm2514 = vweird.f32 %v2507
    %vm2515 = vweird.f32 %v2508
    %vm2516 = vmor %vm2514, %vm2515
    %v2517 = vsel %vm2516, %v2508, %v2513
    %v2518 = vsub.f32 %v2300, %v2502
    %v2519 = vsub.f32 %v2301, %v2502
    %v2520 = vsub.f32 %v2302, %v2502
    %v2521 = vsub.f32 %v2303, %v2502
    %v2522 = vsub.f32 %v2304, %v2502
    %v2523 = vsub.f32 %v2305, %v2502
    %v2524 = vsub.f32 %v2306, %v2502
    %v2525 = vsub.f32 %v2307, %v2502
    %v2526 = vsub.f32 %v2308, %v2502
    %v2527 = vsub.f32 %v2309, %v2502
    %v2528 = vsub.f32 %v2310, %v2502
    %v2529 = vsub.f32 %v2311, %v2502
    %v2530 = vsub.f32 %v2312, %v2502
    %v2531 = vsub.f32 %v2313, %v2502
    %v2532 = vsub.f32 %v2314, %v2502
    %v2533 = vsub.f32 %v2315, %v2502
    %v2534 = vsub.f32 %v2316, %v2502
    %v2535 = vsub.f32 %v2317, %v2502
    %v2536 = vsub.f32 %v2318, %v2502
    %v2537 = vsub.f32 %v2319, %v2502
    %v2538 = vsub.f32 %v2320, %v2502
    %v2539 = vsub.f32 %v2321, %v2502
    %v2540 = vsub.f32 %v2322, %v2502
    %v2541 = vsub.f32 %v2323, %v2502
    %v2542 = vsub.f32 %v2324, %v2502
    %v2543 = vsub.f32 %v2325, %v2502
    %v2544 = vsub.f32 %v2326, %v2502
    %v2545 = vsub.f32 %v2327, %v2502
    %v2546 = vsub.f32 %v2328, %v2502
    %v2547 = vsub.f32 %v2329, %v2502
    %v2548 = vsub.f32 %v2330, %v2502
    %v2549 = vsub.f32 %v2331, %v2502
    %v2550 = vmul.f32 %v2518, %v2517
    %v2551 = vmul.f32 %v2519, %v2517
    %v2552 = vmul.f32 %v2520, %v2517
    %v2553 = vmul.f32 %v2521, %v2517
    %v2554 = vmul.f32 %v2522, %v2517
    %v2555 = vmul.f32 %v2523, %v2517
    %v2556 = vmul.f32 %v2524, %v2517
    %v2557 = vmul.f32 %v2525, %v2517
    %v2558 = vmul.f32 %v2526, %v2517
    %v2559 = vmul.f32 %v2527, %v2517
    %v2560 = vmul.f32 %v2528, %v2517
    %v2561 = vmul.f32 %v2529, %v2517
    %v2562 = vmul.f32 %v2530, %v2517
    %v2563 = vmul.f32 %v2531, %v2517
    %v2564 = vmul.f32 %v2532, %v2517
    %v2565 = vmul.f32 %v2533, %v2517
    %v2566 = vmul.f32 %v2534, %v2517
    %v2567 = vmul.f32 %v2535, %v2517
    %v2568 = vmul.f32 %v2536, %v2517
    %v2569 = vmul.f32 %v2537, %v2517
    %v2570 = vmul.f32 %v2538, %v2517
    %v2571 = vmul.f32 %v2539, %v2517
    %v2572 = vmul.f32 %v2540, %v2517
    %v2573 = vmul.f32 %v2541, %v2517
    %v2574 = vmul.f32 %v2542, %v2517
    %v2575 = vmul.f32 %v2543, %v2517
    %v2576 = vmul.f32 %v2544, %v2517
    %v2577 = vmul.f32 %v2545, %v2517
    %v2578 = vmul.f32 %v2546, %v2517
    %v2579 = vmul.f32 %v2547, %v2517
    %v2580 = vmul.f32 %v2548, %v2517
    %v2581 = vmul.f32 %v2549, %v2517
    %v2582 = vmax.f32 %v2550, 0.0
    %v2583 = vmax.f32 %v2551, 0.0
    %v2584 = vmax.f32 %v2552, 0.0
    %v2585 = vmax.f32 %v2553, 0.0
    %v2586 = vmax.f32 %v2554, 0.0
    %v2587 = vmax.f32 %v2555, 0.0
    %v2588 = vmax.f32 %v2556, 0.0
    %v2589 = vmax.f32 %v2557, 0.0
    %v2590 = vmax.f32 %v2558, 0.0
    %v2591 = vmax.f32 %v2559, 0.0
    %v2592 = vmax.f32 %v2560, 0.0
    %v2593 = vmax.f32 %v2561, 0.0
    %v2594 = vmax.f32 %v2562, 0.0
    %v2595 = vmax.f32 %v2563, 0.0
    %v2596 = vmax.f32 %v2564, 0.0
    %v2597 = vmax.f32 %v2565, 0.0
    %v2598 = vmax.f32 %v2566, 0.0
    %v2599 = vmax.f32 %v2567, 0.0
    %v2600 = vmax.f32 %v2568, 0.0
    %v2601 = vmax.f32 %v2569, 0.0
    %v2602 = vmax.f32 %v2570, 0.0
    %v2603 = vmax.f32 %v2571, 0.0
    %v2604 = vmax.f32 %v2572, 0.0
    %v2605 = vmax.f32 %v2573, 0.0
    %v2606 = vmax.f32 %v2574, 0.0
    %v2607 = vmax.f32 %v2575, 0.0
    %v2608 = vmax.f32 %v2576, 0.0
    %v2609 = vmax.f32 %v2577, 0.0
    %v2610 = vmax.f32 %v2578, 0.0
    %v2611 = vmax.f32 %v2579, 0.0
    %v2612 = vmax.f32 %v2580, 0.0
    %v2613 = vmax.f32 %v2581, 0.0
    %v2614 = vld [vmem:[%s1] sm:$0xff]
    %v2615 = vld [vmem:[%s1 + $0x8] sm:$0xff]
    %v2616 = vld [vmem:[%s1 + $0x10] sm:$0xff]
    %v2617 = vld [vmem:[%s1 + $0x18] sm:$0xff]
    %v2618 = vld [vmem:[%s1 + $0x20] sm:$0xff]
    %v2619 = vld [vmem:[%s1 + $0x28] sm:$0xff]
    %v2620 = vld [vmem:[%s1 + $0x30] sm:$0xff]
    %v2621 = vld [vmem:[%s1 + $0x38] sm:$0xff]
    %v2622 = vld [vmem:[%s1 + $0x40] sm:$0xff]
    %v2623 = vld [vmem:[%s1 + $0x48] sm:$0xff]
    %v2624 = vld [vmem:[%s1 + $0x50] sm:$0xff]
    %v2625 = vld [vmem:[%s1 + $0x58] sm:$0xff]
    %v2626 = vld [vmem:[%s1 + $0x60] sm:$0xff]
    %v2627 = vld [vmem:[%s1 + $0x68] sm:$0xff]
    %v2628 = vld [vmem:[%s1 + $0x70] sm:$0xff]
    %v2629 = vld [vmem:[%s1 + $0x78] sm:$0xff]
    %v2630 = vld [vmem:[%s1 + $0x80] sm:$0xff]
    %v2631 = vld [vmem:[%s1 + $0x88] sm:$0xff]
    %v2632 = vld [vmem:[%s1 + $0x90] sm:$0xff]
    %v2633 = vld [vmem:[%s1 + $0x98] sm:$0xff]
    %v2634 = vld [vmem:[%s1 + $0xa0] sm:$0xff]
    %v2635 = vld [vmem:[%s1 + $0xa8] sm:$0xff]
    %v2636 = vld [vmem:[%s1 + $0xb0] sm:$0xff]
    %v2637 = vld [vmem:[%s1 + $0xb8] sm:$0xff]
    %v2638 = vld [vmem:[%s1 + $0xc0] sm:$0xff]
    %v2639 = vld [vmem:[%s1 + $0xc8] sm:$0xff]
    %v2640 = vld [vmem:[%s1 + $0xd0] sm:$0xff]
    %v2641 = vld [vmem:[%s1 + $0xd8] sm:$0xff]
    %v2642 = vld [vmem:[%s1 + $0xe0] sm:$0xff]
    %v2643 = vld [vmem:[%s1 + $0xe8] sm:$0xff]
    %v2644 = vld [vmem:[%s1 + $0xf0] sm:$0xff]
    %v2645 = vld [vmem:[%s1 + $0xf8] sm:$0xff]
    %v2646 = vpack.c.bf16 %v2583, %v2582
    %v2647 = vpack.c.bf16 %v2585, %v2584
    %v2648 = vpack.c.bf16 %v2587, %v2586
    %v2649 = vpack.c.bf16 %v2589, %v2588
    %v2650 = vpack.c.bf16 %v2591, %v2590
    %v2651 = vpack.c.bf16 %v2593, %v2592
    %v2652 = vpack.c.bf16 %v2595, %v2594
    %v2653 = vpack.c.bf16 %v2597, %v2596
    %v2654 = vpack.c.bf16 %v2599, %v2598
    %v2655 = vpack.c.bf16 %v2601, %v2600
    %v2656 = vpack.c.bf16 %v2603, %v2602
    %v2657 = vpack.c.bf16 %v2605, %v2604
    %v2658 = vpack.c.bf16 %v2607, %v2606
    %v2659 = vpack.c.bf16 %v2609, %v2608
    %v2660 = vpack.c.bf16 %v2611, %v2610
    %v2661 = vpack.c.bf16 %v2613, %v2612
    %v2694 = vunpack.c.l.b16 %v2614
    %v2695 = vunpack.c.h.b16 %v2614
    %v2696 = vunpack.c.l.b16 %v2615
    %v2697 = vunpack.c.h.b16 %v2615
    %v2698 = vunpack.c.l.b16 %v2616
    %v2699 = vunpack.c.h.b16 %v2616
    %v2700 = vunpack.c.l.b16 %v2617
    %v2701 = vunpack.c.h.b16 %v2617
    %v2702 = vunpack.c.l.b16 %v2618
    %v2703 = vunpack.c.h.b16 %v2618
    %v2704 = vunpack.c.l.b16 %v2619
    %v2705 = vunpack.c.h.b16 %v2619
    %v2706 = vunpack.c.l.b16 %v2620
    %v2707 = vunpack.c.h.b16 %v2620
    %v2708 = vunpack.c.l.b16 %v2621
    %v2709 = vunpack.c.h.b16 %v2621
    %v2710 = vunpack.c.l.b16 %v2622
    %v2711 = vunpack.c.h.b16 %v2622
    %v2712 = vunpack.c.l.b16 %v2623
    %v2713 = vunpack.c.h.b16 %v2623
    %v2714 = vunpack.c.l.b16 %v2624
    %v2715 = vunpack.c.h.b16 %v2624
    %v2716 = vunpack.c.l.b16 %v2625
    %v2717 = vunpack.c.h.b16 %v2625
    %v2718 = vunpack.c.l.b16 %v2626
    %v2719 = vunpack.c.h.b16 %v2626
    %v2720 = vunpack.c.l.b16 %v2627
    %v2721 = vunpack.c.h.b16 %v2627
    %v2722 = vunpack.c.l.b16 %v2628
    %v2723 = vunpack.c.h.b16 %v2628
    %v2724 = vunpack.c.l.b16 %v2629
    %v2725 = vunpack.c.h.b16 %v2629
    %v2726 = vunpack.c.l.b16 %v2630
    %v2727 = vunpack.c.h.b16 %v2630
    %v2728 = vunpack.c.l.b16 %v2631
    %v2729 = vunpack.c.h.b16 %v2631
    %v2730 = vunpack.c.l.b16 %v2632
    %v2731 = vunpack.c.h.b16 %v2632
    %v2732 = vunpack.c.l.b16 %v2633
    %v2733 = vunpack.c.h.b16 %v2633
    %v2734 = vunpack.c.l.b16 %v2634
    %v2735 = vunpack.c.h.b16 %v2634
    %v2736 = vunpack.c.l.b16 %v2635
    %v2737 = vunpack.c.h.b16 %v2635
    %v2738 = vunpack.c.l.b16 %v2636
    %v2739 = vunpack.c.h.b16 %v2636
    %v2740 = vunpack.c.l.b16 %v2637
    %v2741 = vunpack.c.h.b16 %v2637
    %v2742 = vunpack.c.l.b16 %v2638
    %v2743 = vunpack.c.h.b16 %v2638
    %v2744 = vunpack.c.l.b16 %v2639
    %v2745 = vunpack.c.h.b16 %v2639
    %v2746 = vunpack.c.l.b16 %v2640
    %v2747 = vunpack.c.h.b16 %v2640
    %v2748 = vunpack.c.l.b16 %v2641
    %v2749 = vunpack.c.h.b16 %v2641
    %v2750 = vunpack.c.l.b16 %v2642
    %v2751 = vunpack.c.h.b16 %v2642
    %v2752 = vunpack.c.l.b16 %v2643
    %v2753 = vunpack.c.h.b16 %v2643
    %v2754 = vunpack.c.l.b16 %v2644
    %v2755 = vunpack.c.h.b16 %v2644
    %v2756 = vunpack.c.l.b16 %v2645
    %v2757 = vunpack.c.h.b16 %v2645
    %v2758 = vpack.c.b16 %v2696, %v2694
    %v2759 = vpack.c.b16 %v2697, %v2695
    %v2760 = vpack.c.b16 %v2700, %v2698
    %v2761 = vpack.c.b16 %v2701, %v2699
    %v2762 = vpack.c.b16 %v2704, %v2702
    %v2763 = vpack.c.b16 %v2705, %v2703
    %v2764 = vpack.c.b16 %v2708, %v2706
    %v2765 = vpack.c.b16 %v2709, %v2707
    %v2766 = vpack.c.b16 %v2712, %v2710
    %v2767 = vpack.c.b16 %v2713, %v2711
    %v2768 = vpack.c.b16 %v2716, %v2714
    %v2769 = vpack.c.b16 %v2717, %v2715
    %v2770 = vpack.c.b16 %v2720, %v2718
    %v2771 = vpack.c.b16 %v2721, %v2719
    %v2772 = vpack.c.b16 %v2724, %v2722
    %v2773 = vpack.c.b16 %v2725, %v2723
    %v2774 = vpack.c.b16 %v2728, %v2726
    %v2775 = vpack.c.b16 %v2729, %v2727
    %v2776 = vpack.c.b16 %v2732, %v2730
    %v2777 = vpack.c.b16 %v2733, %v2731
    %v2778 = vpack.c.b16 %v2736, %v2734
    %v2779 = vpack.c.b16 %v2737, %v2735
    %v2780 = vpack.c.b16 %v2740, %v2738
    %v2781 = vpack.c.b16 %v2741, %v2739
    %v2782 = vpack.c.b16 %v2744, %v2742
    %v2783 = vpack.c.b16 %v2745, %v2743
    %v2784 = vpack.c.b16 %v2748, %v2746
    %v2785 = vpack.c.b16 %v2749, %v2747
    %v2786 = vpack.c.b16 %v2752, %v2750
    %v2787 = vpack.c.b16 %v2753, %v2751
    %v2788 = vpack.c.b16 %v2756, %v2754
    %v2789 = vpack.c.b16 %v2757, %v2755
    %2822 = vmatpush.bf16.msra.mxu0 %v2653
    %2823 = vmatpush.bf16.msra.mxu0 %v2652
    %2824 = vmatpush.bf16.msra.mxu0 %v2651
    %2825 = vmatpush.bf16.msra.mxu0 %v2650
    %2826 = vmatpush.bf16.msra.mxu0 %v2649
    %2827 = vmatpush.bf16.msra.mxu0 %v2648
    %2828 = vmatpush.bf16.msra.mxu0 %v2647
    %2829 = vmatpush.bf16.msra.mxu0 %v2646
    %2830 = vmatmul.bf16.gmra.mxu0 %v2758
    %v2831 = vpop.f32.mrf.mxu0
    %v2832 = vadd.f32 0.0, %v2831
    %v2833 = vpop.f32.mrf.mxu0
    %v2834 = vadd.f32 0.0, %v2833
    %2835 = vmatmul.bf16.gmra.mxu0 %v2760
    %v2836 = vpop.f32.mrf.mxu0
    %v2837 = vadd.f32 0.0, %v2836
    %v2838 = vpop.f32.mrf.mxu0
    %v2839 = vadd.f32 0.0, %v2838
    %2840 = vmatmul.bf16.gmra.mxu0 %v2762
    %v2841 = vpop.f32.mrf.mxu0
    %v2842 = vadd.f32 0.0, %v2841
    %v2843 = vpop.f32.mrf.mxu0
    %v2844 = vadd.f32 0.0, %v2843
    %2845 = vmatmul.bf16.gmra.mxu0 %v2764
    %v2846 = vpop.f32.mrf.mxu0
    %v2847 = vadd.f32 0.0, %v2846
    %v2848 = vpop.f32.mrf.mxu0
    %v2849 = vadd.f32 0.0, %v2848
    %2850 = vmatmul.bf16.gmra.mxu0 %v2766
    %v2851 = vpop.f32.mrf.mxu0
    %v2852 = vadd.f32 0.0, %v2851
    %v2853 = vpop.f32.mrf.mxu0
    %v2854 = vadd.f32 0.0, %v2853
    %2855 = vmatmul.bf16.gmra.mxu0 %v2768
    %v2856 = vpop.f32.mrf.mxu0
    %v2857 = vadd.f32 0.0, %v2856
    %v2858 = vpop.f32.mrf.mxu0
    %v2859 = vadd.f32 0.0, %v2858
    %2860 = vmatmul.bf16.gmra.mxu0 %v2770
    %v2861 = vpop.f32.mrf.mxu0
    %v2862 = vadd.f32 0.0, %v2861
    %v2863 = vpop.f32.mrf.mxu0
    %v2864 = vadd.f32 0.0, %v2863
    %2865 = vmatmul.bf16.gmra.mxu0 %v2772
    %v2866 = vpop.f32.mrf.mxu0
    %v2867 = vadd.f32 0.0, %v2866
    %v2868 = vpop.f32.mrf.mxu0
    %v2869 = vadd.f32 0.0, %v2868
    %2870 = vmatmul.bf16.gmra.mxu0 %v2774
    %v2871 = vpop.f32.mrf.mxu0
    %v2872 = vadd.f32 0.0, %v2871
    %v2873 = vpop.f32.mrf.mxu0
    %v2874 = vadd.f32 0.0, %v2873
    %2875 = vmatmul.bf16.gmra.mxu0 %v2776
    %v2876 = vpop.f32.mrf.mxu0
    %v2877 = vadd.f32 0.0, %v2876
    %v2878 = vpop.f32.mrf.mxu0
    %v2879 = vadd.f32 0.0, %v2878
    %2880 = vmatmul.bf16.gmra.mxu0 %v2778
    %v2881 = vpop.f32.mrf.mxu0
    %v2882 = vadd.f32 0.0, %v2881
    %v2883 = vpop.f32.mrf.mxu0
    %v2884 = vadd.f32 0.0, %v2883
    %2885 = vmatmul.bf16.gmra.mxu0 %v2780
    %v2886 = vpop.f32.mrf.mxu0
    %v2887 = vadd.f32 0.0, %v2886
    %v2888 = vpop.f32.mrf.mxu0
    %v2889 = vadd.f32 0.0, %v2888
    %2890 = vmatmul.bf16.gmra.mxu0 %v2782
    %v2891 = vpop.f32.mrf.mxu0
    %v2892 = vadd.f32 0.0, %v2891
    %v2893 = vpop.f32.mrf.mxu0
    %v2894 = vadd.f32 0.0, %v2893
    %2895 = vmatmul.bf16.gmra.mxu0 %v2784
    %v2896 = vpop.f32.mrf.mxu0
    %v2897 = vadd.f32 0.0, %v2896
    %v2898 = vpop.f32.mrf.mxu0
    %v2899 = vadd.f32 0.0, %v2898
    %2900 = vmatmul.bf16.gmra.mxu0 %v2786
    %v2901 = vpop.f32.mrf.mxu0
    %v2902 = vadd.f32 0.0, %v2901
    %v2903 = vpop.f32.mrf.mxu0
    %v2904 = vadd.f32 0.0, %v2903
    %2905 = vmatmul.bf16.gmra.mxu0 %v2788
    %v2906 = vpop.f32.mrf.mxu0
    %v2907 = vadd.f32 0.0, %v2906
    %v2908 = vpop.f32.mrf.mxu0
    %v2909 = vadd.f32 0.0, %v2908
    %2910 = vdwg.mxu0
    %2911 = vmatpush.bf16.msra.mxu0 %v2661
    %2912 = vmatpush.bf16.msra.mxu0 %v2660
    %2913 = vmatpush.bf16.msra.mxu0 %v2659
    %2914 = vmatpush.bf16.msra.mxu0 %v2658
    %2915 = vmatpush.bf16.msra.mxu0 %v2657
    %2916 = vmatpush.bf16.msra.mxu0 %v2656
    %2917 = vmatpush.bf16.msra.mxu0 %v2655
    %2918 = vmatpush.bf16.msra.mxu0 %v2654
    %2919 = vmatmul.bf16.gmra.mxu0 %v2759
    %v2920 = vpop.f32.mrf.mxu0
    %v2921 = vadd.f32 %v2832, %v2920
    %v2922 = vpop.f32.mrf.mxu0
    %v2923 = vadd.f32 %v2834, %v2922
    %2924 = vmatmul.bf16.gmra.mxu0 %v2761
    %v2925 = vpop.f32.mrf.mxu0
    %v2926 = vadd.f32 %v2837, %v2925
    %v2927 = vpop.f32.mrf.mxu0
    %v2928 = vadd.f32 %v2839, %v2927
    %2929 = vmatmul.bf16.gmra.mxu0 %v2763
    %v2930 = vpop.f32.mrf.mxu0
    %v2931 = vadd.f32 %v2842, %v2930
    %v2932 = vpop.f32.mrf.mxu0
    %v2933 = vadd.f32 %v2844, %v2932
    %2934 = vmatmul.bf16.gmra.mxu0 %v2765
    %v2935 = vpop.f32.mrf.mxu0
    %v2936 = vadd.f32 %v2847, %v2935
    %v2937 = vpop.f32.mrf.mxu0
    %v2938 = vadd.f32 %v2849, %v2937
    %2939 = vmatmul.bf16.gmra.mxu0 %v2767
    %v2940 = vpop.f32.mrf.mxu0
    %v2941 = vadd.f32 %v2852, %v2940
    %v2942 = vpop.f32.mrf.mxu0
    %v2943 = vadd.f32 %v2854, %v2942
    %2944 = vmatmul.bf16.gmra.mxu0 %v2769
    %v2945 = vpop.f32.mrf.mxu0
    %v2946 = vadd.f32 %v2857, %v2945
    %v2947 = vpop.f32.mrf.mxu0
    %v2948 = vadd.f32 %v2859, %v2947
    %2949 = vmatmul.bf16.gmra.mxu0 %v2771
    %v2950 = vpop.f32.mrf.mxu0
    %v2951 = vadd.f32 %v2862, %v2950
    %v2952 = vpop.f32.mrf.mxu0
    %v2953 = vadd.f32 %v2864, %v2952
    %2954 = vmatmul.bf16.gmra.mxu0 %v2773
    %v2955 = vpop.f32.mrf.mxu0
    %v2956 = vadd.f32 %v2867, %v2955
    %v2957 = vpop.f32.mrf.mxu0
    %v2958 = vadd.f32 %v2869, %v2957
    %2959 = vmatmul.bf16.gmra.mxu0 %v2775
    %v2960 = vpop.f32.mrf.mxu0
    %v2961 = vadd.f32 %v2872, %v2960
    %v2962 = vpop.f32.mrf.mxu0
    %v2963 = vadd.f32 %v2874, %v2962
    %2964 = vmatmul.bf16.gmra.mxu0 %v2777
    %v2965 = vpop.f32.mrf.mxu0
    %v2966 = vadd.f32 %v2877, %v2965
    %v2967 = vpop.f32.mrf.mxu0
    %v2968 = vadd.f32 %v2879, %v2967
    %2969 = vmatmul.bf16.gmra.mxu0 %v2779
    %v2970 = vpop.f32.mrf.mxu0
    %v2971 = vadd.f32 %v2882, %v2970
    %v2972 = vpop.f32.mrf.mxu0
    %v2973 = vadd.f32 %v2884, %v2972
    %2974 = vmatmul.bf16.gmra.mxu0 %v2781
    %v2975 = vpop.f32.mrf.mxu0
    %v2976 = vadd.f32 %v2887, %v2975
    %v2977 = vpop.f32.mrf.mxu0
    %v2978 = vadd.f32 %v2889, %v2977
    %2979 = vmatmul.bf16.gmra.mxu0 %v2783
    %v2980 = vpop.f32.mrf.mxu0
    %v2981 = vadd.f32 %v2892, %v2980
    %v2982 = vpop.f32.mrf.mxu0
    %v2983 = vadd.f32 %v2894, %v2982
    %2984 = vmatmul.bf16.gmra.mxu0 %v2785
    %v2985 = vpop.f32.mrf.mxu0
    %v2986 = vadd.f32 %v2897, %v2985
    %v2987 = vpop.f32.mrf.mxu0
    %v2988 = vadd.f32 %v2899, %v2987
    %2989 = vmatmul.bf16.gmra.mxu0 %v2787
    %v2990 = vpop.f32.mrf.mxu0
    %v2991 = vadd.f32 %v2902, %v2990
    %v2992 = vpop.f32.mrf.mxu0
    %v2993 = vadd.f32 %v2904, %v2992
    %2994 = vmatmul.bf16.gmra.mxu0 %v2789
    %v2995 = vpop.f32.mrf.mxu0
    %v2996 = vadd.f32 %v2907, %v2995
    %v2997 = vpop.f32.mrf.mxu0
    %v2998 = vadd.f32 %v2909, %v2997
    %2999 = vdwg.mxu0
    %v3000 = vmax.f32 %v2921, %v2961
    %v3001 = vmax.f32 %v2923, %v2963
    %v3002 = vmax.f32 %v2926, %v2966
    %v3003 = vmax.f32 %v2928, %v2968
    %v3004 = vmax.f32 %v2931, %v2971
    %v3005 = vmax.f32 %v2933, %v2973
    %v3006 = vmax.f32 %v2936, %v2976
    %v3007 = vmax.f32 %v2938, %v2978
    %v3008 = vmax.f32 %v2941, %v2981
    %v3009 = vmax.f32 %v2943, %v2983
    %v3010 = vmax.f32 %v2946, %v2986
    %v3011 = vmax.f32 %v2948, %v2988
    %v3012 = vmax.f32 %v2951, %v2991
    %v3013 = vmax.f32 %v2953, %v2993
    %v3014 = vmax.f32 %v2956, %v2996
    %v3015 = vmax.f32 %v2958, %v2998
    %vm3016 = vcmp.lt.s32.totalorder %v952, 0
    %v3017 = vsub.s32 0, %v952
    %v3018 = vsel %vm3016, %v3017, %v952
    %v3019 = vshrl.u32 %v3018, 6
    %v3020 = vand.u32 %v3018, 63
    %v3021 = vsub.s32 0, %v3020
    %v3022 = vsel %vm3016, %v3021, %v3020
    %vm3023 = vcmp.lt.s32.totalorder %v953, 0
    %v3024 = vsub.s32 0, %v953
    %v3025 = vsel %vm3023, %v3024, %v953
    %v3026 = vshrl.u32 %v3025, 6
    %v3027 = vand.u32 %v3025, 63
    %v3028 = vsub.s32 0, %v3027
    %v3029 = vsel %vm3023, %v3028, %v3027
    %vm3030 = vcmp.lt.s32.totalorder %v954, 0
    %v3031 = vsub.s32 0, %v954
    %v3032 = vsel %vm3030, %v3031, %v954
    %v3033 = vshrl.u32 %v3032, 6
    %v3034 = vand.u32 %v3032, 63
    %v3035 = vsub.s32 0, %v3034
    %v3036 = vsel %vm3030, %v3035, %v3034
    %vm3037 = vcmp.lt.s32.totalorder %v955, 0
    %v3038 = vsub.s32 0, %v955
    %v3039 = vsel %vm3037, %v3038, %v955
    %v3040 = vshrl.u32 %v3039, 6
    %v3041 = vand.u32 %v3039, 63
    %v3042 = vsub.s32 0, %v3041
    %v3043 = vsel %vm3037, %v3042, %v3041
    %vm3044 = vcmp.lt.s32.totalorder %v956, 0
    %v3045 = vsub.s32 0, %v956
    %v3046 = vsel %vm3044, %v3045, %v956
    %v3047 = vshrl.u32 %v3046, 6
    %v3048 = vand.u32 %v3046, 63
    %v3049 = vsub.s32 0, %v3048
    %v3050 = vsel %vm3044, %v3049, %v3048
    %vm3051 = vcmp.lt.s32.totalorder %v957, 0
    %v3052 = vsub.s32 0, %v957
    %v3053 = vsel %vm3051, %v3052, %v957
    %v3054 = vshrl.u32 %v3053, 6
    %v3055 = vand.u32 %v3053, 63
    %v3056 = vsub.s32 0, %v3055
    %v3057 = vsel %vm3051, %v3056, %v3055
    %vm3058 = vcmp.lt.s32.totalorder %v958, 0
    %v3059 = vsub.s32 0, %v958
    %v3060 = vsel %vm3058, %v3059, %v958
    %v3061 = vshrl.u32 %v3060, 6
    %v3062 = vand.u32 %v3060, 63
    %v3063 = vsub.s32 0, %v3062
    %v3064 = vsel %vm3058, %v3063, %v3062
    %vm3065 = vcmp.lt.s32.totalorder %v959, 0
    %v3066 = vsub.s32 0, %v959
    %v3067 = vsel %vm3065, %v3066, %v959
    %v3068 = vshrl.u32 %v3067, 6
    %v3069 = vand.u32 %v3067, 63
    %v3070 = vsub.s32 0, %v3069
    %v3071 = vsel %vm3065, %v3070, %v3069
    %vm3072 = vcmp.lt.s32.totalorder %v960, 0
    %v3073 = vsub.s32 0, %v960
    %v3074 = vsel %vm3072, %v3073, %v960
    %v3075 = vshrl.u32 %v3074, 6
    %v3076 = vand.u32 %v3074, 63
    %v3077 = vsub.s32 0, %v3076
    %v3078 = vsel %vm3072, %v3077, %v3076
    %vm3079 = vcmp.lt.s32.totalorder %v961, 0
    %v3080 = vsub.s32 0, %v961
    %v3081 = vsel %vm3079, %v3080, %v961
    %v3082 = vshrl.u32 %v3081, 6
    %v3083 = vand.u32 %v3081, 63
    %v3084 = vsub.s32 0, %v3083
    %v3085 = vsel %vm3079, %v3084, %v3083
    %vm3086 = vcmp.lt.s32.totalorder %v962, 0
    %v3087 = vsub.s32 0, %v962
    %v3088 = vsel %vm3086, %v3087, %v962
    %v3089 = vshrl.u32 %v3088, 6
    %v3090 = vand.u32 %v3088, 63
    %v3091 = vsub.s32 0, %v3090
    %v3092 = vsel %vm3086, %v3091, %v3090
    %vm3093 = vcmp.lt.s32.totalorder %v963, 0
    %v3094 = vsub.s32 0, %v963
    %v3095 = vsel %vm3093, %v3094, %v963
    %v3096 = vshrl.u32 %v3095, 6
    %v3097 = vand.u32 %v3095, 63
    %v3098 = vsub.s32 0, %v3097
    %v3099 = vsel %vm3093, %v3098, %v3097
    %vm3100 = vcmp.lt.s32.totalorder %v964, 0
    %v3101 = vsub.s32 0, %v964
    %v3102 = vsel %vm3100, %v3101, %v964
    %v3103 = vshrl.u32 %v3102, 6
    %v3104 = vand.u32 %v3102, 63
    %v3105 = vsub.s32 0, %v3104
    %v3106 = vsel %vm3100, %v3105, %v3104
    %vm3107 = vcmp.lt.s32.totalorder %v965, 0
    %v3108 = vsub.s32 0, %v965
    %v3109 = vsel %vm3107, %v3108, %v965
    %v3110 = vshrl.u32 %v3109, 6
    %v3111 = vand.u32 %v3109, 63
    %v3112 = vsub.s32 0, %v3111
    %v3113 = vsel %vm3107, %v3112, %v3111
    %vm3114 = vcmp.lt.s32.totalorder %v966, 0
    %v3115 = vsub.s32 0, %v966
    %v3116 = vsel %vm3114, %v3115, %v966
    %v3117 = vshrl.u32 %v3116, 6
    %v3118 = vand.u32 %v3116, 63
    %v3119 = vsub.s32 0, %v3118
    %v3120 = vsel %vm3114, %v3119, %v3118
    %vm3121 = vcmp.lt.s32.totalorder %v967, 0
    %v3122 = vsub.s32 0, %v967
    %v3123 = vsel %vm3121, %v3122, %v967
    %v3124 = vshrl.u32 %v3123, 6
    %v3125 = vand.u32 %v3123, 63
    %v3126 = vsub.s32 0, %v3125
    %v3127 = vsel %vm3121, %v3126, %v3125
    %vm3128 = vcmp.ne.s32.totalorder %v3022, 0
    %vm3129 = vcmp.ne.s32.totalorder %v3029, 0
    %vm3130 = vcmp.ne.s32.totalorder %v3036, 0
    %vm3131 = vcmp.ne.s32.totalorder %v3043, 0
    %vm3132 = vcmp.ne.s32.totalorder %v3050, 0
    %vm3133 = vcmp.ne.s32.totalorder %v3057, 0
    %vm3134 = vcmp.ne.s32.totalorder %v3064, 0
    %vm3135 = vcmp.ne.s32.totalorder %v3071, 0
    %vm3136 = vcmp.ne.s32.totalorder %v3078, 0
    %vm3137 = vcmp.ne.s32.totalorder %v3085, 0
    %vm3138 = vcmp.ne.s32.totalorder %v3092, 0
    %vm3139 = vcmp.ne.s32.totalorder %v3099, 0
    %vm3140 = vcmp.ne.s32.totalorder %v3106, 0
    %vm3141 = vcmp.ne.s32.totalorder %v3113, 0
    %vm3142 = vcmp.ne.s32.totalorder %v3120, 0
    %vm3143 = vcmp.ne.s32.totalorder %v3127, 0
    %vm3144 = vcmp.lt.s32.totalorder %v3022, 0
    %vm3145 = vcmp.lt.s32.totalorder %v3029, 0
    %vm3146 = vcmp.lt.s32.totalorder %v3036, 0
    %vm3147 = vcmp.lt.s32.totalorder %v3043, 0
    %vm3148 = vcmp.lt.s32.totalorder %v3050, 0
    %vm3149 = vcmp.lt.s32.totalorder %v3057, 0
    %vm3150 = vcmp.lt.s32.totalorder %v3064, 0
    %vm3151 = vcmp.lt.s32.totalorder %v3071, 0
    %vm3152 = vcmp.lt.s32.totalorder %v3078, 0
    %vm3153 = vcmp.lt.s32.totalorder %v3085, 0
    %vm3154 = vcmp.lt.s32.totalorder %v3092, 0
    %vm3155 = vcmp.lt.s32.totalorder %v3099, 0
    %vm3156 = vcmp.lt.s32.totalorder %v3106, 0
    %vm3157 = vcmp.lt.s32.totalorder %v3113, 0
    %vm3158 = vcmp.lt.s32.totalorder %v3120, 0
    %vm3159 = vcmp.lt.s32.totalorder %v3127, 0
    %vm3160 = vmand %vm3144, %vm3128
    %vm3161 = vmand %vm3145, %vm3129
    %vm3162 = vmand %vm3146, %vm3130
    %vm3163 = vmand %vm3147, %vm3131
    %vm3164 = vmand %vm3148, %vm3132
    %vm3165 = vmand %vm3149, %vm3133
    %vm3166 = vmand %vm3150, %vm3134
    %vm3167 = vmand %vm3151, %vm3135
    %vm3168 = vmand %vm3152, %vm3136
    %vm3169 = vmand %vm3153, %vm3137
    %vm3170 = vmand %vm3154, %vm3138
    %vm3171 = vmand %vm3155, %vm3139
    %vm3172 = vmand %vm3156, %vm3140
    %vm3173 = vmand %vm3157, %vm3141
    %vm3174 = vmand %vm3158, %vm3142
    %vm3175 = vmand %vm3159, %vm3143
    %v3176 = vadd.s32 %v3022, 64
    %v3177 = vadd.s32 %v3029, 64
    %v3178 = vadd.s32 %v3036, 64
    %v3179 = vadd.s32 %v3043, 64
    %v3180 = vadd.s32 %v3050, 64
    %v3181 = vadd.s32 %v3057, 64
    %v3182 = vadd.s32 %v3064, 64
    %v3183 = vadd.s32 %v3071, 64
    %v3184 = vadd.s32 %v3078, 64
    %v3185 = vadd.s32 %v3085, 64
    %v3186 = vadd.s32 %v3092, 64
    %v3187 = vadd.s32 %v3099, 64
    %v3188 = vadd.s32 %v3106, 64
    %v3189 = vadd.s32 %v3113, 64
    %v3190 = vadd.s32 %v3120, 64
    %v3191 = vadd.s32 %v3127, 64
    %v3192 = vsel %vm3160, %v3176, %v3022
    %v3193 = vsel %vm3161, %v3177, %v3029
    %v3194 = vsel %vm3162, %v3178, %v3036
    %v3195 = vsel %vm3163, %v3179, %v3043
    %v3196 = vsel %vm3164, %v3180, %v3050
    %v3197 = vsel %vm3165, %v3181, %v3057
    %v3198 = vsel %vm3166, %v3182, %v3064
    %v3199 = vsel %vm3167, %v3183, %v3071
    %v3200 = vsel %vm3168, %v3184, %v3078
    %v3201 = vsel %vm3169, %v3185, %v3085
    %v3202 = vsel %vm3170, %v3186, %v3092
    %v3203 = vsel %vm3171, %v3187, %v3099
    %v3204 = vsel %vm3172, %v3188, %v3106
    %v3205 = vsel %vm3173, %v3189, %v3113
    %v3206 = vsel %vm3174, %v3190, %v3120
    %v3207 = vsel %vm3175, %v3191, %v3127
    %vm3208 = vcmp.eq.s32.totalorder %v3192, 0
    %vm3209 = vcmp.eq.s32.totalorder %v3193, 0
    %vm3210 = vcmp.eq.s32.totalorder %v3194, 0
    %vm3211 = vcmp.eq.s32.totalorder %v3195, 0
    %vm3212 = vcmp.eq.s32.totalorder %v3196, 0
    %vm3213 = vcmp.eq.s32.totalorder %v3197, 0
    %vm3214 = vcmp.eq.s32.totalorder %v3198, 0
    %vm3215 = vcmp.eq.s32.totalorder %v3199, 0
    %vm3216 = vcmp.eq.s32.totalorder %v3200, 0
    %vm3217 = vcmp.eq.s32.totalorder %v3201, 0
    %vm3218 = vcmp.eq.s32.totalorder %v3202, 0
    %vm3219 = vcmp.eq.s32.totalorder %v3203, 0
    %vm3220 = vcmp.eq.s32.totalorder %v3204, 0
    %vm3221 = vcmp.eq.s32.totalorder %v3205, 0
    %vm3222 = vcmp.eq.s32.totalorder %v3206, 0
    %vm3223 = vcmp.eq.s32.totalorder %v3207, 0
    %vm3224 = vcmp.eq.s32.totalorder %v3192, 63
    %vm3225 = vcmp.eq.s32.totalorder %v3193, 63
    %vm3226 = vcmp.eq.s32.totalorder %v3194, 63
    %vm3227 = vcmp.eq.s32.totalorder %v3195, 63
    %vm3228 = vcmp.eq.s32.totalorder %v3196, 63
    %vm3229 = vcmp.eq.s32.totalorder %v3197, 63
    %vm3230 = vcmp.eq.s32.totalorder %v3198, 63
    %vm3231 = vcmp.eq.s32.totalorder %v3199, 63
    %vm3232 = vcmp.eq.s32.totalorder %v3200, 63
    %vm3233 = vcmp.eq.s32.totalorder %v3201, 63
    %vm3234 = vcmp.eq.s32.totalorder %v3202, 63
    %vm3235 = vcmp.eq.s32.totalorder %v3203, 63
    %vm3236 = vcmp.eq.s32.totalorder %v3204, 63
    %vm3237 = vcmp.eq.s32.totalorder %v3205, 63
    %vm3238 = vcmp.eq.s32.totalorder %v3206, 63
    %vm3239 = vcmp.eq.s32.totalorder %v3207, 63
    %v3240 = vpack.c.bf16 %v3001, %v3000
    %v3241 = vpack.c.bf16 %v3003, %v3002
    %v3242 = vpack.c.bf16 %v3005, %v3004
    %v3243 = vpack.c.bf16 %v3007, %v3006
    %v3244 = vpack.c.bf16 %v3009, %v3008
    %v3245 = vpack.c.bf16 %v3011, %v3010
    %v3246 = vpack.c.bf16 %v3013, %v3012
    %v3247 = vpack.c.bf16 %v3015, %v3014
    %v3248 = vld [vmem:[%s6] sm:$0xff]
    %v3249 = vld [vmem:[%s6 + $0x8] sm:$0xf]
    %v3250 = vld [vmem:[%s6 + $0xc] sm:$0xff]
    %v3251 = vld [vmem:[%s6 + $0x14] sm:$0xf]
    %v3252 = vld [vmem:[%s6 + $0x18] sm:$0xff]
    %v3253 = vld [vmem:[%s6 + $0x20] sm:$0xf]
    %v3254 = vld [vmem:[%s6 + $0x24] sm:$0xff]
    %v3255 = vld [vmem:[%s6 + $0x2c] sm:$0xf]
    %v3256 = vld [vmem:[%s6 + $0x30] sm:$0xff]
    %v3257 = vld [vmem:[%s6 + $0x38] sm:$0xf]
    %v3258 = vld [vmem:[%s6 + $0x3c] sm:$0xff]
    %v3259 = vld [vmem:[%s6 + $0x44] sm:$0xf]
    %v3260 = vld [vmem:[%s6 + $0x48] sm:$0xff]
    %v3261 = vld [vmem:[%s6 + $0x50] sm:$0xf]
    %v3262 = vld [vmem:[%s6 + $0x54] sm:$0xff]
    %v3263 = vld [vmem:[%s6 + $0x5c] sm:$0xf]
    %v3280 = vunpack.c.l.b16 %v3248
    %v3281 = vunpack.c.h.b16 %v3248
    %v3282 = vunpack.c.l.b16 %v3249
    %v3283 = vunpack.c.l.b16 %v3250
    %v3284 = vunpack.c.h.b16 %v3250
    %v3285 = vunpack.c.l.b16 %v3251
    %v3286 = vunpack.c.l.b16 %v3252
    %v3287 = vunpack.c.h.b16 %v3252
    %v3288 = vunpack.c.l.b16 %v3253
    %v3289 = vunpack.c.l.b16 %v3254
    %v3290 = vunpack.c.h.b16 %v3254
    %v3291 = vunpack.c.l.b16 %v3255
    %v3292 = vunpack.c.l.b16 %v3256
    %v3293 = vunpack.c.h.b16 %v3256
    %v3294 = vunpack.c.l.b16 %v3257
    %v3295 = vunpack.c.l.b16 %v3258
    %v3296 = vunpack.c.h.b16 %v3258
    %v3297 = vunpack.c.l.b16 %v3259
    %v3298 = vunpack.c.l.b16 %v3260
    %v3299 = vunpack.c.h.b16 %v3260
    %v3300 = vunpack.c.l.b16 %v3261
    %v3301 = vunpack.c.l.b16 %v3262
    %v3302 = vunpack.c.h.b16 %v3262
    %v3303 = vunpack.c.l.b16 %v3263
    %v3304 = vpack.c.b16 %v3283, %v3280
    %v3305 = vpack.c.b16 %v3284, %v3281
    %v3306 = vpack.c.b16 %v3285, %v3282
    %v3307 = vpack.c.b16 %v3289, %v3286
    %v3308 = vpack.c.b16 %v3290, %v3287
    %v3309 = vpack.c.b16 %v3291, %v3288
    %v3310 = vpack.c.b16 %v3295, %v3292
    %v3311 = vpack.c.b16 %v3296, %v3293
    %v3312 = vpack.c.b16 %v3297, %v3294
    %v3313 = vpack.c.b16 %v3301, %v3298
    %v3314 = vpack.c.b16 %v3302, %v3299
    %v3315 = vpack.c.b16 %v3303, %v3300
    %v3329 = vsel %vm668, %v3240, 0
    %v3332 = vsel %vm668, %v3241, 0
    %v3335 = vsel %vm668, %v3242, 0
    %v3338 = vsel %vm668, %v3243, 0
    %v3341 = vsel %vm668, %v3244, 0
    %v3344 = vsel %vm668, %v3245, 0
    %v3347 = vsel %vm668, %v3246, 0
    %v3350 = vsel %vm668, %v3247, 0
    %3352 = vmatpush.bf16.msra.mxu0 0
    %3353 = vmatpush.bf16.msra.mxu0 0
    %3354 = vmatpush.bf16.msra.mxu0 0
    %3355 = vmatpush.bf16.msra.mxu0 0
    %3356 = vmatpush.bf16.msra.mxu0 %v3313
    %3357 = vmatpush.bf16.msra.mxu0 %v3310
    %3358 = vmatpush.bf16.msra.mxu0 %v3307
    %3359 = vmatpush.bf16.msra.mxu0 %v3304
    %3360 = vmatmul.bf16.gmra.mxu0 %v3329
    %v3361 = vpop.f32.mrf.mxu0
    %v3362 = vadd.f32 0.0, %v3361
    %v3363 = vpop.f32.mrf.mxu0
    %v3364 = vadd.f32 0.0, %v3363
    %3365 = vmatmul.bf16.gmra.mxu0 %v3332
    %v3366 = vpop.f32.mrf.mxu0
    %v3367 = vadd.f32 0.0, %v3366
    %v3368 = vpop.f32.mrf.mxu0
    %v3369 = vadd.f32 0.0, %v3368
    %3370 = vmatmul.bf16.gmra.mxu0 %v3335
    %v3371 = vpop.f32.mrf.mxu0
    %v3372 = vadd.f32 0.0, %v3371
    %v3373 = vpop.f32.mrf.mxu0
    %v3374 = vadd.f32 0.0, %v3373
    %3375 = vmatmul.bf16.gmra.mxu0 %v3338
    %v3376 = vpop.f32.mrf.mxu0
    %v3377 = vadd.f32 0.0, %v3376
    %v3378 = vpop.f32.mrf.mxu0
    %v3379 = vadd.f32 0.0, %v3378
    %3380 = vmatmul.bf16.gmra.mxu0 %v3341
    %v3381 = vpop.f32.mrf.mxu0
    %v3382 = vadd.f32 0.0, %v3381
    %v3383 = vpop.f32.mrf.mxu0
    %v3384 = vadd.f32 0.0, %v3383
    %3385 = vmatmul.bf16.gmra.mxu0 %v3344
    %v3386 = vpop.f32.mrf.mxu0
    %v3387 = vadd.f32 0.0, %v3386
    %v3388 = vpop.f32.mrf.mxu0
    %v3389 = vadd.f32 0.0, %v3388
    %3390 = vmatmul.bf16.gmra.mxu0 %v3347
    %v3391 = vpop.f32.mrf.mxu0
    %v3392 = vadd.f32 0.0, %v3391
    %v3393 = vpop.f32.mrf.mxu0
    %v3394 = vadd.f32 0.0, %v3393
    %3395 = vmatmul.bf16.gmra.mxu0 %v3350
    %v3396 = vpop.f32.mrf.mxu0
    %v3397 = vadd.f32 0.0, %v3396
    %v3398 = vpop.f32.mrf.mxu0
    %v3399 = vadd.f32 0.0, %v3398
    %3400 = vdwg.mxu0
    %3401 = vmatpush.bf16.msra.mxu0 0
    %3402 = vmatpush.bf16.msra.mxu0 0
    %3403 = vmatpush.bf16.msra.mxu0 0
    %3404 = vmatpush.bf16.msra.mxu0 0
    %3405 = vmatpush.bf16.msra.mxu0 %v3314
    %3406 = vmatpush.bf16.msra.mxu0 %v3311
    %3407 = vmatpush.bf16.msra.mxu0 %v3308
    %3408 = vmatpush.bf16.msra.mxu0 %v3305
    %3409 = vmatmul.bf16.gmra.mxu0 %v3329
    %v3410 = vpop.f32.mrf.mxu0
    %v3411 = vadd.f32 0.0, %v3410
    %v3412 = vpop.f32.mrf.mxu0
    %v3413 = vadd.f32 0.0, %v3412
    %3414 = vmatmul.bf16.gmra.mxu0 %v3332
    %v3415 = vpop.f32.mrf.mxu0
    %v3416 = vadd.f32 0.0, %v3415
    %v3417 = vpop.f32.mrf.mxu0
    %v3418 = vadd.f32 0.0, %v3417
    %3419 = vmatmul.bf16.gmra.mxu0 %v3335
    %v3420 = vpop.f32.mrf.mxu0
    %v3421 = vadd.f32 0.0, %v3420
    %v3422 = vpop.f32.mrf.mxu0
    %v3423 = vadd.f32 0.0, %v3422
    %3424 = vmatmul.bf16.gmra.mxu0 %v3338
    %v3425 = vpop.f32.mrf.mxu0
    %v3426 = vadd.f32 0.0, %v3425
    %v3427 = vpop.f32.mrf.mxu0
    %v3428 = vadd.f32 0.0, %v3427
    %3429 = vmatmul.bf16.gmra.mxu0 %v3341
    %v3430 = vpop.f32.mrf.mxu0
    %v3431 = vadd.f32 0.0, %v3430
    %v3432 = vpop.f32.mrf.mxu0
    %v3433 = vadd.f32 0.0, %v3432
    %3434 = vmatmul.bf16.gmra.mxu0 %v3344
    %v3435 = vpop.f32.mrf.mxu0
    %v3436 = vadd.f32 0.0, %v3435
    %v3437 = vpop.f32.mrf.mxu0
    %v3438 = vadd.f32 0.0, %v3437
    %3439 = vmatmul.bf16.gmra.mxu0 %v3347
    %v3440 = vpop.f32.mrf.mxu0
    %v3441 = vadd.f32 0.0, %v3440
    %v3442 = vpop.f32.mrf.mxu0
    %v3443 = vadd.f32 0.0, %v3442
    %3444 = vmatmul.bf16.gmra.mxu0 %v3350
    %v3445 = vpop.f32.mrf.mxu0
    %v3446 = vadd.f32 0.0, %v3445
    %v3447 = vpop.f32.mrf.mxu0
    %v3448 = vadd.f32 0.0, %v3447
    %3449 = vdwg.mxu0
    %3450 = vmatpush.bf16.msra.mxu0 0
    %3451 = vmatpush.bf16.msra.mxu0 0
    %3452 = vmatpush.bf16.msra.mxu0 0
    %3453 = vmatpush.bf16.msra.mxu0 0
    %3454 = vmatpush.bf16.msra.mxu0 %v3315
    %3455 = vmatpush.bf16.msra.mxu0 %v3312
    %3456 = vmatpush.bf16.msra.mxu0 %v3309
    %3457 = vmatpush.bf16.msra.mxu0 %v3306
    %3458 = vmatmul.bf16.gmra.mxu0 %v3329
    %v3459 = vpop.f32.mrf.mxu0
    %v3460 = vadd.f32 0.0, %v3459
    %v3461 = vpop.f32.mrf.mxu0
    %v3462 = vadd.f32 0.0, %v3461
    %3463 = vmatmul.bf16.gmra.mxu0 %v3332
    %v3464 = vpop.f32.mrf.mxu0
    %v3465 = vadd.f32 0.0, %v3464
    %v3466 = vpop.f32.mrf.mxu0
    %v3467 = vadd.f32 0.0, %v3466
    %3468 = vmatmul.bf16.gmra.mxu0 %v3335
    %v3469 = vpop.f32.mrf.mxu0
    %v3470 = vadd.f32 0.0, %v3469
    %v3471 = vpop.f32.mrf.mxu0
    %v3472 = vadd.f32 0.0, %v3471
    %3473 = vmatmul.bf16.gmra.mxu0 %v3338
    %v3474 = vpop.f32.mrf.mxu0
    %v3475 = vadd.f32 0.0, %v3474
    %v3476 = vpop.f32.mrf.mxu0
    %v3477 = vadd.f32 0.0, %v3476
    %3478 = vmatmul.bf16.gmra.mxu0 %v3341
    %v3479 = vpop.f32.mrf.mxu0
    %v3480 = vadd.f32 0.0, %v3479
    %v3481 = vpop.f32.mrf.mxu0
    %v3482 = vadd.f32 0.0, %v3481
    %3483 = vmatmul.bf16.gmra.mxu0 %v3344
    %v3484 = vpop.f32.mrf.mxu0
    %v3485 = vadd.f32 0.0, %v3484
    %v3486 = vpop.f32.mrf.mxu0
    %v3487 = vadd.f32 0.0, %v3486
    %3488 = vmatmul.bf16.gmra.mxu0 %v3347
    %v3489 = vpop.f32.mrf.mxu0
    %v3490 = vadd.f32 0.0, %v3489
    %v3491 = vpop.f32.mrf.mxu0
    %v3492 = vadd.f32 0.0, %v3491
    %3493 = vmatmul.bf16.gmra.mxu0 %v3350
    %v3494 = vpop.f32.mrf.mxu0
    %v3495 = vadd.f32 0.0, %v3494
    %v3496 = vpop.f32.mrf.mxu0
    %v3497 = vadd.f32 0.0, %v3496
    %3498 = vdwg.mxu0
    %v3515 = vrot.slane %v3362, 7
    %v3516 = vrot.slane %v3364, 7
    %v3517 = vsel %vm1754, %v3515, %v3516
    %v3518 = vrot.slane %v3367, 7
    %v3519 = vsel %vm1754, %v3516, %v3518
    %v3520 = vrot.slane %v3369, 7
    %v3521 = vsel %vm1754, %v3518, %v3520
    %v3522 = vrot.slane %v3372, 7
    %v3523 = vsel %vm1754, %v3520, %v3522
    %v3524 = vrot.slane %v3374, 7
    %v3525 = vsel %vm1754, %v3522, %v3524
    %v3526 = vrot.slane %v3377, 7
    %v3527 = vsel %vm1754, %v3524, %v3526
    %v3528 = vrot.slane %v3379, 7
    %v3529 = vsel %vm1754, %v3526, %v3528
    %v3530 = vrot.slane %v3382, 7
    %v3531 = vsel %vm1754, %v3528, %v3530
    %v3532 = vrot.slane %v3384, 7
    %v3533 = vsel %vm1754, %v3530, %v3532
    %v3534 = vrot.slane %v3387, 7
    %v3535 = vsel %vm1754, %v3532, %v3534
    %v3536 = vrot.slane %v3389, 7
    %v3537 = vsel %vm1754, %v3534, %v3536
    %v3538 = vrot.slane %v3392, 7
    %v3539 = vsel %vm1754, %v3536, %v3538
    %v3540 = vrot.slane %v3394, 7
    %v3541 = vsel %vm1754, %v3538, %v3540
    %v3542 = vrot.slane %v3397, 7
    %v3543 = vsel %vm1754, %v3540, %v3542
    %v3544 = vrot.slane %v3399, 7
    %v3545 = vsel %vm1754, %v3542, %v3544
    %v3562 = vsel %vm1754, 0.0, %v3515
    %v3563 = vsel %vm3208, 1, 0
    %v3564 = vsel %vm3209, 1, 0
    %v3565 = vsel %vm3210, 1, 0
    %v3566 = vsel %vm3211, 1, 0
    %v3567 = vsel %vm3212, 1, 0
    %v3568 = vsel %vm3213, 1, 0
    %v3569 = vsel %vm3214, 1, 0
    %v3570 = vsel %vm3215, 1, 0
    %v3571 = vsel %vm3216, 1, 0
    %v3572 = vsel %vm3217, 1, 0
    %v3573 = vsel %vm3218, 1, 0
    %v3574 = vsel %vm3219, 1, 0
    %v3575 = vsel %vm3220, 1, 0
    %v3576 = vsel %vm3221, 1, 0
    %v3577 = vsel %vm3222, 1, 0
    %v3578 = vsel %vm3223, 1, 0
    %vm3579 = vcmp.eq.s32.totalorder %v3563, 1
    %vm3580 = vcmp.eq.s32.totalorder %v3564, 1
    %vm3581 = vcmp.eq.s32.totalorder %v3565, 1
    %vm3582 = vcmp.eq.s32.totalorder %v3566, 1
    %vm3583 = vcmp.eq.s32.totalorder %v3567, 1
    %vm3584 = vcmp.eq.s32.totalorder %v3568, 1
    %vm3585 = vcmp.eq.s32.totalorder %v3569, 1
    %vm3586 = vcmp.eq.s32.totalorder %v3570, 1
    %vm3587 = vcmp.eq.s32.totalorder %v3571, 1
    %vm3588 = vcmp.eq.s32.totalorder %v3572, 1
    %vm3589 = vcmp.eq.s32.totalorder %v3573, 1
    %vm3590 = vcmp.eq.s32.totalorder %v3574, 1
    %vm3591 = vcmp.eq.s32.totalorder %v3575, 1
    %vm3592 = vcmp.eq.s32.totalorder %v3576, 1
    %vm3593 = vcmp.eq.s32.totalorder %v3577, 1
    %vm3594 = vcmp.eq.s32.totalorder %v3578, 1
    %v3595 = vsel %vm3579, 0.0, %v3562
    %v3596 = vsel %vm3580, 0.0, %v3517
    %v3597 = vsel %vm3581, 0.0, %v3519
    %v3598 = vsel %vm3582, 0.0, %v3521
    %v3599 = vsel %vm3583, 0.0, %v3523
    %v3600 = vsel %vm3584, 0.0, %v3525
    %v3601 = vsel %vm3585, 0.0, %v3527
    %v3602 = vsel %vm3586, 0.0, %v3529
    %v3603 = vsel %vm3587, 0.0, %v3531
    %v3604 = vsel %vm3588, 0.0, %v3533
    %v3605 = vsel %vm3589, 0.0, %v3535
    %v3606 = vsel %vm3590, 0.0, %v3537
    %v3607 = vsel %vm3591, 0.0, %v3539
    %v3608 = vsel %vm3592, 0.0, %v3541
    %v3609 = vsel %vm3593, 0.0, %v3543
    %v3610 = vsel %vm3594, 0.0, %v3545
    %v3627 = vrot.slane %v3460, 1
    %v3628 = vrot.slane %v3462, 1
    %v3629 = vsel %vm1979, %v3627, %v3628
    %v3630 = vrot.slane %v3465, 1
    %v3631 = vsel %vm1979, %v3628, %v3630
    %v3632 = vrot.slane %v3467, 1
    %v3633 = vsel %vm1979, %v3630, %v3632
    %v3634 = vrot.slane %v3470, 1
    %v3635 = vsel %vm1979, %v3632, %v3634
    %v3636 = vrot.slane %v3472, 1
    %v3637 = vsel %vm1979, %v3634, %v3636
    %v3638 = vrot.slane %v3475, 1
    %v3639 = vsel %vm1979, %v3636, %v3638
    %v3640 = vrot.slane %v3477, 1
    %v3641 = vsel %vm1979, %v3638, %v3640
    %v3642 = vrot.slane %v3480, 1
    %v3643 = vsel %vm1979, %v3640, %v3642
    %v3644 = vrot.slane %v3482, 1
    %v3645 = vsel %vm1979, %v3642, %v3644
    %v3646 = vrot.slane %v3485, 1
    %v3647 = vsel %vm1979, %v3644, %v3646
    %v3648 = vrot.slane %v3487, 1
    %v3649 = vsel %vm1979, %v3646, %v3648
    %v3650 = vrot.slane %v3490, 1
    %v3651 = vsel %vm1979, %v3648, %v3650
    %v3652 = vrot.slane %v3492, 1
    %v3653 = vsel %vm1979, %v3650, %v3652
    %v3654 = vrot.slane %v3495, 1
    %v3655 = vsel %vm1979, %v3652, %v3654
    %v3656 = vrot.slane %v3497, 1
    %v3657 = vsel %vm1979, %v3654, %v3656
    %v3674 = vsel %vm1979, %v3656, 0.0
    %v3675 = vsel %vm3224, 1, 0
    %v3676 = vsel %vm3225, 1, 0
    %v3677 = vsel %vm3226, 1, 0
    %v3678 = vsel %vm3227, 1, 0
    %v3679 = vsel %vm3228, 1, 0
    %v3680 = vsel %vm3229, 1, 0
    %v3681 = vsel %vm3230, 1, 0
    %v3682 = vsel %vm3231, 1, 0
    %v3683 = vsel %vm3232, 1, 0
    %v3684 = vsel %vm3233, 1, 0
    %v3685 = vsel %vm3234, 1, 0
    %v3686 = vsel %vm3235, 1, 0
    %v3687 = vsel %vm3236, 1, 0
    %v3688 = vsel %vm3237, 1, 0
    %v3689 = vsel %vm3238, 1, 0
    %v3690 = vsel %vm3239, 1, 0
    %vm3691 = vcmp.eq.s32.totalorder %v3675, 1
    %vm3692 = vcmp.eq.s32.totalorder %v3676, 1
    %vm3693 = vcmp.eq.s32.totalorder %v3677, 1
    %vm3694 = vcmp.eq.s32.totalorder %v3678, 1
    %vm3695 = vcmp.eq.s32.totalorder %v3679, 1
    %vm3696 = vcmp.eq.s32.totalorder %v3680, 1
    %vm3697 = vcmp.eq.s32.totalorder %v3681, 1
    %vm3698 = vcmp.eq.s32.totalorder %v3682, 1
    %vm3699 = vcmp.eq.s32.totalorder %v3683, 1
    %vm3700 = vcmp.eq.s32.totalorder %v3684, 1
    %vm3701 = vcmp.eq.s32.totalorder %v3685, 1
    %vm3702 = vcmp.eq.s32.totalorder %v3686, 1
    %vm3703 = vcmp.eq.s32.totalorder %v3687, 1
    %vm3704 = vcmp.eq.s32.totalorder %v3688, 1
    %vm3705 = vcmp.eq.s32.totalorder %v3689, 1
    %vm3706 = vcmp.eq.s32.totalorder %v3690, 1
    %v3707 = vsel %vm3691, 0.0, %v3629
    %v3708 = vsel %vm3692, 0.0, %v3631
    %v3709 = vsel %vm3693, 0.0, %v3633
    %v3710 = vsel %vm3694, 0.0, %v3635
    %v3711 = vsel %vm3695, 0.0, %v3637
    %v3712 = vsel %vm3696, 0.0, %v3639
    %v3713 = vsel %vm3697, 0.0, %v3641
    %v3714 = vsel %vm3698, 0.0, %v3643
    %v3715 = vsel %vm3699, 0.0, %v3645
    %v3716 = vsel %vm3700, 0.0, %v3647
    %v3717 = vsel %vm3701, 0.0, %v3649
    %v3718 = vsel %vm3702, 0.0, %v3651
    %v3719 = vsel %vm3703, 0.0, %v3653
    %v3720 = vsel %vm3704, 0.0, %v3655
    %v3721 = vsel %vm3705, 0.0, %v3657
    %v3722 = vsel %vm3706, 0.0, %v3674
    %v3723 = vadd.f32 %v3595, %v3411
    %v3724 = vadd.f32 %v3596, %v3413
    %v3725 = vadd.f32 %v3597, %v3416
    %v3726 = vadd.f32 %v3598, %v3418
    %v3727 = vadd.f32 %v3599, %v3421
    %v3728 = vadd.f32 %v3600, %v3423
    %v3729 = vadd.f32 %v3601, %v3426
    %v3730 = vadd.f32 %v3602, %v3428
    %v3731 = vadd.f32 %v3603, %v3431
    %v3732 = vadd.f32 %v3604, %v3433
    %v3733 = vadd.f32 %v3605, %v3436
    %v3734 = vadd.f32 %v3606, %v3438
    %v3735 = vadd.f32 %v3607, %v3441
    %v3736 = vadd.f32 %v3608, %v3443
    %v3737 = vadd.f32 %v3609, %v3446
    %v3738 = vadd.f32 %v3610, %v3448
    %v3739 = vadd.f32 %v3723, %v3707
    %v3740 = vadd.f32 %v3724, %v3708
    %v3741 = vadd.f32 %v3725, %v3709
    %v3742 = vadd.f32 %v3726, %v3710
    %v3743 = vadd.f32 %v3727, %v3711
    %v3744 = vadd.f32 %v3728, %v3712
    %v3745 = vadd.f32 %v3729, %v3713
    %v3746 = vadd.f32 %v3730, %v3714
    %v3747 = vadd.f32 %v3731, %v3715
    %v3748 = vadd.f32 %v3732, %v3716
    %v3749 = vadd.f32 %v3733, %v3717
    %v3750 = vadd.f32 %v3734, %v3718
    %v3751 = vadd.f32 %v3735, %v3719
    %v3752 = vadd.f32 %v3736, %v3720
    %v3753 = vadd.f32 %v3737, %v3721
    %v3754 = vadd.f32 %v3738, %v3722
    %v3755 = vadd.f32 %v3739, %v3740
    %v3756 = vadd.f32 %v3755, %v3741
    %v3757 = vadd.f32 %v3756, %v3742
    %v3758 = vadd.f32 %v3757, %v3743
    %v3759 = vadd.f32 %v3758, %v3744
    %v3760 = vadd.f32 %v3759, %v3745
    %v3761 = vadd.f32 %v3760, %v3746
    %v3762 = vadd.f32 %v3761, %v3747
    %v3763 = vadd.f32 %v3762, %v3748
    %v3764 = vadd.f32 %v3763, %v3749
    %v3765 = vadd.f32 %v3764, %v3750
    %v3766 = vadd.f32 %v3765, %v3751
    %v3767 = vadd.f32 %v3766, %v3752
    %v3768 = vadd.f32 %v3767, %v3753
    %v3769 = vadd.f32 %v3768, %v3754
    %v3770 = vrot.slane %v3769, 4
    %v3771 = vadd.f32 %v3769, %v3770
    %v3772 = vrot.slane %v3771, 2
    %v3773 = vadd.f32 %v3771, %v3772
    %v3774 = vrot.slane %v3773, 1
    %v3775 = vadd.f32 %v3773, %v3774
    %v3776 = vmul.f32 %v3739, %v3739
    %v3777 = vmul.f32 %v3740, %v3740
    %v3778 = vmul.f32 %v3741, %v3741
    %v3779 = vmul.f32 %v3742, %v3742
    %v3780 = vmul.f32 %v3743, %v3743
    %v3781 = vmul.f32 %v3744, %v3744
    %v3782 = vmul.f32 %v3745, %v3745
    %v3783 = vmul.f32 %v3746, %v3746
    %v3784 = vmul.f32 %v3747, %v3747
    %v3785 = vmul.f32 %v3748, %v3748
    %v3786 = vmul.f32 %v3749, %v3749
    %v3787 = vmul.f32 %v3750, %v3750
    %v3788 = vmul.f32 %v3751, %v3751
    %v3789 = vmul.f32 %v3752, %v3752
    %v3790 = vmul.f32 %v3753, %v3753
    %v3791 = vmul.f32 %v3754, %v3754
    %v3792 = vadd.f32 %v3776, %v3777
    %v3793 = vadd.f32 %v3792, %v3778
    %v3794 = vadd.f32 %v3793, %v3779
    %v3795 = vadd.f32 %v3794, %v3780
    %v3796 = vadd.f32 %v3795, %v3781
    %v3797 = vadd.f32 %v3796, %v3782
    %v3798 = vadd.f32 %v3797, %v3783
    %v3799 = vadd.f32 %v3798, %v3784
    %v3800 = vadd.f32 %v3799, %v3785
    %v3801 = vadd.f32 %v3800, %v3786
    %v3802 = vadd.f32 %v3801, %v3787
    %v3803 = vadd.f32 %v3802, %v3788
    %v3804 = vadd.f32 %v3803, %v3789
    %v3805 = vadd.f32 %v3804, %v3790
    %v3806 = vadd.f32 %v3805, %v3791
    %v3807 = vrot.slane %v3806, 4
    %v3808 = vadd.f32 %v3806, %v3807
    %v3809 = vrot.slane %v3808, 2
    %v3810 = vadd.f32 %v3808, %v3809
    %v3811 = vrot.slane %v3810, 1
    %v3812 = vadd.f32 %v3810, %v3811
    %v3813 = vmul.f32 %v3775, 0.0078125
    %v3814 = vmul.f32 %v3812, 0.0078125
    %v3815 = vmul.f32 %v3813, %v3813
    %v3816 = vsub.f32 %v3814, %v3815
    %v3817 = vmax.f32 %v3816, 0.0
    %v3818 = vadd.f32 %v3817, 1e-05
    %v3819 = vrsqrt.pop %v3818
    %v3820 = vmul.f32 %v3819, %v3818
    %v3821 = vmul.f32 %v3820, %v3819
    %v3822 = vmul.f32 0.5, %v3821
    %v3823 = vsub.f32 1.5, %v3822
    %v3824 = vmul.f32 %v3819, %v3823
    %vm3825 = vweird.f32 %v3818
    %vm3826 = vweird.f32 %v3819
    %vm3827 = vmor %vm3825, %vm3826
    %v3828 = vsel %vm3827, %v3819, %v3824
    %v3829 = vsub.f32 %v3739, %v3813
    %v3830 = vsub.f32 %v3740, %v3813
    %v3831 = vsub.f32 %v3741, %v3813
    %v3832 = vsub.f32 %v3742, %v3813
    %v3833 = vsub.f32 %v3743, %v3813
    %v3834 = vsub.f32 %v3744, %v3813
    %v3835 = vsub.f32 %v3745, %v3813
    %v3836 = vsub.f32 %v3746, %v3813
    %v3837 = vsub.f32 %v3747, %v3813
    %v3838 = vsub.f32 %v3748, %v3813
    %v3839 = vsub.f32 %v3749, %v3813
    %v3840 = vsub.f32 %v3750, %v3813
    %v3841 = vsub.f32 %v3751, %v3813
    %v3842 = vsub.f32 %v3752, %v3813
    %v3843 = vsub.f32 %v3753, %v3813
    %v3844 = vsub.f32 %v3754, %v3813
    %v3845 = vmul.f32 %v3829, %v3828
    %v3846 = vmul.f32 %v3830, %v3828
    %v3847 = vmul.f32 %v3831, %v3828
    %v3848 = vmul.f32 %v3832, %v3828
    %v3849 = vmul.f32 %v3833, %v3828
    %v3850 = vmul.f32 %v3834, %v3828
    %v3851 = vmul.f32 %v3835, %v3828
    %v3852 = vmul.f32 %v3836, %v3828
    %v3853 = vmul.f32 %v3837, %v3828
    %v3854 = vmul.f32 %v3838, %v3828
    %v3855 = vmul.f32 %v3839, %v3828
    %v3856 = vmul.f32 %v3840, %v3828
    %v3857 = vmul.f32 %v3841, %v3828
    %v3858 = vmul.f32 %v3842, %v3828
    %v3859 = vmul.f32 %v3843, %v3828
    %v3860 = vmul.f32 %v3844, %v3828
    %v3861 = vmax.f32 %v3845, 0.0
    %v3862 = vmax.f32 %v3846, 0.0
    %v3863 = vmax.f32 %v3847, 0.0
    %v3864 = vmax.f32 %v3848, 0.0
    %v3865 = vmax.f32 %v3849, 0.0
    %v3866 = vmax.f32 %v3850, 0.0
    %v3867 = vmax.f32 %v3851, 0.0
    %v3868 = vmax.f32 %v3852, 0.0
    %v3869 = vmax.f32 %v3853, 0.0
    %v3870 = vmax.f32 %v3854, 0.0
    %v3871 = vmax.f32 %v3855, 0.0
    %v3872 = vmax.f32 %v3856, 0.0
    %v3873 = vmax.f32 %v3857, 0.0
    %v3874 = vmax.f32 %v3858, 0.0
    %v3875 = vmax.f32 %v3859, 0.0
    %v3876 = vmax.f32 %v3860, 0.0
    %v3877 = vpack.c.bf16 %v3862, %v3861
    %v3878 = vpack.c.bf16 %v3864, %v3863
    %v3879 = vpack.c.bf16 %v3866, %v3865
    %v3880 = vpack.c.bf16 %v3868, %v3867
    %v3881 = vpack.c.bf16 %v3870, %v3869
    %v3882 = vpack.c.bf16 %v3872, %v3871
    %v3883 = vpack.c.bf16 %v3874, %v3873
    %v3884 = vpack.c.bf16 %v3876, %v3875
    %v3885 = vld [vmem:[%s7] sm:$0xff]
    %v3886 = vld [vmem:[%s7 + $0x8] sm:$0xf]
    %v3887 = vld [vmem:[%s7 + $0xc] sm:$0xff]
    %v3888 = vld [vmem:[%s7 + $0x14] sm:$0xf]
    %v3889 = vld [vmem:[%s7 + $0x18] sm:$0xff]
    %v3890 = vld [vmem:[%s7 + $0x20] sm:$0xf]
    %v3891 = vld [vmem:[%s7 + $0x24] sm:$0xff]
    %v3892 = vld [vmem:[%s7 + $0x2c] sm:$0xf]
    %v3893 = vld [vmem:[%s7 + $0x30] sm:$0xff]
    %v3894 = vld [vmem:[%s7 + $0x38] sm:$0xf]
    %v3895 = vld [vmem:[%s7 + $0x3c] sm:$0xff]
    %v3896 = vld [vmem:[%s7 + $0x44] sm:$0xf]
    %v3897 = vld [vmem:[%s7 + $0x48] sm:$0xff]
    %v3898 = vld [vmem:[%s7 + $0x50] sm:$0xf]
    %v3899 = vld [vmem:[%s7 + $0x54] sm:$0xff]
    %v3900 = vld [vmem:[%s7 + $0x5c] sm:$0xf]
    %v3901 = vld [vmem:[%s7 + $0x60] sm:$0xff]
    %v3902 = vld [vmem:[%s7 + $0x68] sm:$0xf]
    %v3903 = vld [vmem:[%s7 + $0x6c] sm:$0xff]
    %v3904 = vld [vmem:[%s7 + $0x74] sm:$0xf]
    %v3905 = vld [vmem:[%s7 + $0x78] sm:$0xff]
    %v3906 = vld [vmem:[%s7 + $0x80] sm:$0xf]
    %v3907 = vld [vmem:[%s7 + $0x84] sm:$0xff]
    %v3908 = vld [vmem:[%s7 + $0x8c] sm:$0xf]
    %v3909 = vld [vmem:[%s7 + $0x90] sm:$0xff]
    %v3910 = vld [vmem:[%s7 + $0x98] sm:$0xf]
    %v3911 = vld [vmem:[%s7 + $0x9c] sm:$0xff]
    %v3912 = vld [vmem:[%s7 + $0xa4] sm:$0xf]
    %v3913 = vld [vmem:[%s7 + $0xa8] sm:$0xff]
    %v3914 = vld [vmem:[%s7 + $0xb0] sm:$0xf]
    %v3915 = vld [vmem:[%s7 + $0xb4] sm:$0xff]
    %v3916 = vld [vmem:[%s7 + $0xbc] sm:$0xf]
    %v3949 = vunpack.c.l.b16 %v3885
    %v3950 = vunpack.c.h.b16 %v3885
    %v3951 = vunpack.c.l.b16 %v3886
    %v3952 = vunpack.c.l.b16 %v3887
    %v3953 = vunpack.c.h.b16 %v3887
    %v3954 = vunpack.c.l.b16 %v3888
    %v3955 = vunpack.c.l.b16 %v3889
    %v3956 = vunpack.c.h.b16 %v3889
    %v3957 = vunpack.c.l.b16 %v3890
    %v3958 = vunpack.c.l.b16 %v3891
    %v3959 = vunpack.c.h.b16 %v3891
    %v3960 = vunpack.c.l.b16 %v3892
    %v3961 = vunpack.c.l.b16 %v3893
    %v3962 = vunpack.c.h.b16 %v3893
    %v3963 = vunpack.c.l.b16 %v3894
    %v3964 = vunpack.c.l.b16 %v3895
    %v3965 = vunpack.c.h.b16 %v3895
    %v3966 = vunpack.c.l.b16 %v3896
    %v3967 = vunpack.c.l.b16 %v3897
    %v3968 = vunpack.c.h.b16 %v3897
    %v3969 = vunpack.c.l.b16 %v3898
    %v3970 = vunpack.c.l.b16 %v3899
    %v3971 = vunpack.c.h.b16 %v3899
    %v3972 = vunpack.c.l.b16 %v3900
    %v3973 = vunpack.c.l.b16 %v3901
    %v3974 = vunpack.c.h.b16 %v3901
    %v3975 = vunpack.c.l.b16 %v3902
    %v3976 = vunpack.c.l.b16 %v3903
    %v3977 = vunpack.c.h.b16 %v3903
    %v3978 = vunpack.c.l.b16 %v3904
    %v3979 = vunpack.c.l.b16 %v3905
    %v3980 = vunpack.c.h.b16 %v3905
    %v3981 = vunpack.c.l.b16 %v3906
    %v3982 = vunpack.c.l.b16 %v3907
    %v3983 = vunpack.c.h.b16 %v3907
    %v3984 = vunpack.c.l.b16 %v3908
    %v3985 = vunpack.c.l.b16 %v3909
    %v3986 = vunpack.c.h.b16 %v3909
    %v3987 = vunpack.c.l.b16 %v3910
    %v3988 = vunpack.c.l.b16 %v3911
    %v3989 = vunpack.c.h.b16 %v3911
    %v3990 = vunpack.c.l.b16 %v3912
    %v3991 = vunpack.c.l.b16 %v3913
    %v3992 = vunpack.c.h.b16 %v3913
    %v3993 = vunpack.c.l.b16 %v3914
    %v3994 = vunpack.c.l.b16 %v3915
    %v3995 = vunpack.c.h.b16 %v3915
    %v3996 = vunpack.c.l.b16 %v3916
    %v3997 = vpack.c.b16 %v3952, %v3949
    %v3998 = vpack.c.b16 %v3953, %v3950
    %v3999 = vpack.c.b16 %v3954, %v3951
    %v4000 = vpack.c.b16 %v3958, %v3955
    %v4001 = vpack.c.b16 %v3959, %v3956
    %v4002 = vpack.c.b16 %v3960, %v3957
    %v4003 = vpack.c.b16 %v3964, %v3961
    %v4004 = vpack.c.b16 %v3965, %v3962
    %v4005 = vpack.c.b16 %v3966, %v3963
    %v4006 = vpack.c.b16 %v3970, %v3967
    %v4007 = vpack.c.b16 %v3971, %v3968
    %v4008 = vpack.c.b16 %v3972, %v3969
    %v4009 = vpack.c.b16 %v3976, %v3973
    %v4010 = vpack.c.b16 %v3977, %v3974
    %v4011 = vpack.c.b16 %v3978, %v3975
    %v4012 = vpack.c.b16 %v3982, %v3979
    %v4013 = vpack.c.b16 %v3983, %v3980
    %v4014 = vpack.c.b16 %v3984, %v3981
    %v4015 = vpack.c.b16 %v3988, %v3985
    %v4016 = vpack.c.b16 %v3989, %v3986
    %v4017 = vpack.c.b16 %v3990, %v3987
    %v4018 = vpack.c.b16 %v3994, %v3991
    %v4019 = vpack.c.b16 %v3995, %v3992
    %v4020 = vpack.c.b16 %v3996, %v3993
    %4045 = vmatpush.bf16.msra.mxu0 %v4018
    %4046 = vmatpush.bf16.msra.mxu0 %v4015
    %4047 = vmatpush.bf16.msra.mxu0 %v4012
    %4048 = vmatpush.bf16.msra.mxu0 %v4009
    %4049 = vmatpush.bf16.msra.mxu0 %v4006
    %4050 = vmatpush.bf16.msra.mxu0 %v4003
    %4051 = vmatpush.bf16.msra.mxu0 %v4000
    %4052 = vmatpush.bf16.msra.mxu0 %v3997
    %4053 = vmatmul.bf16.gmra.mxu0 %v3877
    %v4054 = vpop.f32.mrf.mxu0
    %v4055 = vadd.f32 0.0, %v4054
    %v4056 = vpop.f32.mrf.mxu0
    %v4057 = vadd.f32 0.0, %v4056
    %4058 = vmatmul.bf16.gmra.mxu0 %v3878
    %v4059 = vpop.f32.mrf.mxu0
    %v4060 = vadd.f32 0.0, %v4059
    %v4061 = vpop.f32.mrf.mxu0
    %v4062 = vadd.f32 0.0, %v4061
    %4063 = vmatmul.bf16.gmra.mxu0 %v3879
    %v4064 = vpop.f32.mrf.mxu0
    %v4065 = vadd.f32 0.0, %v4064
    %v4066 = vpop.f32.mrf.mxu0
    %v4067 = vadd.f32 0.0, %v4066
    %4068 = vmatmul.bf16.gmra.mxu0 %v3880
    %v4069 = vpop.f32.mrf.mxu0
    %v4070 = vadd.f32 0.0, %v4069
    %v4071 = vpop.f32.mrf.mxu0
    %v4072 = vadd.f32 0.0, %v4071
    %4073 = vmatmul.bf16.gmra.mxu0 %v3881
    %v4074 = vpop.f32.mrf.mxu0
    %v4075 = vadd.f32 0.0, %v4074
    %v4076 = vpop.f32.mrf.mxu0
    %v4077 = vadd.f32 0.0, %v4076
    %4078 = vmatmul.bf16.gmra.mxu0 %v3882
    %v4079 = vpop.f32.mrf.mxu0
    %v4080 = vadd.f32 0.0, %v4079
    %v4081 = vpop.f32.mrf.mxu0
    %v4082 = vadd.f32 0.0, %v4081
    %4083 = vmatmul.bf16.gmra.mxu0 %v3883
    %v4084 = vpop.f32.mrf.mxu0
    %v4085 = vadd.f32 0.0, %v4084
    %v4086 = vpop.f32.mrf.mxu0
    %v4087 = vadd.f32 0.0, %v4086
    %4088 = vmatmul.bf16.gmra.mxu0 %v3884
    %v4089 = vpop.f32.mrf.mxu0
    %v4090 = vadd.f32 0.0, %v4089
    %v4091 = vpop.f32.mrf.mxu0
    %v4092 = vadd.f32 0.0, %v4091
    %4093 = vdwg.mxu0
    %4094 = vmatpush.bf16.msra.mxu0 %v4019
    %4095 = vmatpush.bf16.msra.mxu0 %v4016
    %4096 = vmatpush.bf16.msra.mxu0 %v4013
    %4097 = vmatpush.bf16.msra.mxu0 %v4010
    %4098 = vmatpush.bf16.msra.mxu0 %v4007
    %4099 = vmatpush.bf16.msra.mxu0 %v4004
    %4100 = vmatpush.bf16.msra.mxu0 %v4001
    %4101 = vmatpush.bf16.msra.mxu0 %v3998
    %4102 = vmatmul.bf16.gmra.mxu0 %v3877
    %v4103 = vpop.f32.mrf.mxu0
    %v4104 = vadd.f32 0.0, %v4103
    %v4105 = vpop.f32.mrf.mxu0
    %v4106 = vadd.f32 0.0, %v4105
    %4107 = vmatmul.bf16.gmra.mxu0 %v3878
    %v4108 = vpop.f32.mrf.mxu0
    %v4109 = vadd.f32 0.0, %v4108
    %v4110 = vpop.f32.mrf.mxu0
    %v4111 = vadd.f32 0.0, %v4110
    %4112 = vmatmul.bf16.gmra.mxu0 %v3879
    %v4113 = vpop.f32.mrf.mxu0
    %v4114 = vadd.f32 0.0, %v4113
    %v4115 = vpop.f32.mrf.mxu0
    %v4116 = vadd.f32 0.0, %v4115
    %4117 = vmatmul.bf16.gmra.mxu0 %v3880
    %v4118 = vpop.f32.mrf.mxu0
    %v4119 = vadd.f32 0.0, %v4118
    %v4120 = vpop.f32.mrf.mxu0
    %v4121 = vadd.f32 0.0, %v4120
    %4122 = vmatmul.bf16.gmra.mxu0 %v3881
    %v4123 = vpop.f32.mrf.mxu0
    %v4124 = vadd.f32 0.0, %v4123
    %v4125 = vpop.f32.mrf.mxu0
    %v4126 = vadd.f32 0.0, %v4125
    %4127 = vmatmul.bf16.gmra.mxu0 %v3882
    %v4128 = vpop.f32.mrf.mxu0
    %v4129 = vadd.f32 0.0, %v4128
    %v4130 = vpop.f32.mrf.mxu0
    %v4131 = vadd.f32 0.0, %v4130
    %4132 = vmatmul.bf16.gmra.mxu0 %v3883
    %v4133 = vpop.f32.mrf.mxu0
    %v4134 = vadd.f32 0.0, %v4133
    %v4135 = vpop.f32.mrf.mxu0
    %v4136 = vadd.f32 0.0, %v4135
    %4137 = vmatmul.bf16.gmra.mxu0 %v3884
    %v4138 = vpop.f32.mrf.mxu0
    %v4139 = vadd.f32 0.0, %v4138
    %v4140 = vpop.f32.mrf.mxu0
    %v4141 = vadd.f32 0.0, %v4140
    %4142 = vdwg.mxu0
    %4143 = vmatpush.bf16.msra.mxu0 %v4020
    %4144 = vmatpush.bf16.msra.mxu0 %v4017
    %4145 = vmatpush.bf16.msra.mxu0 %v4014
    %4146 = vmatpush.bf16.msra.mxu0 %v4011
    %4147 = vmatpush.bf16.msra.mxu0 %v4008
    %4148 = vmatpush.bf16.msra.mxu0 %v4005
    %4149 = vmatpush.bf16.msra.mxu0 %v4002
    %4150 = vmatpush.bf16.msra.mxu0 %v3999
    %4151 = vmatmul.bf16.gmra.mxu0 %v3877
    %v4152 = vpop.f32.mrf.mxu0
    %v4153 = vadd.f32 0.0, %v4152
    %v4154 = vpop.f32.mrf.mxu0
    %v4155 = vadd.f32 0.0, %v4154
    %4156 = vmatmul.bf16.gmra.mxu0 %v3878
    %v4157 = vpop.f32.mrf.mxu0
    %v4158 = vadd.f32 0.0, %v4157
    %v4159 = vpop.f32.mrf.mxu0
    %v4160 = vadd.f32 0.0, %v4159
    %4161 = vmatmul.bf16.gmra.mxu0 %v3879
    %v4162 = vpop.f32.mrf.mxu0
    %v4163 = vadd.f32 0.0, %v4162
    %v4164 = vpop.f32.mrf.mxu0
    %v4165 = vadd.f32 0.0, %v4164
    %4166 = vmatmul.bf16.gmra.mxu0 %v3880
    %v4167 = vpop.f32.mrf.mxu0
    %v4168 = vadd.f32 0.0, %v4167
    %v4169 = vpop.f32.mrf.mxu0
    %v4170 = vadd.f32 0.0, %v4169
    %4171 = vmatmul.bf16.gmra.mxu0 %v3881
    %v4172 = vpop.f32.mrf.mxu0
    %v4173 = vadd.f32 0.0, %v4172
    %v4174 = vpop.f32.mrf.mxu0
    %v4175 = vadd.f32 0.0, %v4174
    %4176 = vmatmul.bf16.gmra.mxu0 %v3882
    %v4177 = vpop.f32.mrf.mxu0
    %v4178 = vadd.f32 0.0, %v4177
    %v4179 = vpop.f32.mrf.mxu0
    %v4180 = vadd.f32 0.0, %v4179
    %4181 = vmatmul.bf16.gmra.mxu0 %v3883
    %v4182 = vpop.f32.mrf.mxu0
    %v4183 = vadd.f32 0.0, %v4182
    %v4184 = vpop.f32.mrf.mxu0
    %v4185 = vadd.f32 0.0, %v4184
    %4186 = vmatmul.bf16.gmra.mxu0 %v3884
    %v4187 = vpop.f32.mrf.mxu0
    %v4188 = vadd.f32 0.0, %v4187
    %v4189 = vpop.f32.mrf.mxu0
    %v4190 = vadd.f32 0.0, %v4189
    %4191 = vdwg.mxu0
    %v4208 = vrot.slane %v4055, 7
    %v4209 = vrot.slane %v4057, 7
    %v4210 = vsel %vm1754, %v4208, %v4209
    %v4211 = vrot.slane %v4060, 7
    %v4212 = vsel %vm1754, %v4209, %v4211
    %v4213 = vrot.slane %v4062, 7
    %v4214 = vsel %vm1754, %v4211, %v4213
    %v4215 = vrot.slane %v4065, 7
    %v4216 = vsel %vm1754, %v4213, %v4215
    %v4217 = vrot.slane %v4067, 7
    %v4218 = vsel %vm1754, %v4215, %v4217
    %v4219 = vrot.slane %v4070, 7
    %v4220 = vsel %vm1754, %v4217, %v4219
    %v4221 = vrot.slane %v4072, 7
    %v4222 = vsel %vm1754, %v4219, %v4221
    %v4223 = vrot.slane %v4075, 7
    %v4224 = vsel %vm1754, %v4221, %v4223
    %v4225 = vrot.slane %v4077, 7
    %v4226 = vsel %vm1754, %v4223, %v4225
    %v4227 = vrot.slane %v4080, 7
    %v4228 = vsel %vm1754, %v4225, %v4227
    %v4229 = vrot.slane %v4082, 7
    %v4230 = vsel %vm1754, %v4227, %v4229
    %v4231 = vrot.slane %v4085, 7
    %v4232 = vsel %vm1754, %v4229, %v4231
    %v4233 = vrot.slane %v4087, 7
    %v4234 = vsel %vm1754, %v4231, %v4233
    %v4235 = vrot.slane %v4090, 7
    %v4236 = vsel %vm1754, %v4233, %v4235
    %v4237 = vrot.slane %v4092, 7
    %v4238 = vsel %vm1754, %v4235, %v4237
    %v4255 = vsel %vm1754, 0.0, %v4208
    %v4256 = vsel %vm3579, 0.0, %v4255
    %v4257 = vsel %vm3580, 0.0, %v4210
    %v4258 = vsel %vm3581, 0.0, %v4212
    %v4259 = vsel %vm3582, 0.0, %v4214
    %v4260 = vsel %vm3583, 0.0, %v4216
    %v4261 = vsel %vm3584, 0.0, %v4218
    %v4262 = vsel %vm3585, 0.0, %v4220
    %v4263 = vsel %vm3586, 0.0, %v4222
    %v4264 = vsel %vm3587, 0.0, %v4224
    %v4265 = vsel %vm3588, 0.0, %v4226
    %v4266 = vsel %vm3589, 0.0, %v4228
    %v4267 = vsel %vm3590, 0.0, %v4230
    %v4268 = vsel %vm3591, 0.0, %v4232
    %v4269 = vsel %vm3592, 0.0, %v4234
    %v4270 = vsel %vm3593, 0.0, %v4236
    %v4271 = vsel %vm3594, 0.0, %v4238
    %v4288 = vrot.slane %v4153, 1
    %v4289 = vrot.slane %v4155, 1
    %v4290 = vsel %vm1979, %v4288, %v4289
    %v4291 = vrot.slane %v4158, 1
    %v4292 = vsel %vm1979, %v4289, %v4291
    %v4293 = vrot.slane %v4160, 1
    %v4294 = vsel %vm1979, %v4291, %v4293
    %v4295 = vrot.slane %v4163, 1
    %v4296 = vsel %vm1979, %v4293, %v4295
    %v4297 = vrot.slane %v4165, 1
    %v4298 = vsel %vm1979, %v4295, %v4297
    %v4299 = vrot.slane %v4168, 1
    %v4300 = vsel %vm1979, %v4297, %v4299
    %v4301 = vrot.slane %v4170, 1
    %v4302 = vsel %vm1979, %v4299, %v4301
    %v4303 = vrot.slane %v4173, 1
    %v4304 = vsel %vm1979, %v4301, %v4303
    %v4305 = vrot.slane %v4175, 1
    %v4306 = vsel %vm1979, %v4303, %v4305
    %v4307 = vrot.slane %v4178, 1
    %v4308 = vsel %vm1979, %v4305, %v4307
    %v4309 = vrot.slane %v4180, 1
    %v4310 = vsel %vm1979, %v4307, %v4309
    %v4311 = vrot.slane %v4183, 1
    %v4312 = vsel %vm1979, %v4309, %v4311
    %v4313 = vrot.slane %v4185, 1
    %v4314 = vsel %vm1979, %v4311, %v4313
    %v4315 = vrot.slane %v4188, 1
    %v4316 = vsel %vm1979, %v4313, %v4315
    %v4317 = vrot.slane %v4190, 1
    %v4318 = vsel %vm1979, %v4315, %v4317
    %v4335 = vsel %vm1979, %v4317, 0.0
    %v4336 = vsel %vm3691, 0.0, %v4290
    %v4337 = vsel %vm3692, 0.0, %v4292
    %v4338 = vsel %vm3693, 0.0, %v4294
    %v4339 = vsel %vm3694, 0.0, %v4296
    %v4340 = vsel %vm3695, 0.0, %v4298
    %v4341 = vsel %vm3696, 0.0, %v4300
    %v4342 = vsel %vm3697, 0.0, %v4302
    %v4343 = vsel %vm3698, 0.0, %v4304
    %v4344 = vsel %vm3699, 0.0, %v4306
    %v4345 = vsel %vm3700, 0.0, %v4308
    %v4346 = vsel %vm3701, 0.0, %v4310
    %v4347 = vsel %vm3702, 0.0, %v4312
    %v4348 = vsel %vm3703, 0.0, %v4314
    %v4349 = vsel %vm3704, 0.0, %v4316
    %v4350 = vsel %vm3705, 0.0, %v4318
    %v4351 = vsel %vm3706, 0.0, %v4335
    %v4352 = vadd.f32 %v4256, %v4104
    %v4353 = vadd.f32 %v4257, %v4106
    %v4354 = vadd.f32 %v4258, %v4109
    %v4355 = vadd.f32 %v4259, %v4111
    %v4356 = vadd.f32 %v4260, %v4114
    %v4357 = vadd.f32 %v4261, %v4116
    %v4358 = vadd.f32 %v4262, %v4119
    %v4359 = vadd.f32 %v4263, %v4121
    %v4360 = vadd.f32 %v4264, %v4124
    %v4361 = vadd.f32 %v4265, %v4126
    %v4362 = vadd.f32 %v4266, %v4129
    %v4363 = vadd.f32 %v4267, %v4131
    %v4364 = vadd.f32 %v4268, %v4134
    %v4365 = vadd.f32 %v4269, %v4136
    %v4366 = vadd.f32 %v4270, %v4139
    %v4367 = vadd.f32 %v4271, %v4141
    %v4368 = vadd.f32 %v4352, %v4336
    %v4369 = vadd.f32 %v4353, %v4337
    %v4370 = vadd.f32 %v4354, %v4338
    %v4371 = vadd.f32 %v4355, %v4339
    %v4372 = vadd.f32 %v4356, %v4340
    %v4373 = vadd.f32 %v4357, %v4341
    %v4374 = vadd.f32 %v4358, %v4342
    %v4375 = vadd.f32 %v4359, %v4343
    %v4376 = vadd.f32 %v4360, %v4344
    %v4377 = vadd.f32 %v4361, %v4345
    %v4378 = vadd.f32 %v4362, %v4346
    %v4379 = vadd.f32 %v4363, %v4347
    %v4380 = vadd.f32 %v4364, %v4348
    %v4381 = vadd.f32 %v4365, %v4349
    %v4382 = vadd.f32 %v4366, %v4350
    %v4383 = vadd.f32 %v4367, %v4351
    %v4384 = vadd.f32 %v4368, %v4369
    %v4385 = vadd.f32 %v4384, %v4370
    %v4386 = vadd.f32 %v4385, %v4371
    %v4387 = vadd.f32 %v4386, %v4372
    %v4388 = vadd.f32 %v4387, %v4373
    %v4389 = vadd.f32 %v4388, %v4374
    %v4390 = vadd.f32 %v4389, %v4375
    %v4391 = vadd.f32 %v4390, %v4376
    %v4392 = vadd.f32 %v4391, %v4377
    %v4393 = vadd.f32 %v4392, %v4378
    %v4394 = vadd.f32 %v4393, %v4379
    %v4395 = vadd.f32 %v4394, %v4380
    %v4396 = vadd.f32 %v4395, %v4381
    %v4397 = vadd.f32 %v4396, %v4382
    %v4398 = vadd.f32 %v4397, %v4383
    %v4399 = vrot.slane %v4398, 4
    %v4400 = vadd.f32 %v4398, %v4399
    %v4401 = vrot.slane %v4400, 2
    %v4402 = vadd.f32 %v4400, %v4401
    %v4403 = vrot.slane %v4402, 1
    %v4404 = vadd.f32 %v4402, %v4403
    %v4405 = vmul.f32 %v4368, %v4368
    %v4406 = vmul.f32 %v4369, %v4369
    %v4407 = vmul.f32 %v4370, %v4370
    %v4408 = vmul.f32 %v4371, %v4371
    %v4409 = vmul.f32 %v4372, %v4372
    %v4410 = vmul.f32 %v4373, %v4373
    %v4411 = vmul.f32 %v4374, %v4374
    %v4412 = vmul.f32 %v4375, %v4375
    %v4413 = vmul.f32 %v4376, %v4376
    %v4414 = vmul.f32 %v4377, %v4377
    %v4415 = vmul.f32 %v4378, %v4378
    %v4416 = vmul.f32 %v4379, %v4379
    %v4417 = vmul.f32 %v4380, %v4380
    %v4418 = vmul.f32 %v4381, %v4381
    %v4419 = vmul.f32 %v4382, %v4382
    %v4420 = vmul.f32 %v4383, %v4383
    %v4421 = vadd.f32 %v4405, %v4406
    %v4422 = vadd.f32 %v4421, %v4407
    %v4423 = vadd.f32 %v4422, %v4408
    %v4424 = vadd.f32 %v4423, %v4409
    %v4425 = vadd.f32 %v4424, %v4410
    %v4426 = vadd.f32 %v4425, %v4411
    %v4427 = vadd.f32 %v4426, %v4412
    %v4428 = vadd.f32 %v4427, %v4413
    %v4429 = vadd.f32 %v4428, %v4414
    %v4430 = vadd.f32 %v4429, %v4415
    %v4431 = vadd.f32 %v4430, %v4416
    %v4432 = vadd.f32 %v4431, %v4417
    %v4433 = vadd.f32 %v4432, %v4418
    %v4434 = vadd.f32 %v4433, %v4419
    %v4435 = vadd.f32 %v4434, %v4420
    %v4436 = vrot.slane %v4435, 4
    %v4437 = vadd.f32 %v4435, %v4436
    %v4438 = vrot.slane %v4437, 2
    %v4439 = vadd.f32 %v4437, %v4438
    %v4440 = vrot.slane %v4439, 1
    %v4441 = vadd.f32 %v4439, %v4440
    %v4442 = vmul.f32 %v4404, 0.0078125
    %v4443 = vmul.f32 %v4441, 0.0078125
    %v4444 = vmul.f32 %v4442, %v4442
    %v4445 = vsub.f32 %v4443, %v4444
    %v4446 = vmax.f32 %v4445, 0.0
    %v4447 = vadd.f32 %v4446, 1e-05
    %v4448 = vrsqrt.pop %v4447
    %v4449 = vmul.f32 %v4448, %v4447
    %v4450 = vmul.f32 %v4449, %v4448
    %v4451 = vmul.f32 0.5, %v4450
    %v4452 = vsub.f32 1.5, %v4451
    %v4453 = vmul.f32 %v4448, %v4452
    %vm4454 = vweird.f32 %v4447
    %vm4455 = vweird.f32 %v4448
    %vm4456 = vmor %vm4454, %vm4455
    %v4457 = vsel %vm4456, %v4448, %v4453
    %v4458 = vsub.f32 %v4368, %v4442
    %v4459 = vsub.f32 %v4369, %v4442
    %v4460 = vsub.f32 %v4370, %v4442
    %v4461 = vsub.f32 %v4371, %v4442
    %v4462 = vsub.f32 %v4372, %v4442
    %v4463 = vsub.f32 %v4373, %v4442
    %v4464 = vsub.f32 %v4374, %v4442
    %v4465 = vsub.f32 %v4375, %v4442
    %v4466 = vsub.f32 %v4376, %v4442
    %v4467 = vsub.f32 %v4377, %v4442
    %v4468 = vsub.f32 %v4378, %v4442
    %v4469 = vsub.f32 %v4379, %v4442
    %v4470 = vsub.f32 %v4380, %v4442
    %v4471 = vsub.f32 %v4381, %v4442
    %v4472 = vsub.f32 %v4382, %v4442
    %v4473 = vsub.f32 %v4383, %v4442
    %v4474 = vmul.f32 %v4458, %v4457
    %v4475 = vmul.f32 %v4459, %v4457
    %v4476 = vmul.f32 %v4460, %v4457
    %v4477 = vmul.f32 %v4461, %v4457
    %v4478 = vmul.f32 %v4462, %v4457
    %v4479 = vmul.f32 %v4463, %v4457
    %v4480 = vmul.f32 %v4464, %v4457
    %v4481 = vmul.f32 %v4465, %v4457
    %v4482 = vmul.f32 %v4466, %v4457
    %v4483 = vmul.f32 %v4467, %v4457
    %v4484 = vmul.f32 %v4468, %v4457
    %v4485 = vmul.f32 %v4469, %v4457
    %v4486 = vmul.f32 %v4470, %v4457
    %v4487 = vmul.f32 %v4471, %v4457
    %v4488 = vmul.f32 %v4472, %v4457
    %v4489 = vmul.f32 %v4473, %v4457
    %v4490 = vmax.f32 %v4474, 0.0
    %v4491 = vmax.f32 %v4475, 0.0
    %v4492 = vmax.f32 %v4476, 0.0
    %v4493 = vmax.f32 %v4477, 0.0
    %v4494 = vmax.f32 %v4478, 0.0
    %v4495 = vmax.f32 %v4479, 0.0
    %v4496 = vmax.f32 %v4480, 0.0
    %v4497 = vmax.f32 %v4481, 0.0
    %v4498 = vmax.f32 %v4482, 0.0
    %v4499 = vmax.f32 %v4483, 0.0
    %v4500 = vmax.f32 %v4484, 0.0
    %v4501 = vmax.f32 %v4485, 0.0
    %v4502 = vmax.f32 %v4486, 0.0
    %v4503 = vmax.f32 %v4487, 0.0
    %v4504 = vmax.f32 %v4488, 0.0
    %v4505 = vmax.f32 %v4489, 0.0
    %v4506 = vld [vmem:[%s2] sm:$0xf]
    %v4507 = vld [vmem:[%s2 + $0x4] sm:$0xf]
    %v4508 = vld [vmem:[%s2 + $0x8] sm:$0xf]
    %v4509 = vld [vmem:[%s2 + $0xc] sm:$0xf]
    %v4510 = vld [vmem:[%s2 + $0x10] sm:$0xf]
    %v4511 = vld [vmem:[%s2 + $0x14] sm:$0xf]
    %v4512 = vld [vmem:[%s2 + $0x18] sm:$0xf]
    %v4513 = vld [vmem:[%s2 + $0x1c] sm:$0xf]
    %v4514 = vld [vmem:[%s2 + $0x20] sm:$0xf]
    %v4515 = vld [vmem:[%s2 + $0x24] sm:$0xf]
    %v4516 = vld [vmem:[%s2 + $0x28] sm:$0xf]
    %v4517 = vld [vmem:[%s2 + $0x2c] sm:$0xf]
    %v4518 = vld [vmem:[%s2 + $0x30] sm:$0xf]
    %v4519 = vld [vmem:[%s2 + $0x34] sm:$0xf]
    %v4520 = vld [vmem:[%s2 + $0x38] sm:$0xf]
    %v4521 = vld [vmem:[%s2 + $0x3c] sm:$0xf]
    %v4522 = vpack.c.bf16 %v4491, %v4490
    %v4523 = vpack.c.bf16 %v4493, %v4492
    %v4524 = vpack.c.bf16 %v4495, %v4494
    %v4525 = vpack.c.bf16 %v4497, %v4496
    %v4526 = vpack.c.bf16 %v4499, %v4498
    %v4527 = vpack.c.bf16 %v4501, %v4500
    %v4528 = vpack.c.bf16 %v4503, %v4502
    %v4529 = vpack.c.bf16 %v4505, %v4504
    %v4546 = vunpack.c.l.b16 %v4506
    %v4547 = vunpack.c.l.b16 %v4507
    %v4548 = vunpack.c.l.b16 %v4508
    %v4549 = vunpack.c.l.b16 %v4509
    %v4550 = vunpack.c.l.b16 %v4510
    %v4551 = vunpack.c.l.b16 %v4511
    %v4552 = vunpack.c.l.b16 %v4512
    %v4553 = vunpack.c.l.b16 %v4513
    %v4554 = vunpack.c.l.b16 %v4514
    %v4555 = vunpack.c.l.b16 %v4515
    %v4556 = vunpack.c.l.b16 %v4516
    %v4557 = vunpack.c.l.b16 %v4517
    %v4558 = vunpack.c.l.b16 %v4518
    %v4559 = vunpack.c.l.b16 %v4519
    %v4560 = vunpack.c.l.b16 %v4520
    %v4561 = vunpack.c.l.b16 %v4521
    %v4562 = vpack.c.b16 %v4547, %v4546
    %v4563 = vpack.c.b16 %v4549, %v4548
    %v4564 = vpack.c.b16 %v4551, %v4550
    %v4565 = vpack.c.b16 %v4553, %v4552
    %v4566 = vpack.c.b16 %v4555, %v4554
    %v4567 = vpack.c.b16 %v4557, %v4556
    %v4568 = vpack.c.b16 %v4559, %v4558
    %v4569 = vpack.c.b16 %v4561, %v4560
    %4578 = vmatpush.bf16.msra.mxu0 %v4529
    %4579 = vmatpush.bf16.msra.mxu0 %v4528
    %4580 = vmatpush.bf16.msra.mxu0 %v4527
    %4581 = vmatpush.bf16.msra.mxu0 %v4526
    %4582 = vmatpush.bf16.msra.mxu0 %v4525
    %4583 = vmatpush.bf16.msra.mxu0 %v4524
    %4584 = vmatpush.bf16.msra.mxu0 %v4523
    %4585 = vmatpush.bf16.msra.mxu0 %v4522
    %4586 = vmatmul.bf16.gmra.mxu0 %v4562
    %v4587 = vpop.f32.mrf.mxu0
    %v4588 = vadd.f32 0.0, %v4587
    %v4589 = vpop.f32.mrf.mxu0
    %v4590 = vadd.f32 0.0, %v4589
    %4591 = vmatmul.bf16.gmra.mxu0 %v4563
    %v4592 = vpop.f32.mrf.mxu0
    %v4593 = vadd.f32 0.0, %v4592
    %v4594 = vpop.f32.mrf.mxu0
    %v4595 = vadd.f32 0.0, %v4594
    %4596 = vmatmul.bf16.gmra.mxu0 %v4564
    %v4597 = vpop.f32.mrf.mxu0
    %v4598 = vadd.f32 0.0, %v4597
    %v4599 = vpop.f32.mrf.mxu0
    %v4600 = vadd.f32 0.0, %v4599
    %4601 = vmatmul.bf16.gmra.mxu0 %v4565
    %v4602 = vpop.f32.mrf.mxu0
    %v4603 = vadd.f32 0.0, %v4602
    %v4604 = vpop.f32.mrf.mxu0
    %v4605 = vadd.f32 0.0, %v4604
    %4606 = vmatmul.bf16.gmra.mxu0 %v4566
    %v4607 = vpop.f32.mrf.mxu0
    %v4608 = vadd.f32 0.0, %v4607
    %v4609 = vpop.f32.mrf.mxu0
    %v4610 = vadd.f32 0.0, %v4609
    %4611 = vmatmul.bf16.gmra.mxu0 %v4567
    %v4612 = vpop.f32.mrf.mxu0
    %v4613 = vadd.f32 0.0, %v4612
    %v4614 = vpop.f32.mrf.mxu0
    %v4615 = vadd.f32 0.0, %v4614
    %4616 = vmatmul.bf16.gmra.mxu0 %v4568
    %v4617 = vpop.f32.mrf.mxu0
    %v4618 = vadd.f32 0.0, %v4617
    %v4619 = vpop.f32.mrf.mxu0
    %v4620 = vadd.f32 0.0, %v4619
    %4621 = vmatmul.bf16.gmra.mxu0 %v4569
    %v4622 = vpop.f32.mrf.mxu0
    %v4623 = vadd.f32 0.0, %v4622
    %v4624 = vpop.f32.mrf.mxu0
    %v4625 = vadd.f32 0.0, %v4624
    %4626 = vdwg.mxu0
    %v4627 = vmax.f32 %v4588, %v4608
    %v4628 = vmax.f32 %v4590, %v4610
    %v4629 = vmax.f32 %v4593, %v4613
    %v4630 = vmax.f32 %v4595, %v4615
    %v4631 = vmax.f32 %v4598, %v4618
    %v4632 = vmax.f32 %v4600, %v4620
    %v4633 = vmax.f32 %v4603, %v4623
    %v4634 = vmax.f32 %v4605, %v4625
    %vm4635 = vcmp.lt.s32.totalorder %v952, 0
    %v4636 = vsub.s32 0, %v952
    %v4637 = vsel %vm4635, %v4636, %v952
    %v4638 = vshrl.u32 %v4637, 5
    %v4639 = vand.u32 %v4637, 31
    %v4640 = vsub.s32 0, %v4639
    %v4641 = vsel %vm4635, %v4640, %v4639
    %vm4642 = vcmp.lt.s32.totalorder %v953, 0
    %v4643 = vsub.s32 0, %v953
    %v4644 = vsel %vm4642, %v4643, %v953
    %v4645 = vshrl.u32 %v4644, 5
    %v4646 = vand.u32 %v4644, 31
    %v4647 = vsub.s32 0, %v4646
    %v4648 = vsel %vm4642, %v4647, %v4646
    %vm4649 = vcmp.lt.s32.totalorder %v954, 0
    %v4650 = vsub.s32 0, %v954
    %v4651 = vsel %vm4649, %v4650, %v954
    %v4652 = vshrl.u32 %v4651, 5
    %v4653 = vand.u32 %v4651, 31
    %v4654 = vsub.s32 0, %v4653
    %v4655 = vsel %vm4649, %v4654, %v4653
    %vm4656 = vcmp.lt.s32.totalorder %v955, 0
    %v4657 = vsub.s32 0, %v955
    %v4658 = vsel %vm4656, %v4657, %v955
    %v4659 = vshrl.u32 %v4658, 5
    %v4660 = vand.u32 %v4658, 31
    %v4661 = vsub.s32 0, %v4660
    %v4662 = vsel %vm4656, %v4661, %v4660
    %vm4663 = vcmp.lt.s32.totalorder %v956, 0
    %v4664 = vsub.s32 0, %v956
    %v4665 = vsel %vm4663, %v4664, %v956
    %v4666 = vshrl.u32 %v4665, 5
    %v4667 = vand.u32 %v4665, 31
    %v4668 = vsub.s32 0, %v4667
    %v4669 = vsel %vm4663, %v4668, %v4667
    %vm4670 = vcmp.lt.s32.totalorder %v957, 0
    %v4671 = vsub.s32 0, %v957
    %v4672 = vsel %vm4670, %v4671, %v957
    %v4673 = vshrl.u32 %v4672, 5
    %v4674 = vand.u32 %v4672, 31
    %v4675 = vsub.s32 0, %v4674
    %v4676 = vsel %vm4670, %v4675, %v4674
    %vm4677 = vcmp.lt.s32.totalorder %v958, 0
    %v4678 = vsub.s32 0, %v958
    %v4679 = vsel %vm4677, %v4678, %v958
    %v4680 = vshrl.u32 %v4679, 5
    %v4681 = vand.u32 %v4679, 31
    %v4682 = vsub.s32 0, %v4681
    %v4683 = vsel %vm4677, %v4682, %v4681
    %vm4684 = vcmp.lt.s32.totalorder %v959, 0
    %v4685 = vsub.s32 0, %v959
    %v4686 = vsel %vm4684, %v4685, %v959
    %v4687 = vshrl.u32 %v4686, 5
    %v4688 = vand.u32 %v4686, 31
    %v4689 = vsub.s32 0, %v4688
    %v4690 = vsel %vm4684, %v4689, %v4688
    %vm4691 = vcmp.ne.s32.totalorder %v4641, 0
    %vm4692 = vcmp.ne.s32.totalorder %v4648, 0
    %vm4693 = vcmp.ne.s32.totalorder %v4655, 0
    %vm4694 = vcmp.ne.s32.totalorder %v4662, 0
    %vm4695 = vcmp.ne.s32.totalorder %v4669, 0
    %vm4696 = vcmp.ne.s32.totalorder %v4676, 0
    %vm4697 = vcmp.ne.s32.totalorder %v4683, 0
    %vm4698 = vcmp.ne.s32.totalorder %v4690, 0
    %vm4699 = vcmp.lt.s32.totalorder %v4641, 0
    %vm4700 = vcmp.lt.s32.totalorder %v4648, 0
    %vm4701 = vcmp.lt.s32.totalorder %v4655, 0
    %vm4702 = vcmp.lt.s32.totalorder %v4662, 0
    %vm4703 = vcmp.lt.s32.totalorder %v4669, 0
    %vm4704 = vcmp.lt.s32.totalorder %v4676, 0
    %vm4705 = vcmp.lt.s32.totalorder %v4683, 0
    %vm4706 = vcmp.lt.s32.totalorder %v4690, 0
    %vm4707 = vmand %vm4699, %vm4691
    %vm4708 = vmand %vm4700, %vm4692
    %vm4709 = vmand %vm4701, %vm4693
    %vm4710 = vmand %vm4702, %vm4694
    %vm4711 = vmand %vm4703, %vm4695
    %vm4712 = vmand %vm4704, %vm4696
    %vm4713 = vmand %vm4705, %vm4697
    %vm4714 = vmand %vm4706, %vm4698
    %v4715 = vadd.s32 %v4641, 32
    %v4716 = vadd.s32 %v4648, 32
    %v4717 = vadd.s32 %v4655, 32
    %v4718 = vadd.s32 %v4662, 32
    %v4719 = vadd.s32 %v4669, 32
    %v4720 = vadd.s32 %v4676, 32
    %v4721 = vadd.s32 %v4683, 32
    %v4722 = vadd.s32 %v4690, 32
    %v4723 = vsel %vm4707, %v4715, %v4641
    %v4724 = vsel %vm4708, %v4716, %v4648
    %v4725 = vsel %vm4709, %v4717, %v4655
    %v4726 = vsel %vm4710, %v4718, %v4662
    %v4727 = vsel %vm4711, %v4719, %v4669
    %v4728 = vsel %vm4712, %v4720, %v4676
    %v4729 = vsel %vm4713, %v4721, %v4683
    %v4730 = vsel %vm4714, %v4722, %v4690
    %vm4731 = vcmp.eq.s32.totalorder %v4723, 0
    %vm4732 = vcmp.eq.s32.totalorder %v4724, 0
    %vm4733 = vcmp.eq.s32.totalorder %v4725, 0
    %vm4734 = vcmp.eq.s32.totalorder %v4726, 0
    %vm4735 = vcmp.eq.s32.totalorder %v4727, 0
    %vm4736 = vcmp.eq.s32.totalorder %v4728, 0
    %vm4737 = vcmp.eq.s32.totalorder %v4729, 0
    %vm4738 = vcmp.eq.s32.totalorder %v4730, 0
    %vm4739 = vcmp.eq.s32.totalorder %v4723, 31
    %vm4740 = vcmp.eq.s32.totalorder %v4724, 31
    %vm4741 = vcmp.eq.s32.totalorder %v4725, 31
    %vm4742 = vcmp.eq.s32.totalorder %v4726, 31
    %vm4743 = vcmp.eq.s32.totalorder %v4727, 31
    %vm4744 = vcmp.eq.s32.totalorder %v4728, 31
    %vm4745 = vcmp.eq.s32.totalorder %v4729, 31
    %vm4746 = vcmp.eq.s32.totalorder %v4730, 31
    %v4747 = vpack.c.bf16 %v4628, %v4627
    %v4748 = vpack.c.bf16 %v4630, %v4629
    %v4749 = vpack.c.bf16 %v4632, %v4631
    %v4750 = vpack.c.bf16 %v4634, %v4633
    %v4751 = vld [vmem:[%s8] sm:$0xff]
    %v4752 = vld [vmem:[%s8 + $0x8] sm:$0xff]
    %v4753 = vld [vmem:[%s8 + $0x10] sm:$0xff]
    %v4754 = vld [vmem:[%s8 + $0x18] sm:$0xff]
    %v4755 = vld [vmem:[%s8 + $0x20] sm:$0xff]
    %v4756 = vld [vmem:[%s8 + $0x28] sm:$0xff]
    %v4757 = vld [vmem:[%s8 + $0x30] sm:$0xff]
    %v4758 = vld [vmem:[%s8 + $0x38] sm:$0xff]
    %v4759 = vld [vmem:[%s8 + $0x40] sm:$0xff]
    %v4760 = vld [vmem:[%s8 + $0x48] sm:$0xff]
    %v4761 = vld [vmem:[%s8 + $0x50] sm:$0xff]
    %v4762 = vld [vmem:[%s8 + $0x58] sm:$0xff]
    %v4763 = vld [vmem:[%s8 + $0x60] sm:$0xff]
    %v4764 = vld [vmem:[%s8 + $0x68] sm:$0xff]
    %v4765 = vld [vmem:[%s8 + $0x70] sm:$0xff]
    %v4766 = vld [vmem:[%s8 + $0x78] sm:$0xff]
    %v4767 = vld [vmem:[%s8 + $0x80] sm:$0xff]
    %v4768 = vld [vmem:[%s8 + $0x88] sm:$0xff]
    %v4769 = vld [vmem:[%s8 + $0x90] sm:$0xff]
    %v4770 = vld [vmem:[%s8 + $0x98] sm:$0xff]
    %v4771 = vld [vmem:[%s8 + $0xa0] sm:$0xff]
    %v4772 = vld [vmem:[%s8 + $0xa8] sm:$0xff]
    %v4773 = vld [vmem:[%s8 + $0xb0] sm:$0xff]
    %v4774 = vld [vmem:[%s8 + $0xb8] sm:$0xff]
    %v4775 = vld [vmem:[%s8 + $0xc0] sm:$0xff]
    %v4776 = vld [vmem:[%s8 + $0xc8] sm:$0xff]
    %v4777 = vld [vmem:[%s8 + $0xd0] sm:$0xff]
    %v4778 = vld [vmem:[%s8 + $0xd8] sm:$0xff]
    %v4779 = vld [vmem:[%s8 + $0xe0] sm:$0xff]
    %v4780 = vld [vmem:[%s8 + $0xe8] sm:$0xff]
    %v4781 = vld [vmem:[%s8 + $0xf0] sm:$0xff]
    %v4782 = vld [vmem:[%s8 + $0xf8] sm:$0xff]
    %v4783 = vld [vmem:[%s8 + $0x100] sm:$0xff]
    %v4784 = vld [vmem:[%s8 + $0x108] sm:$0xff]
    %v4785 = vld [vmem:[%s8 + $0x110] sm:$0xff]
    %v4786 = vld [vmem:[%s8 + $0x118] sm:$0xff]
    %v4787 = vld [vmem:[%s8 + $0x120] sm:$0xff]
    %v4788 = vld [vmem:[%s8 + $0x128] sm:$0xff]
    %v4789 = vld [vmem:[%s8 + $0x130] sm:$0xff]
    %v4790 = vld [vmem:[%s8 + $0x138] sm:$0xff]
    %v4791 = vld [vmem:[%s8 + $0x140] sm:$0xff]
    %v4792 = vld [vmem:[%s8 + $0x148] sm:$0xff]
    %v4793 = vld [vmem:[%s8 + $0x150] sm:$0xff]
    %v4794 = vld [vmem:[%s8 + $0x158] sm:$0xff]
    %v4795 = vld [vmem:[%s8 + $0x160] sm:$0xff]
    %v4796 = vld [vmem:[%s8 + $0x168] sm:$0xff]
    %v4797 = vld [vmem:[%s8 + $0x170] sm:$0xff]
    %v4798 = vld [vmem:[%s8 + $0x178] sm:$0xff]
    %v4847 = vunpack.c.l.b16 %v4751
    %v4848 = vunpack.c.h.b16 %v4751
    %v4849 = vunpack.c.l.b16 %v4752
    %v4850 = vunpack.c.h.b16 %v4752
    %v4851 = vunpack.c.l.b16 %v4753
    %v4852 = vunpack.c.h.b16 %v4753
    %v4853 = vunpack.c.l.b16 %v4754
    %v4854 = vunpack.c.h.b16 %v4754
    %v4855 = vunpack.c.l.b16 %v4755
    %v4856 = vunpack.c.h.b16 %v4755
    %v4857 = vunpack.c.l.b16 %v4756
    %v4858 = vunpack.c.h.b16 %v4756
    %v4859 = vunpack.c.l.b16 %v4757
    %v4860 = vunpack.c.h.b16 %v4757
    %v4861 = vunpack.c.l.b16 %v4758
    %v4862 = vunpack.c.h.b16 %v4758
    %v4863 = vunpack.c.l.b16 %v4759
    %v4864 = vunpack.c.h.b16 %v4759
    %v4865 = vunpack.c.l.b16 %v4760
    %v4866 = vunpack.c.h.b16 %v4760
    %v4867 = vunpack.c.l.b16 %v4761
    %v4868 = vunpack.c.h.b16 %v4761
    %v4869 = vunpack.c.l.b16 %v4762
    %v4870 = vunpack.c.h.b16 %v4762
    %v4871 = vunpack.c.l.b16 %v4763
    %v4872 = vunpack.c.h.b16 %v4763
    %v4873 = vunpack.c.l.b16 %v4764
    %v4874 = vunpack.c.h.b16 %v4764
    %v4875 = vunpack.c.l.b16 %v4765
    %v4876 = vunpack.c.h.b16 %v4765
    %v4877 = vunpack.c.l.b16 %v4766
    %v4878 = vunpack.c.h.b16 %v4766
    %v4879 = vunpack.c.l.b16 %v4767
    %v4880 = vunpack.c.h.b16 %v4767
    %v4881 = vunpack.c.l.b16 %v4768
    %v4882 = vunpack.c.h.b16 %v4768
    %v4883 = vunpack.c.l.b16 %v4769
    %v4884 = vunpack.c.h.b16 %v4769
    %v4885 = vunpack.c.l.b16 %v4770
    %v4886 = vunpack.c.h.b16 %v4770
    %v4887 = vunpack.c.l.b16 %v4771
    %v4888 = vunpack.c.h.b16 %v4771
    %v4889 = vunpack.c.l.b16 %v4772
    %v4890 = vunpack.c.h.b16 %v4772
    %v4891 = vunpack.c.l.b16 %v4773
    %v4892 = vunpack.c.h.b16 %v4773
    %v4893 = vunpack.c.l.b16 %v4774
    %v4894 = vunpack.c.h.b16 %v4774
    %v4895 = vunpack.c.l.b16 %v4775
    %v4896 = vunpack.c.h.b16 %v4775
    %v4897 = vunpack.c.l.b16 %v4776
    %v4898 = vunpack.c.h.b16 %v4776
    %v4899 = vunpack.c.l.b16 %v4777
    %v4900 = vunpack.c.h.b16 %v4777
    %v4901 = vunpack.c.l.b16 %v4778
    %v4902 = vunpack.c.h.b16 %v4778
    %v4903 = vunpack.c.l.b16 %v4779
    %v4904 = vunpack.c.h.b16 %v4779
    %v4905 = vunpack.c.l.b16 %v4780
    %v4906 = vunpack.c.h.b16 %v4780
    %v4907 = vunpack.c.l.b16 %v4781
    %v4908 = vunpack.c.h.b16 %v4781
    %v4909 = vunpack.c.l.b16 %v4782
    %v4910 = vunpack.c.h.b16 %v4782
    %v4911 = vunpack.c.l.b16 %v4783
    %v4912 = vunpack.c.h.b16 %v4783
    %v4913 = vunpack.c.l.b16 %v4784
    %v4914 = vunpack.c.h.b16 %v4784
    %v4915 = vunpack.c.l.b16 %v4785
    %v4916 = vunpack.c.h.b16 %v4785
    %v4917 = vunpack.c.l.b16 %v4786
    %v4918 = vunpack.c.h.b16 %v4786
    %v4919 = vunpack.c.l.b16 %v4787
    %v4920 = vunpack.c.h.b16 %v4787
    %v4921 = vunpack.c.l.b16 %v4788
    %v4922 = vunpack.c.h.b16 %v4788
    %v4923 = vunpack.c.l.b16 %v4789
    %v4924 = vunpack.c.h.b16 %v4789
    %v4925 = vunpack.c.l.b16 %v4790
    %v4926 = vunpack.c.h.b16 %v4790
    %v4927 = vunpack.c.l.b16 %v4791
    %v4928 = vunpack.c.h.b16 %v4791
    %v4929 = vunpack.c.l.b16 %v4792
    %v4930 = vunpack.c.h.b16 %v4792
    %v4931 = vunpack.c.l.b16 %v4793
    %v4932 = vunpack.c.h.b16 %v4793
    %v4933 = vunpack.c.l.b16 %v4794
    %v4934 = vunpack.c.h.b16 %v4794
    %v4935 = vunpack.c.l.b16 %v4795
    %v4936 = vunpack.c.h.b16 %v4795
    %v4937 = vunpack.c.l.b16 %v4796
    %v4938 = vunpack.c.h.b16 %v4796
    %v4939 = vunpack.c.l.b16 %v4797
    %v4940 = vunpack.c.h.b16 %v4797
    %v4941 = vunpack.c.l.b16 %v4798
    %v4942 = vunpack.c.h.b16 %v4798
    %v4943 = vpack.c.b16 %v4853, %v4847
    %v4944 = vpack.c.b16 %v4854, %v4848
    %v4945 = vpack.c.b16 %v4855, %v4849
    %v4946 = vpack.c.b16 %v4856, %v4850
    %v4947 = vpack.c.b16 %v4857, %v4851
    %v4948 = vpack.c.b16 %v4858, %v4852
    %v4949 = vpack.c.b16 %v4865, %v4859
    %v4950 = vpack.c.b16 %v4866, %v4860
    %v4951 = vpack.c.b16 %v4867, %v4861
    %v4952 = vpack.c.b16 %v4868, %v4862
    %v4953 = vpack.c.b16 %v4869, %v4863
    %v4954 = vpack.c.b16 %v4870, %v4864
    %v4955 = vpack.c.b16 %v4877, %v4871
    %v4956 = vpack.c.b16 %v4878, %v4872
    %v4957 = vpack.c.b16 %v4879, %v4873
    %v4958 = vpack.c.b16 %v4880, %v4874
    %v4959 = vpack.c.b16 %v4881, %v4875
    %v4960 = vpack.c.b16 %v4882, %v4876
    %v4961 = vpack.c.b16 %v4889, %v4883
    %v4962 = vpack.c.b16 %v4890, %v4884
    %v4963 = vpack.c.b16 %v4891, %v4885
    %v4964 = vpack.c.b16 %v4892, %v4886
    %v4965 = vpack.c.b16 %v4893, %v4887
    %v4966 = vpack.c.b16 %v4894, %v4888
    %v4967 = vpack.c.b16 %v4901, %v4895
    %v4968 = vpack.c.b16 %v4902, %v4896
    %v4969 = vpack.c.b16 %v4903, %v4897
    %v4970 = vpack.c.b16 %v4904, %v4898
    %v4971 = vpack.c.b16 %v4905, %v4899
    %v4972 = vpack.c.b16 %v4906, %v4900
    %v4973 = vpack.c.b16 %v4913, %v4907
    %v4974 = vpack.c.b16 %v4914, %v4908
    %v4975 = vpack.c.b16 %v4915, %v4909
    %v4976 = vpack.c.b16 %v4916, %v4910
    %v4977 = vpack.c.b16 %v4917, %v4911
    %v4978 = vpack.c.b16 %v4918, %v4912
    %v4979 = vpack.c.b16 %v4925, %v4919
    %v4980 = vpack.c.b16 %v4926, %v4920
    %v4981 = vpack.c.b16 %v4927, %v4921
    %v4982 = vpack.c.b16 %v4928, %v4922
    %v4983 = vpack.c.b16 %v4929, %v4923
    %v4984 = vpack.c.b16 %v4930, %v4924
    %v4985 = vpack.c.b16 %v4937, %v4931
    %v4986 = vpack.c.b16 %v4938, %v4932
    %v4987 = vpack.c.b16 %v4939, %v4933
    %v4988 = vpack.c.b16 %v4940, %v4934
    %v4989 = vpack.c.b16 %v4941, %v4935
    %v4990 = vpack.c.b16 %v4942, %v4936
    %5039 = vmatpush.bf16.msra.mxu0 %v4985
    %5040 = vmatpush.bf16.msra.mxu0 %v4979
    %5041 = vmatpush.bf16.msra.mxu0 %v4973
    %5042 = vmatpush.bf16.msra.mxu0 %v4967
    %5043 = vmatpush.bf16.msra.mxu0 %v4961
    %5044 = vmatpush.bf16.msra.mxu0 %v4955
    %5045 = vmatpush.bf16.msra.mxu0 %v4949
    %5046 = vmatpush.bf16.msra.mxu0 %v4943
    %5047 = vmatmul.bf16.gmra.mxu0 %v4747
    %v5048 = vpop.f32.mrf.mxu0
    %v5049 = vadd.f32 0.0, %v5048
    %v5050 = vpop.f32.mrf.mxu0
    %v5051 = vadd.f32 0.0, %v5050
    %5052 = vmatmul.bf16.gmra.mxu0 %v4748
    %v5053 = vpop.f32.mrf.mxu0
    %v5054 = vadd.f32 0.0, %v5053
    %v5055 = vpop.f32.mrf.mxu0
    %v5056 = vadd.f32 0.0, %v5055
    %5057 = vmatmul.bf16.gmra.mxu0 %v4749
    %v5058 = vpop.f32.mrf.mxu0
    %v5059 = vadd.f32 0.0, %v5058
    %v5060 = vpop.f32.mrf.mxu0
    %v5061 = vadd.f32 0.0, %v5060
    %5062 = vmatmul.bf16.gmra.mxu0 %v4750
    %v5063 = vpop.f32.mrf.mxu0
    %v5064 = vadd.f32 0.0, %v5063
    %v5065 = vpop.f32.mrf.mxu0
    %v5066 = vadd.f32 0.0, %v5065
    %5067 = vdwg.mxu0
    %5068 = vmatpush.bf16.msra.mxu0 %v4986
    %5069 = vmatpush.bf16.msra.mxu0 %v4980
    %5070 = vmatpush.bf16.msra.mxu0 %v4974
    %5071 = vmatpush.bf16.msra.mxu0 %v4968
    %5072 = vmatpush.bf16.msra.mxu0 %v4962
    %5073 = vmatpush.bf16.msra.mxu0 %v4956
    %5074 = vmatpush.bf16.msra.mxu0 %v4950
    %5075 = vmatpush.bf16.msra.mxu0 %v4944
    %5076 = vmatmul.bf16.gmra.mxu0 %v4747
    %v5077 = vpop.f32.mrf.mxu0
    %v5078 = vadd.f32 0.0, %v5077
    %v5079 = vpop.f32.mrf.mxu0
    %v5080 = vadd.f32 0.0, %v5079
    %5081 = vmatmul.bf16.gmra.mxu0 %v4748
    %v5082 = vpop.f32.mrf.mxu0
    %v5083 = vadd.f32 0.0, %v5082
    %v5084 = vpop.f32.mrf.mxu0
    %v5085 = vadd.f32 0.0, %v5084
    %5086 = vmatmul.bf16.gmra.mxu0 %v4749
    %v5087 = vpop.f32.mrf.mxu0
    %v5088 = vadd.f32 0.0, %v5087
    %v5089 = vpop.f32.mrf.mxu0
    %v5090 = vadd.f32 0.0, %v5089
    %5091 = vmatmul.bf16.gmra.mxu0 %v4750
    %v5092 = vpop.f32.mrf.mxu0
    %v5093 = vadd.f32 0.0, %v5092
    %v5094 = vpop.f32.mrf.mxu0
    %v5095 = vadd.f32 0.0, %v5094
    %5096 = vdwg.mxu0
    %5097 = vmatpush.bf16.msra.mxu0 %v4987
    %5098 = vmatpush.bf16.msra.mxu0 %v4981
    %5099 = vmatpush.bf16.msra.mxu0 %v4975
    %5100 = vmatpush.bf16.msra.mxu0 %v4969
    %5101 = vmatpush.bf16.msra.mxu0 %v4963
    %5102 = vmatpush.bf16.msra.mxu0 %v4957
    %5103 = vmatpush.bf16.msra.mxu0 %v4951
    %5104 = vmatpush.bf16.msra.mxu0 %v4945
    %5105 = vmatmul.bf16.gmra.mxu0 %v4747
    %v5106 = vpop.f32.mrf.mxu0
    %v5107 = vadd.f32 0.0, %v5106
    %v5108 = vpop.f32.mrf.mxu0
    %v5109 = vadd.f32 0.0, %v5108
    %5110 = vmatmul.bf16.gmra.mxu0 %v4748
    %v5111 = vpop.f32.mrf.mxu0
    %v5112 = vadd.f32 0.0, %v5111
    %v5113 = vpop.f32.mrf.mxu0
    %v5114 = vadd.f32 0.0, %v5113
    %5115 = vmatmul.bf16.gmra.mxu0 %v4749
    %v5116 = vpop.f32.mrf.mxu0
    %v5117 = vadd.f32 0.0, %v5116
    %v5118 = vpop.f32.mrf.mxu0
    %v5119 = vadd.f32 0.0, %v5118
    %5120 = vmatmul.bf16.gmra.mxu0 %v4750
    %v5121 = vpop.f32.mrf.mxu0
    %v5122 = vadd.f32 0.0, %v5121
    %v5123 = vpop.f32.mrf.mxu0
    %v5124 = vadd.f32 0.0, %v5123
    %5125 = vdwg.mxu0
    %5126 = vmatpush.bf16.msra.mxu0 %v4988
    %5127 = vmatpush.bf16.msra.mxu0 %v4982
    %5128 = vmatpush.bf16.msra.mxu0 %v4976
    %5129 = vmatpush.bf16.msra.mxu0 %v4970
    %5130 = vmatpush.bf16.msra.mxu0 %v4964
    %5131 = vmatpush.bf16.msra.mxu0 %v4958
    %5132 = vmatpush.bf16.msra.mxu0 %v4952
    %5133 = vmatpush.bf16.msra.mxu0 %v4946
    %5134 = vmatmul.bf16.gmra.mxu0 %v4747
    %v5135 = vpop.f32.mrf.mxu0
    %v5136 = vadd.f32 0.0, %v5135
    %v5137 = vpop.f32.mrf.mxu0
    %v5138 = vadd.f32 0.0, %v5137
    %5139 = vmatmul.bf16.gmra.mxu0 %v4748
    %v5140 = vpop.f32.mrf.mxu0
    %v5141 = vadd.f32 0.0, %v5140
    %v5142 = vpop.f32.mrf.mxu0
    %v5143 = vadd.f32 0.0, %v5142
    %5144 = vmatmul.bf16.gmra.mxu0 %v4749
    %v5145 = vpop.f32.mrf.mxu0
    %v5146 = vadd.f32 0.0, %v5145
    %v5147 = vpop.f32.mrf.mxu0
    %v5148 = vadd.f32 0.0, %v5147
    %5149 = vmatmul.bf16.gmra.mxu0 %v4750
    %v5150 = vpop.f32.mrf.mxu0
    %v5151 = vadd.f32 0.0, %v5150
    %v5152 = vpop.f32.mrf.mxu0
    %v5153 = vadd.f32 0.0, %v5152
    %5154 = vdwg.mxu0
    %5155 = vmatpush.bf16.msra.mxu0 %v4989
    %5156 = vmatpush.bf16.msra.mxu0 %v4983
    %5157 = vmatpush.bf16.msra.mxu0 %v4977
    %5158 = vmatpush.bf16.msra.mxu0 %v4971
    %5159 = vmatpush.bf16.msra.mxu0 %v4965
    %5160 = vmatpush.bf16.msra.mxu0 %v4959
    %5161 = vmatpush.bf16.msra.mxu0 %v4953
    %5162 = vmatpush.bf16.msra.mxu0 %v4947
    %5163 = vmatmul.bf16.gmra.mxu0 %v4747
    %v5164 = vpop.f32.mrf.mxu0
    %v5165 = vadd.f32 0.0, %v5164
    %v5166 = vpop.f32.mrf.mxu0
    %v5167 = vadd.f32 0.0, %v5166
    %5168 = vmatmul.bf16.gmra.mxu0 %v4748
    %v5169 = vpop.f32.mrf.mxu0
    %v5170 = vadd.f32 0.0, %v5169
    %v5171 = vpop.f32.mrf.mxu0
    %v5172 = vadd.f32 0.0, %v5171
    %5173 = vmatmul.bf16.gmra.mxu0 %v4749
    %v5174 = vpop.f32.mrf.mxu0
    %v5175 = vadd.f32 0.0, %v5174
    %v5176 = vpop.f32.mrf.mxu0
    %v5177 = vadd.f32 0.0, %v5176
    %5178 = vmatmul.bf16.gmra.mxu0 %v4750
    %v5179 = vpop.f32.mrf.mxu0
    %v5180 = vadd.f32 0.0, %v5179
    %v5181 = vpop.f32.mrf.mxu0
    %v5182 = vadd.f32 0.0, %v5181
    %5183 = vdwg.mxu0
    %5184 = vmatpush.bf16.msra.mxu0 %v4990
    %5185 = vmatpush.bf16.msra.mxu0 %v4984
    %5186 = vmatpush.bf16.msra.mxu0 %v4978
    %5187 = vmatpush.bf16.msra.mxu0 %v4972
    %5188 = vmatpush.bf16.msra.mxu0 %v4966
    %5189 = vmatpush.bf16.msra.mxu0 %v4960
    %5190 = vmatpush.bf16.msra.mxu0 %v4954
    %5191 = vmatpush.bf16.msra.mxu0 %v4948
    %5192 = vmatmul.bf16.gmra.mxu0 %v4747
    %v5193 = vpop.f32.mrf.mxu0
    %v5194 = vadd.f32 0.0, %v5193
    %v5195 = vpop.f32.mrf.mxu0
    %v5196 = vadd.f32 0.0, %v5195
    %5197 = vmatmul.bf16.gmra.mxu0 %v4748
    %v5198 = vpop.f32.mrf.mxu0
    %v5199 = vadd.f32 0.0, %v5198
    %v5200 = vpop.f32.mrf.mxu0
    %v5201 = vadd.f32 0.0, %v5200
    %5202 = vmatmul.bf16.gmra.mxu0 %v4749
    %v5203 = vpop.f32.mrf.mxu0
    %v5204 = vadd.f32 0.0, %v5203
    %v5205 = vpop.f32.mrf.mxu0
    %v5206 = vadd.f32 0.0, %v5205
    %5207 = vmatmul.bf16.gmra.mxu0 %v4750
    %v5208 = vpop.f32.mrf.mxu0
    %v5209 = vadd.f32 0.0, %v5208
    %v5210 = vpop.f32.mrf.mxu0
    %v5211 = vadd.f32 0.0, %v5210
    %5212 = vdwg.mxu0
    %v5229 = vrot.slane %v5049, 7
    %v5230 = vrot.slane %v5078, 7
    %v5231 = vrot.slane %v5051, 7
    %v5232 = vsel %vm1754, %v5229, %v5231
    %v5233 = vrot.slane %v5080, 7
    %v5234 = vsel %vm1754, %v5230, %v5233
    %v5235 = vrot.slane %v5054, 7
    %v5236 = vsel %vm1754, %v5231, %v5235
    %v5237 = vrot.slane %v5083, 7
    %v5238 = vsel %vm1754, %v5233, %v5237
    %v5239 = vrot.slane %v5056, 7
    %v5240 = vsel %vm1754, %v5235, %v5239
    %v5241 = vrot.slane %v5085, 7
    %v5242 = vsel %vm1754, %v5237, %v5241
    %v5243 = vrot.slane %v5059, 7
    %v5244 = vsel %vm1754, %v5239, %v5243
    %v5245 = vrot.slane %v5088, 7
    %v5246 = vsel %vm1754, %v5241, %v5245
    %v5247 = vrot.slane %v5061, 7
    %v5248 = vsel %vm1754, %v5243, %v5247
    %v5249 = vrot.slane %v5090, 7
    %v5250 = vsel %vm1754, %v5245, %v5249
    %v5251 = vrot.slane %v5064, 7
    %v5252 = vsel %vm1754, %v5247, %v5251
    %v5253 = vrot.slane %v5093, 7
    %v5254 = vsel %vm1754, %v5249, %v5253
    %v5255 = vrot.slane %v5066, 7
    %v5256 = vsel %vm1754, %v5251, %v5255
    %v5257 = vrot.slane %v5095, 7
    %v5258 = vsel %vm1754, %v5253, %v5257
    %v5275 = vsel %vm1754, 0.0, %v5229
    %v5276 = vsel %vm1754, 0.0, %v5230
    %v5277 = vsel %vm4731, 1, 0
    %v5278 = vsel %vm4732, 1, 0
    %v5279 = vsel %vm4733, 1, 0
    %v5280 = vsel %vm4734, 1, 0
    %v5281 = vsel %vm4735, 1, 0
    %v5282 = vsel %vm4736, 1, 0
    %v5283 = vsel %vm4737, 1, 0
    %v5284 = vsel %vm4738, 1, 0
    %vm5285 = vcmp.eq.s32.totalorder %v5277, 1
    %vm5286 = vcmp.eq.s32.totalorder %v5278, 1
    %vm5287 = vcmp.eq.s32.totalorder %v5279, 1
    %vm5288 = vcmp.eq.s32.totalorder %v5280, 1
    %vm5289 = vcmp.eq.s32.totalorder %v5281, 1
    %vm5290 = vcmp.eq.s32.totalorder %v5282, 1
    %vm5291 = vcmp.eq.s32.totalorder %v5283, 1
    %vm5292 = vcmp.eq.s32.totalorder %v5284, 1
    %v5293 = vsel %vm5285, 0.0, %v5275
    %v5294 = vsel %vm5285, 0.0, %v5276
    %v5295 = vsel %vm5286, 0.0, %v5232
    %v5296 = vsel %vm5286, 0.0, %v5234
    %v5297 = vsel %vm5287, 0.0, %v5236
    %v5298 = vsel %vm5287, 0.0, %v5238
    %v5299 = vsel %vm5288, 0.0, %v5240
    %v5300 = vsel %vm5288, 0.0, %v5242
    %v5301 = vsel %vm5289, 0.0, %v5244
    %v5302 = vsel %vm5289, 0.0, %v5246
    %v5303 = vsel %vm5290, 0.0, %v5248
    %v5304 = vsel %vm5290, 0.0, %v5250
    %v5305 = vsel %vm5291, 0.0, %v5252
    %v5306 = vsel %vm5291, 0.0, %v5254
    %v5307 = vsel %vm5292, 0.0, %v5256
    %v5308 = vsel %vm5292, 0.0, %v5258
    %v5325 = vrot.slane %v5165, 1
    %v5326 = vrot.slane %v5167, 1
    %v5327 = vsel %vm1979, %v5325, %v5326
    %v5328 = vrot.slane %v5194, 1
    %v5329 = vrot.slane %v5196, 1
    %v5330 = vsel %vm1979, %v5328, %v5329
    %v5331 = vrot.slane %v5170, 1
    %v5332 = vsel %vm1979, %v5326, %v5331
    %v5333 = vrot.slane %v5199, 1
    %v5334 = vsel %vm1979, %v5329, %v5333
    %v5335 = vrot.slane %v5172, 1
    %v5336 = vsel %vm1979, %v5331, %v5335
    %v5337 = vrot.slane %v5201, 1
    %v5338 = vsel %vm1979, %v5333, %v5337
    %v5339 = vrot.slane %v5175, 1
    %v5340 = vsel %vm1979, %v5335, %v5339
    %v5341 = vrot.slane %v5204, 1
    %v5342 = vsel %vm1979, %v5337, %v5341
    %v5343 = vrot.slane %v5177, 1
    %v5344 = vsel %vm1979, %v5339, %v5343
    %v5345 = vrot.slane %v5206, 1
    %v5346 = vsel %vm1979, %v5341, %v5345
    %v5347 = vrot.slane %v5180, 1
    %v5348 = vsel %vm1979, %v5343, %v5347
    %v5349 = vrot.slane %v5209, 1
    %v5350 = vsel %vm1979, %v5345, %v5349
    %v5351 = vrot.slane %v5182, 1
    %v5352 = vsel %vm1979, %v5347, %v5351
    %v5353 = vrot.slane %v5211, 1
    %v5354 = vsel %vm1979, %v5349, %v5353
    %v5371 = vsel %vm1979, %v5351, 0.0
    %v5372 = vsel %vm1979, %v5353, 0.0
    %v5373 = vsel %vm4739, 1, 0
    %v5374 = vsel %vm4740, 1, 0
    %v5375 = vsel %vm4741, 1, 0
    %v5376 = vsel %vm4742, 1, 0
    %v5377 = vsel %vm4743, 1, 0
    %v5378 = vsel %vm4744, 1, 0
    %v5379 = vsel %vm4745, 1, 0
    %v5380 = vsel %vm4746, 1, 0
    %vm5381 = vcmp.eq.s32.totalorder %v5373, 1
    %vm5382 = vcmp.eq.s32.totalorder %v5374, 1
    %vm5383 = vcmp.eq.s32.totalorder %v5375, 1
    %vm5384 = vcmp.eq.s32.totalorder %v5376, 1
    %vm5385 = vcmp.eq.s32.totalorder %v5377, 1
    %vm5386 = vcmp.eq.s32.totalorder %v5378, 1
    %vm5387 = vcmp.eq.s32.totalorder %v5379, 1
    %vm5388 = vcmp.eq.s32.totalorder %v5380, 1
    %v5389 = vsel %vm5381, 0.0, %v5327
    %v5390 = vsel %vm5381, 0.0, %v5330
    %v5391 = vsel %vm5382, 0.0, %v5332
    %v5392 = vsel %vm5382, 0.0, %v5334
    %v5393 = vsel %vm5383, 0.0, %v5336
    %v5394 = vsel %vm5383, 0.0, %v5338
    %v5395 = vsel %vm5384, 0.0, %v5340
    %v5396 = vsel %vm5384, 0.0, %v5342
    %v5397 = vsel %vm5385, 0.0, %v5344
    %v5398 = vsel %vm5385, 0.0, %v5346
    %v5399 = vsel %vm5386, 0.0, %v5348
    %v5400 = vsel %vm5386, 0.0, %v5350
    %v5401 = vsel %vm5387, 0.0, %v5352
    %v5402 = vsel %vm5387, 0.0, %v5354
    %v5403 = vsel %vm5388, 0.0, %v5371
    %v5404 = vsel %vm5388, 0.0, %v5372
    %v5405 = vadd.f32 %v5293, %v5107
    %v5406 = vadd.f32 %v5294, %v5136
    %v5407 = vadd.f32 %v5295, %v5109
    %v5408 = vadd.f32 %v5296, %v5138
    %v5409 = vadd.f32 %v5297, %v5112
    %v5410 = vadd.f32 %v5298, %v5141
    %v5411 = vadd.f32 %v5299, %v5114
    %v5412 = vadd.f32 %v5300, %v5143
    %v5413 = vadd.f32 %v5301, %v5117
    %v5414 = vadd.f32 %v5302, %v5146
    %v5415 = vadd.f32 %v5303, %v5119
    %v5416 = vadd.f32 %v5304, %v5148
    %v5417 = vadd.f32 %v5305, %v5122
    %v5418 = vadd.f32 %v5306, %v5151
    %v5419 = vadd.f32 %v5307, %v5124
    %v5420 = vadd.f32 %v5308, %v5153
    %v5421 = vadd.f32 %v5405, %v5389
    %v5422 = vadd.f32 %v5406, %v5390
    %v5423 = vadd.f32 %v5407, %v5391
    %v5424 = vadd.f32 %v5408, %v5392
    %v5425 = vadd.f32 %v5409, %v5393
    %v5426 = vadd.f32 %v5410, %v5394
    %v5427 = vadd.f32 %v5411, %v5395
    %v5428 = vadd.f32 %v5412, %v5396
    %v5429 = vadd.f32 %v5413, %v5397
    %v5430 = vadd.f32 %v5414, %v5398
    %v5431 = vadd.f32 %v5415, %v5399
    %v5432 = vadd.f32 %v5416, %v5400
    %v5433 = vadd.f32 %v5417, %v5401
    %v5434 = vadd.f32 %v5418, %v5402
    %v5435 = vadd.f32 %v5419, %v5403
    %v5436 = vadd.f32 %v5420, %v5404
    %v5437 = vadd.f32 %v5421, %v5423
    %v5438 = vadd.f32 %v5437, %v5425
    %v5439 = vadd.f32 %v5438, %v5427
    %v5440 = vadd.f32 %v5439, %v5429
    %v5441 = vadd.f32 %v5440, %v5431
    %v5442 = vadd.f32 %v5441, %v5433
    %v5443 = vadd.f32 %v5442, %v5435
    %v5444 = vrot.slane %v5443, 4
    %v5445 = vadd.f32 %v5443, %v5444
    %v5446 = vrot.slane %v5445, 2
    %v5447 = vadd.f32 %v5445, %v5446
    %v5448 = vrot.slane %v5447, 1
    %v5449 = vadd.f32 %v5447, %v5448
    %v5450 = vadd.f32 %v5422, %v5424
    %v5451 = vadd.f32 %v5450, %v5426
    %v5452 = vadd.f32 %v5451, %v5428
    %v5453 = vadd.f32 %v5452, %v5430
    %v5454 = vadd.f32 %v5453, %v5432
    %v5455 = vadd.f32 %v5454, %v5434
    %v5456 = vadd.f32 %v5455, %v5436
    %v5457 = vrot.slane %v5456, 4
    %v5458 = vadd.f32 %v5456, %v5457
    %v5459 = vrot.slane %v5458, 2
    %v5460 = vadd.f32 %v5458, %v5459
    %v5461 = vrot.slane %v5460, 1
    %v5462 = vadd.f32 %v5460, %v5461
    %v5463 = vmul.f32 %v5421, %v5421
    %v5464 = vmul.f32 %v5422, %v5422
    %v5465 = vmul.f32 %v5423, %v5423
    %v5466 = vmul.f32 %v5424, %v5424
    %v5467 = vmul.f32 %v5425, %v5425
    %v5468 = vmul.f32 %v5426, %v5426
    %v5469 = vmul.f32 %v5427, %v5427
    %v5470 = vmul.f32 %v5428, %v5428
    %v5471 = vmul.f32 %v5429, %v5429
    %v5472 = vmul.f32 %v5430, %v5430
    %v5473 = vmul.f32 %v5431, %v5431
    %v5474 = vmul.f32 %v5432, %v5432
    %v5475 = vmul.f32 %v5433, %v5433
    %v5476 = vmul.f32 %v5434, %v5434
    %v5477 = vmul.f32 %v5435, %v5435
    %v5478 = vmul.f32 %v5436, %v5436
    %v5479 = vadd.f32 %v5463, %v5465
    %v5480 = vadd.f32 %v5479, %v5467
    %v5481 = vadd.f32 %v5480, %v5469
    %v5482 = vadd.f32 %v5481, %v5471
    %v5483 = vadd.f32 %v5482, %v5473
    %v5484 = vadd.f32 %v5483, %v5475
    %v5485 = vadd.f32 %v5484, %v5477
    %v5486 = vrot.slane %v5485, 4
    %v5487 = vadd.f32 %v5485, %v5486
    %v5488 = vrot.slane %v5487, 2
    %v5489 = vadd.f32 %v5487, %v5488
    %v5490 = vrot.slane %v5489, 1
    %v5491 = vadd.f32 %v5489, %v5490
    %v5492 = vadd.f32 %v5464, %v5466
    %v5493 = vadd.f32 %v5492, %v5468
    %v5494 = vadd.f32 %v5493, %v5470
    %v5495 = vadd.f32 %v5494, %v5472
    %v5496 = vadd.f32 %v5495, %v5474
    %v5497 = vadd.f32 %v5496, %v5476
    %v5498 = vadd.f32 %v5497, %v5478
    %v5499 = vrot.slane %v5498, 4
    %v5500 = vadd.f32 %v5498, %v5499
    %v5501 = vrot.slane %v5500, 2
    %v5502 = vadd.f32 %v5500, %v5501
    %v5503 = vrot.slane %v5502, 1
    %v5504 = vadd.f32 %v5502, %v5503
    %v5505 = vmul.f32 %v5449, 0.015625
    %v5506 = vmul.f32 %v5462, 0.015625
    %v5507 = vmul.f32 %v5491, 0.015625
    %v5508 = vmul.f32 %v5504, 0.015625
    %v5509 = vmul.f32 %v5505, %v5505
    %v5510 = vmul.f32 %v5506, %v5506
    %v5511 = vsub.f32 %v5507, %v5509
    %v5512 = vsub.f32 %v5508, %v5510
    %v5513 = vmax.f32 %v5511, 0.0
    %v5514 = vmax.f32 %v5512, 0.0
    %v5515 = vadd.f32 %v5513, 1e-05
    %v5516 = vadd.f32 %v5514, 1e-05
    %v5517 = vrsqrt.pop %v5515
    %v5518 = vmul.f32 %v5517, %v5515
    %v5519 = vmul.f32 %v5518, %v5517
    %v5520 = vmul.f32 0.5, %v5519
    %v5521 = vsub.f32 1.5, %v5520
    %v5522 = vmul.f32 %v5517, %v5521
    %vm5523 = vweird.f32 %v5515
    %vm5524 = vweird.f32 %v5517
    %vm5525 = vmor %vm5523, %vm5524
    %v5526 = vsel %vm5525, %v5517, %v5522
    %v5527 = vrsqrt.pop %v5516
    %v5528 = vmul.f32 %v5527, %v5516
    %v5529 = vmul.f32 %v5528, %v5527
    %v5530 = vmul.f32 0.5, %v5529
    %v5531 = vsub.f32 1.5, %v5530
    %v5532 = vmul.f32 %v5527, %v5531
    %vm5533 = vweird.f32 %v5516
    %vm5534 = vweird.f32 %v5527
    %vm5535 = vmor %vm5533, %vm5534
    %v5536 = vsel %vm5535, %v5527, %v5532
    %v5537 = vsub.f32 %v5421, %v5505
    %v5538 = vsub.f32 %v5422, %v5506
    %v5539 = vsub.f32 %v5423, %v5505
    %v5540 = vsub.f32 %v5424, %v5506
    %v5541 = vsub.f32 %v5425, %v5505
    %v5542 = vsub.f32 %v5426, %v5506
    %v5543 = vsub.f32 %v5427, %v5505
    %v5544 = vsub.f32 %v5428, %v5506
    %v5545 = vsub.f32 %v5429, %v5505
    %v5546 = vsub.f32 %v5430, %v5506
    %v5547 = vsub.f32 %v5431, %v5505
    %v5548 = vsub.f32 %v5432, %v5506
    %v5549 = vsub.f32 %v5433, %v5505
    %v5550 = vsub.f32 %v5434, %v5506
    %v5551 = vsub.f32 %v5435, %v5505
    %v5552 = vsub.f32 %v5436, %v5506
    %v5553 = vmul.f32 %v5537, %v5526
    %v5554 = vmul.f32 %v5538, %v5536
    %v5555 = vmul.f32 %v5539, %v5526
    %v5556 = vmul.f32 %v5540, %v5536
    %v5557 = vmul.f32 %v5541, %v5526
    %v5558 = vmul.f32 %v5542, %v5536
    %v5559 = vmul.f32 %v5543, %v5526
    %v5560 = vmul.f32 %v5544, %v5536
    %v5561 = vmul.f32 %v5545, %v5526
    %v5562 = vmul.f32 %v5546, %v5536
    %v5563 = vmul.f32 %v5547, %v5526
    %v5564 = vmul.f32 %v5548, %v5536
    %v5565 = vmul.f32 %v5549, %v5526
    %v5566 = vmul.f32 %v5550, %v5536
    %v5567 = vmul.f32 %v5551, %v5526
    %v5568 = vmul.f32 %v5552, %v5536
    %v5569 = vmax.f32 %v5553, 0.0
    %v5570 = vmax.f32 %v5554, 0.0
    %v5571 = vmax.f32 %v5555, 0.0
    %v5572 = vmax.f32 %v5556, 0.0
    %v5573 = vmax.f32 %v5557, 0.0
    %v5574 = vmax.f32 %v5558, 0.0
    %v5575 = vmax.f32 %v5559, 0.0
    %v5576 = vmax.f32 %v5560, 0.0
    %v5577 = vmax.f32 %v5561, 0.0
    %v5578 = vmax.f32 %v5562, 0.0
    %v5579 = vmax.f32 %v5563, 0.0
    %v5580 = vmax.f32 %v5564, 0.0
    %v5581 = vmax.f32 %v5565, 0.0
    %v5582 = vmax.f32 %v5566, 0.0
    %v5583 = vmax.f32 %v5567, 0.0
    %v5584 = vmax.f32 %v5568, 0.0
    %v5585 = vpack.c.bf16 %v5571, %v5569
    %v5586 = vpack.c.bf16 %v5572, %v5570
    %v5587 = vpack.c.bf16 %v5575, %v5573
    %v5588 = vpack.c.bf16 %v5576, %v5574
    %v5589 = vpack.c.bf16 %v5579, %v5577
    %v5590 = vpack.c.bf16 %v5580, %v5578
    %v5591 = vpack.c.bf16 %v5583, %v5581
    %v5592 = vpack.c.bf16 %v5584, %v5582
    %v5593 = vld [vmem:[%s9] sm:$0xff]
    %v5594 = vld [vmem:[%s9 + $0x8] sm:$0xff]
    %v5595 = vld [vmem:[%s9 + $0x10] sm:$0xff]
    %v5596 = vld [vmem:[%s9 + $0x18] sm:$0xff]
    %v5597 = vld [vmem:[%s9 + $0x20] sm:$0xff]
    %v5598 = vld [vmem:[%s9 + $0x28] sm:$0xff]
    %v5599 = vld [vmem:[%s9 + $0x30] sm:$0xff]
    %v5600 = vld [vmem:[%s9 + $0x38] sm:$0xff]
    %v5601 = vld [vmem:[%s9 + $0x40] sm:$0xff]
    %v5602 = vld [vmem:[%s9 + $0x48] sm:$0xff]
    %v5603 = vld [vmem:[%s9 + $0x50] sm:$0xff]
    %v5604 = vld [vmem:[%s9 + $0x58] sm:$0xff]
    %v5605 = vld [vmem:[%s9 + $0x60] sm:$0xff]
    %v5606 = vld [vmem:[%s9 + $0x68] sm:$0xff]
    %v5607 = vld [vmem:[%s9 + $0x70] sm:$0xff]
    %v5608 = vld [vmem:[%s9 + $0x78] sm:$0xff]
    %v5609 = vld [vmem:[%s9 + $0x80] sm:$0xff]
    %v5610 = vld [vmem:[%s9 + $0x88] sm:$0xff]
    %v5611 = vld [vmem:[%s9 + $0x90] sm:$0xff]
    %v5612 = vld [vmem:[%s9 + $0x98] sm:$0xff]
    %v5613 = vld [vmem:[%s9 + $0xa0] sm:$0xff]
    %v5614 = vld [vmem:[%s9 + $0xa8] sm:$0xff]
    %v5615 = vld [vmem:[%s9 + $0xb0] sm:$0xff]
    %v5616 = vld [vmem:[%s9 + $0xb8] sm:$0xff]
    %v5617 = vld [vmem:[%s9 + $0xc0] sm:$0xff]
    %v5618 = vld [vmem:[%s9 + $0xc8] sm:$0xff]
    %v5619 = vld [vmem:[%s9 + $0xd0] sm:$0xff]
    %v5620 = vld [vmem:[%s9 + $0xd8] sm:$0xff]
    %v5621 = vld [vmem:[%s9 + $0xe0] sm:$0xff]
    %v5622 = vld [vmem:[%s9 + $0xe8] sm:$0xff]
    %v5623 = vld [vmem:[%s9 + $0xf0] sm:$0xff]
    %v5624 = vld [vmem:[%s9 + $0xf8] sm:$0xff]
    %v5625 = vld [vmem:[%s9 + $0x100] sm:$0xff]
    %v5626 = vld [vmem:[%s9 + $0x108] sm:$0xff]
    %v5627 = vld [vmem:[%s9 + $0x110] sm:$0xff]
    %v5628 = vld [vmem:[%s9 + $0x118] sm:$0xff]
    %v5629 = vld [vmem:[%s9 + $0x120] sm:$0xff]
    %v5630 = vld [vmem:[%s9 + $0x128] sm:$0xff]
    %v5631 = vld [vmem:[%s9 + $0x130] sm:$0xff]
    %v5632 = vld [vmem:[%s9 + $0x138] sm:$0xff]
    %v5633 = vld [vmem:[%s9 + $0x140] sm:$0xff]
    %v5634 = vld [vmem:[%s9 + $0x148] sm:$0xff]
    %v5635 = vld [vmem:[%s9 + $0x150] sm:$0xff]
    %v5636 = vld [vmem:[%s9 + $0x158] sm:$0xff]
    %v5637 = vld [vmem:[%s9 + $0x160] sm:$0xff]
    %v5638 = vld [vmem:[%s9 + $0x168] sm:$0xff]
    %v5639 = vld [vmem:[%s9 + $0x170] sm:$0xff]
    %v5640 = vld [vmem:[%s9 + $0x178] sm:$0xff]
    %v5641 = vld [vmem:[%s9 + $0x180] sm:$0xff]
    %v5642 = vld [vmem:[%s9 + $0x188] sm:$0xff]
    %v5643 = vld [vmem:[%s9 + $0x190] sm:$0xff]
    %v5644 = vld [vmem:[%s9 + $0x198] sm:$0xff]
    %v5645 = vld [vmem:[%s9 + $0x1a0] sm:$0xff]
    %v5646 = vld [vmem:[%s9 + $0x1a8] sm:$0xff]
    %v5647 = vld [vmem:[%s9 + $0x1b0] sm:$0xff]
    %v5648 = vld [vmem:[%s9 + $0x1b8] sm:$0xff]
    %v5649 = vld [vmem:[%s9 + $0x1c0] sm:$0xff]
    %v5650 = vld [vmem:[%s9 + $0x1c8] sm:$0xff]
    %v5651 = vld [vmem:[%s9 + $0x1d0] sm:$0xff]
    %v5652 = vld [vmem:[%s9 + $0x1d8] sm:$0xff]
    %v5653 = vld [vmem:[%s9 + $0x1e0] sm:$0xff]
    %v5654 = vld [vmem:[%s9 + $0x1e8] sm:$0xff]
    %v5655 = vld [vmem:[%s9 + $0x1f0] sm:$0xff]
    %v5656 = vld [vmem:[%s9 + $0x1f8] sm:$0xff]
    %v5657 = vld [vmem:[%s9 + $0x200] sm:$0xff]
    %v5658 = vld [vmem:[%s9 + $0x208] sm:$0xff]
    %v5659 = vld [vmem:[%s9 + $0x210] sm:$0xff]
    %v5660 = vld [vmem:[%s9 + $0x218] sm:$0xff]
    %v5661 = vld [vmem:[%s9 + $0x220] sm:$0xff]
    %v5662 = vld [vmem:[%s9 + $0x228] sm:$0xff]
    %v5663 = vld [vmem:[%s9 + $0x230] sm:$0xff]
    %v5664 = vld [vmem:[%s9 + $0x238] sm:$0xff]
    %v5665 = vld [vmem:[%s9 + $0x240] sm:$0xff]
    %v5666 = vld [vmem:[%s9 + $0x248] sm:$0xff]
    %v5667 = vld [vmem:[%s9 + $0x250] sm:$0xff]
    %v5668 = vld [vmem:[%s9 + $0x258] sm:$0xff]
    %v5669 = vld [vmem:[%s9 + $0x260] sm:$0xff]
    %v5670 = vld [vmem:[%s9 + $0x268] sm:$0xff]
    %v5671 = vld [vmem:[%s9 + $0x270] sm:$0xff]
    %v5672 = vld [vmem:[%s9 + $0x278] sm:$0xff]
    %v5673 = vld [vmem:[%s9 + $0x280] sm:$0xff]
    %v5674 = vld [vmem:[%s9 + $0x288] sm:$0xff]
    %v5675 = vld [vmem:[%s9 + $0x290] sm:$0xff]
    %v5676 = vld [vmem:[%s9 + $0x298] sm:$0xff]
    %v5677 = vld [vmem:[%s9 + $0x2a0] sm:$0xff]
    %v5678 = vld [vmem:[%s9 + $0x2a8] sm:$0xff]
    %v5679 = vld [vmem:[%s9 + $0x2b0] sm:$0xff]
    %v5680 = vld [vmem:[%s9 + $0x2b8] sm:$0xff]
    %v5681 = vld [vmem:[%s9 + $0x2c0] sm:$0xff]
    %v5682 = vld [vmem:[%s9 + $0x2c8] sm:$0xff]
    %v5683 = vld [vmem:[%s9 + $0x2d0] sm:$0xff]
    %v5684 = vld [vmem:[%s9 + $0x2d8] sm:$0xff]
    %v5685 = vld [vmem:[%s9 + $0x2e0] sm:$0xff]
    %v5686 = vld [vmem:[%s9 + $0x2e8] sm:$0xff]
    %v5687 = vld [vmem:[%s9 + $0x2f0] sm:$0xff]
    %v5688 = vld [vmem:[%s9 + $0x2f8] sm:$0xff]
    %v5785 = vunpack.c.l.b16 %v5593
    %v5786 = vunpack.c.h.b16 %v5593
    %v5787 = vunpack.c.l.b16 %v5594
    %v5788 = vunpack.c.h.b16 %v5594
    %v5789 = vunpack.c.l.b16 %v5595
    %v5790 = vunpack.c.h.b16 %v5595
    %v5791 = vunpack.c.l.b16 %v5596
    %v5792 = vunpack.c.h.b16 %v5596
    %v5793 = vunpack.c.l.b16 %v5597
    %v5794 = vunpack.c.h.b16 %v5597
    %v5795 = vunpack.c.l.b16 %v5598
    %v5796 = vunpack.c.h.b16 %v5598
    %v5797 = vunpack.c.l.b16 %v5599
    %v5798 = vunpack.c.h.b16 %v5599
    %v5799 = vunpack.c.l.b16 %v5600
    %v5800 = vunpack.c.h.b16 %v5600
    %v5801 = vunpack.c.l.b16 %v5601
    %v5802 = vunpack.c.h.b16 %v5601
    %v5803 = vunpack.c.l.b16 %v5602
    %v5804 = vunpack.c.h.b16 %v5602
    %v5805 = vunpack.c.l.b16 %v5603
    %v5806 = vunpack.c.h.b16 %v5603
    %v5807 = vunpack.c.l.b16 %v5604
    %v5808 = vunpack.c.h.b16 %v5604
    %v5809 = vunpack.c.l.b16 %v5605
    %v5810 = vunpack.c.h.b16 %v5605
    %v5811 = vunpack.c.l.b16 %v5606
    %v5812 = vunpack.c.h.b16 %v5606
    %v5813 = vunpack.c.l.b16 %v5607
    %v5814 = vunpack.c.h.b16 %v5607
    %v5815 = vunpack.c.l.b16 %v5608
    %v5816 = vunpack.c.h.b16 %v5608
    %v5817 = vunpack.c.l.b16 %v5609
    %v5818 = vunpack.c.h.b16 %v5609
    %v5819 = vunpack.c.l.b16 %v5610
    %v5820 = vunpack.c.h.b16 %v5610
    %v5821 = vunpack.c.l.b16 %v5611
    %v5822 = vunpack.c.h.b16 %v5611
    %v5823 = vunpack.c.l.b16 %v5612
    %v5824 = vunpack.c.h.b16 %v5612
    %v5825 = vunpack.c.l.b16 %v5613
    %v5826 = vunpack.c.h.b16 %v5613
    %v5827 = vunpack.c.l.b16 %v5614
    %v5828 = vunpack.c.h.b16 %v5614
    %v5829 = vunpack.c.l.b16 %v5615
    %v5830 = vunpack.c.h.b16 %v5615
    %v5831 = vunpack.c.l.b16 %v5616
    %v5832 = vunpack.c.h.b16 %v5616
    %v5833 = vunpack.c.l.b16 %v5617
    %v5834 = vunpack.c.h.b16 %v5617
    %v5835 = vunpack.c.l.b16 %v5618
    %v5836 = vunpack.c.h.b16 %v5618
    %v5837 = vunpack.c.l.b16 %v5619
    %v5838 = vunpack.c.h.b16 %v5619
    %v5839 = vunpack.c.l.b16 %v5620
    %v5840 = vunpack.c.h.b16 %v5620
    %v5841 = vunpack.c.l.b16 %v5621
    %v5842 = vunpack.c.h.b16 %v5621
    %v5843 = vunpack.c.l.b16 %v5622
    %v5844 = vunpack.c.h.b16 %v5622
    %v5845 = vunpack.c.l.b16 %v5623
    %v5846 = vunpack.c.h.b16 %v5623
    %v5847 = vunpack.c.l.b16 %v5624
    %v5848 = vunpack.c.h.b16 %v5624
    %v5849 = vunpack.c.l.b16 %v5625
    %v5850 = vunpack.c.h.b16 %v5625
    %v5851 = vunpack.c.l.b16 %v5626
    %v5852 = vunpack.c.h.b16 %v5626
    %v5853 = vunpack.c.l.b16 %v5627
    %v5854 = vunpack.c.h.b16 %v5627
    %v5855 = vunpack.c.l.b16 %v5628
    %v5856 = vunpack.c.h.b16 %v5628
    %v5857 = vunpack.c.l.b16 %v5629
    %v5858 = vunpack.c.h.b16 %v5629
    %v5859 = vunpack.c.l.b16 %v5630
    %v5860 = vunpack.c.h.b16 %v5630
    %v5861 = vunpack.c.l.b16 %v5631
    %v5862 = vunpack.c.h.b16 %v5631
    %v5863 = vunpack.c.l.b16 %v5632
    %v5864 = vunpack.c.h.b16 %v5632
    %v5865 = vunpack.c.l.b16 %v5633
    %v5866 = vunpack.c.h.b16 %v5633
    %v5867 = vunpack.c.l.b16 %v5634
    %v5868 = vunpack.c.h.b16 %v5634
    %v5869 = vunpack.c.l.b16 %v5635
    %v5870 = vunpack.c.h.b16 %v5635
    %v5871 = vunpack.c.l.b16 %v5636
    %v5872 = vunpack.c.h.b16 %v5636
    %v5873 = vunpack.c.l.b16 %v5637
    %v5874 = vunpack.c.h.b16 %v5637
    %v5875 = vunpack.c.l.b16 %v5638
    %v5876 = vunpack.c.h.b16 %v5638
    %v5877 = vunpack.c.l.b16 %v5639
    %v5878 = vunpack.c.h.b16 %v5639
    %v5879 = vunpack.c.l.b16 %v5640
    %v5880 = vunpack.c.h.b16 %v5640
    %v5881 = vunpack.c.l.b16 %v5641
    %v5882 = vunpack.c.h.b16 %v5641
    %v5883 = vunpack.c.l.b16 %v5642
    %v5884 = vunpack.c.h.b16 %v5642
    %v5885 = vunpack.c.l.b16 %v5643
    %v5886 = vunpack.c.h.b16 %v5643
    %v5887 = vunpack.c.l.b16 %v5644
    %v5888 = vunpack.c.h.b16 %v5644
    %v5889 = vunpack.c.l.b16 %v5645
    %v5890 = vunpack.c.h.b16 %v5645
    %v5891 = vunpack.c.l.b16 %v5646
    %v5892 = vunpack.c.h.b16 %v5646
    %v5893 = vunpack.c.l.b16 %v5647
    %v5894 = vunpack.c.h.b16 %v5647
    %v5895 = vunpack.c.l.b16 %v5648
    %v5896 = vunpack.c.h.b16 %v5648
    %v5897 = vunpack.c.l.b16 %v5649
    %v5898 = vunpack.c.h.b16 %v5649
    %v5899 = vunpack.c.l.b16 %v5650
    %v5900 = vunpack.c.h.b16 %v5650
    %v5901 = vunpack.c.l.b16 %v5651
    %v5902 = vunpack.c.h.b16 %v5651
    %v5903 = vunpack.c.l.b16 %v5652
    %v5904 = vunpack.c.h.b16 %v5652
    %v5905 = vunpack.c.l.b16 %v5653
    %v5906 = vunpack.c.h.b16 %v5653
    %v5907 = vunpack.c.l.b16 %v5654
    %v5908 = vunpack.c.h.b16 %v5654
    %v5909 = vunpack.c.l.b16 %v5655
    %v5910 = vunpack.c.h.b16 %v5655
    %v5911 = vunpack.c.l.b16 %v5656
    %v5912 = vunpack.c.h.b16 %v5656
    %v5913 = vunpack.c.l.b16 %v5657
    %v5914 = vunpack.c.h.b16 %v5657
    %v5915 = vunpack.c.l.b16 %v5658
    %v5916 = vunpack.c.h.b16 %v5658
    %v5917 = vunpack.c.l.b16 %v5659
    %v5918 = vunpack.c.h.b16 %v5659
    %v5919 = vunpack.c.l.b16 %v5660
    %v5920 = vunpack.c.h.b16 %v5660
    %v5921 = vunpack.c.l.b16 %v5661
    %v5922 = vunpack.c.h.b16 %v5661
    %v5923 = vunpack.c.l.b16 %v5662
    %v5924 = vunpack.c.h.b16 %v5662
    %v5925 = vunpack.c.l.b16 %v5663
    %v5926 = vunpack.c.h.b16 %v5663
    %v5927 = vunpack.c.l.b16 %v5664
    %v5928 = vunpack.c.h.b16 %v5664
    %v5929 = vunpack.c.l.b16 %v5665
    %v5930 = vunpack.c.h.b16 %v5665
    %v5931 = vunpack.c.l.b16 %v5666
    %v5932 = vunpack.c.h.b16 %v5666
    %v5933 = vunpack.c.l.b16 %v5667
    %v5934 = vunpack.c.h.b16 %v5667
    %v5935 = vunpack.c.l.b16 %v5668
    %v5936 = vunpack.c.h.b16 %v5668
    %v5937 = vunpack.c.l.b16 %v5669
    %v5938 = vunpack.c.h.b16 %v5669
    %v5939 = vunpack.c.l.b16 %v5670
    %v5940 = vunpack.c.h.b16 %v5670
    %v5941 = vunpack.c.l.b16 %v5671
    %v5942 = vunpack.c.h.b16 %v5671
    %v5943 = vunpack.c.l.b16 %v5672
    %v5944 = vunpack.c.h.b16 %v5672
    %v5945 = vunpack.c.l.b16 %v5673
    %v5946 = vunpack.c.h.b16 %v5673
    %v5947 = vunpack.c.l.b16 %v5674
    %v5948 = vunpack.c.h.b16 %v5674
    %v5949 = vunpack.c.l.b16 %v5675
    %v5950 = vunpack.c.h.b16 %v5675
    %v5951 = vunpack.c.l.b16 %v5676
    %v5952 = vunpack.c.h.b16 %v5676
    %v5953 = vunpack.c.l.b16 %v5677
    %v5954 = vunpack.c.h.b16 %v5677
    %v5955 = vunpack.c.l.b16 %v5678
    %v5956 = vunpack.c.h.b16 %v5678
    %v5957 = vunpack.c.l.b16 %v5679
    %v5958 = vunpack.c.h.b16 %v5679
    %v5959 = vunpack.c.l.b16 %v5680
    %v5960 = vunpack.c.h.b16 %v5680
    %v5961 = vunpack.c.l.b16 %v5681
    %v5962 = vunpack.c.h.b16 %v5681
    %v5963 = vunpack.c.l.b16 %v5682
    %v5964 = vunpack.c.h.b16 %v5682
    %v5965 = vunpack.c.l.b16 %v5683
    %v5966 = vunpack.c.h.b16 %v5683
    %v5967 = vunpack.c.l.b16 %v5684
    %v5968 = vunpack.c.h.b16 %v5684
    %v5969 = vunpack.c.l.b16 %v5685
    %v5970 = vunpack.c.h.b16 %v5685
    %v5971 = vunpack.c.l.b16 %v5686
    %v5972 = vunpack.c.h.b16 %v5686
    %v5973 = vunpack.c.l.b16 %v5687
    %v5974 = vunpack.c.h.b16 %v5687
    %v5975 = vunpack.c.l.b16 %v5688
    %v5976 = vunpack.c.h.b16 %v5688
    %v5977 = vpack.c.b16 %v5791, %v5785
    %v5978 = vpack.c.b16 %v5792, %v5786
    %v5979 = vpack.c.b16 %v5793, %v5787
    %v5980 = vpack.c.b16 %v5794, %v5788
    %v5981 = vpack.c.b16 %v5795, %v5789
    %v5982 = vpack.c.b16 %v5796, %v5790
    %v5983 = vpack.c.b16 %v5803, %v5797
    %v5984 = vpack.c.b16 %v5804, %v5798
    %v5985 = vpack.c.b16 %v5805, %v5799
    %v5986 = vpack.c.b16 %v5806, %v5800
    %v5987 = vpack.c.b16 %v5807, %v5801
    %v5988 = vpack.c.b16 %v5808, %v5802
    %v5989 = vpack.c.b16 %v5815, %v5809
    %v5990 = vpack.c.b16 %v5816, %v5810
    %v5991 = vpack.c.b16 %v5817, %v5811
    %v5992 = vpack.c.b16 %v5818, %v5812
    %v5993 = vpack.c.b16 %v5819, %v5813
    %v5994 = vpack.c.b16 %v5820, %v5814
    %v5995 = vpack.c.b16 %v5827, %v5821
    %v5996 = vpack.c.b16 %v5828, %v5822
    %v5997 = vpack.c.b16 %v5829, %v5823
    %v5998 = vpack.c.b16 %v5830, %v5824
    %v5999 = vpack.c.b16 %v5831, %v5825
    %v6000 = vpack.c.b16 %v5832, %v5826
    %v6001 = vpack.c.b16 %v5839, %v5833
    %v6002 = vpack.c.b16 %v5840, %v5834
    %v6003 = vpack.c.b16 %v5841, %v5835
    %v6004 = vpack.c.b16 %v5842, %v5836
    %v6005 = vpack.c.b16 %v5843, %v5837
    %v6006 = vpack.c.b16 %v5844, %v5838
    %v6007 = vpack.c.b16 %v5851, %v5845
    %v6008 = vpack.c.b16 %v5852, %v5846
    %v6009 = vpack.c.b16 %v5853, %v5847
    %v6010 = vpack.c.b16 %v5854, %v5848
    %v6011 = vpack.c.b16 %v5855, %v5849
    %v6012 = vpack.c.b16 %v5856, %v5850
    %v6013 = vpack.c.b16 %v5863, %v5857
    %v6014 = vpack.c.b16 %v5864, %v5858
    %v6015 = vpack.c.b16 %v5865, %v5859
    %v6016 = vpack.c.b16 %v5866, %v5860
    %v6017 = vpack.c.b16 %v5867, %v5861
    %v6018 = vpack.c.b16 %v5868, %v5862
    %v6019 = vpack.c.b16 %v5875, %v5869
    %v6020 = vpack.c.b16 %v5876, %v5870
    %v6021 = vpack.c.b16 %v5877, %v5871
    %v6022 = vpack.c.b16 %v5878, %v5872
    %v6023 = vpack.c.b16 %v5879, %v5873
    %v6024 = vpack.c.b16 %v5880, %v5874
    %v6025 = vpack.c.b16 %v5887, %v5881
    %v6026 = vpack.c.b16 %v5888, %v5882
    %v6027 = vpack.c.b16 %v5889, %v5883
    %v6028 = vpack.c.b16 %v5890, %v5884
    %v6029 = vpack.c.b16 %v5891, %v5885
    %v6030 = vpack.c.b16 %v5892, %v5886
    %v6031 = vpack.c.b16 %v5899, %v5893
    %v6032 = vpack.c.b16 %v5900, %v5894
    %v6033 = vpack.c.b16 %v5901, %v5895
    %v6034 = vpack.c.b16 %v5902, %v5896
    %v6035 = vpack.c.b16 %v5903, %v5897
    %v6036 = vpack.c.b16 %v5904, %v5898
    %v6037 = vpack.c.b16 %v5911, %v5905
    %v6038 = vpack.c.b16 %v5912, %v5906
    %v6039 = vpack.c.b16 %v5913, %v5907
    %v6040 = vpack.c.b16 %v5914, %v5908
    %v6041 = vpack.c.b16 %v5915, %v5909
    %v6042 = vpack.c.b16 %v5916, %v5910
    %v6043 = vpack.c.b16 %v5923, %v5917
    %v6044 = vpack.c.b16 %v5924, %v5918
    %v6045 = vpack.c.b16 %v5925, %v5919
    %v6046 = vpack.c.b16 %v5926, %v5920
    %v6047 = vpack.c.b16 %v5927, %v5921
    %v6048 = vpack.c.b16 %v5928, %v5922
    %v6049 = vpack.c.b16 %v5935, %v5929
    %v6050 = vpack.c.b16 %v5936, %v5930
    %v6051 = vpack.c.b16 %v5937, %v5931
    %v6052 = vpack.c.b16 %v5938, %v5932
    %v6053 = vpack.c.b16 %v5939, %v5933
    %v6054 = vpack.c.b16 %v5940, %v5934
    %v6055 = vpack.c.b16 %v5947, %v5941
    %v6056 = vpack.c.b16 %v5948, %v5942
    %v6057 = vpack.c.b16 %v5949, %v5943
    %v6058 = vpack.c.b16 %v5950, %v5944
    %v6059 = vpack.c.b16 %v5951, %v5945
    %v6060 = vpack.c.b16 %v5952, %v5946
    %v6061 = vpack.c.b16 %v5959, %v5953
    %v6062 = vpack.c.b16 %v5960, %v5954
    %v6063 = vpack.c.b16 %v5961, %v5955
    %v6064 = vpack.c.b16 %v5962, %v5956
    %v6065 = vpack.c.b16 %v5963, %v5957
    %v6066 = vpack.c.b16 %v5964, %v5958
    %v6067 = vpack.c.b16 %v5971, %v5965
    %v6068 = vpack.c.b16 %v5972, %v5966
    %v6069 = vpack.c.b16 %v5973, %v5967
    %v6070 = vpack.c.b16 %v5974, %v5968
    %v6071 = vpack.c.b16 %v5975, %v5969
    %v6072 = vpack.c.b16 %v5976, %v5970
    %6169 = vmatpush.bf16.msra.mxu0 %v6019
    %6170 = vmatpush.bf16.msra.mxu0 %v6013
    %6171 = vmatpush.bf16.msra.mxu0 %v6007
    %6172 = vmatpush.bf16.msra.mxu0 %v6001
    %6173 = vmatpush.bf16.msra.mxu0 %v5995
    %6174 = vmatpush.bf16.msra.mxu0 %v5989
    %6175 = vmatpush.bf16.msra.mxu0 %v5983
    %6176 = vmatpush.bf16.msra.mxu0 %v5977
    %6177 = vmatmul.bf16.gmra.mxu0 %v5585
    %v6178 = vpop.f32.mrf.mxu0
    %v6179 = vadd.f32 0.0, %v6178
    %v6180 = vpop.f32.mrf.mxu0
    %v6181 = vadd.f32 0.0, %v6180
    %6182 = vmatmul.bf16.gmra.mxu0 %v5587
    %v6183 = vpop.f32.mrf.mxu0
    %v6184 = vadd.f32 0.0, %v6183
    %v6185 = vpop.f32.mrf.mxu0
    %v6186 = vadd.f32 0.0, %v6185
    %6187 = vmatmul.bf16.gmra.mxu0 %v5589
    %v6188 = vpop.f32.mrf.mxu0
    %v6189 = vadd.f32 0.0, %v6188
    %v6190 = vpop.f32.mrf.mxu0
    %v6191 = vadd.f32 0.0, %v6190
    %6192 = vmatmul.bf16.gmra.mxu0 %v5591
    %v6193 = vpop.f32.mrf.mxu0
    %v6194 = vadd.f32 0.0, %v6193
    %v6195 = vpop.f32.mrf.mxu0
    %v6196 = vadd.f32 0.0, %v6195
    %6197 = vdwg.mxu0
    %6198 = vmatpush.bf16.msra.mxu0 %v6067
    %6199 = vmatpush.bf16.msra.mxu0 %v6061
    %6200 = vmatpush.bf16.msra.mxu0 %v6055
    %6201 = vmatpush.bf16.msra.mxu0 %v6049
    %6202 = vmatpush.bf16.msra.mxu0 %v6043
    %6203 = vmatpush.bf16.msra.mxu0 %v6037
    %6204 = vmatpush.bf16.msra.mxu0 %v6031
    %6205 = vmatpush.bf16.msra.mxu0 %v6025
    %6206 = vmatmul.bf16.gmra.mxu0 %v5586
    %v6207 = vpop.f32.mrf.mxu0
    %v6208 = vadd.f32 %v6179, %v6207
    %v6209 = vpop.f32.mrf.mxu0
    %v6210 = vadd.f32 %v6181, %v6209
    %6211 = vmatmul.bf16.gmra.mxu0 %v5588
    %v6212 = vpop.f32.mrf.mxu0
    %v6213 = vadd.f32 %v6184, %v6212
    %v6214 = vpop.f32.mrf.mxu0
    %v6215 = vadd.f32 %v6186, %v6214
    %6216 = vmatmul.bf16.gmra.mxu0 %v5590
    %v6217 = vpop.f32.mrf.mxu0
    %v6218 = vadd.f32 %v6189, %v6217
    %v6219 = vpop.f32.mrf.mxu0
    %v6220 = vadd.f32 %v6191, %v6219
    %6221 = vmatmul.bf16.gmra.mxu0 %v5592
    %v6222 = vpop.f32.mrf.mxu0
    %v6223 = vadd.f32 %v6194, %v6222
    %v6224 = vpop.f32.mrf.mxu0
    %v6225 = vadd.f32 %v6196, %v6224
    %6226 = vdwg.mxu0
    %6227 = vmatpush.bf16.msra.mxu0 %v6020
    %6228 = vmatpush.bf16.msra.mxu0 %v6014
    %6229 = vmatpush.bf16.msra.mxu0 %v6008
    %6230 = vmatpush.bf16.msra.mxu0 %v6002
    %6231 = vmatpush.bf16.msra.mxu0 %v5996
    %6232 = vmatpush.bf16.msra.mxu0 %v5990
    %6233 = vmatpush.bf16.msra.mxu0 %v5984
    %6234 = vmatpush.bf16.msra.mxu0 %v5978
    %6235 = vmatmul.bf16.gmra.mxu0 %v5585
    %v6236 = vpop.f32.mrf.mxu0
    %v6237 = vadd.f32 0.0, %v6236
    %v6238 = vpop.f32.mrf.mxu0
    %v6239 = vadd.f32 0.0, %v6238
    %6240 = vmatmul.bf16.gmra.mxu0 %v5587
    %v6241 = vpop.f32.mrf.mxu0
    %v6242 = vadd.f32 0.0, %v6241
    %v6243 = vpop.f32.mrf.mxu0
    %v6244 = vadd.f32 0.0, %v6243
    %6245 = vmatmul.bf16.gmra.mxu0 %v5589
    %v6246 = vpop.f32.mrf.mxu0
    %v6247 = vadd.f32 0.0, %v6246
    %v6248 = vpop.f32.mrf.mxu0
    %v6249 = vadd.f32 0.0, %v6248
    %6250 = vmatmul.bf16.gmra.mxu0 %v5591
    %v6251 = vpop.f32.mrf.mxu0
    %v6252 = vadd.f32 0.0, %v6251
    %v6253 = vpop.f32.mrf.mxu0
    %v6254 = vadd.f32 0.0, %v6253
    %6255 = vdwg.mxu0
    %6256 = vmatpush.bf16.msra.mxu0 %v6068
    %6257 = vmatpush.bf16.msra.mxu0 %v6062
    %6258 = vmatpush.bf16.msra.mxu0 %v6056
    %6259 = vmatpush.bf16.msra.mxu0 %v6050
    %6260 = vmatpush.bf16.msra.mxu0 %v6044
    %6261 = vmatpush.bf16.msra.mxu0 %v6038
    %6262 = vmatpush.bf16.msra.mxu0 %v6032
    %6263 = vmatpush.bf16.msra.mxu0 %v6026
    %6264 = vmatmul.bf16.gmra.mxu0 %v5586
    %v6265 = vpop.f32.mrf.mxu0
    %v6266 = vadd.f32 %v6237, %v6265
    %v6267 = vpop.f32.mrf.mxu0
    %v6268 = vadd.f32 %v6239, %v6267
    %6269 = vmatmul.bf16.gmra.mxu0 %v5588
    %v6270 = vpop.f32.mrf.mxu0
    %v6271 = vadd.f32 %v6242, %v6270
    %v6272 = vpop.f32.mrf.mxu0
    %v6273 = vadd.f32 %v6244, %v6272
    %6274 = vmatmul.bf16.gmra.mxu0 %v5590
    %v6275 = vpop.f32.mrf.mxu0
    %v6276 = vadd.f32 %v6247, %v6275
    %v6277 = vpop.f32.mrf.mxu0
    %v6278 = vadd.f32 %v6249, %v6277
    %6279 = vmatmul.bf16.gmra.mxu0 %v5592
    %v6280 = vpop.f32.mrf.mxu0
    %v6281 = vadd.f32 %v6252, %v6280
    %v6282 = vpop.f32.mrf.mxu0
    %v6283 = vadd.f32 %v6254, %v6282
    %6284 = vdwg.mxu0
    %6285 = vmatpush.bf16.msra.mxu0 %v6021
    %6286 = vmatpush.bf16.msra.mxu0 %v6015
    %6287 = vmatpush.bf16.msra.mxu0 %v6009
    %6288 = vmatpush.bf16.msra.mxu0 %v6003
    %6289 = vmatpush.bf16.msra.mxu0 %v5997
    %6290 = vmatpush.bf16.msra.mxu0 %v5991
    %6291 = vmatpush.bf16.msra.mxu0 %v5985
    %6292 = vmatpush.bf16.msra.mxu0 %v5979
    %6293 = vmatmul.bf16.gmra.mxu0 %v5585
    %v6294 = vpop.f32.mrf.mxu0
    %v6295 = vadd.f32 0.0, %v6294
    %v6296 = vpop.f32.mrf.mxu0
    %v6297 = vadd.f32 0.0, %v6296
    %6298 = vmatmul.bf16.gmra.mxu0 %v5587
    %v6299 = vpop.f32.mrf.mxu0
    %v6300 = vadd.f32 0.0, %v6299
    %v6301 = vpop.f32.mrf.mxu0
    %v6302 = vadd.f32 0.0, %v6301
    %6303 = vmatmul.bf16.gmra.mxu0 %v5589
    %v6304 = vpop.f32.mrf.mxu0
    %v6305 = vadd.f32 0.0, %v6304
    %v6306 = vpop.f32.mrf.mxu0
    %v6307 = vadd.f32 0.0, %v6306
    %6308 = vmatmul.bf16.gmra.mxu0 %v5591
    %v6309 = vpop.f32.mrf.mxu0
    %v6310 = vadd.f32 0.0, %v6309
    %v6311 = vpop.f32.mrf.mxu0
    %v6312 = vadd.f32 0.0, %v6311
    %6313 = vdwg.mxu0
    %6314 = vmatpush.bf16.msra.mxu0 %v6069
    %6315 = vmatpush.bf16.msra.mxu0 %v6063
    %6316 = vmatpush.bf16.msra.mxu0 %v6057
    %6317 = vmatpush.bf16.msra.mxu0 %v6051
    %6318 = vmatpush.bf16.msra.mxu0 %v6045
    %6319 = vmatpush.bf16.msra.mxu0 %v6039
    %6320 = vmatpush.bf16.msra.mxu0 %v6033
    %6321 = vmatpush.bf16.msra.mxu0 %v6027
    %6322 = vmatmul.bf16.gmra.mxu0 %v5586
    %v6323 = vpop.f32.mrf.mxu0
    %v6324 = vadd.f32 %v6295, %v6323
    %v6325 = vpop.f32.mrf.mxu0
    %v6326 = vadd.f32 %v6297, %v6325
    %6327 = vmatmul.bf16.gmra.mxu0 %v5588
    %v6328 = vpop.f32.mrf.mxu0
    %v6329 = vadd.f32 %v6300, %v6328
    %v6330 = vpop.f32.mrf.mxu0
    %v6331 = vadd.f32 %v6302, %v6330
    %6332 = vmatmul.bf16.gmra.mxu0 %v5590
    %v6333 = vpop.f32.mrf.mxu0
    %v6334 = vadd.f32 %v6305, %v6333
    %v6335 = vpop.f32.mrf.mxu0
    %v6336 = vadd.f32 %v6307, %v6335
    %6337 = vmatmul.bf16.gmra.mxu0 %v5592
    %v6338 = vpop.f32.mrf.mxu0
    %v6339 = vadd.f32 %v6310, %v6338
    %v6340 = vpop.f32.mrf.mxu0
    %v6341 = vadd.f32 %v6312, %v6340
    %6342 = vdwg.mxu0
    %6343 = vmatpush.bf16.msra.mxu0 %v6022
    %6344 = vmatpush.bf16.msra.mxu0 %v6016
    %6345 = vmatpush.bf16.msra.mxu0 %v6010
    %6346 = vmatpush.bf16.msra.mxu0 %v6004
    %6347 = vmatpush.bf16.msra.mxu0 %v5998
    %6348 = vmatpush.bf16.msra.mxu0 %v5992
    %6349 = vmatpush.bf16.msra.mxu0 %v5986
    %6350 = vmatpush.bf16.msra.mxu0 %v5980
    %6351 = vmatmul.bf16.gmra.mxu0 %v5585
    %v6352 = vpop.f32.mrf.mxu0
    %v6353 = vadd.f32 0.0, %v6352
    %v6354 = vpop.f32.mrf.mxu0
    %v6355 = vadd.f32 0.0, %v6354
    %6356 = vmatmul.bf16.gmra.mxu0 %v5587
    %v6357 = vpop.f32.mrf.mxu0
    %v6358 = vadd.f32 0.0, %v6357
    %v6359 = vpop.f32.mrf.mxu0
    %v6360 = vadd.f32 0.0, %v6359
    %6361 = vmatmul.bf16.gmra.mxu0 %v5589
    %v6362 = vpop.f32.mrf.mxu0
    %v6363 = vadd.f32 0.0, %v6362
    %v6364 = vpop.f32.mrf.mxu0
    %v6365 = vadd.f32 0.0, %v6364
    %6366 = vmatmul.bf16.gmra.mxu0 %v5591
    %v6367 = vpop.f32.mrf.mxu0
    %v6368 = vadd.f32 0.0, %v6367
    %v6369 = vpop.f32.mrf.mxu0
    %v6370 = vadd.f32 0.0, %v6369
    %6371 = vdwg.mxu0
    %6372 = vmatpush.bf16.msra.mxu0 %v6070
    %6373 = vmatpush.bf16.msra.mxu0 %v6064
    %6374 = vmatpush.bf16.msra.mxu0 %v6058
    %6375 = vmatpush.bf16.msra.mxu0 %v6052
    %6376 = vmatpush.bf16.msra.mxu0 %v6046
    %6377 = vmatpush.bf16.msra.mxu0 %v6040
    %6378 = vmatpush.bf16.msra.mxu0 %v6034
    %6379 = vmatpush.bf16.msra.mxu0 %v6028
    %6380 = vmatmul.bf16.gmra.mxu0 %v5586
    %v6381 = vpop.f32.mrf.mxu0
    %v6382 = vadd.f32 %v6353, %v6381
    %v6383 = vpop.f32.mrf.mxu0
    %v6384 = vadd.f32 %v6355, %v6383
    %6385 = vmatmul.bf16.gmra.mxu0 %v5588
    %v6386 = vpop.f32.mrf.mxu0
    %v6387 = vadd.f32 %v6358, %v6386
    %v6388 = vpop.f32.mrf.mxu0
    %v6389 = vadd.f32 %v6360, %v6388
    %6390 = vmatmul.bf16.gmra.mxu0 %v5590
    %v6391 = vpop.f32.mrf.mxu0
    %v6392 = vadd.f32 %v6363, %v6391
    %v6393 = vpop.f32.mrf.mxu0
    %v6394 = vadd.f32 %v6365, %v6393
    %6395 = vmatmul.bf16.gmra.mxu0 %v5592
    %v6396 = vpop.f32.mrf.mxu0
    %v6397 = vadd.f32 %v6368, %v6396
    %v6398 = vpop.f32.mrf.mxu0
    %v6399 = vadd.f32 %v6370, %v6398
    %6400 = vdwg.mxu0
    %6401 = vmatpush.bf16.msra.mxu0 %v6023
    %6402 = vmatpush.bf16.msra.mxu0 %v6017
    %6403 = vmatpush.bf16.msra.mxu0 %v6011
    %6404 = vmatpush.bf16.msra.mxu0 %v6005
    %6405 = vmatpush.bf16.msra.mxu0 %v5999
    %6406 = vmatpush.bf16.msra.mxu0 %v5993
    %6407 = vmatpush.bf16.msra.mxu0 %v5987
    %6408 = vmatpush.bf16.msra.mxu0 %v5981
    %6409 = vmatmul.bf16.gmra.mxu0 %v5585
    %v6410 = vpop.f32.mrf.mxu0
    %v6411 = vadd.f32 0.0, %v6410
    %v6412 = vpop.f32.mrf.mxu0
    %v6413 = vadd.f32 0.0, %v6412
    %6414 = vmatmul.bf16.gmra.mxu0 %v5587
    %v6415 = vpop.f32.mrf.mxu0
    %v6416 = vadd.f32 0.0, %v6415
    %v6417 = vpop.f32.mrf.mxu0
    %v6418 = vadd.f32 0.0, %v6417
    %6419 = vmatmul.bf16.gmra.mxu0 %v5589
    %v6420 = vpop.f32.mrf.mxu0
    %v6421 = vadd.f32 0.0, %v6420
    %v6422 = vpop.f32.mrf.mxu0
    %v6423 = vadd.f32 0.0, %v6422
    %6424 = vmatmul.bf16.gmra.mxu0 %v5591
    %v6425 = vpop.f32.mrf.mxu0
    %v6426 = vadd.f32 0.0, %v6425
    %v6427 = vpop.f32.mrf.mxu0
    %v6428 = vadd.f32 0.0, %v6427
    %6429 = vdwg.mxu0
    %6430 = vmatpush.bf16.msra.mxu0 %v6071
    %6431 = vmatpush.bf16.msra.mxu0 %v6065
    %6432 = vmatpush.bf16.msra.mxu0 %v6059
    %6433 = vmatpush.bf16.msra.mxu0 %v6053
    %6434 = vmatpush.bf16.msra.mxu0 %v6047
    %6435 = vmatpush.bf16.msra.mxu0 %v6041
    %6436 = vmatpush.bf16.msra.mxu0 %v6035
    %6437 = vmatpush.bf16.msra.mxu0 %v6029
    %6438 = vmatmul.bf16.gmra.mxu0 %v5586
    %v6439 = vpop.f32.mrf.mxu0
    %v6440 = vadd.f32 %v6411, %v6439
    %v6441 = vpop.f32.mrf.mxu0
    %v6442 = vadd.f32 %v6413, %v6441
    %6443 = vmatmul.bf16.gmra.mxu0 %v5588
    %v6444 = vpop.f32.mrf.mxu0
    %v6445 = vadd.f32 %v6416, %v6444
    %v6446 = vpop.f32.mrf.mxu0
    %v6447 = vadd.f32 %v6418, %v6446
    %6448 = vmatmul.bf16.gmra.mxu0 %v5590
    %v6449 = vpop.f32.mrf.mxu0
    %v6450 = vadd.f32 %v6421, %v6449
    %v6451 = vpop.f32.mrf.mxu0
    %v6452 = vadd.f32 %v6423, %v6451
    %6453 = vmatmul.bf16.gmra.mxu0 %v5592
    %v6454 = vpop.f32.mrf.mxu0
    %v6455 = vadd.f32 %v6426, %v6454
    %v6456 = vpop.f32.mrf.mxu0
    %v6457 = vadd.f32 %v6428, %v6456
    %6458 = vdwg.mxu0
    %6459 = vmatpush.bf16.msra.mxu0 %v6024
    %6460 = vmatpush.bf16.msra.mxu0 %v6018
    %6461 = vmatpush.bf16.msra.mxu0 %v6012
    %6462 = vmatpush.bf16.msra.mxu0 %v6006
    %6463 = vmatpush.bf16.msra.mxu0 %v6000
    %6464 = vmatpush.bf16.msra.mxu0 %v5994
    %6465 = vmatpush.bf16.msra.mxu0 %v5988
    %6466 = vmatpush.bf16.msra.mxu0 %v5982
    %6467 = vmatmul.bf16.gmra.mxu0 %v5585
    %v6468 = vpop.f32.mrf.mxu0
    %v6469 = vadd.f32 0.0, %v6468
    %v6470 = vpop.f32.mrf.mxu0
    %v6471 = vadd.f32 0.0, %v6470
    %6472 = vmatmul.bf16.gmra.mxu0 %v5587
    %v6473 = vpop.f32.mrf.mxu0
    %v6474 = vadd.f32 0.0, %v6473
    %v6475 = vpop.f32.mrf.mxu0
    %v6476 = vadd.f32 0.0, %v6475
    %6477 = vmatmul.bf16.gmra.mxu0 %v5589
    %v6478 = vpop.f32.mrf.mxu0
    %v6479 = vadd.f32 0.0, %v6478
    %v6480 = vpop.f32.mrf.mxu0
    %v6481 = vadd.f32 0.0, %v6480
    %6482 = vmatmul.bf16.gmra.mxu0 %v5591
    %v6483 = vpop.f32.mrf.mxu0
    %v6484 = vadd.f32 0.0, %v6483
    %v6485 = vpop.f32.mrf.mxu0
    %v6486 = vadd.f32 0.0, %v6485
    %6487 = vdwg.mxu0
    %6488 = vmatpush.bf16.msra.mxu0 %v6072
    %6489 = vmatpush.bf16.msra.mxu0 %v6066
    %6490 = vmatpush.bf16.msra.mxu0 %v6060
    %6491 = vmatpush.bf16.msra.mxu0 %v6054
    %6492 = vmatpush.bf16.msra.mxu0 %v6048
    %6493 = vmatpush.bf16.msra.mxu0 %v6042
    %6494 = vmatpush.bf16.msra.mxu0 %v6036
    %6495 = vmatpush.bf16.msra.mxu0 %v6030
    %6496 = vmatmul.bf16.gmra.mxu0 %v5586
    %v6497 = vpop.f32.mrf.mxu0
    %v6498 = vadd.f32 %v6469, %v6497
    %v6499 = vpop.f32.mrf.mxu0
    %v6500 = vadd.f32 %v6471, %v6499
    %6501 = vmatmul.bf16.gmra.mxu0 %v5588
    %v6502 = vpop.f32.mrf.mxu0
    %v6503 = vadd.f32 %v6474, %v6502
    %v6504 = vpop.f32.mrf.mxu0
    %v6505 = vadd.f32 %v6476, %v6504
    %6506 = vmatmul.bf16.gmra.mxu0 %v5590
    %v6507 = vpop.f32.mrf.mxu0
    %v6508 = vadd.f32 %v6479, %v6507
    %v6509 = vpop.f32.mrf.mxu0
    %v6510 = vadd.f32 %v6481, %v6509
    %6511 = vmatmul.bf16.gmra.mxu0 %v5592
    %v6512 = vpop.f32.mrf.mxu0
    %v6513 = vadd.f32 %v6484, %v6512
    %v6514 = vpop.f32.mrf.mxu0
    %v6515 = vadd.f32 %v6486, %v6514
    %6516 = vdwg.mxu0
    %v6533 = vrot.slane %v6208, 7
    %v6534 = vrot.slane %v6266, 7
    %v6535 = vrot.slane %v6210, 7
    %v6536 = vsel %vm1754, %v6533, %v6535
    %v6537 = vrot.slane %v6268, 7
    %v6538 = vsel %vm1754, %v6534, %v6537
    %v6539 = vrot.slane %v6213, 7
    %v6540 = vsel %vm1754, %v6535, %v6539
    %v6541 = vrot.slane %v6271, 7
    %v6542 = vsel %vm1754, %v6537, %v6541
    %v6543 = vrot.slane %v6215, 7
    %v6544 = vsel %vm1754, %v6539, %v6543
    %v6545 = vrot.slane %v6273, 7
    %v6546 = vsel %vm1754, %v6541, %v6545
    %v6547 = vrot.slane %v6218, 7
    %v6548 = vsel %vm1754, %v6543, %v6547
    %v6549 = vrot.slane %v6276, 7
    %v6550 = vsel %vm1754, %v6545, %v6549
    %v6551 = vrot.slane %v6220, 7
    %v6552 = vsel %vm1754, %v6547, %v6551
    %v6553 = vrot.slane %v6278, 7
    %v6554 = vsel %vm1754, %v6549, %v6553
    %v6555 = vrot.slane %v6223, 7
    %v6556 = vsel %vm1754, %v6551, %v6555
    %v6557 = vrot.slane %v6281, 7
    %v6558 = vsel %vm1754, %v6553, %v6557
    %v6559 = vrot.slane %v6225, 7
    %v6560 = vsel %vm1754, %v6555, %v6559
    %v6561 = vrot.slane %v6283, 7
    %v6562 = vsel %vm1754, %v6557, %v6561
    %v6579 = vsel %vm1754, 0.0, %v6533
    %v6580 = vsel %vm1754, 0.0, %v6534
    %v6581 = vsel %vm5285, 0.0, %v6579
    %v6582 = vsel %vm5285, 0.0, %v6580
    %v6583 = vsel %vm5286, 0.0, %v6536
    %v6584 = vsel %vm5286, 0.0, %v6538
    %v6585 = vsel %vm5287, 0.0, %v6540
    %v6586 = vsel %vm5287, 0.0, %v6542
    %v6587 = vsel %vm5288, 0.0, %v6544
    %v6588 = vsel %vm5288, 0.0, %v6546
    %v6589 = vsel %vm5289, 0.0, %v6548
    %v6590 = vsel %vm5289, 0.0, %v6550
    %v6591 = vsel %vm5290, 0.0, %v6552
    %v6592 = vsel %vm5290, 0.0, %v6554
    %v6593 = vsel %vm5291, 0.0, %v6556
    %v6594 = vsel %vm5291, 0.0, %v6558
    %v6595 = vsel %vm5292, 0.0, %v6560
    %v6596 = vsel %vm5292, 0.0, %v6562
    %v6613 = vrot.slane %v6440, 1
    %v6614 = vrot.slane %v6442, 1
    %v6615 = vsel %vm1979, %v6613, %v6614
    %v6616 = vrot.slane %v6498, 1
    %v6617 = vrot.slane %v6500, 1
    %v6618 = vsel %vm1979, %v6616, %v6617
    %v6619 = vrot.slane %v6445, 1
    %v6620 = vsel %vm1979, %v6614, %v6619
    %v6621 = vrot.slane %v6503, 1
    %v6622 = vsel %vm1979, %v6617, %v6621
    %v6623 = vrot.slane %v6447, 1
    %v6624 = vsel %vm1979, %v6619, %v6623
    %v6625 = vrot.slane %v6505, 1
    %v6626 = vsel %vm1979, %v6621, %v6625
    %v6627 = vrot.slane %v6450, 1
    %v6628 = vsel %vm1979, %v6623, %v6627
    %v6629 = vrot.slane %v6508, 1
    %v6630 = vsel %vm1979, %v6625, %v6629
    %v6631 = vrot.slane %v6452, 1
    %v6632 = vsel %vm1979, %v6627, %v6631
    %v6633 = vrot.slane %v6510, 1
    %v6634 = vsel %vm1979, %v6629, %v6633
    %v6635 = vrot.slane %v6455, 1
    %v6636 = vsel %vm1979, %v6631, %v6635
    %v6637 = vrot.slane %v6513, 1
    %v6638 = vsel %vm1979, %v6633, %v6637
    %v6639 = vrot.slane %v6457, 1
    %v6640 = vsel %vm1979, %v6635, %v6639
    %v6641 = vrot.slane %v6515, 1
    %v6642 = vsel %vm1979, %v6637, %v6641
    %v6659 = vsel %vm1979, %v6639, 0.0
    %v6660 = vsel %vm1979, %v6641, 0.0
    %v6661 = vsel %vm5381, 0.0, %v6615
    %v6662 = vsel %vm5381, 0.0, %v6618
    %v6663 = vsel %vm5382, 0.0, %v6620
    %v6664 = vsel %vm5382, 0.0, %v6622
    %v6665 = vsel %vm5383, 0.0, %v6624
    %v6666 = vsel %vm5383, 0.0, %v6626
    %v6667 = vsel %vm5384, 0.0, %v6628
    %v6668 = vsel %vm5384, 0.0, %v6630
    %v6669 = vsel %vm5385, 0.0, %v6632
    %v6670 = vsel %vm5385, 0.0, %v6634
    %v6671 = vsel %vm5386, 0.0, %v6636
    %v6672 = vsel %vm5386, 0.0, %v6638
    %v6673 = vsel %vm5387, 0.0, %v6640
    %v6674 = vsel %vm5387, 0.0, %v6642
    %v6675 = vsel %vm5388, 0.0, %v6659
    %v6676 = vsel %vm5388, 0.0, %v6660
    %v6677 = vadd.f32 %v6581, %v6324
    %v6678 = vadd.f32 %v6582, %v6382
    %v6679 = vadd.f32 %v6583, %v6326
    %v6680 = vadd.f32 %v6584, %v6384
    %v6681 = vadd.f32 %v6585, %v6329
    %v6682 = vadd.f32 %v6586, %v6387
    %v6683 = vadd.f32 %v6587, %v6331
    %v6684 = vadd.f32 %v6588, %v6389
    %v6685 = vadd.f32 %v6589, %v6334
    %v6686 = vadd.f32 %v6590, %v6392
    %v6687 = vadd.f32 %v6591, %v6336
    %v6688 = vadd.f32 %v6592, %v6394
    %v6689 = vadd.f32 %v6593, %v6339
    %v6690 = vadd.f32 %v6594, %v6397
    %v6691 = vadd.f32 %v6595, %v6341
    %v6692 = vadd.f32 %v6596, %v6399
    %v6693 = vadd.f32 %v6677, %v6661
    %v6694 = vadd.f32 %v6678, %v6662
    %v6695 = vadd.f32 %v6679, %v6663
    %v6696 = vadd.f32 %v6680, %v6664
    %v6697 = vadd.f32 %v6681, %v6665
    %v6698 = vadd.f32 %v6682, %v6666
    %v6699 = vadd.f32 %v6683, %v6667
    %v6700 = vadd.f32 %v6684, %v6668
    %v6701 = vadd.f32 %v6685, %v6669
    %v6702 = vadd.f32 %v6686, %v6670
    %v6703 = vadd.f32 %v6687, %v6671
    %v6704 = vadd.f32 %v6688, %v6672
    %v6705 = vadd.f32 %v6689, %v6673
    %v6706 = vadd.f32 %v6690, %v6674
    %v6707 = vadd.f32 %v6691, %v6675
    %v6708 = vadd.f32 %v6692, %v6676
    %v6709 = vadd.f32 %v6693, %v6695
    %v6710 = vadd.f32 %v6709, %v6697
    %v6711 = vadd.f32 %v6710, %v6699
    %v6712 = vadd.f32 %v6711, %v6701
    %v6713 = vadd.f32 %v6712, %v6703
    %v6714 = vadd.f32 %v6713, %v6705
    %v6715 = vadd.f32 %v6714, %v6707
    %v6716 = vrot.slane %v6715, 4
    %v6717 = vadd.f32 %v6715, %v6716
    %v6718 = vrot.slane %v6717, 2
    %v6719 = vadd.f32 %v6717, %v6718
    %v6720 = vrot.slane %v6719, 1
    %v6721 = vadd.f32 %v6719, %v6720
    %v6722 = vadd.f32 %v6694, %v6696
    %v6723 = vadd.f32 %v6722, %v6698
    %v6724 = vadd.f32 %v6723, %v6700
    %v6725 = vadd.f32 %v6724, %v6702
    %v6726 = vadd.f32 %v6725, %v6704
    %v6727 = vadd.f32 %v6726, %v6706
    %v6728 = vadd.f32 %v6727, %v6708
    %v6729 = vrot.slane %v6728, 4
    %v6730 = vadd.f32 %v6728, %v6729
    %v6731 = vrot.slane %v6730, 2
    %v6732 = vadd.f32 %v6730, %v6731
    %v6733 = vrot.slane %v6732, 1
    %v6734 = vadd.f32 %v6732, %v6733
    %v6735 = vmul.f32 %v6693, %v6693
    %v6736 = vmul.f32 %v6694, %v6694
    %v6737 = vmul.f32 %v6695, %v6695
    %v6738 = vmul.f32 %v6696, %v6696
    %v6739 = vmul.f32 %v6697, %v6697
    %v6740 = vmul.f32 %v6698, %v6698
    %v6741 = vmul.f32 %v6699, %v6699
    %v6742 = vmul.f32 %v6700, %v6700
    %v6743 = vmul.f32 %v6701, %v6701
    %v6744 = vmul.f32 %v6702, %v6702
    %v6745 = vmul.f32 %v6703, %v6703
    %v6746 = vmul.f32 %v6704, %v6704
    %v6747 = vmul.f32 %v6705, %v6705
    %v6748 = vmul.f32 %v6706, %v6706
    %v6749 = vmul.f32 %v6707, %v6707
    %v6750 = vmul.f32 %v6708, %v6708
    %v6751 = vadd.f32 %v6735, %v6737
    %v6752 = vadd.f32 %v6751, %v6739
    %v6753 = vadd.f32 %v6752, %v6741
    %v6754 = vadd.f32 %v6753, %v6743
    %v6755 = vadd.f32 %v6754, %v6745
    %v6756 = vadd.f32 %v6755, %v6747
    %v6757 = vadd.f32 %v6756, %v6749
    %v6758 = vrot.slane %v6757, 4
    %v6759 = vadd.f32 %v6757, %v6758
    %v6760 = vrot.slane %v6759, 2
    %v6761 = vadd.f32 %v6759, %v6760
    %v6762 = vrot.slane %v6761, 1
    %v6763 = vadd.f32 %v6761, %v6762
    %v6764 = vadd.f32 %v6736, %v6738
    %v6765 = vadd.f32 %v6764, %v6740
    %v6766 = vadd.f32 %v6765, %v6742
    %v6767 = vadd.f32 %v6766, %v6744
    %v6768 = vadd.f32 %v6767, %v6746
    %v6769 = vadd.f32 %v6768, %v6748
    %v6770 = vadd.f32 %v6769, %v6750
    %v6771 = vrot.slane %v6770, 4
    %v6772 = vadd.f32 %v6770, %v6771
    %v6773 = vrot.slane %v6772, 2
    %v6774 = vadd.f32 %v6772, %v6773
    %v6775 = vrot.slane %v6774, 1
    %v6776 = vadd.f32 %v6774, %v6775
    %v6777 = vmul.f32 %v6721, 0.015625
    %v6778 = vmul.f32 %v6734, 0.015625
    %v6779 = vmul.f32 %v6763, 0.015625
    %v6780 = vmul.f32 %v6776, 0.015625
    %v6781 = vmul.f32 %v6777, %v6777
    %v6782 = vmul.f32 %v6778, %v6778
    %v6783 = vsub.f32 %v6779, %v6781
    %v6784 = vsub.f32 %v6780, %v6782
    %v6785 = vmax.f32 %v6783, 0.0
    %v6786 = vmax.f32 %v6784, 0.0
    %v6787 = vadd.f32 %v6785, 1e-05
    %v6788 = vadd.f32 %v6786, 1e-05
    %v6789 = vrsqrt.pop %v6787
    %v6790 = vmul.f32 %v6789, %v6787
    %v6791 = vmul.f32 %v6790, %v6789
    %v6792 = vmul.f32 0.5, %v6791
    %v6793 = vsub.f32 1.5, %v6792
    %v6794 = vmul.f32 %v6789, %v6793
    %vm6795 = vweird.f32 %v6787
    %vm6796 = vweird.f32 %v6789
    %vm6797 = vmor %vm6795, %vm6796
    %v6798 = vsel %vm6797, %v6789, %v6794
    %v6799 = vrsqrt.pop %v6788
    %v6800 = vmul.f32 %v6799, %v6788
    %v6801 = vmul.f32 %v6800, %v6799
    %v6802 = vmul.f32 0.5, %v6801
    %v6803 = vsub.f32 1.5, %v6802
    %v6804 = vmul.f32 %v6799, %v6803
    %vm6805 = vweird.f32 %v6788
    %vm6806 = vweird.f32 %v6799
    %vm6807 = vmor %vm6805, %vm6806
    %v6808 = vsel %vm6807, %v6799, %v6804
    %v6809 = vsub.f32 %v6693, %v6777
    %v6810 = vsub.f32 %v6694, %v6778
    %v6811 = vsub.f32 %v6695, %v6777
    %v6812 = vsub.f32 %v6696, %v6778
    %v6813 = vsub.f32 %v6697, %v6777
    %v6814 = vsub.f32 %v6698, %v6778
    %v6815 = vsub.f32 %v6699, %v6777
    %v6816 = vsub.f32 %v6700, %v6778
    %v6817 = vsub.f32 %v6701, %v6777
    %v6818 = vsub.f32 %v6702, %v6778
    %v6819 = vsub.f32 %v6703, %v6777
    %v6820 = vsub.f32 %v6704, %v6778
    %v6821 = vsub.f32 %v6705, %v6777
    %v6822 = vsub.f32 %v6706, %v6778
    %v6823 = vsub.f32 %v6707, %v6777
    %v6824 = vsub.f32 %v6708, %v6778
    %v6825 = vmul.f32 %v6809, %v6798
    %v6826 = vmul.f32 %v6810, %v6808
    %v6827 = vmul.f32 %v6811, %v6798
    %v6828 = vmul.f32 %v6812, %v6808
    %v6829 = vmul.f32 %v6813, %v6798
    %v6830 = vmul.f32 %v6814, %v6808
    %v6831 = vmul.f32 %v6815, %v6798
    %v6832 = vmul.f32 %v6816, %v6808
    %v6833 = vmul.f32 %v6817, %v6798
    %v6834 = vmul.f32 %v6818, %v6808
    %v6835 = vmul.f32 %v6819, %v6798
    %v6836 = vmul.f32 %v6820, %v6808
    %v6837 = vmul.f32 %v6821, %v6798
    %v6838 = vmul.f32 %v6822, %v6808
    %v6839 = vmul.f32 %v6823, %v6798
    %v6840 = vmul.f32 %v6824, %v6808
    %v6841 = vmax.f32 %v6825, 0.0
    %v6842 = vmax.f32 %v6826, 0.0
    %v6843 = vmax.f32 %v6827, 0.0
    %v6844 = vmax.f32 %v6828, 0.0
    %v6845 = vmax.f32 %v6829, 0.0
    %v6846 = vmax.f32 %v6830, 0.0
    %v6847 = vmax.f32 %v6831, 0.0
    %v6848 = vmax.f32 %v6832, 0.0
    %v6849 = vmax.f32 %v6833, 0.0
    %v6850 = vmax.f32 %v6834, 0.0
    %v6851 = vmax.f32 %v6835, 0.0
    %v6852 = vmax.f32 %v6836, 0.0
    %v6853 = vmax.f32 %v6837, 0.0
    %v6854 = vmax.f32 %v6838, 0.0
    %v6855 = vmax.f32 %v6839, 0.0
    %v6856 = vmax.f32 %v6840, 0.0
    %v6857 = vld [vmem:[%s3] sm:$0xf]
    %v6858 = vld [vmem:[%s3 + $0x4] sm:$0xf]
    %v6859 = vld [vmem:[%s3 + $0x8] sm:$0xf]
    %v6860 = vld [vmem:[%s3 + $0xc] sm:$0xf]
    %v6861 = vld [vmem:[%s3 + $0x10] sm:$0xf]
    %v6862 = vld [vmem:[%s3 + $0x14] sm:$0xf]
    %v6863 = vld [vmem:[%s3 + $0x18] sm:$0xf]
    %v6864 = vld [vmem:[%s3 + $0x1c] sm:$0xf]
    %v6865 = vpack.c.bf16 %v6843, %v6841
    %v6866 = vpack.c.bf16 %v6844, %v6842
    %v6867 = vpack.c.bf16 %v6847, %v6845
    %v6868 = vpack.c.bf16 %v6848, %v6846
    %v6869 = vpack.c.bf16 %v6851, %v6849
    %v6870 = vpack.c.bf16 %v6852, %v6850
    %v6871 = vpack.c.bf16 %v6855, %v6853
    %v6872 = vpack.c.bf16 %v6856, %v6854
    %v6881 = vunpack.c.l.b16 %v6857
    %v6882 = vunpack.c.l.b16 %v6858
    %v6883 = vunpack.c.l.b16 %v6859
    %v6884 = vunpack.c.l.b16 %v6860
    %v6885 = vunpack.c.l.b16 %v6861
    %v6886 = vunpack.c.l.b16 %v6862
    %v6887 = vunpack.c.l.b16 %v6863
    %v6888 = vunpack.c.l.b16 %v6864
    %v6889 = vpack.c.b16 %v6882, %v6881
    %v6890 = vpack.c.b16 %v6884, %v6883
    %v6891 = vpack.c.b16 %v6886, %v6885
    %v6892 = vpack.c.b16 %v6888, %v6887
    %v6894 = vsel %vm668, %v6889, 0
    %v6897 = vsel %vm668, %v6890, 0
    %v6900 = vsel %vm668, %v6891, 0
    %v6903 = vsel %vm668, %v6892, 0
    %6905 = vmatpush.bf16.msra.mxu0 0
    %6906 = vmatpush.bf16.msra.mxu0 0
    %6907 = vmatpush.bf16.msra.mxu0 0
    %6908 = vmatpush.bf16.msra.mxu0 0
    %6909 = vmatpush.bf16.msra.mxu0 %v6871
    %6910 = vmatpush.bf16.msra.mxu0 %v6869
    %6911 = vmatpush.bf16.msra.mxu0 %v6867
    %6912 = vmatpush.bf16.msra.mxu0 %v6865
    %6913 = vmatmul.bf16.gmra.mxu0 %v6894
    %v6914 = vpop.f32.mrf.mxu0
    %v6915 = vadd.f32 0.0, %v6914
    %v6916 = vpop.f32.mrf.mxu0
    %v6917 = vadd.f32 0.0, %v6916
    %6918 = vmatmul.bf16.gmra.mxu0 %v6897
    %v6919 = vpop.f32.mrf.mxu0
    %v6920 = vadd.f32 0.0, %v6919
    %v6921 = vpop.f32.mrf.mxu0
    %v6922 = vadd.f32 0.0, %v6921
    %6923 = vmatmul.bf16.gmra.mxu0 %v6900
    %v6924 = vpop.f32.mrf.mxu0
    %v6925 = vadd.f32 0.0, %v6924
    %v6926 = vpop.f32.mrf.mxu0
    %v6927 = vadd.f32 0.0, %v6926
    %6928 = vmatmul.bf16.gmra.mxu0 %v6903
    %v6929 = vpop.f32.mrf.mxu0
    %v6930 = vadd.f32 0.0, %v6929
    %v6931 = vpop.f32.mrf.mxu0
    %v6932 = vadd.f32 0.0, %v6931
    %6933 = vdwg.mxu0
    %6934 = vmatpush.bf16.msra.mxu0 0
    %6935 = vmatpush.bf16.msra.mxu0 0
    %6936 = vmatpush.bf16.msra.mxu0 0
    %6937 = vmatpush.bf16.msra.mxu0 0
    %6938 = vmatpush.bf16.msra.mxu0 %v6872
    %6939 = vmatpush.bf16.msra.mxu0 %v6870
    %6940 = vmatpush.bf16.msra.mxu0 %v6868
    %6941 = vmatpush.bf16.msra.mxu0 %v6866
    %6942 = vmatmul.bf16.gmra.mxu0 %v6894
    %v6943 = vpop.f32.mrf.mxu0
    %v6944 = vadd.f32 0.0, %v6943
    %v6945 = vpop.f32.mrf.mxu0
    %v6946 = vadd.f32 0.0, %v6945
    %6947 = vmatmul.bf16.gmra.mxu0 %v6897
    %v6948 = vpop.f32.mrf.mxu0
    %v6949 = vadd.f32 0.0, %v6948
    %v6950 = vpop.f32.mrf.mxu0
    %v6951 = vadd.f32 0.0, %v6950
    %6952 = vmatmul.bf16.gmra.mxu0 %v6900
    %v6953 = vpop.f32.mrf.mxu0
    %v6954 = vadd.f32 0.0, %v6953
    %v6955 = vpop.f32.mrf.mxu0
    %v6956 = vadd.f32 0.0, %v6955
    %6957 = vmatmul.bf16.gmra.mxu0 %v6903
    %v6958 = vpop.f32.mrf.mxu0
    %v6959 = vadd.f32 0.0, %v6958
    %v6960 = vpop.f32.mrf.mxu0
    %v6961 = vadd.f32 0.0, %v6960
    %6962 = vdwg.mxu0
    %v6963 = vmax.f32 %v6915, %v6925
    %v6964 = vmax.f32 %v6944, %v6954
    %v6965 = vmax.f32 %v6917, %v6927
    %v6966 = vmax.f32 %v6946, %v6956
    %v6967 = vmax.f32 %v6920, %v6930
    %v6968 = vmax.f32 %v6949, %v6959
    %v6969 = vmax.f32 %v6922, %v6932
    %v6970 = vmax.f32 %v6951, %v6961
    %v6971 = vmax.f32 %v6963, %v6965
    %v6972 = vrot.slane %v6971, 4
    %v6973 = vmax.f32 %v6971, %v6972
    %v6974 = vrot.slane %v6973, 2
    %v6975 = vmax.f32 %v6973, %v6974
    %v6976 = vrot.slane %v6975, 1
    %v6977 = vmax.f32 %v6975, %v6976
    %v6978 = vmax.f32 %v6964, %v6966
    %v6979 = vrot.slane %v6978, 4
    %v6980 = vmax.f32 %v6978, %v6979
    %v6981 = vrot.slane %v6980, 2
    %v6982 = vmax.f32 %v6980, %v6981
    %v6983 = vrot.slane %v6982, 1
    %v6984 = vmax.f32 %v6982, %v6983
    %v6985 = vmax.f32 %v6967, %v6969
    %v6986 = vrot.slane %v6985, 4
    %v6987 = vmax.f32 %v6985, %v6986
    %v6988 = vrot.slane %v6987, 2
    %v6989 = vmax.f32 %v6987, %v6988
    %v6990 = vrot.slane %v6989, 1
    %v6991 = vmax.f32 %v6989, %v6990
    %v6992 = vmax.f32 %v6968, %v6970
    %v6993 = vrot.slane %v6992, 4
    %v6994 = vmax.f32 %v6992, %v6993
    %v6995 = vrot.slane %v6994, 2
    %v6996 = vmax.f32 %v6994, %v6995
    %v6997 = vrot.slane %v6996, 1
    %v6998 = vmax.f32 %v6996, %v6997
    %v6999 = vpack.c.bf16 %v6977, %v6977
    %v7000 = vpack.c.bf16 %v6984, %v6984
    %v7001 = vpack.c.bf16 %v6991, %v6991
    %v7002 = vpack.c.bf16 %v6998, %v6998
    %v7003 = vld [vmem:[%s10] sm:$0xff]
    %v7004 = vld [vmem:[%s10 + $0x8] sm:$0xff]
    %v7005 = vld [vmem:[%s10 + $0x10] sm:$0xff]
    %v7006 = vld [vmem:[%s10 + $0x18] sm:$0xff]
    %v7007 = vld [vmem:[%s10 + $0x20] sm:$0xff]
    %v7008 = vld [vmem:[%s10 + $0x28] sm:$0xff]
    %v7009 = vld [vmem:[%s10 + $0x30] sm:$0xff]
    %v7010 = vld [vmem:[%s10 + $0x38] sm:$0xff]
    %v7011 = vld [vmem:[%s10 + $0x40] sm:$0xff]
    %v7012 = vld [vmem:[%s10 + $0x48] sm:$0xff]
    %v7013 = vld [vmem:[%s10 + $0x50] sm:$0xff]
    %v7014 = vld [vmem:[%s10 + $0x58] sm:$0xff]
    %v7015 = vld [vmem:[%s10 + $0x60] sm:$0xff]
    %v7016 = vld [vmem:[%s10 + $0x68] sm:$0xff]
    %v7017 = vld [vmem:[%s10 + $0x70] sm:$0xff]
    %v7018 = vld [vmem:[%s10 + $0x78] sm:$0xff]
    %v7019 = vld [vmem:[%s10 + $0x80] sm:$0xff]
    %v7020 = vld [vmem:[%s10 + $0x88] sm:$0xff]
    %v7021 = vld [vmem:[%s10 + $0x90] sm:$0xff]
    %v7022 = vld [vmem:[%s10 + $0x98] sm:$0xff]
    %v7023 = vld [vmem:[%s10 + $0xa0] sm:$0xff]
    %v7024 = vld [vmem:[%s10 + $0xa8] sm:$0xff]
    %v7025 = vld [vmem:[%s10 + $0xb0] sm:$0xff]
    %v7026 = vld [vmem:[%s10 + $0xb8] sm:$0xff]
    %v7027 = vld [vmem:[%s10 + $0xc0] sm:$0xff]
    %v7028 = vld [vmem:[%s10 + $0xc8] sm:$0xff]
    %v7029 = vld [vmem:[%s10 + $0xd0] sm:$0xff]
    %v7030 = vld [vmem:[%s10 + $0xd8] sm:$0xff]
    %v7031 = vld [vmem:[%s10 + $0xe0] sm:$0xff]
    %v7032 = vld [vmem:[%s10 + $0xe8] sm:$0xff]
    %v7033 = vld [vmem:[%s10 + $0xf0] sm:$0xff]
    %v7034 = vld [vmem:[%s10 + $0xf8] sm:$0xff]
    %v7035 = vld [vmem:[%s11] sm:$0x3]
    %v7037 = vperm.slane %v7035, 0
    %v7038 = vperm.slane %v7035, 1
    %v7045 = vunpack.c.l.b16 %v6999
    %v7046 = vunpack.c.l.b16 %v7000
    %v7047 = vunpack.c.l.b16 %v7001
    %v7048 = vunpack.c.l.b16 %v7002
    %vm7049 = vcmask 1041409
    %v7050 = vsel %vm7049, %v7047, %v7045
    %v7051 = vsel %vm7049, %v7048, %v7046
    %v7052 = vpack.c.b16 %v7050, %v7050
    %v7053 = vpack.c.b16 %v7051, %v7051
    %v7088 = vunpack.c.l.b16 %v7003
    %v7089 = vunpack.c.h.b16 %v7003
    %v7090 = vunpack.c.l.b16 %v7004
    %v7091 = vunpack.c.h.b16 %v7004
    %v7092 = vunpack.c.l.b16 %v7005
    %v7093 = vunpack.c.h.b16 %v7005
    %v7094 = vunpack.c.l.b16 %v7006
    %v7095 = vunpack.c.h.b16 %v7006
    %v7096 = vunpack.c.l.b16 %v7007
    %v7097 = vunpack.c.h.b16 %v7007
    %v7098 = vunpack.c.l.b16 %v7008
    %v7099 = vunpack.c.h.b16 %v7008
    %v7100 = vunpack.c.l.b16 %v7009
    %v7101 = vunpack.c.h.b16 %v7009
    %v7102 = vunpack.c.l.b16 %v7010
    %v7103 = vunpack.c.h.b16 %v7010
    %v7104 = vunpack.c.l.b16 %v7011
    %v7105 = vunpack.c.h.b16 %v7011
    %v7106 = vunpack.c.l.b16 %v7012
    %v7107 = vunpack.c.h.b16 %v7012
    %v7108 = vunpack.c.l.b16 %v7013
    %v7109 = vunpack.c.h.b16 %v7013
    %v7110 = vunpack.c.l.b16 %v7014
    %v7111 = vunpack.c.h.b16 %v7014
    %v7112 = vunpack.c.l.b16 %v7015
    %v7113 = vunpack.c.h.b16 %v7015
    %v7114 = vunpack.c.l.b16 %v7016
    %v7115 = vunpack.c.h.b16 %v7016
    %v7116 = vunpack.c.l.b16 %v7017
    %v7117 = vunpack.c.h.b16 %v7017
    %v7118 = vunpack.c.l.b16 %v7018
    %v7119 = vunpack.c.h.b16 %v7018
    %v7120 = vunpack.c.l.b16 %v7019
    %v7121 = vunpack.c.h.b16 %v7019
    %v7122 = vunpack.c.l.b16 %v7020
    %v7123 = vunpack.c.h.b16 %v7020
    %v7124 = vunpack.c.l.b16 %v7021
    %v7125 = vunpack.c.h.b16 %v7021
    %v7126 = vunpack.c.l.b16 %v7022
    %v7127 = vunpack.c.h.b16 %v7022
    %v7128 = vunpack.c.l.b16 %v7023
    %v7129 = vunpack.c.h.b16 %v7023
    %v7130 = vunpack.c.l.b16 %v7024
    %v7131 = vunpack.c.h.b16 %v7024
    %v7132 = vunpack.c.l.b16 %v7025
    %v7133 = vunpack.c.h.b16 %v7025
    %v7134 = vunpack.c.l.b16 %v7026
    %v7135 = vunpack.c.h.b16 %v7026
    %v7136 = vunpack.c.l.b16 %v7027
    %v7137 = vunpack.c.h.b16 %v7027
    %v7138 = vunpack.c.l.b16 %v7028
    %v7139 = vunpack.c.h.b16 %v7028
    %v7140 = vunpack.c.l.b16 %v7029
    %v7141 = vunpack.c.h.b16 %v7029
    %v7142 = vunpack.c.l.b16 %v7030
    %v7143 = vunpack.c.h.b16 %v7030
    %v7144 = vunpack.c.l.b16 %v7031
    %v7145 = vunpack.c.h.b16 %v7031
    %v7146 = vunpack.c.l.b16 %v7032
    %v7147 = vunpack.c.h.b16 %v7032
    %v7148 = vunpack.c.l.b16 %v7033
    %v7149 = vunpack.c.h.b16 %v7033
    %v7150 = vunpack.c.l.b16 %v7034
    %v7151 = vunpack.c.h.b16 %v7034
    %v7152 = vpack.c.b16 %v7090, %v7088
    %v7153 = vpack.c.b16 %v7091, %v7089
    %v7154 = vpack.c.b16 %v7094, %v7092
    %v7155 = vpack.c.b16 %v7095, %v7093
    %v7156 = vpack.c.b16 %v7098, %v7096
    %v7157 = vpack.c.b16 %v7099, %v7097
    %v7158 = vpack.c.b16 %v7102, %v7100
    %v7159 = vpack.c.b16 %v7103, %v7101
    %v7160 = vpack.c.b16 %v7106, %v7104
    %v7161 = vpack.c.b16 %v7107, %v7105
    %v7162 = vpack.c.b16 %v7110, %v7108
    %v7163 = vpack.c.b16 %v7111, %v7109
    %v7164 = vpack.c.b16 %v7114, %v7112
    %v7165 = vpack.c.b16 %v7115, %v7113
    %v7166 = vpack.c.b16 %v7118, %v7116
    %v7167 = vpack.c.b16 %v7119, %v7117
    %v7168 = vpack.c.b16 %v7122, %v7120
    %v7169 = vpack.c.b16 %v7123, %v7121
    %v7170 = vpack.c.b16 %v7126, %v7124
    %v7171 = vpack.c.b16 %v7127, %v7125
    %v7172 = vpack.c.b16 %v7130, %v7128
    %v7173 = vpack.c.b16 %v7131, %v7129
    %v7174 = vpack.c.b16 %v7134, %v7132
    %v7175 = vpack.c.b16 %v7135, %v7133
    %v7176 = vpack.c.b16 %v7138, %v7136
    %v7177 = vpack.c.b16 %v7139, %v7137
    %v7178 = vpack.c.b16 %v7142, %v7140
    %v7179 = vpack.c.b16 %v7143, %v7141
    %v7180 = vpack.c.b16 %v7146, %v7144
    %v7181 = vpack.c.b16 %v7147, %v7145
    %v7182 = vpack.c.b16 %v7150, %v7148
    %v7183 = vpack.c.b16 %v7151, %v7149
    %7216 = vmatpush.bf16.msra.mxu0 %v7166
    %7217 = vmatpush.bf16.msra.mxu0 %v7164
    %7218 = vmatpush.bf16.msra.mxu0 %v7162
    %7219 = vmatpush.bf16.msra.mxu0 %v7160
    %7220 = vmatpush.bf16.msra.mxu0 %v7158
    %7221 = vmatpush.bf16.msra.mxu0 %v7156
    %7222 = vmatpush.bf16.msra.mxu0 %v7154
    %7223 = vmatpush.bf16.msra.mxu0 %v7152
    %7224 = vmatmul.bf16.gmra.mxu0 %v7052
    %v7225 = vpop.f32.mrf.mxu0
    %v7226 = vadd.f32 %v7037, %v7225
    %v7227 = vpop.f32.mrf.mxu0
    %7228 = vdwg.mxu0
    %7229 = vmatpush.bf16.msra.mxu0 %v7182
    %7230 = vmatpush.bf16.msra.mxu0 %v7180
    %7231 = vmatpush.bf16.msra.mxu0 %v7178
    %7232 = vmatpush.bf16.msra.mxu0 %v7176
    %7233 = vmatpush.bf16.msra.mxu0 %v7174
    %7234 = vmatpush.bf16.msra.mxu0 %v7172
    %7235 = vmatpush.bf16.msra.mxu0 %v7170
    %7236 = vmatpush.bf16.msra.mxu0 %v7168
    %7237 = vmatmul.bf16.gmra.mxu0 %v7053
    %v7238 = vpop.f32.mrf.mxu0
    %v7239 = vadd.f32 %v7226, %v7238
    %v7240 = vpop.f32.mrf.mxu0
    %7241 = vdwg.mxu0
    %7242 = vmatpush.bf16.msra.mxu0 %v7167
    %7243 = vmatpush.bf16.msra.mxu0 %v7165
    %7244 = vmatpush.bf16.msra.mxu0 %v7163
    %7245 = vmatpush.bf16.msra.mxu0 %v7161
    %7246 = vmatpush.bf16.msra.mxu0 %v7159
    %7247 = vmatpush.bf16.msra.mxu0 %v7157
    %7248 = vmatpush.bf16.msra.mxu0 %v7155
    %7249 = vmatpush.bf16.msra.mxu0 %v7153
    %7250 = vmatmul.bf16.gmra.mxu0 %v7052
    %v7251 = vpop.f32.mrf.mxu0
    %v7252 = vadd.f32 %v7038, %v7251
    %v7253 = vpop.f32.mrf.mxu0
    %7254 = vdwg.mxu0
    %7255 = vmatpush.bf16.msra.mxu0 %v7183
    %7256 = vmatpush.bf16.msra.mxu0 %v7181
    %7257 = vmatpush.bf16.msra.mxu0 %v7179
    %7258 = vmatpush.bf16.msra.mxu0 %v7177
    %7259 = vmatpush.bf16.msra.mxu0 %v7175
    %7260 = vmatpush.bf16.msra.mxu0 %v7173
    %7261 = vmatpush.bf16.msra.mxu0 %v7171
    %7262 = vmatpush.bf16.msra.mxu0 %v7169
    %7263 = vmatmul.bf16.gmra.mxu0 %v7053
    %v7264 = vpop.f32.mrf.mxu0
    %v7265 = vadd.f32 %v7252, %v7264
    %v7266 = vpop.f32.mrf.mxu0
    %7267 = vdwg.mxu0
    %v7268 = vmax.f32 %v7239, 0.0
    %v7269 = vmax.f32 %v7265, 0.0
    %v7270 = vld [vmem:[%s12] sm:$0xf]
    %v7271 = vld [vmem:[%s12 + $0x4] sm:$0xf]
    %v7272 = vld [vmem:[%s12 + $0x8] sm:$0xf]
    %v7273 = vld [vmem:[%s12 + $0xc] sm:$0xf]
    %v7274 = vld [vmem:[%s12 + $0x10] sm:$0xf]
    %v7275 = vld [vmem:[%s12 + $0x14] sm:$0xf]
    %v7276 = vld [vmem:[%s12 + $0x18] sm:$0xf]
    %v7277 = vld [vmem:[%s12 + $0x1c] sm:$0xf]
    %v7278 = vld [vmem:[%s12 + $0x20] sm:$0xf]
    %v7279 = vld [vmem:[%s12 + $0x24] sm:$0xf]
    %v7280 = vld [vmem:[%s12 + $0x28] sm:$0xf]
    %v7281 = vld [vmem:[%s12 + $0x2c] sm:$0xf]
    %v7282 = vld [vmem:[%s12 + $0x30] sm:$0xf]
    %v7283 = vld [vmem:[%s12 + $0x34] sm:$0xf]
    %v7284 = vld [vmem:[%s12 + $0x38] sm:$0xf]
    %v7285 = vld [vmem:[%s12 + $0x3c] sm:$0xf]
    %v7286 = vld [vmem:[%s12 + $0x40] sm:$0xf]
    %v7287 = vld [vmem:[%s12 + $0x44] sm:$0xf]
    %v7288 = vld [vmem:[%s12 + $0x48] sm:$0xf]
    %v7289 = vld [vmem:[%s12 + $0x4c] sm:$0xf]
    %v7290 = vld [vmem:[%s12 + $0x50] sm:$0xf]
    %v7291 = vld [vmem:[%s12 + $0x54] sm:$0xf]
    %v7292 = vld [vmem:[%s12 + $0x58] sm:$0xf]
    %v7293 = vld [vmem:[%s12 + $0x5c] sm:$0xf]
    %v7294 = vld [vmem:[%s12 + $0x60] sm:$0xf]
    %v7295 = vld [vmem:[%s12 + $0x64] sm:$0xf]
    %v7296 = vld [vmem:[%s12 + $0x68] sm:$0xf]
    %v7297 = vld [vmem:[%s12 + $0x6c] sm:$0xf]
    %v7298 = vld [vmem:[%s12 + $0x70] sm:$0xf]
    %v7299 = vld [vmem:[%s12 + $0x74] sm:$0xf]
    %v7300 = vld [vmem:[%s12 + $0x78] sm:$0xf]
    %v7301 = vld [vmem:[%s12 + $0x7c] sm:$0xf]
    %v7302 = vpack.c.bf16 %v7268, %v7268
    %v7303 = vpack.c.bf16 %v7269, %v7269
    %v7304 = vld [vmem:[%s13] sm:$0xf]
    %v7305 = vld [vmem:[%s13 + $0x4] sm:$0xf]
    %v7306 = vld [vmem:[%s13 + $0x8] sm:$0xf]
    %v7307 = vld [vmem:[%s13 + $0xc] sm:$0xf]
    %v7308 = vld [vmem:[%s13 + $0x10] sm:$0xf]
    %v7309 = vld [vmem:[%s13 + $0x14] sm:$0xf]
    %v7310 = vld [vmem:[%s13 + $0x18] sm:$0xf]
    %v7311 = vld [vmem:[%s13 + $0x1c] sm:$0xf]
    %v7312 = vld [vmem:[%s13 + $0x20] sm:$0xf]
    %v7313 = vld [vmem:[%s13 + $0x24] sm:$0xf]
    %v7314 = vld [vmem:[%s13 + $0x28] sm:$0xf]
    %v7315 = vld [vmem:[%s13 + $0x2c] sm:$0xf]
    %v7316 = vld [vmem:[%s13 + $0x30] sm:$0xf]
    %v7317 = vld [vmem:[%s13 + $0x34] sm:$0xf]
    %v7318 = vld [vmem:[%s13 + $0x38] sm:$0xf]
    %v7319 = vld [vmem:[%s13 + $0x3c] sm:$0xf]
    %v7320 = vld [vmem:[%s13 + $0x40] sm:$0xf]
    %v7321 = vld [vmem:[%s13 + $0x44] sm:$0xf]
    %v7322 = vld [vmem:[%s13 + $0x48] sm:$0xf]
    %v7323 = vld [vmem:[%s13 + $0x4c] sm:$0xf]
    %v7324 = vld [vmem:[%s13 + $0x50] sm:$0xf]
    %v7325 = vld [vmem:[%s13 + $0x54] sm:$0xf]
    %v7326 = vld [vmem:[%s13 + $0x58] sm:$0xf]
    %v7327 = vld [vmem:[%s13 + $0x5c] sm:$0xf]
    %v7328 = vld [vmem:[%s13 + $0x60] sm:$0xf]
    %v7329 = vld [vmem:[%s13 + $0x64] sm:$0xf]
    %v7330 = vld [vmem:[%s13 + $0x68] sm:$0xf]
    %v7331 = vld [vmem:[%s13 + $0x6c] sm:$0xf]
    %v7332 = vld [vmem:[%s13 + $0x70] sm:$0xf]
    %v7333 = vld [vmem:[%s13 + $0x74] sm:$0xf]
    %v7334 = vld [vmem:[%s13 + $0x78] sm:$0xf]
    %v7335 = vld [vmem:[%s13 + $0x7c] sm:$0xf]
    %v7368 = vunpack.c.l.b16 %v7304
    %v7369 = vunpack.c.l.b16 %v7305
    %v7370 = vunpack.c.l.b16 %v7306
    %v7371 = vunpack.c.l.b16 %v7307
    %v7372 = vunpack.c.l.b16 %v7308
    %v7373 = vunpack.c.l.b16 %v7309
    %v7374 = vunpack.c.l.b16 %v7310
    %v7375 = vunpack.c.l.b16 %v7311
    %v7376 = vunpack.c.l.b16 %v7312
    %v7377 = vunpack.c.l.b16 %v7313
    %v7378 = vunpack.c.l.b16 %v7314
    %v7379 = vunpack.c.l.b16 %v7315
    %v7380 = vunpack.c.l.b16 %v7316
    %v7381 = vunpack.c.l.b16 %v7317
    %v7382 = vunpack.c.l.b16 %v7318
    %v7383 = vunpack.c.l.b16 %v7319
    %v7384 = vunpack.c.l.b16 %v7320
    %v7385 = vunpack.c.l.b16 %v7321
    %v7386 = vunpack.c.l.b16 %v7322
    %v7387 = vunpack.c.l.b16 %v7323
    %v7388 = vunpack.c.l.b16 %v7324
    %v7389 = vunpack.c.l.b16 %v7325
    %v7390 = vunpack.c.l.b16 %v7326
    %v7391 = vunpack.c.l.b16 %v7327
    %v7392 = vunpack.c.l.b16 %v7328
    %v7393 = vunpack.c.l.b16 %v7329
    %v7394 = vunpack.c.l.b16 %v7330
    %v7395 = vunpack.c.l.b16 %v7331
    %v7396 = vunpack.c.l.b16 %v7332
    %v7397 = vunpack.c.l.b16 %v7333
    %v7398 = vunpack.c.l.b16 %v7334
    %v7399 = vunpack.c.l.b16 %v7335
    %v7400 = vpack.c.b16 %v7369, %v7368
    %v7401 = vpack.c.b16 %v7371, %v7370
    %v7402 = vpack.c.b16 %v7373, %v7372
    %v7403 = vpack.c.b16 %v7375, %v7374
    %v7404 = vpack.c.b16 %v7377, %v7376
    %v7405 = vpack.c.b16 %v7379, %v7378
    %v7406 = vpack.c.b16 %v7381, %v7380
    %v7407 = vpack.c.b16 %v7383, %v7382
    %v7408 = vpack.c.b16 %v7385, %v7384
    %v7409 = vpack.c.b16 %v7387, %v7386
    %v7410 = vpack.c.b16 %v7389, %v7388
    %v7411 = vpack.c.b16 %v7391, %v7390
    %v7412 = vpack.c.b16 %v7393, %v7392
    %v7413 = vpack.c.b16 %v7395, %v7394
    %v7414 = vpack.c.b16 %v7397, %v7396
    %v7415 = vpack.c.b16 %v7399, %v7398
    %7432 = vmatpush.bf16.msra.mxu0 %v7407
    %7433 = vmatpush.bf16.msra.mxu0 %v7406
    %7434 = vmatpush.bf16.msra.mxu0 %v7405
    %7435 = vmatpush.bf16.msra.mxu0 %v7404
    %7436 = vmatpush.bf16.msra.mxu0 %v7403
    %7437 = vmatpush.bf16.msra.mxu0 %v7402
    %7438 = vmatpush.bf16.msra.mxu0 %v7401
    %7439 = vmatpush.bf16.msra.mxu0 %v7400
    %7440 = vmatmul.bf16.gmra.mxu0 %v7302
    %v7441 = vpop.f32.mrf.mxu0
    %v7442 = vadd.f32 0.0, %v7441
    %v7443 = vpop.f32.mrf.mxu0
    %7444 = vdwg.mxu0
    %7445 = vmatpush.bf16.msra.mxu0 %v7415
    %7446 = vmatpush.bf16.msra.mxu0 %v7414
    %7447 = vmatpush.bf16.msra.mxu0 %v7413
    %7448 = vmatpush.bf16.msra.mxu0 %v7412
    %7449 = vmatpush.bf16.msra.mxu0 %v7411
    %7450 = vmatpush.bf16.msra.mxu0 %v7410
    %7451 = vmatpush.bf16.msra.mxu0 %v7409
    %7452 = vmatpush.bf16.msra.mxu0 %v7408
    %7453 = vmatmul.bf16.gmra.mxu0 %v7303
    %v7454 = vpop.f32.mrf.mxu0
    %v7455 = vadd.f32 %v7442, %v7454
    %v7456 = vpop.f32.mrf.mxu0
    %7457 = vdwg.mxu0
    %v7490 = vunpack.c.l.b16 %v7270
    %v7491 = vunpack.c.l.b16 %v7271
    %v7492 = vunpack.c.l.b16 %v7272
    %v7493 = vunpack.c.l.b16 %v7273
    %v7494 = vunpack.c.l.b16 %v7274
    %v7495 = vunpack.c.l.b16 %v7275
    %v7496 = vunpack.c.l.b16 %v7276
    %v7497 = vunpack.c.l.b16 %v7277
    %v7498 = vunpack.c.l.b16 %v7278
    %v7499 = vunpack.c.l.b16 %v7279
    %v7500 = vunpack.c.l.b16 %v7280
    %v7501 = vunpack.c.l.b16 %v7281
    %v7502 = vunpack.c.l.b16 %v7282
    %v7503 = vunpack.c.l.b16 %v7283
    %v7504 = vunpack.c.l.b16 %v7284
    %v7505 = vunpack.c.l.b16 %v7285
    %v7506 = vunpack.c.l.b16 %v7286
    %v7507 = vunpack.c.l.b16 %v7287
    %v7508 = vunpack.c.l.b16 %v7288
    %v7509 = vunpack.c.l.b16 %v7289
    %v7510 = vunpack.c.l.b16 %v7290
    %v7511 = vunpack.c.l.b16 %v7291
    %v7512 = vunpack.c.l.b16 %v7292
    %v7513 = vunpack.c.l.b16 %v7293
    %v7514 = vunpack.c.l.b16 %v7294
    %v7515 = vunpack.c.l.b16 %v7295
    %v7516 = vunpack.c.l.b16 %v7296
    %v7517 = vunpack.c.l.b16 %v7297
    %v7518 = vunpack.c.l.b16 %v7298
    %v7519 = vunpack.c.l.b16 %v7299
    %v7520 = vunpack.c.l.b16 %v7300
    %v7521 = vunpack.c.l.b16 %v7301
    %v7522 = vpack.c.b16 %v7491, %v7490
    %v7523 = vpack.c.b16 %v7493, %v7492
    %v7524 = vpack.c.b16 %v7495, %v7494
    %v7525 = vpack.c.b16 %v7497, %v7496
    %v7526 = vpack.c.b16 %v7499, %v7498
    %v7527 = vpack.c.b16 %v7501, %v7500
    %v7528 = vpack.c.b16 %v7503, %v7502
    %v7529 = vpack.c.b16 %v7505, %v7504
    %v7530 = vpack.c.b16 %v7507, %v7506
    %v7531 = vpack.c.b16 %v7509, %v7508
    %v7532 = vpack.c.b16 %v7511, %v7510
    %v7533 = vpack.c.b16 %v7513, %v7512
    %v7534 = vpack.c.b16 %v7515, %v7514
    %v7535 = vpack.c.b16 %v7517, %v7516
    %v7536 = vpack.c.b16 %v7519, %v7518
    %v7537 = vpack.c.b16 %v7521, %v7520
    %7554 = vmatpush.bf16.msra.mxu0 %v7529
    %7555 = vmatpush.bf16.msra.mxu0 %v7528
    %7556 = vmatpush.bf16.msra.mxu0 %v7527
    %7557 = vmatpush.bf16.msra.mxu0 %v7526
    %7558 = vmatpush.bf16.msra.mxu0 %v7525
    %7559 = vmatpush.bf16.msra.mxu0 %v7524
    %7560 = vmatpush.bf16.msra.mxu0 %v7523
    %7561 = vmatpush.bf16.msra.mxu0 %v7522
    %7562 = vmatmul.bf16.gmra.mxu0 %v7052
    %v7563 = vpop.f32.mrf.mxu0
    %v7564 = vadd.f32 %v7455, %v7563
    %v7565 = vpop.f32.mrf.mxu0
    %7566 = vdwg.mxu0
    %7567 = vmatpush.bf16.msra.mxu0 %v7537
    %7568 = vmatpush.bf16.msra.mxu0 %v7536
    %7569 = vmatpush.bf16.msra.mxu0 %v7535
    %7570 = vmatpush.bf16.msra.mxu0 %v7534
    %7571 = vmatpush.bf16.msra.mxu0 %v7533
    %7572 = vmatpush.bf16.msra.mxu0 %v7532
    %7573 = vmatpush.bf16.msra.mxu0 %v7531
    %7574 = vmatpush.bf16.msra.mxu0 %v7530
    %7575 = vmatmul.bf16.gmra.mxu0 %v7053
    %v7576 = vpop.f32.mrf.mxu0
    %v7577 = vadd.f32 %v7564, %v7576
    %v7578 = vpop.f32.mrf.mxu0
    %7579 = vdwg.mxu0
    %v7580 = vld [vmem:[%s14] sm:$0x1]
    %v7582 = vperm.slane %v7580, 0
    %v7584 = vadd.f32 %v7577, %v7582
    %v7585 = vand.u32 2147483647, %v7584
    %v7586 = vsub.f32 0.0, %v7585
    %v7587 = vmul.f32 %v7586, 1.442695
    %v7588 = vpow.pop %v7587
    %vm7589 = vcmp.ge.f32.partialorder %v7584, 0.0
    %v7590 = vadd.f32 %v7588, 1.0
    %v7591 = vrcp.pop %v7590
    %v7592 = vmul.f32 %v7590, %v7591
    %v7593 = vsub.f32 1.0, %v7592
    %v7594 = vmul.f32 %v7591, %v7593
    %v7595 = vadd.f32 %v7591, %v7594
    %vm7596 = vweird.f32 %v7590
    %vm7597 = vweird.f32 %v7591
    %vm7598 = vmor %vm7596, %vm7597
    %v7599 = vsel %vm7598, %v7591, %v7595
    %v7600 = vand.u32 2147483647, %v7590
    %vm7601 = vcmp.eq.f32.partialorder %v7600, 8.507059e+37
    %v7602 = vand.u32 %v7590, 2147483648
    %v7603 = vor.u32 1.1754944e-38, %v7602
    %v7604 = vsel %vm7601, %v7603, %v7599
    %v7605 = vmul.f32 1.0, %v7604
    %v7606 = vmul.f32 %v7588, %v7604
    %v7607 = vsel %vm7589, %v7605, %v7606
    %vm7608 = vcmask 123904
    %7609 = vst.msk [vmem:[#allocation2] sm:$0x3] %vm7608, %v7607
    %v7614 = vrot.slane %v6984, 6
    %v7615 = vrot.slane %v6998, 6
    %vm7616 = vcmask 1041408
    %v7617 = vsel %vm7616, %v6977, %v7614
    %v7618 = vsel %vm7616, %v6991, %v7615
    %vm7619 = vcmask 1044484
    %v7620 = vsel %vm7619, %v7617, %v7617
    %vm7621 = vcmask 1046534
    %v7622 = vsel %vm7621, %v7617, %v7620
    %v7623 = vrot.slane %v7618, 7
    %v7624 = vsel %vm7049, %v7623, %v7622
    %vm7625 = vcmask 1043459
    %v7626 = vsel %vm7625, %v7623, %v7624
    %vm7627 = vcmask 1045509
    %v7628 = vsel %vm7627, %v7623, %v7626
    %vm7629 = vcmask 1047559
    %v7630 = vsel %vm7629, %v7623, %v7628
    %7632 = vst [vmem:[#allocation4] sm:$0xf] %v7630
    %v7635 = vrot.slane %v7269, 6
    %v7636 = vsel %vm7616, %v7268, %v7635
    %7638 = vst [vmem:[#allocation6] sm:$0xf] %v7636
    // Predicated region
    $region62: #{bytecode_net_forward.1} parent=1 // pred_check
      _
    $region63: #{bytecode_net_forward.1} parent=1 // pred_check_branch
      %7640 = sbr.rel (0) target = $region65
    $region64: #{bytecode_net_forward.1} parent=1 // pred_region
      %7642 = vsyncadd [#allocation3], 0
      %s7644 = sshll.u32 [#allocation2], 4
      %s7645 = int_to_ptr.vmem [resolvable:$true] %s7644
      %s7646 = sshll.u32 %s15, 4
      %s7647 = int_to_ptr.hbm [resolvable:$true] %s7646
      %7649 = dma.vmem_to_hbm [thread:$0]  %s7645, 32, %s7647, [#allocation3]
    $region65: #{bytecode_net_forward.1} parent=1 // pred_fallthru
      _
    // Predicated region
    $region66: #{bytecode_net_forward.1} parent=1 // pred_check
      _
    $region67: #{bytecode_net_forward.1} parent=1 // pred_check_branch
      %7651 = sbr.rel (0) target = $region69
    $region68: #{bytecode_net_forward.1} parent=1 // pred_region
      %7653 = vsyncadd [#allocation5], 0
      %s7655 = sshll.u32 [#allocation4], 4
      %s7656 = int_to_ptr.vmem [resolvable:$true] %s7655
      %s7657 = sshll.u32 %s16, 4
      %s7658 = int_to_ptr.hbm [resolvable:$true] %s7657
      %7660 = dma.vmem_to_hbm [thread:$0]  %s7656, 64, %s7658, [#allocation5]
    $region69: #{bytecode_net_forward.1} parent=1 // pred_fallthru
      _
    // Predicated region
    $region70: #{bytecode_net_forward.1} parent=1 // pred_check
      _
    $region71: #{bytecode_net_forward.1} parent=1 // pred_check_branch
      %7662 = sbr.rel (0) target = $region73
    $region72: #{bytecode_net_forward.1} parent=1 // pred_region
      %7664 = vsyncadd [#allocation5], 0
      %s7666 = sshll.u32 [#allocation6], 4
      %s7667 = int_to_ptr.vmem [resolvable:$true] %s7666
      %s7668 = sshll.u32 %s17, 4
      %s7669 = int_to_ptr.hbm [resolvable:$true] %s7668
      %7671 = dma.vmem_to_hbm [thread:$0]  %s7667, 64, %s7669, [#allocation5]
    $region73: #{bytecode_net_forward.1} parent=1 // pred_fallthru
      _
    // Predicated region
    $region74: #{bytecode_net_forward.1} parent=1 // pred_check
      _
    $region75: #{bytecode_net_forward.1} parent=1 // pred_check_branch
      %7673 = sbr.rel (0) target = $region77
    $region76: #{bytecode_net_forward.1} parent=1 // pred_region
      %7675 = dma.done [#allocation3], 32
    $region77: #{bytecode_net_forward.1} parent=1 // pred_fallthru
      _
    // Predicated region
    $region78: #{bytecode_net_forward.1} parent=1 // pred_check
      _
    $region79: #{bytecode_net_forward.1} parent=1 // pred_check_branch
      %7677 = sbr.rel (0) target = $region81
    $region80: #{bytecode_net_forward.1} parent=1 // pred_region
      %7679 = dma.done [#allocation5], 64
    $region81: #{bytecode_net_forward.1} parent=1 // pred_fallthru
      _
    // Predicated region
    $region82: #{bytecode_net_forward.1} parent=1 // pred_check
      _
    $region83: #{bytecode_net_forward.1} parent=1 // pred_check_branch
      %7681 = sbr.rel (0) target = $region85
    $region84: #{bytecode_net_forward.1} parent=1 // pred_region
      %7683 = dma.done [#allocation5], 64
    $region85: #{bytecode_net_forward.1} parent=1 // pred_fallthru
      _
    %7684 = vsyncpa [#allocation3], 1
    %7685 = vsyncpa [#allocation5], 1

</llo_original>
